<compile_context>
chip_gen: v7x
topology: tpu7x:2x2x1
jax: 0.10.0
libtpu: 0.0.40
codegen_flags: <defaults>
</compile_context>

<pallas_src>
import functools

import jax
import jax.numpy as jnp
from jax.experimental import pallas as pl
from jax.experimental.pallas import tpu as pltpu

_VMEM = pl.BlockSpec(memory_space=pltpu.MemorySpace.VMEM)

_CONV_CFG = ((3, 3, 16), (2, 16, 32), (2, 32, 64))   # (K, Cin, Cout) per conv layer
_OUT_W = 128                                          # lane-dense output slab width
_CIN_PAD = 8                                          # image channels zero-padded 3 -> 8


# ----------------------------- row bookkeeping ------------------------------

def _row_plan(batch, n, m):
    """Row counts for the padded whole-grid activation layout (row = b*n*m + h*m + w).
    Each layer is computed for a few extra (garbage) rows so the next layer's shifted row
    slices never run out of source rows; garbage rows never feed a valid output."""
    assert n >= 5 and m >= 5
    nrows = batch * n * m
    s_fc1 = (n - 5) * m + (m - 5)     # largest fc1 gather offset
    s_c23 = m + 1                     # largest 2x2-conv offset
    s_c1 = 2 * m + 2                  # largest 3x3-conv offset
    l3 = nrows + s_fc1                # conv3 output rows
    l2 = l3 + s_c23                   # conv2 output rows
    l1 = l2 + s_c23                   # conv1 output rows
    l0 = l1 + s_c1                    # padded input rows
    return l0, l1, l2, l3, nrows


# ----------------------------- Pallas kernel --------------------------------

def _shifted_matmul(src_ref, w_ref, shifts, out_rows):
    """sum_k src[s_k : s_k + out_rows, :] @ w[k], f32 accumulation (conv / fc1 gather)."""
    cdt = w_ref.dtype
    acc = None
    for k, s in enumerate(shifts):
        xs = src_ref[s:s + out_rows, :].astype(cdt)
        d = jnp.dot(xs, w_ref[k], preferred_element_type=jnp.float32)
        acc = d if acc is None else acc + d
    return acc


def _fused_forward_kernel(x_ref, w1_ref, w2_ref, w3_ref, wf1_ref, wf2_ref, wh_ref, b_ref,
                          out_ref, y1_ref, y2_ref, y3_ref, *, n_actions, batch, n, m):
    """Whole RNDPredModel forward.  Activations live on the padded (b,h,w) row grid; each
    conv is K*K tiny MXU matmuls over statically shifted row slices (real weights only, no
    dense banded expansion); fc1 is a (n-4)*(m-4)-way shifted matmul + exact iota row
    selection; fc2_val/fc2_act and the three heads are fused lane-dense matmuls."""
    A = n_actions
    _, l1, l2, l3, nrows = _row_plan(batch, n, m)

    sh_c1 = [a * m + c for a in range(3) for c in range(3)]            # 3x3 conv offsets
    sh_c2 = [a * m + c for a in range(2) for c in range(2)]            # 2x2 conv offsets
    sh_fc = [a * m + c for a in range(n - 4) for c in range(m - 4)]    # fc1 gather offsets

    # conv1/2/3, each with eval-mode BatchNorm folded into weight + bias, then ReLU.
    acc = _shifted_matmul(x_ref, w1_ref, sh_c1, l1)
    y1_ref[...] = jnp.maximum(acc + b_ref[0:1, 0:y1_ref.shape[-1]], 0.0)
    acc = _shifted_matmul(y1_ref, w2_ref, sh_c2, l2)
    y2_ref[...] = jnp.maximum(acc + b_ref[1:2, 0:y2_ref.shape[-1]], 0.0)
    acc = _shifted_matmul(y2_ref, w3_ref, sh_c2, l3)
    y3_ref[...] = jnp.maximum(acc + b_ref[2:3, 0:y3_ref.shape[-1]], 0.0)

    # fc1 (plain Linear, no ReLU).  PyTorch's NCHW flatten is folded into the per-position
    # weight slices; row b*n*m of `v` holds batch b's embedding.  Pick those rows with an
    # exact 0/1 selection matmul built from iota (no data-dependent gather needed).
    hidden = wf1_ref.shape[-1]
    v = _shifted_matmul(y3_ref, wf1_ref, sh_fc, nrows)
    col = jax.lax.broadcasted_iota(jnp.int32, (batch, nrows), 1)
    row = jax.lax.broadcasted_iota(jnp.int32, (batch, nrows), 0)
    sel = (col == row * (n * m)).astype(jnp.float32)
    emb = jnp.dot(sel, v, preferred_element_type=jnp.float32) + b_ref[3:4, 0:hidden]

    # fc2_val / fc2_act fused: h2 = [val || act]  (B, 2*mem), then ReLU.
    two_mem = wf2_ref.shape[-1]
    h2 = jnp.dot(emb.astype(wf2_ref.dtype), wf2_ref[...],
                 preferred_element_type=jnp.float32) + b_ref[4:5, 0:two_mem]
    h2 = jnp.maximum(h2, 0.0)

    # vf_ext / vf_int / pd fused into one lane-dense (2*mem, 128) matmul:
    #   cols [0, A) -> pd logits, col A -> vpred_ext, col A+1 -> vpred_int.
    big = jnp.dot(h2.astype(wh_ref.dtype), wh_ref[...],
                  preferred_element_type=jnp.float32) + b_ref[5:6, 0:_OUT_W]

    # log_softmax over the pd columns only (f32 stable LSE).  Cols >= A+2 are unspecified;
    # the wrapper never reads beyond col A+1.
    pd = big[:, :A]
    mx = jnp.max(pd, axis=1, keepdims=True)
    lse = mx + jnp.log(jnp.sum(jnp.exp(pd - mx), axis=1, keepdims=True))
    lane = jax.lax.broadcasted_iota(jnp.int32, big.shape, 1)
    out_ref[...] = jnp.where(lane < A, big - lse, big).astype(out_ref.dtype)


# ------------------------------ parameter prep ------------------------------

def init_raw_params(key, n=7, m=7, hidden=128, mem=128, n_actions=7):
    """Random parameters in PyTorch-equivalent layouts (Conv2d OIHW, Linear as (in, out))."""
    ks = jax.random.split(key, 32)
    it = iter(ks)

    def nrm(shape, scale=0.1):
        return scale * jax.random.normal(next(it), shape, jnp.float32)

    raw = {'convs': []}
    for K, cin, cout in _CONV_CFG:
        raw['convs'].append(dict(
            w=nrm((cout, cin, K, K)), b=nrm((cout,)),
            gamma=1.0 + nrm((cout,)), beta=nrm((cout,)),
            rmean=nrm((cout,)), rvar=1.0 + jnp.abs(nrm((cout,)))))
    emb_size = (n - 4) * (m - 4) * 64
    raw['fc1_w'] = nrm((emb_size, hidden)); raw['fc1_b'] = nrm((hidden,))
    raw['fc2_val_w'] = nrm((hidden, mem));  raw['fc2_val_b'] = nrm((mem,))
    raw['fc2_act_w'] = nrm((hidden, mem));  raw['fc2_act_b'] = nrm((mem,))
    raw['vf_w'] = nrm((mem, 2));            raw['vf_b'] = nrm((2,))   # col0=ext, col1=int
    raw['pd_w'] = nrm((mem, n_actions));    raw['pd_b'] = nrm((n_actions,))
    return raw


def prepare_params(raw, n=7, m=7, eps=1e-5, weight_dtype=jnp.bfloat16):
    """One-time (init) weight re-layout: fold eval-mode BN, stack per-shift conv weights,
    fold the NCHW flatten into fc1's per-position slices, fuse fc2_val/fc2_act, fuse the
    three heads into one lane-dense matrix, pack all biases into one f32 slab, and cast the
    matmul weights to `weight_dtype` (bf16 for the fast path)."""
    hidden = raw['fc1_w'].shape[1]
    mem = raw['fc2_val_w'].shape[1]
    n_actions = raw['pd_w'].shape[1]
    assert n_actions + 2 <= _OUT_W

    p = {}
    biases = []
    for li, (conv, (K, cin, cout)) in enumerate(zip(raw['convs'], _CONV_CFG), start=1):
        scale = conv['gamma'] / jnp.sqrt(conv['rvar'] + eps)
        wfold = jnp.transpose(conv['w'], (2, 3, 1, 0)) * scale          # (K,K,Cin,Cout)
        if li == 1 and cin < _CIN_PAD:                                  # free zero-pad to 8
            wfold = jnp.pad(wfold, ((0, 0), (0, 0), (0, _CIN_PAD - cin), (0, 0)))
            cin = _CIN_PAD
        p[f'conv{li}_w'] = wfold.reshape(K * K, cin, cout).astype(weight_dtype)
        biases.append((conv['b'] - conv['rmean']) * scale + conv['beta'])

    ho, wo = n - 4, m - 4
    c_last = _CONV_CFG[-1][2]
    # fc1: PyTorch NCHW flatten rows (c*ho*wo + h*wo + w) -> per-(h,w) (C, hidden) slices.
    wf1 = raw['fc1_w'].reshape(c_last, ho, wo, hidden)
    p['fc1_w'] = (jnp.transpose(wf1, (1, 2, 0, 3))
                  .reshape(ho * wo, c_last, hidden).astype(weight_dtype))
    biases.append(raw['fc1_b'])

    # fc2_val / fc2_act fused into a single (hidden, 2*mem) matmul.
    p['fc2_w'] = jnp.concatenate([raw['fc2_val_w'], raw['fc2_act_w']],
                                 axis=1).astype(weight_dtype)
    biases.append(jnp.concatenate([raw['fc2_val_b'], raw['fc2_act_b']]))

    # vf_ext / vf_int / pd fused into one (2*mem, 128) lane-dense matmul.
    A = n_actions
    wh = jnp.zeros((2 * mem, _OUT_W), jnp.float32)
    wh = wh.at[:mem, A:A + 2].set(raw['vf_w'])     # value heads read the 'val' half
    wh = wh.at[mem:, :A].set(raw['pd_w'])          # pd reads the 'act' half
    p['head_w'] = wh.astype(weight_dtype)
    bh = jnp.zeros((_OUT_W,), jnp.float32)
    bh = bh.at[:A].set(raw['pd_b']).at[A:A + 2].set(raw['vf_b'])
    biases.append(bh)

    # Pack the six bias vectors into ONE (8, width) f32 slab (row per layer).
    width = max(256, max(int(b.shape[0]) for b in biases))
    slab = jnp.zeros((8, width), jnp.float32)
    for r, b in enumerate(biases):
        slab = slab.at[r, :b.shape[0]].set(b)
    p['bias'] = slab
    return p


# ------------------------------- forward ------------------------------------

def _cost_estimate(params, batch, n, m, n_actions):
    l0, l1, l2, l3, nrows = _row_plan(batch, n, m)
    flops = 0
    for r, wname in zip((l1, l2, l3, nrows), ('conv1_w', 'conv2_w', 'conv3_w', 'fc1_w')):
        kk, cin, cout = params[wname].shape
        flops += 2 * r * kk * cin * cout
    flops += 2 * batch * nrows * params['fc1_w'].shape[-1]            # row selection
    flops += 2 * batch * params['fc2_w'].shape[0] * params['fc2_w'].shape[1]
    flops += 2 * batch * params['head_w'].shape[0] * params['head_w'].shape[1]
    bytes_accessed = (l0 * _CIN_PAD * 4 + batch * _OUT_W * 4
                      + sum(int(v.size) * int(v.dtype.itemsize) for v in params.values()))
    return pl.CostEstimate(flops=int(flops), transcendentals=int(batch * (n_actions + 1)),
                           bytes_accessed=int(bytes_accessed))


def rnd_models_forward(params, image, memory, *, n_actions):
    """RNDModels.forward == RNDPredModel.forward(obs, memory) with use_memory=use_text=False.
    One fused, gridless Pallas call; returns (log_probs, (vpred_ext, vpred_int), memory)."""
    B, n, m, cin = image.shape
    assert cin <= _CIN_PAD
    l0, l1, l2, l3, _ = _row_plan(B, n, m)

    # Whole-grid layout (row = b*n*m + h*m + w); zero-pad rows/channels (never reach a
    # valid output) so every in-kernel shifted slice is a plain static rectangle.
    x = image.astype(jnp.float32).reshape(B * n * m, cin)
    x = jnp.pad(x, ((0, l0 - B * n * m), (0, _CIN_PAD - cin)))

    args = (x,
            params['conv1_w'], params['conv2_w'], params['conv3_w'],
            params['fc1_w'], params['fc2_w'], params['head_w'], params['bias'])

    couts = [c[2] for c in _CONV_CFG]
    out = pl.pallas_call(
        functools.partial(_fused_forward_kernel, n_actions=n_actions, batch=B, n=n, m=m),
        out_shape=jax.ShapeDtypeStruct((B, _OUT_W), jnp.float32),
        in_specs=[_VMEM] * len(args),
        out_specs=_VMEM,
        scratch_shapes=[pltpu.VMEM((l1, couts[0]), jnp.float32),
                        pltpu.VMEM((l2, couts[1]), jnp.float32),
                        pltpu.VMEM((l3, couts[2]), jnp.float32)],
        cost_estimate=_cost_estimate(params, B, n, m, n_actions),
    )(*args)

    logp = out[:, :n_actions]
    vpred_ext = out[:, n_actions]
    vpred_int = out[:, n_actions + 1]
    return logp, (vpred_ext, vpred_int), memory       # memory untouched (use_memory=False)


# ------------------------- pure-JAX reference (check) ------------------------

def _reference_forward(raw, image, eps=1e-5):
    hp = jax.lax.Precision.HIGHEST
    x = image.astype(jnp.float32)                                   # NHWC
    for conv in raw['convs']:
        w = jnp.transpose(conv['w'], (2, 3, 1, 0))                  # OIHW -> HWIO
        x = jax.lax.conv_general_dilated(x, w, (1, 1), 'VALID',
                                         dimension_numbers=('NHWC', 'HWIO', 'NHWC'),
                                         precision=hp)
        x = x + conv['b']
        scale = conv['gamma'] / jnp.sqrt(conv['rvar'] + eps)
        x = (x - conv['rmean']) * scale + conv['beta']
        x = jnp.maximum(x, 0.0)
    B = x.shape[0]
    flat = jnp.transpose(x, (0, 3, 1, 2)).reshape(B, -1)            # PyTorch NCHW flatten
    emb = jnp.dot(flat, raw['fc1_w'], precision=hp) + raw['fc1_b']
    val = jnp.maximum(jnp.dot(emb, raw['fc2_val_w'], precision=hp) + raw['fc2_val_b'], 0.0)
    act = jnp.maximum(jnp.dot(emb, raw['fc2_act_w'], precision=hp) + raw['fc2_act_b'], 0.0)
    v = jnp.dot(val, raw['vf_w'], precision=hp) + raw['vf_b']
    pd = jnp.dot(act, raw['pd_w'], precision=hp) + raw['pd_b']
    return jax.nn.log_softmax(pd, axis=1), v[:, 0], v[:, 1]


# --------------------------------- main --------------------------------------

if __name__ == "__main__":
    key = jax.random.PRNGKey(0)
    kp, kx = jax.random.split(key)
    B, n, m, n_actions, mem_dim, hidden = 2, 7, 7, 7, 128, 128

    raw = init_raw_params(kp, n=n, m=m, hidden=hidden, mem=mem_dim, n_actions=n_actions)
    image = jax.random.uniform(kx, (B, n, m, 3), dtype=jnp.float32)
    memory = jnp.zeros((B, mem_dim), dtype=jnp.float32)

    fwd = jax.jit(functools.partial(rnd_models_forward, n_actions=n_actions))
    logp_ref, vext_ref, vint_ref = _reference_forward(raw, image)

    # (1) f32-weight run: tight check that the restructured kernel matches the module.
    params_f32 = prepare_params(raw, n=n, m=m, weight_dtype=jnp.float32)
    logp32, (vext32, vint32), _ = jax.block_until_ready(fwd(params_f32, image, memory))
    assert bool(jnp.allclose(logp32, logp_ref, atol=2e-3, rtol=2e-3))
    assert bool(jnp.allclose(vext32, vext_ref, atol=2e-3, rtol=2e-3))
    assert bool(jnp.allclose(vint32, vint_ref, atol=2e-3, rtol=2e-3))

    # (2) bf16-weight run: the DMA-optimized fast path (production configuration).
    params = prepare_params(raw, n=n, m=m, weight_dtype=jnp.bfloat16)
    logp, (vext, vint), mem_out = fwd(params, image, memory)
    jax.block_until_ready((logp, vext, vint, mem_out))

    assert logp.shape == (B, n_actions)
    assert vext.shape == (B,) and vint.shape == (B,)
    assert mem_out.shape == (B, mem_dim)
    assert bool(jnp.all(jnp.isfinite(logp)))
    assert bool(jnp.allclose(jnp.sum(jnp.exp(logp), axis=1), 1.0, atol=1e-5))
    assert bool(jnp.allclose(logp, logp_ref, atol=3e-2, rtol=3e-2))
    assert bool(jnp.allclose(vext, vext_ref, atol=3e-2, rtol=3e-2))
    assert bool(jnp.allclose(vint, vint_ref, atol=3e-2, rtol=3e-2))

    print("KERNEL_OK")
</pallas_src>

<mosaic_0001>
module attributes {stable_mosaic.version = 11 : i64} {
  func.func @_fused_forward_kernel(%arg0: memref<146x8xf32, #tpu.memory_space<vmem>>, %arg1: memref<9x8x16xf32, #tpu.memory_space<vmem>>, %arg2: memref<4x16x32xf32, #tpu.memory_space<vmem>>, %arg3: memref<4x32x64xf32, #tpu.memory_space<vmem>>, %arg4: memref<9x64x128xf32, #tpu.memory_space<vmem>>, %arg5: memref<128x256xf32, #tpu.memory_space<vmem>>, %arg6: memref<256x128xf32, #tpu.memory_space<vmem>>, %arg7: memref<8x256xf32, #tpu.memory_space<vmem>>, %arg8: memref<2x128xf32, #tpu.memory_space<vmem>>, %arg9: memref<130x16xf32, #tpu.memory_space<vmem>>, %arg10: memref<122x32xf32, #tpu.memory_space<vmem>>, %arg11: memref<114x64xf32, #tpu.memory_space<vmem>>) attributes {dimension_semantics = [], scalar_prefetch = 0 : i64, scratch_operands = 3 : i64, tpu.core_type = #tpu.core_type<tc>} {
    %c0 = arith.constant 0 : index
    %c0_0 = arith.constant 0 : index
    %0 = vector.load %arg0[%c0, %c0_0] : memref<146x8xf32, #tpu.memory_space<vmem>>, vector<130x8xf32>
    %c0_1 = arith.constant 0 : index
    %c0_2 = arith.constant 0 : index
    %c0_3 = arith.constant 0 : index
    %1 = vector.load %arg1[%c0_1, %c0_2, %c0_3] : memref<9x8x16xf32, #tpu.memory_space<vmem>>, vector<1x8x16xf32>
    %2 = vector.shape_cast %1 : vector<1x8x16xf32> to vector<8x16xf32>
    %cst = arith.constant dense<0.000000e+00> : vector<130x16xf32>
    %3 = tpu.matmul %0, %2, %cst {dimension_numbers = #tpu.dot_dimension_numbers<[1], [0], [0], [1], [0, 0, 1, 1], [], []>} : vector<130x8xf32>, vector<8x16xf32>, vector<130x16xf32> -> vector<130x16xf32>
    %c1 = arith.constant 1 : index
    %c0_4 = arith.constant 0 : index
    %4 = vector.load %arg0[%c1, %c0_4] : memref<146x8xf32, #tpu.memory_space<vmem>>, vector<130x8xf32>
    %c1_5 = arith.constant 1 : index
    %c0_6 = arith.constant 0 : index
    %c0_7 = arith.constant 0 : index
    %5 = vector.load %arg1[%c1_5, %c0_6, %c0_7] : memref<9x8x16xf32, #tpu.memory_space<vmem>>, vector<1x8x16xf32>
    %6 = vector.shape_cast %5 : vector<1x8x16xf32> to vector<8x16xf32>
    %cst_8 = arith.constant dense<0.000000e+00> : vector<130x16xf32>
    %7 = tpu.matmul %4, %6, %cst_8 {dimension_numbers = #tpu.dot_dimension_numbers<[1], [0], [0], [1], [0, 0, 1, 1], [], []>} : vector<130x8xf32>, vector<8x16xf32>, vector<130x16xf32> -> vector<130x16xf32>
    %8 = arith.addf %3, %7 : vector<130x16xf32>
    %c2 = arith.constant 2 : index
    %c0_9 = arith.constant 0 : index
    %9 = vector.load %arg0[%c2, %c0_9] : memref<146x8xf32, #tpu.memory_space<vmem>>, vector<130x8xf32>
    %c2_10 = arith.constant 2 : index
    %c0_11 = arith.constant 0 : index
    %c0_12 = arith.constant 0 : index
    %10 = vector.load %arg1[%c2_10, %c0_11, %c0_12] : memref<9x8x16xf32, #tpu.memory_space<vmem>>, vector<1x8x16xf32>
    %11 = vector.shape_cast %10 : vector<1x8x16xf32> to vector<8x16xf32>
    %cst_13 = arith.constant dense<0.000000e+00> : vector<130x16xf32>
    %12 = tpu.matmul %9, %11, %cst_13 {dimension_numbers = #tpu.dot_dimension_numbers<[1], [0], [0], [1], [0, 0, 1, 1], [], []>} : vector<130x8xf32>, vector<8x16xf32>, vector<130x16xf32> -> vector<130x16xf32>
    %13 = arith.addf %8, %12 : vector<130x16xf32>
    %c7 = arith.constant 7 : index
    %c0_14 = arith.constant 0 : index
    %14 = vector.load %arg0[%c7, %c0_14] : memref<146x8xf32, #tpu.memory_space<vmem>>, vector<130x8xf32>
    %c3 = arith.constant 3 : index
    %c0_15 = arith.constant 0 : index
    %c0_16 = arith.constant 0 : index
    %15 = vector.load %arg1[%c3, %c0_15, %c0_16] : memref<9x8x16xf32, #tpu.memory_space<vmem>>, vector<1x8x16xf32>
    %16 = vector.shape_cast %15 : vector<1x8x16xf32> to vector<8x16xf32>
    %cst_17 = arith.constant dense<0.000000e+00> : vector<130x16xf32>
    %17 = tpu.matmul %14, %16, %cst_17 {dimension_numbers = #tpu.dot_dimension_numbers<[1], [0], [0], [1], [0, 0, 1, 1], [], []>} : vector<130x8xf32>, vector<8x16xf32>, vector<130x16xf32> -> vector<130x16xf32>
    %18 = arith.addf %13, %17 : vector<130x16xf32>
    %c8 = arith.constant 8 : index
    %c0_18 = arith.constant 0 : index
    %19 = vector.load %arg0[%c8, %c0_18] : memref<146x8xf32, #tpu.memory_space<vmem>>, vector<130x8xf32>
    %c4 = arith.constant 4 : index
    %c0_19 = arith.constant 0 : index
    %c0_20 = arith.constant 0 : index
    %20 = vector.load %arg1[%c4, %c0_19, %c0_20] : memref<9x8x16xf32, #tpu.memory_space<vmem>>, vector<1x8x16xf32>
    %21 = vector.shape_cast %20 : vector<1x8x16xf32> to vector<8x16xf32>
    %cst_21 = arith.constant dense<0.000000e+00> : vector<130x16xf32>
    %22 = tpu.matmul %19, %21, %cst_21 {dimension_numbers = #tpu.dot_dimension_numbers<[1], [0], [0], [1], [0, 0, 1, 1], [], []>} : vector<130x8xf32>, vector<8x16xf32>, vector<130x16xf32> -> vector<130x16xf32>
    %23 = arith.addf %18, %22 : vector<130x16xf32>
    %c9 = arith.constant 9 : index
    %c0_22 = arith.constant 0 : index
    %24 = vector.load %arg0[%c9, %c0_22] : memref<146x8xf32, #tpu.memory_space<vmem>>, vector<130x8xf32>
    %c5 = arith.constant 5 : index
    %c0_23 = arith.constant 0 : index
    %c0_24 = arith.constant 0 : index
    %25 = vector.load %arg1[%c5, %c0_23, %c0_24] : memref<9x8x16xf32, #tpu.memory_space<vmem>>, vector<1x8x16xf32>
    %26 = vector.shape_cast %25 : vector<1x8x16xf32> to vector<8x16xf32>
    %cst_25 = arith.constant dense<0.000000e+00> : vector<130x16xf32>
    %27 = tpu.matmul %24, %26, %cst_25 {dimension_numbers = #tpu.dot_dimension_numbers<[1], [0], [0], [1], [0, 0, 1, 1], [], []>} : vector<130x8xf32>, vector<8x16xf32>, vector<130x16xf32> -> vector<130x16xf32>
    %28 = arith.addf %23, %27 : vector<130x16xf32>
    %c14 = arith.constant 14 : index
    %c0_26 = arith.constant 0 : index
    %29 = vector.load %arg0[%c14, %c0_26] : memref<146x8xf32, #tpu.memory_space<vmem>>, vector<130x8xf32>
    %c6 = arith.constant 6 : index
    %c0_27 = arith.constant 0 : index
    %c0_28 = arith.constant 0 : index
    %30 = vector.load %arg1[%c6, %c0_27, %c0_28] : memref<9x8x16xf32, #tpu.memory_space<vmem>>, vector<1x8x16xf32>
    %31 = vector.shape_cast %30 : vector<1x8x16xf32> to vector<8x16xf32>
    %cst_29 = arith.constant dense<0.000000e+00> : vector<130x16xf32>
    %32 = tpu.matmul %29, %31, %cst_29 {dimension_numbers = #tpu.dot_dimension_numbers<[1], [0], [0], [1], [0, 0, 1, 1], [], []>} : vector<130x8xf32>, vector<8x16xf32>, vector<130x16xf32> -> vector<130x16xf32>
    %33 = arith.addf %28, %32 : vector<130x16xf32>
    %c15 = arith.constant 15 : index
    %c0_30 = arith.constant 0 : index
    %34 = vector.load %arg0[%c15, %c0_30] : memref<146x8xf32, #tpu.memory_space<vmem>>, vector<130x8xf32>
    %c7_31 = arith.constant 7 : index
    %c0_32 = arith.constant 0 : index
    %c0_33 = arith.constant 0 : index
    %35 = vector.load %arg1[%c7_31, %c0_32, %c0_33] : memref<9x8x16xf32, #tpu.memory_space<vmem>>, vector<1x8x16xf32>
    %36 = vector.shape_cast %35 : vector<1x8x16xf32> to vector<8x16xf32>
    %cst_34 = arith.constant dense<0.000000e+00> : vector<130x16xf32>
    %37 = tpu.matmul %34, %36, %cst_34 {dimension_numbers = #tpu.dot_dimension_numbers<[1], [0], [0], [1], [0, 0, 1, 1], [], []>} : vector<130x8xf32>, vector<8x16xf32>, vector<130x16xf32> -> vector<130x16xf32>
    %38 = arith.addf %33, %37 : vector<130x16xf32>
    %c16 = arith.constant 16 : index
    %c0_35 = arith.constant 0 : index
    %39 = vector.load %arg0[%c16, %c0_35] : memref<146x8xf32, #tpu.memory_space<vmem>>, vector<130x8xf32>
    %c8_36 = arith.constant 8 : index
    %c0_37 = arith.constant 0 : index
    %c0_38 = arith.constant 0 : index
    %40 = vector.load %arg1[%c8_36, %c0_37, %c0_38] : memref<9x8x16xf32, #tpu.memory_space<vmem>>, vector<1x8x16xf32>
    %41 = vector.shape_cast %40 : vector<1x8x16xf32> to vector<8x16xf32>
    %cst_39 = arith.constant dense<0.000000e+00> : vector<130x16xf32>
    %42 = tpu.matmul %39, %41, %cst_39 {dimension_numbers = #tpu.dot_dimension_numbers<[1], [0], [0], [1], [0, 0, 1, 1], [], []>} : vector<130x8xf32>, vector<8x16xf32>, vector<130x16xf32> -> vector<130x16xf32>
    %43 = arith.addf %38, %42 : vector<130x16xf32>
    %c0_40 = arith.constant 0 : index
    %c0_41 = arith.constant 0 : index
    %44 = vector.load %arg7[%c0_40, %c0_41] : memref<8x256xf32, #tpu.memory_space<vmem>>, vector<1x16xf32>
    %45 = vector.broadcast %44 : vector<1x16xf32> to vector<130x16xf32>
    %46 = arith.addf %43, %45 : vector<130x16xf32>
    %cst_42 = arith.constant 0.000000e+00 : f32
    %47 = vector.broadcast %cst_42 : f32 to vector<130x16xf32>
    %48 = arith.maximumf %46, %47 : vector<130x16xf32>
    %c0_43 = arith.constant 0 : index
    %c0_44 = arith.constant 0 : index
    %49 = vector.load %arg9[%c0_43, %c0_44] : memref<130x16xf32, #tpu.memory_space<vmem>>, vector<130x16xf32>
    tpu.vector_store %arg9[%c0_43, %c0_44], %48 {strides = array<i32>} : memref<130x16xf32, #tpu.memory_space<vmem>>, vector<130x16xf32>,
    %c0_45 = arith.constant 0 : index
    %c0_46 = arith.constant 0 : index
    %50 = vector.load %arg9[%c0_45, %c0_46] : memref<130x16xf32, #tpu.memory_space<vmem>>, vector<122x16xf32>
    %c0_47 = arith.constant 0 : index
    %c0_48 = arith.constant 0 : index
    %c0_49 = arith.constant 0 : index
    %51 = vector.load %arg2[%c0_47, %c0_48, %c0_49] : memref<4x16x32xf32, #tpu.memory_space<vmem>>, vector<1x16x32xf32>
    %52 = vector.shape_cast %51 : vector<1x16x32xf32> to vector<16x32xf32>
    %cst_50 = arith.constant dense<0.000000e+00> : vector<122x32xf32>
    %53 = tpu.matmul %50, %52, %cst_50 {dimension_numbers = #tpu.dot_dimension_numbers<[1], [0], [0], [1], [0, 0, 1, 1], [], []>} : vector<122x16xf32>, vector<16x32xf32>, vector<122x32xf32> -> vector<122x32xf32>
    %c1_51 = arith.constant 1 : index
    %c0_52 = arith.constant 0 : index
    %54 = vector.load %arg9[%c1_51, %c0_52] : memref<130x16xf32, #tpu.memory_space<vmem>>, vector<122x16xf32>
    %c1_53 = arith.constant 1 : index
    %c0_54 = arith.constant 0 : index
    %c0_55 = arith.constant 0 : index
    %55 = vector.load %arg2[%c1_53, %c0_54, %c0_55] : memref<4x16x32xf32, #tpu.memory_space<vmem>>, vector<1x16x32xf32>
    %56 = vector.shape_cast %55 : vector<1x16x32xf32> to vector<16x32xf32>
    %cst_56 = arith.constant dense<0.000000e+00> : vector<122x32xf32>
    %57 = tpu.matmul %54, %56, %cst_56 {dimension_numbers = #tpu.dot_dimension_numbers<[1], [0], [0], [1], [0, 0, 1, 1], [], []>} : vector<122x16xf32>, vector<16x32xf32>, vector<122x32xf32> -> vector<122x32xf32>
    %58 = arith.addf %53, %57 : vector<122x32xf32>
    %c7_57 = arith.constant 7 : index
    %c0_58 = arith.constant 0 : index
    %59 = vector.load %arg9[%c7_57, %c0_58] : memref<130x16xf32, #tpu.memory_space<vmem>>, vector<122x16xf32>
    %c2_59 = arith.constant 2 : index
    %c0_60 = arith.constant 0 : index
    %c0_61 = arith.constant 0 : index
    %60 = vector.load %arg2[%c2_59, %c0_60, %c0_61] : memref<4x16x32xf32, #tpu.memory_space<vmem>>, vector<1x16x32xf32>
    %61 = vector.shape_cast %60 : vector<1x16x32xf32> to vector<16x32xf32>
    %cst_62 = arith.constant dense<0.000000e+00> : vector<122x32xf32>
    %62 = tpu.matmul %59, %61, %cst_62 {dimension_numbers = #tpu.dot_dimension_numbers<[1], [0], [0], [1], [0, 0, 1, 1], [], []>} : vector<122x16xf32>, vector<16x32xf32>, vector<122x32xf32> -> vector<122x32xf32>
    %63 = arith.addf %58, %62 : vector<122x32xf32>
    %c8_63 = arith.constant 8 : index
    %c0_64 = arith.constant 0 : index
    %64 = vector.load %arg9[%c8_63, %c0_64] : memref<130x16xf32, #tpu.memory_space<vmem>>, vector<122x16xf32>
    %c3_65 = arith.constant 3 : index
    %c0_66 = arith.constant 0 : index
    %c0_67 = arith.constant 0 : index
    %65 = vector.load %arg2[%c3_65, %c0_66, %c0_67] : memref<4x16x32xf32, #tpu.memory_space<vmem>>, vector<1x16x32xf32>
    %66 = vector.shape_cast %65 : vector<1x16x32xf32> to vector<16x32xf32>
    %cst_68 = arith.constant dense<0.000000e+00> : vector<122x32xf32>
    %67 = tpu.matmul %64, %66, %cst_68 {dimension_numbers = #tpu.dot_dimension_numbers<[1], [0], [0], [1], [0, 0, 1, 1], [], []>} : vector<122x16xf32>, vector<16x32xf32>, vector<122x32xf32> -> vector<122x32xf32>
    %68 = arith.addf %63, %67 : vector<122x32xf32>
    %c1_69 = arith.constant 1 : index
    %c0_70 = arith.constant 0 : index
    %69 = vector.load %arg7[%c1_69, %c0_70] : memref<8x256xf32, #tpu.memory_space<vmem>>, vector<1x32xf32>
    %70 = vector.broadcast %69 : vector<1x32xf32> to vector<122x32xf32>
    %71 = arith.addf %68, %70 : vector<122x32xf32>
    %cst_71 = arith.constant 0.000000e+00 : f32
    %72 = vector.broadcast %cst_71 : f32 to vector<122x32xf32>
    %73 = arith.maximumf %71, %72 : vector<122x32xf32>
    %c0_72 = arith.constant 0 : index
    %c0_73 = arith.constant 0 : index
    %74 = vector.load %arg10[%c0_72, %c0_73] : memref<122x32xf32, #tpu.memory_space<vmem>>, vector<122x32xf32>
    tpu.vector_store %arg10[%c0_72, %c0_73], %73 {strides = array<i32>} : memref<122x32xf32, #tpu.memory_space<vmem>>, vector<122x32xf32>,
    %c0_74 = arith.constant 0 : index
    %c0_75 = arith.constant 0 : index
    %75 = vector.load %arg10[%c0_74, %c0_75] : memref<122x32xf32, #tpu.memory_space<vmem>>, vector<114x32xf32>
    %c0_76 = arith.constant 0 : index
    %c0_77 = arith.constant 0 : index
    %c0_78 = arith.constant 0 : index
    %76 = vector.load %arg3[%c0_76, %c0_77, %c0_78] : memref<4x32x64xf32, #tpu.memory_space<vmem>>, vector<1x32x64xf32>
    %77 = vector.shape_cast %76 : vector<1x32x64xf32> to vector<32x64xf32>
    %cst_79 = arith.constant dense<0.000000e+00> : vector<114x64xf32>
    %78 = tpu.matmul %75, %77, %cst_79 {dimension_numbers = #tpu.dot_dimension_numbers<[1], [0], [0], [1], [0, 0, 1, 1], [], []>} : vector<114x32xf32>, vector<32x64xf32>, vector<114x64xf32> -> vector<114x64xf32>
    %c1_80 = arith.constant 1 : index
    %c0_81 = arith.constant 0 : index
    %79 = vector.load %arg10[%c1_80, %c0_81] : memref<122x32xf32, #tpu.memory_space<vmem>>, vector<114x32xf32>
    %c1_82 = arith.constant 1 : index
    %c0_83 = arith.constant 0 : index
    %c0_84 = arith.constant 0 : index
    %80 = vector.load %arg3[%c1_82, %c0_83, %c0_84] : memref<4x32x64xf32, #tpu.memory_space<vmem>>, vector<1x32x64xf32>
    %81 = vector.shape_cast %80 : vector<1x32x64xf32> to vector<32x64xf32>
    %cst_85 = arith.constant dense<0.000000e+00> : vector<114x64xf32>
    %82 = tpu.matmul %79, %81, %cst_85 {dimension_numbers = #tpu.dot_dimension_numbers<[1], [0], [0], [1], [0, 0, 1, 1], [], []>} : vector<114x32xf32>, vector<32x64xf32>, vector<114x64xf32> -> vector<114x64xf32>
    %83 = arith.addf %78, %82 : vector<114x64xf32>
    %c7_86 = arith.constant 7 : index
    %c0_87 = arith.constant 0 : index
    %84 = vector.load %arg10[%c7_86, %c0_87] : memref<122x32xf32, #tpu.memory_space<vmem>>, vector<114x32xf32>
    %c2_88 = arith.constant 2 : index
    %c0_89 = arith.constant 0 : index
    %c0_90 = arith.constant 0 : index
    %85 = vector.load %arg3[%c2_88, %c0_89, %c0_90] : memref<4x32x64xf32, #tpu.memory_space<vmem>>, vector<1x32x64xf32>
    %86 = vector.shape_cast %85 : vector<1x32x64xf32> to vector<32x64xf32>
    %cst_91 = arith.constant dense<0.000000e+00> : vector<114x64xf32>
    %87 = tpu.matmul %84, %86, %cst_91 {dimension_numbers = #tpu.dot_dimension_numbers<[1], [0], [0], [1], [0, 0, 1, 1], [], []>} : vector<114x32xf32>, vector<32x64xf32>, vector<114x64xf32> -> vector<114x64xf32>
    %88 = arith.addf %83, %87 : vector<114x64xf32>
    %c8_92 = arith.constant 8 : index
    %c0_93 = arith.constant 0 : index
    %89 = vector.load %arg10[%c8_92, %c0_93] : memref<122x32xf32, #tpu.memory_space<vmem>>, vector<114x32xf32>
    %c3_94 = arith.constant 3 : index
    %c0_95 = arith.constant 0 : index
    %c0_96 = arith.constant 0 : index
    %90 = vector.load %arg3[%c3_94, %c0_95, %c0_96] : memref<4x32x64xf32, #tpu.memory_space<vmem>>, vector<1x32x64xf32>
    %91 = vector.shape_cast %90 : vector<1x32x64xf32> to vector<32x64xf32>
    %cst_97 = arith.constant dense<0.000000e+00> : vector<114x64xf32>
    %92 = tpu.matmul %89, %91, %cst_97 {dimension_numbers = #tpu.dot_dimension_numbers<[1], [0], [0], [1], [0, 0, 1, 1], [], []>} : vector<114x32xf32>, vector<32x64xf32>, vector<114x64xf32> -> vector<114x64xf32>
    %93 = arith.addf %88, %92 : vector<114x64xf32>
    %c2_98 = arith.constant 2 : index
    %c0_99 = arith.constant 0 : index
    %94 = vector.load %arg7[%c2_98, %c0_99] : memref<8x256xf32, #tpu.memory_space<vmem>>, vector<1x64xf32>
    %95 = vector.broadcast %94 : vector<1x64xf32> to vector<114x64xf32>
    %96 = arith.addf %93, %95 : vector<114x64xf32>
    %cst_100 = arith.constant 0.000000e+00 : f32
    %97 = vector.broadcast %cst_100 : f32 to vector<114x64xf32>
    %98 = arith.maximumf %96, %97 : vector<114x64xf32>
    %c0_101 = arith.constant 0 : index
    %c0_102 = arith.constant 0 : index
    %99 = vector.load %arg11[%c0_101, %c0_102] : memref<114x64xf32, #tpu.memory_space<vmem>>, vector<114x64xf32>
    tpu.vector_store %arg11[%c0_101, %c0_102], %98 {strides = array<i32>} : memref<114x64xf32, #tpu.memory_space<vmem>>, vector<114x64xf32>,
    %c0_103 = arith.constant 0 : index
    %c0_104 = arith.constant 0 : index
    %100 = vector.load %arg11[%c0_103, %c0_104] : memref<114x64xf32, #tpu.memory_space<vmem>>, vector<98x64xf32>
    %c0_105 = arith.constant 0 : index
    %c0_106 = arith.constant 0 : index
    %c0_107 = arith.constant 0 : index
    %101 = vector.load %arg4[%c0_105, %c0_106, %c0_107] : memref<9x64x128xf32, #tpu.memory_space<vmem>>, vector<1x64x128xf32>
    %102 = vector.shape_cast %101 : vector<1x64x128xf32> to vector<64x128xf32>
    %cst_108 = arith.constant dense<0.000000e+00> : vector<98x128xf32>
    %103 = tpu.matmul %100, %102, %cst_108 {dimension_numbers = #tpu.dot_dimension_numbers<[1], [0], [0], [1], [0, 0, 1, 1], [], []>} : vector<98x64xf32>, vector<64x128xf32>, vector<98x128xf32> -> vector<98x128xf32>
    %c1_109 = arith.constant 1 : index
    %c0_110 = arith.constant 0 : index
    %104 = vector.load %arg11[%c1_109, %c0_110] : memref<114x64xf32, #tpu.memory_space<vmem>>, vector<98x64xf32>
    %c1_111 = arith.constant 1 : index
    %c0_112 = arith.constant 0 : index
    %c0_113 = arith.constant 0 : index
    %105 = vector.load %arg4[%c1_111, %c0_112, %c0_113] : memref<9x64x128xf32, #tpu.memory_space<vmem>>, vector<1x64x128xf32>
    %106 = vector.shape_cast %105 : vector<1x64x128xf32> to vector<64x128xf32>
    %cst_114 = arith.constant dense<0.000000e+00> : vector<98x128xf32>
    %107 = tpu.matmul %104, %106, %cst_114 {dimension_numbers = #tpu.dot_dimension_numbers<[1], [0], [0], [1], [0, 0, 1, 1], [], []>} : vector<98x64xf32>, vector<64x128xf32>, vector<98x128xf32> -> vector<98x128xf32>
    %108 = arith.addf %103, %107 : vector<98x128xf32>
    %c2_115 = arith.constant 2 : index
    %c0_116 = arith.constant 0 : index
    %109 = vector.load %arg11[%c2_115, %c0_116] : memref<114x64xf32, #tpu.memory_space<vmem>>, vector<98x64xf32>
    %c2_117 = arith.constant 2 : index
    %c0_118 = arith.constant 0 : index
    %c0_119 = arith.constant 0 : index
    %110 = vector.load %arg4[%c2_117, %c0_118, %c0_119] : memref<9x64x128xf32, #tpu.memory_space<vmem>>, vector<1x64x128xf32>
    %111 = vector.shape_cast %110 : vector<1x64x128xf32> to vector<64x128xf32>
    %cst_120 = arith.constant dense<0.000000e+00> : vector<98x128xf32>
    %112 = tpu.matmul %109, %111, %cst_120 {dimension_numbers = #tpu.dot_dimension_numbers<[1], [0], [0], [1], [0, 0, 1, 1], [], []>} : vector<98x64xf32>, vector<64x128xf32>, vector<98x128xf32> -> vector<98x128xf32>
    %113 = arith.addf %108, %112 : vector<98x128xf32>
    %c7_121 = arith.constant 7 : index
    %c0_122 = arith.constant 0 : index
    %114 = vector.load %arg11[%c7_121, %c0_122] : memref<114x64xf32, #tpu.memory_space<vmem>>, vector<98x64xf32>
    %c3_123 = arith.constant 3 : index
    %c0_124 = arith.constant 0 : index
    %c0_125 = arith.constant 0 : index
    %115 = vector.load %arg4[%c3_123, %c0_124, %c0_125] : memref<9x64x128xf32, #tpu.memory_space<vmem>>, vector<1x64x128xf32>
    %116 = vector.shape_cast %115 : vector<1x64x128xf32> to vector<64x128xf32>
    %cst_126 = arith.constant dense<0.000000e+00> : vector<98x128xf32>
    %117 = tpu.matmul %114, %116, %cst_126 {dimension_numbers = #tpu.dot_dimension_numbers<[1], [0], [0], [1], [0, 0, 1, 1], [], []>} : vector<98x64xf32>, vector<64x128xf32>, vector<98x128xf32> -> vector<98x128xf32>
    %118 = arith.addf %113, %117 : vector<98x128xf32>
    %c8_127 = arith.constant 8 : index
    %c0_128 = arith.constant 0 : index
    %119 = vector.load %arg11[%c8_127, %c0_128] : memref<114x64xf32, #tpu.memory_space<vmem>>, vector<98x64xf32>
    %c4_129 = arith.constant 4 : index
    %c0_130 = arith.constant 0 : index
    %c0_131 = arith.constant 0 : index
    %120 = vector.load %arg4[%c4_129, %c0_130, %c0_131] : memref<9x64x128xf32, #tpu.memory_space<vmem>>, vector<1x64x128xf32>
    %121 = vector.shape_cast %120 : vector<1x64x128xf32> to vector<64x128xf32>
    %cst_132 = arith.constant dense<0.000000e+00> : vector<98x128xf32>
    %122 = tpu.matmul %119, %121, %cst_132 {dimension_numbers = #tpu.dot_dimension_numbers<[1], [0], [0], [1], [0, 0, 1, 1], [], []>} : vector<98x64xf32>, vector<64x128xf32>, vector<98x128xf32> -> vector<98x128xf32>
    %123 = arith.addf %118, %122 : vector<98x128xf32>
    %c9_133 = arith.constant 9 : index
    %c0_134 = arith.constant 0 : index
    %124 = vector.load %arg11[%c9_133, %c0_134] : memref<114x64xf32, #tpu.memory_space<vmem>>, vector<98x64xf32>
    %c5_135 = arith.constant 5 : index
    %c0_136 = arith.constant 0 : index
    %c0_137 = arith.constant 0 : index
    %125 = vector.load %arg4[%c5_135, %c0_136, %c0_137] : memref<9x64x128xf32, #tpu.memory_space<vmem>>, vector<1x64x128xf32>
    %126 = vector.shape_cast %125 : vector<1x64x128xf32> to vector<64x128xf32>
    %cst_138 = arith.constant dense<0.000000e+00> : vector<98x128xf32>
    %127 = tpu.matmul %124, %126, %cst_138 {dimension_numbers = #tpu.dot_dimension_numbers<[1], [0], [0], [1], [0, 0, 1, 1], [], []>} : vector<98x64xf32>, vector<64x128xf32>, vector<98x128xf32> -> vector<98x128xf32>
    %128 = arith.addf %123, %127 : vector<98x128xf32>
    %c14_139 = arith.constant 14 : index
    %c0_140 = arith.constant 0 : index
    %129 = vector.load %arg11[%c14_139, %c0_140] : memref<114x64xf32, #tpu.memory_space<vmem>>, vector<98x64xf32>
    %c6_141 = arith.constant 6 : index
    %c0_142 = arith.constant 0 : index
    %c0_143 = arith.constant 0 : index
    %130 = vector.load %arg4[%c6_141, %c0_142, %c0_143] : memref<9x64x128xf32, #tpu.memory_space<vmem>>, vector<1x64x128xf32>
    %131 = vector.shape_cast %130 : vector<1x64x128xf32> to vector<64x128xf32>
    %cst_144 = arith.constant dense<0.000000e+00> : vector<98x128xf32>
    %132 = tpu.matmul %129, %131, %cst_144 {dimension_numbers = #tpu.dot_dimension_numbers<[1], [0], [0], [1], [0, 0, 1, 1], [], []>} : vector<98x64xf32>, vector<64x128xf32>, vector<98x128xf32> -> vector<98x128xf32>
    %133 = arith.addf %128, %132 : vector<98x128xf32>
    %c15_145 = arith.constant 15 : index
    %c0_146 = arith.constant 0 : index
    %134 = vector.load %arg11[%c15_145, %c0_146] : memref<114x64xf32, #tpu.memory_space<vmem>>, vector<98x64xf32>
    %c7_147 = arith.constant 7 : index
    %c0_148 = arith.constant 0 : index
    %c0_149 = arith.constant 0 : index
    %135 = vector.load %arg4[%c7_147, %c0_148, %c0_149] : memref<9x64x128xf32, #tpu.memory_space<vmem>>, vector<1x64x128xf32>
    %136 = vector.shape_cast %135 : vector<1x64x128xf32> to vector<64x128xf32>
    %cst_150 = arith.constant dense<0.000000e+00> : vector<98x128xf32>
    %137 = tpu.matmul %134, %136, %cst_150 {dimension_numbers = #tpu.dot_dimension_numbers<[1], [0], [0], [1], [0, 0, 1, 1], [], []>} : vector<98x64xf32>, vector<64x128xf32>, vector<98x128xf32> -> vector<98x128xf32>
    %138 = arith.addf %133, %137 : vector<98x128xf32>
    %c16_151 = arith.constant 16 : index
    %c0_152 = arith.constant 0 : index
    %139 = vector.load %arg11[%c16_151, %c0_152] : memref<114x64xf32, #tpu.memory_space<vmem>>, vector<98x64xf32>
    %c8_153 = arith.constant 8 : index
    %c0_154 = arith.constant 0 : index
    %c0_155 = arith.constant 0 : index
    %140 = vector.load %arg4[%c8_153, %c0_154, %c0_155] : memref<9x64x128xf32, #tpu.memory_space<vmem>>, vector<1x64x128xf32>
    %141 = vector.shape_cast %140 : vector<1x64x128xf32> to vector<64x128xf32>
    %cst_156 = arith.constant dense<0.000000e+00> : vector<98x128xf32>
    %142 = tpu.matmul %139, %141, %cst_156 {dimension_numbers = #tpu.dot_dimension_numbers<[1], [0], [0], [1], [0, 0, 1, 1], [], []>} : vector<98x64xf32>, vector<64x128xf32>, vector<98x128xf32> -> vector<98x128xf32>
    %143 = arith.addf %138, %142 : vector<98x128xf32>
    %144 = tpu.iota {dimensions = array<i32: 1>} : vector<2x98xi32>
    %145 = tpu.iota {dimensions = array<i32: 0>} : vector<2x98xi32>
    %c49_i32 = arith.constant 49 : i32
    %146 = vector.broadcast %c49_i32 : i32 to vector<2x98xi32>
    %147 = arith.muli %145, %146 : vector<2x98xi32>
    %148 = arith.cmpi eq, %144, %147 : vector<2x98xi32>
    %149 = arith.extui %148 : vector<2x98xi1> to vector<2x98xi32>
    %150 = arith.sitofp %149 : vector<2x98xi32> to vector<2x98xf32>
    %cst_157 = arith.constant dense<0.000000e+00> : vector<2x128xf32>
    %151 = tpu.matmul %150, %143, %cst_157 {dimension_numbers = #tpu.dot_dimension_numbers<[1], [0], [0], [1], [0, 0, 1, 1], [], []>} : vector<2x98xf32>, vector<98x128xf32>, vector<2x128xf32> -> vector<2x128xf32>
    %c3_158 = arith.constant 3 : index
    %c0_159 = arith.constant 0 : index
    %152 = vector.load %arg7[%c3_158, %c0_159] : memref<8x256xf32, #tpu.memory_space<vmem>>, vector<1x128xf32>
    %153 = vector.broadcast %152 : vector<1x128xf32> to vector<2x128xf32>
    %154 = arith.addf %151, %153 : vector<2x128xf32>
    %c0_160 = arith.constant 0 : index
    %c0_161 = arith.constant 0 : index
    %155 = vector.load %arg5[%c0_160, %c0_161] : memref<128x256xf32, #tpu.memory_space<vmem>>, vector<128x256xf32>
    %cst_162 = arith.constant dense<0.000000e+00> : vector<2x256xf32>
    %156 = tpu.matmul %154, %155, %cst_162 {dimension_numbers = #tpu.dot_dimension_numbers<[1], [0], [0], [1], [0, 0, 1, 1], [], []>} : vector<2x128xf32>, vector<128x256xf32>, vector<2x256xf32> -> vector<2x256xf32>
    %c4_163 = arith.constant 4 : index
    %c0_164 = arith.constant 0 : index
    %157 = vector.load %arg7[%c4_163, %c0_164] : memref<8x256xf32, #tpu.memory_space<vmem>>, vector<1x256xf32>
    %158 = vector.broadcast %157 : vector<1x256xf32> to vector<2x256xf32>
    %159 = arith.addf %156, %158 : vector<2x256xf32>
    %cst_165 = arith.constant 0.000000e+00 : f32
    %160 = vector.broadcast %cst_165 : f32 to vector<2x256xf32>
    %161 = arith.maximumf %159, %160 : vector<2x256xf32>
    %c0_166 = arith.constant 0 : index
    %c0_167 = arith.constant 0 : index
    %162 = vector.load %arg6[%c0_166, %c0_167] : memref<256x128xf32, #tpu.memory_space<vmem>>, vector<256x128xf32>
    %cst_168 = arith.constant dense<0.000000e+00> : vector<2x128xf32>
    %163 = tpu.matmul %161, %162, %cst_168 {dimension_numbers = #tpu.dot_dimension_numbers<[1], [0], [0], [1], [0, 0, 1, 1], [], []>} : vector<2x256xf32>, vector<256x128xf32>, vector<2x128xf32> -> vector<2x128xf32>
    %c5_169 = arith.constant 5 : index
    %c0_170 = arith.constant 0 : index
    %164 = vector.load %arg7[%c5_169, %c0_170] : memref<8x256xf32, #tpu.memory_space<vmem>>, vector<1x128xf32>
    %165 = vector.broadcast %164 : vector<1x128xf32> to vector<2x128xf32>
    %166 = arith.addf %163, %165 : vector<2x128xf32>
    %167 = vector.extract_strided_slice %166 {offsets = [0, 0], sizes = [2, 7], strides = [1, 1]} : vector<2x128xf32> to vector<2x7xf32>
    %cst_171 = arith.constant dense<0xFF800000> : vector<2xf32>
    %168 = vector.multi_reduction <maximumf>, %167, %cst_171 [1] : vector<2x7xf32> to vector<2xf32>
    %169 = vector.shape_cast %168 : vector<2xf32> to vector<2x1xf32>
    %170 = vector.broadcast %169 : vector<2x1xf32> to vector<2x7xf32>
    %171 = arith.subf %167, %170 : vector<2x7xf32>
    %172 = math.exp %171 : vector<2x7xf32>
    %cst_172 = arith.constant dense<0.000000e+00> : vector<2xf32>
    %173 = vector.multi_reduction <add>, %172, %cst_172 [1] : vector<2x7xf32> to vector<2xf32>
    %174 = vector.shape_cast %173 : vector<2xf32> to vector<2x1xf32>
    %175 = math.log %174 : vector<2x1xf32>
    %176 = arith.addf %169, %175 : vector<2x1xf32>
    %177 = tpu.iota {dimensions = array<i32: 1>} : vector<2x128xi32>
    %c7_i32 = arith.constant 7 : i32
    %178 = vector.broadcast %c7_i32 : i32 to vector<2x128xi32>
    %179 = arith.cmpi slt, %177, %178 : vector<2x128xi32>
    %180 = vector.broadcast %176 : vector<2x1xf32> to vector<2x128xf32>
    %181 = arith.subf %166, %180 : vector<2x128xf32>
    %182 = arith.select %179, %181, %166 : vector<2x128xi1>, vector<2x128xf32>
    %c0_173 = arith.constant 0 : index
    %c0_174 = arith.constant 0 : index
    %183 = vector.load %arg8[%c0_173, %c0_174] : memref<2x128xf32, #tpu.memory_space<vmem>>, vector<2x128xf32>
    tpu.vector_store %arg8[%c0_173, %c0_174], %182 {strides = array<i32>} : memref<2x128xf32, #tpu.memory_space<vmem>>, vector<2x128xf32>,
    return
  }
}

</mosaic_0001>

<llo_original>
// kernel: rnd_models_forward.1
$region0: #{rnd_models_forward.1}
  #allocation0 [shape = 'u32[]', space=smem, size = 0x4, offset = 0x4, fixed_abs, tag = 'smem constant byte address 0x4 - core index']
  #allocation1 [shape = 'u32[144,128]{1,0:T(1,128)}', space=vmem, size = 0x12000, scoped, tag = 'internal scratch']
  #allocation2 [shape = 'f32[130,16]{1,0:T(8,128)}', space=vmem, size = 0x11000, scoped, tag = 'scratch operand']
  #allocation3 [shape = 'f32[122,32]{1,0:T(8,128)}', space=vmem, size = 0x10000, scoped, tag = 'scratch operand']
  #allocation4 [shape = 'f32[114,64]{1,0:T(8,128)}', space=vmem, size = 0xf000, scoped, tag = 'scratch operand']
  %s0 = inlined_call_operand.vmem [shape: f32[146,8], index: 0, kind: input, shape index: {}]
  %s1 = inlined_call_operand.vmem [shape: f32[9,8,16], index: 1, kind: input, shape index: {}]
  %s2 = inlined_call_operand.vmem [shape: f32[4,16,32], index: 2, kind: input, shape index: {}]
  %s3 = inlined_call_operand.vmem [shape: f32[4,32,64], index: 3, kind: input, shape index: {}]
  %s4 = inlined_call_operand.hbm [shape: f32[9,64,128], index: 4, kind: input, shape index: {}]
  %s5 = inlined_call_operand.vmem [shape: f32[128,256], index: 5, kind: input, shape index: {}]
  %s6 = inlined_call_operand.hbm [shape: f32[256,128], index: 6, kind: input, shape index: {}]
  %s7 = inlined_call_operand.hbm [shape: f32[8,256], index: 7, kind: input, shape index: {}]
  %s8 = inlined_call_operand.vmem [shape: f32[2,128], index: 8, kind: output, shape index: {}]
  %s9 = sld [smem:[#allocation0]]
  $region54: #{rnd_models_forward.1} parent=0
    _
  %s11 = ssub.s32 1, %s9
  %s12 = scalar_select 0, %s11, %s9
  $region1: #{rnd_models_forward.1} parent=0
    #allocation5 [shape = 'u8[294912]{0}', space=vmem, size = 0x48000, scoped, tag = 'input window, operand 4, single buffered']
    #allocation6 [shape = 's32[1]{0}', space=sflag, size = 0x4, scoped, tag = 'scoped memory for rnd_models_forward.1']
    #allocation7 [shape = 'u8[131072]{0}', space=vmem, size = 0x20000, scoped, tag = 'input window, operand 6, single buffered']
    #allocation8 [shape = 's32[1]{0}', space=sflag, size = 0x4, scoped, tag = 'scoped memory for rnd_models_forward.1']
    #allocation9 [shape = 'u8[8192]{0}', space=vmem, size = 0x2000, scoped, tag = 'input window, operand 7, single buffered']
    %13 = vsyncpa [#allocation6], 0
    %14 = vsyncpa [#allocation8], 0
    // Predicated region
    $region2: #{rnd_models_forward.1} parent=1 // pred_check
      _
    $region3: #{rnd_models_forward.1} parent=1 // pred_check_branch
      %16 = sbr.rel (0) target = $region5
    $region4: #{rnd_models_forward.1} parent=1 // pred_region
      _
    $region5: #{rnd_models_forward.1} parent=1 // pred_fallthru
      _
    // Predicated region
    $region6: #{rnd_models_forward.1} parent=1 // pred_check
      _
    $region7: #{rnd_models_forward.1} parent=1 // pred_check_branch
      %18 = sbr.rel (0) target = $region9
    $region8: #{rnd_models_forward.1} parent=1 // pred_region
      _
    $region9: #{rnd_models_forward.1} parent=1 // pred_fallthru
      _
    // Predicated region
    $region10: #{rnd_models_forward.1} parent=1 // pred_check
      _
    $region11: #{rnd_models_forward.1} parent=1 // pred_check_branch
      %20 = sbr.rel (0) target = $region13
    $region12: #{rnd_models_forward.1} parent=1 // pred_region
      _
    $region13: #{rnd_models_forward.1} parent=1 // pred_fallthru
      _
    // Predicated region
    $region14: #{rnd_models_forward.1} parent=1 // pred_check
      _
    $region15: #{rnd_models_forward.1} parent=1 // pred_check_branch
      %22 = sbr.rel (0) target = $region17
    $region16: #{rnd_models_forward.1} parent=1 // pred_region
      _
    $region17: #{rnd_models_forward.1} parent=1 // pred_fallthru
      _
    // Predicated region
    $region18: #{rnd_models_forward.1} parent=1 // pred_check
      _
    $region19: #{rnd_models_forward.1} parent=1 // pred_check_branch
      %24 = sbr.rel (0) target = $region21
    $region20: #{rnd_models_forward.1} parent=1 // pred_region
      %s26 = ssub.s32 9216, 9216
      %27 = vsyncadd [#allocation6], %s26
      %s28 = sshll.u32 [#allocation5], 4
      %s29 = int_to_ptr.vmem [resolvable:$true] %s28
      %34 = dma.hbm_to_vmem [thread:$0]  %s4, 9216, %s29, [#allocation6], 128, 128, 8
    $region21: #{rnd_models_forward.1} parent=1 // pred_fallthru
      _
    // Predicated region
    $region22: #{rnd_models_forward.1} parent=1 // pred_check
      _
    $region23: #{rnd_models_forward.1} parent=1 // pred_check_branch
      %36 = sbr.rel (0) target = $region25
    $region24: #{rnd_models_forward.1} parent=1 // pred_region
      _
    $region25: #{rnd_models_forward.1} parent=1 // pred_fallthru
      _
    // Predicated region
    $region26: #{rnd_models_forward.1} parent=1 // pred_check
      _
    $region27: #{rnd_models_forward.1} parent=1 // pred_check_branch
      %38 = sbr.rel (0) target = $region29
    $region28: #{rnd_models_forward.1} parent=1 // pred_region
      %s40 = ssub.s32 4096, 4096
      %41 = vsyncadd [#allocation8], %s40
      %s42 = sshll.u32 [#allocation7], 4
      %s43 = int_to_ptr.vmem [resolvable:$true] %s42
      %48 = dma.hbm_to_vmem [thread:$0]  %s6, 4096, %s43, [#allocation8], 128, 128, 8
    $region29: #{rnd_models_forward.1} parent=1 // pred_fallthru
      _
    // Predicated region
    $region30: #{rnd_models_forward.1} parent=1 // pred_check
      _
    $region31: #{rnd_models_forward.1} parent=1 // pred_check_branch
      %50 = sbr.rel (0) target = $region33
    $region32: #{rnd_models_forward.1} parent=1 // pred_region
      %s52 = ssub.s32 256, 256
      %53 = vsyncadd [#allocation8], %s52
      %s55 = sshll.u32 [#allocation9], 4
      %s56 = int_to_ptr.vmem [resolvable:$true] %s55
      %58 = dma.hbm_to_vmem [thread:$0]  %s7, 256, %s56, [#allocation8]
    $region33: #{rnd_models_forward.1} parent=1 // pred_fallthru
      _
    // Predicated region
    $region34: #{rnd_models_forward.1} parent=1 // pred_check
      _
    $region35: #{rnd_models_forward.1} parent=1 // pred_check_branch
      %60 = sbr.rel (0) target = $region37
    $region36: #{rnd_models_forward.1} parent=1 // pred_region
      %61 = dma.done [#allocation6], 9216
    $region37: #{rnd_models_forward.1} parent=1 // pred_fallthru
      _
    // Predicated region
    $region38: #{rnd_models_forward.1} parent=1 // pred_check
      _
    $region39: #{rnd_models_forward.1} parent=1 // pred_check_branch
      %63 = sbr.rel (0) target = $region41
    $region40: #{rnd_models_forward.1} parent=1 // pred_region
      %64 = dma.done [#allocation8], 4096
    $region41: #{rnd_models_forward.1} parent=1 // pred_fallthru
      _
    // Predicated region
    $region42: #{rnd_models_forward.1} parent=1 // pred_check
      _
    $region43: #{rnd_models_forward.1} parent=1 // pred_check_branch
      %66 = sbr.rel (0) target = $region45
    $region44: #{rnd_models_forward.1} parent=1 // pred_region
      %67 = dma.done [#allocation8], 256
    $region45: #{rnd_models_forward.1} parent=1 // pred_fallthru
      _
    %v68 = vld [vmem:[%s0] sm:$0xff]
    %v69 = vld [vmem:[%s0 + $0x8] sm:$0xff]
    %v70 = vld [vmem:[%s0 + $0x10] sm:$0xff]
    %v71 = vld [vmem:[%s0 + $0x18] sm:$0xff]
    %v72 = vld [vmem:[%s0 + $0x20] sm:$0xff]
    %v73 = vld [vmem:[%s0 + $0x28] sm:$0xff]
    %v74 = vld [vmem:[%s0 + $0x30] sm:$0xff]
    %v75 = vld [vmem:[%s0 + $0x38] sm:$0xff]
    %v76 = vld [vmem:[%s0 + $0x40] sm:$0xff]
    %v77 = vld [vmem:[%s0 + $0x48] sm:$0xff]
    %v78 = vld [vmem:[%s0 + $0x50] sm:$0xff]
    %v79 = vld [vmem:[%s0 + $0x58] sm:$0xff]
    %v80 = vld [vmem:[%s0 + $0x60] sm:$0xff]
    %v81 = vld [vmem:[%s0 + $0x68] sm:$0xff]
    %v82 = vld [vmem:[%s0 + $0x70] sm:$0xff]
    %v83 = vld [vmem:[%s0 + $0x78] sm:$0xff]
    %v84 = vld [vmem:[%s0 + $0x80] sm:$0x3]
    %v85 = vld [vmem:[%s1] sm:$0xff]
    %v86 = vld [vmem:[%s0 + $0x1] sm:$0xff]
    %v87 = vld [vmem:[%s0 + $0x9] sm:$0xff]
    %v88 = vld [vmem:[%s0 + $0x11] sm:$0xff]
    %v89 = vld [vmem:[%s0 + $0x19] sm:$0xff]
    %v90 = vld [vmem:[%s0 + $0x21] sm:$0xff]
    %v91 = vld [vmem:[%s0 + $0x29] sm:$0xff]
    %v92 = vld [vmem:[%s0 + $0x31] sm:$0xff]
    %v93 = vld [vmem:[%s0 + $0x39] sm:$0xff]
    %v94 = vld [vmem:[%s0 + $0x41] sm:$0xff]
    %v95 = vld [vmem:[%s0 + $0x49] sm:$0xff]
    %v96 = vld [vmem:[%s0 + $0x51] sm:$0xff]
    %v97 = vld [vmem:[%s0 + $0x59] sm:$0xff]
    %v98 = vld [vmem:[%s0 + $0x61] sm:$0xff]
    %v99 = vld [vmem:[%s0 + $0x69] sm:$0xff]
    %v100 = vld [vmem:[%s0 + $0x71] sm:$0xff]
    %v101 = vld [vmem:[%s0 + $0x79] sm:$0xff]
    %v102 = vld [vmem:[%s0 + $0x81] sm:$0x3]
    %s103 = scalar_lea.vmem %s1, 8
    %v104 = vld [vmem:[%s103] sm:$0xff]
    %vm105 = vcmask 64512
    %v107 = vsel %vm105, %v86, 0
    %v110 = vsel %vm105, %v87, 0
    %v113 = vsel %vm105, %v88, 0
    %v116 = vsel %vm105, %v89, 0
    %v119 = vsel %vm105, %v90, 0
    %v122 = vsel %vm105, %v91, 0
    %v125 = vsel %vm105, %v92, 0
    %v128 = vsel %vm105, %v93, 0
    %v131 = vsel %vm105, %v94, 0
    %v134 = vsel %vm105, %v95, 0
    %v137 = vsel %vm105, %v96, 0
    %v140 = vsel %vm105, %v97, 0
    %v143 = vsel %vm105, %v98, 0
    %v146 = vsel %vm105, %v99, 0
    %v149 = vsel %vm105, %v100, 0
    %v152 = vsel %vm105, %v101, 0
    %v155 = vsel %vm105, %v102, 0
    %157 = vmatprep.subr.mxu0 0.0
    %158 = vmatpush1.msra.mxu0 %v104
    %159 = vmatprep.subr.mxu0 0.0
    %160 = vmatpush1.msra.mxu0 0.0
    %161 = vmatprep.subr.mxu0 0.0
    %162 = vmatpush1.msra.mxu0 0.0
    %163 = vmatprep.subr.mxu0 0.0
    %164 = vmatpush1.msra.mxu0 0.0
    %165 = vmatprep.subr.mxu0 0.0
    %166 = vmatpush1.msra.mxu0 0.0
    %167 = vmatprep.subr.mxu0 0.0
    %168 = vmatpush1.msra.mxu0 0.0
    %169 = vmatprep.subr.mxu0 0.0
    %170 = vmatpush1.msra.mxu0 0.0
    %171 = vmatprep.subr.mxu0 0.0
    %172 = vmatpush1.msra.mxu0 0.0
    %173 = vmatprep.subr.mxu0 0.0
    %174 = vmatpush1.msra.mxu0 0.0
    %175 = vmatprep.subr.mxu0 0.0
    %176 = vmatpush1.msra.mxu0 0.0
    %177 = vmatprep.subr.mxu0 0.0
    %178 = vmatpush1.msra.mxu0 0.0
    %179 = vmatprep.subr.mxu0 0.0
    %180 = vmatpush1.msra.mxu0 0.0
    %181 = vmatprep.subr.mxu0 0.0
    %182 = vmatpush1.msra.mxu0 0.0
    %183 = vmatprep.subr.mxu0 0.0
    %184 = vmatpush1.msra.mxu0 0.0
    %185 = vmatprep.subr.mxu0 0.0
    %186 = vmatpush1.msra.mxu0 0.0
    %187 = vmatprep.subr.mxu0 0.0
    %188 = vmatpush1.msra.mxu0 0.0
    %189 = vmatprep.subr.mxu0 0.0
    %190 = vmatpush1.msra.mxu0 0.0
    %191 = vmatprep.subr.mxu0 0.0
    %192 = vmatpush1.msra.mxu0 0.0
    %193 = vmatprep.subr.mxu0 0.0
    %194 = vmatpush1.msra.mxu0 0.0
    %195 = vmatprep.subr.mxu0 0.0
    %196 = vmatpush1.msra.mxu0 0.0
    %197 = vmatprep.subr.mxu0 0.0
    %198 = vmatpush1.msra.mxu0 0.0
    %199 = vmatprep.subr.mxu0 0.0
    %200 = vmatpush1.msra.mxu0 0.0
    %201 = vmatprep.subr.mxu0 0.0
    %202 = vmatpush1.msra.mxu0 0.0
    %203 = vmatprep.subr.mxu0 0.0
    %204 = vmatpush1.msra.mxu0 0.0
    %205 = vmatprep.subr.mxu0 0.0
    %206 = vmatpush1.msra.mxu0 0.0
    %207 = vmatprep.subr.mxu0 0.0
    %208 = vmatpush1.msra.mxu0 0.0
    %209 = vmatprep.subr.mxu0 0.0
    %210 = vmatpush1.msra.mxu0 0.0
    %211 = vmatprep.subr.mxu0 0.0
    %212 = vmatpush1.msra.mxu0 0.0
    %213 = vmatprep.subr.mxu0 0.0
    %214 = vmatpush1.msra.mxu0 0.0
    %215 = vmatprep.subr.mxu0 0.0
    %216 = vmatpush1.msra.mxu0 0.0
    %217 = vmatprep.subr.mxu0 0.0
    %218 = vmatpush1.msra.mxu0 0.0
    %219 = vmatprep.subr.mxu0 0.0
    %220 = vmatpush1.msra.mxu0 0.0
    %221 = vmatprep.mubr.f32.mxu0 0.0
    %222 = vmatmul.mubr.f32.gmra.mrb[0].mxu0 %v107
    %v223 = vpop.f32.mrb[0].mxu0
    %v224 = vadd.f32 0.0, %v223
    %v225 = vpop.f32.mrb[0].mxu0
    %226 = vmatprep.mubr.f32.mxu0 0.0
    %227 = vmatmul.mubr.f32.gmra.mrb[0].mxu0 %v110
    %v228 = vpop.f32.mrb[0].mxu0
    %v229 = vadd.f32 0.0, %v228
    %v230 = vpop.f32.mrb[0].mxu0
    %231 = vmatprep.mubr.f32.mxu0 0.0
    %232 = vmatmul.mubr.f32.gmra.mrb[0].mxu0 %v113
    %v233 = vpop.f32.mrb[0].mxu0
    %v234 = vadd.f32 0.0, %v233
    %v235 = vpop.f32.mrb[0].mxu0
    %236 = vmatprep.mubr.f32.mxu0 0.0
    %237 = vmatmul.mubr.f32.gmra.mrb[0].mxu0 %v116
    %v238 = vpop.f32.mrb[0].mxu0
    %v239 = vadd.f32 0.0, %v238
    %v240 = vpop.f32.mrb[0].mxu0
    %241 = vmatprep.mubr.f32.mxu0 0.0
    %242 = vmatmul.mubr.f32.gmra.mrb[0].mxu0 %v119
    %v243 = vpop.f32.mrb[0].mxu0
    %v244 = vadd.f32 0.0, %v243
    %v245 = vpop.f32.mrb[0].mxu0
    %246 = vmatprep.mubr.f32.mxu0 0.0
    %247 = vmatmul.mubr.f32.gmra.mrb[0].mxu0 %v122
    %v248 = vpop.f32.mrb[0].mxu0
    %v249 = vadd.f32 0.0, %v248
    %v250 = vpop.f32.mrb[0].mxu0
    %251 = vmatprep.mubr.f32.mxu0 0.0
    %252 = vmatmul.mubr.f32.gmra.mrb[0].mxu0 %v125
    %v253 = vpop.f32.mrb[0].mxu0
    %v254 = vadd.f32 0.0, %v253
    %v255 = vpop.f32.mrb[0].mxu0
    %256 = vmatprep.mubr.f32.mxu0 0.0
    %257 = vmatmul.mubr.f32.gmra.mrb[0].mxu0 %v128
    %v258 = vpop.f32.mrb[0].mxu0
    %v259 = vadd.f32 0.0, %v258
    %v260 = vpop.f32.mrb[0].mxu0
    %261 = vmatprep.mubr.f32.mxu0 0.0
    %262 = vmatmul.mubr.f32.gmra.mrb[0].mxu0 %v131
    %v263 = vpop.f32.mrb[0].mxu0
    %v264 = vadd.f32 0.0, %v263
    %v265 = vpop.f32.mrb[0].mxu0
    %266 = vmatprep.mubr.f32.mxu0 0.0
    %267 = vmatmul.mubr.f32.gmra.mrb[0].mxu0 %v134
    %v268 = vpop.f32.mrb[0].mxu0
    %v269 = vadd.f32 0.0, %v268
    %v270 = vpop.f32.mrb[0].mxu0
    %271 = vmatprep.mubr.f32.mxu0 0.0
    %272 = vmatmul.mubr.f32.gmra.mrb[0].mxu0 %v137
    %v273 = vpop.f32.mrb[0].mxu0
    %v274 = vadd.f32 0.0, %v273
    %v275 = vpop.f32.mrb[0].mxu0
    %276 = vmatprep.mubr.f32.mxu0 0.0
    %277 = vmatmul.mubr.f32.gmra.mrb[0].mxu0 %v140
    %v278 = vpop.f32.mrb[0].mxu0
    %v279 = vadd.f32 0.0, %v278
    %v280 = vpop.f32.mrb[0].mxu0
    %281 = vmatprep.mubr.f32.mxu0 0.0
    %282 = vmatmul.mubr.f32.gmra.mrb[0].mxu0 %v143
    %v283 = vpop.f32.mrb[0].mxu0
    %v284 = vadd.f32 0.0, %v283
    %v285 = vpop.f32.mrb[0].mxu0
    %286 = vmatprep.mubr.f32.mxu0 0.0
    %287 = vmatmul.mubr.f32.gmra.mrb[0].mxu0 %v146
    %v288 = vpop.f32.mrb[0].mxu0
    %v289 = vadd.f32 0.0, %v288
    %v290 = vpop.f32.mrb[0].mxu0
    %291 = vmatprep.mubr.f32.mxu0 0.0
    %292 = vmatmul.mubr.f32.gmra.mrb[0].mxu0 %v149
    %v293 = vpop.f32.mrb[0].mxu0
    %v294 = vadd.f32 0.0, %v293
    %v295 = vpop.f32.mrb[0].mxu0
    %296 = vmatprep.mubr.f32.mxu0 0.0
    %297 = vmatmul.mubr.f32.gmra.mrb[0].mxu0 %v152
    %v298 = vpop.f32.mrb[0].mxu0
    %v299 = vadd.f32 0.0, %v298
    %v300 = vpop.f32.mrb[0].mxu0
    %301 = vmatprep.mubr.f32.mxu0 0.0
    %302 = vmatmul.mubr.f32.gmra.mrb[0].mxu0 %v155
    %v303 = vpop.f32.mrb[0].mxu0
    %v304 = vadd.f32 0.0, %v303
    %v305 = vpop.f32.mrb[0].mxu0
    %306 = vdwg.mxu0
    %v308 = vsel %vm105, %v68, 0
    %v311 = vsel %vm105, %v69, 0
    %v314 = vsel %vm105, %v70, 0
    %v317 = vsel %vm105, %v71, 0
    %v320 = vsel %vm105, %v72, 0
    %v323 = vsel %vm105, %v73, 0
    %v326 = vsel %vm105, %v74, 0
    %v329 = vsel %vm105, %v75, 0
    %v332 = vsel %vm105, %v76, 0
    %v335 = vsel %vm105, %v77, 0
    %v338 = vsel %vm105, %v78, 0
    %v341 = vsel %vm105, %v79, 0
    %v344 = vsel %vm105, %v80, 0
    %v347 = vsel %vm105, %v81, 0
    %v350 = vsel %vm105, %v82, 0
    %v353 = vsel %vm105, %v83, 0
    %v356 = vsel %vm105, %v84, 0
    %358 = vmatprep.subr.mxu0 0.0
    %359 = vmatpush1.msra.mxu0 %v85
    %360 = vmatprep.subr.mxu0 0.0
    %361 = vmatpush1.msra.mxu0 0.0
    %362 = vmatprep.subr.mxu0 0.0
    %363 = vmatpush1.msra.mxu0 0.0
    %364 = vmatprep.subr.mxu0 0.0
    %365 = vmatpush1.msra.mxu0 0.0
    %366 = vmatprep.subr.mxu0 0.0
    %367 = vmatpush1.msra.mxu0 0.0
    %368 = vmatprep.subr.mxu0 0.0
    %369 = vmatpush1.msra.mxu0 0.0
    %370 = vmatprep.subr.mxu0 0.0
    %371 = vmatpush1.msra.mxu0 0.0
    %372 = vmatprep.subr.mxu0 0.0
    %373 = vmatpush1.msra.mxu0 0.0
    %374 = vmatprep.subr.mxu0 0.0
    %375 = vmatpush1.msra.mxu0 0.0
    %376 = vmatprep.subr.mxu0 0.0
    %377 = vmatpush1.msra.mxu0 0.0
    %378 = vmatprep.subr.mxu0 0.0
    %379 = vmatpush1.msra.mxu0 0.0
    %380 = vmatprep.subr.mxu0 0.0
    %381 = vmatpush1.msra.mxu0 0.0
    %382 = vmatprep.subr.mxu0 0.0
    %383 = vmatpush1.msra.mxu0 0.0
    %384 = vmatprep.subr.mxu0 0.0
    %385 = vmatpush1.msra.mxu0 0.0
    %386 = vmatprep.subr.mxu0 0.0
    %387 = vmatpush1.msra.mxu0 0.0
    %388 = vmatprep.subr.mxu0 0.0
    %389 = vmatpush1.msra.mxu0 0.0
    %390 = vmatprep.subr.mxu0 0.0
    %391 = vmatpush1.msra.mxu0 0.0
    %392 = vmatprep.subr.mxu0 0.0
    %393 = vmatpush1.msra.mxu0 0.0
    %394 = vmatprep.subr.mxu0 0.0
    %395 = vmatpush1.msra.mxu0 0.0
    %396 = vmatprep.subr.mxu0 0.0
    %397 = vmatpush1.msra.mxu0 0.0
    %398 = vmatprep.subr.mxu0 0.0
    %399 = vmatpush1.msra.mxu0 0.0
    %400 = vmatprep.subr.mxu0 0.0
    %401 = vmatpush1.msra.mxu0 0.0
    %402 = vmatprep.subr.mxu0 0.0
    %403 = vmatpush1.msra.mxu0 0.0
    %404 = vmatprep.subr.mxu0 0.0
    %405 = vmatpush1.msra.mxu0 0.0
    %406 = vmatprep.subr.mxu0 0.0
    %407 = vmatpush1.msra.mxu0 0.0
    %408 = vmatprep.subr.mxu0 0.0
    %409 = vmatpush1.msra.mxu0 0.0
    %410 = vmatprep.subr.mxu0 0.0
    %411 = vmatpush1.msra.mxu0 0.0
    %412 = vmatprep.subr.mxu0 0.0
    %413 = vmatpush1.msra.mxu0 0.0
    %414 = vmatprep.subr.mxu0 0.0
    %415 = vmatpush1.msra.mxu0 0.0
    %416 = vmatprep.subr.mxu0 0.0
    %417 = vmatpush1.msra.mxu0 0.0
    %418 = vmatprep.subr.mxu0 0.0
    %419 = vmatpush1.msra.mxu0 0.0
    %420 = vmatprep.subr.mxu0 0.0
    %421 = vmatpush1.msra.mxu0 0.0
    %422 = vmatprep.mubr.f32.mxu0 0.0
    %423 = vmatmul.mubr.f32.gmra.mrb[0].mxu0 %v308
    %v424 = vpop.f32.mrb[0].mxu0
    %v425 = vadd.f32 %v224, %v424
    %v426 = vpop.f32.mrb[0].mxu0
    %427 = vmatprep.mubr.f32.mxu0 0.0
    %428 = vmatmul.mubr.f32.gmra.mrb[0].mxu0 %v311
    %v429 = vpop.f32.mrb[0].mxu0
    %v430 = vadd.f32 %v229, %v429
    %v431 = vpop.f32.mrb[0].mxu0
    %432 = vmatprep.mubr.f32.mxu0 0.0
    %433 = vmatmul.mubr.f32.gmra.mrb[0].mxu0 %v314
    %v434 = vpop.f32.mrb[0].mxu0
    %v435 = vadd.f32 %v234, %v434
    %v436 = vpop.f32.mrb[0].mxu0
    %437 = vmatprep.mubr.f32.mxu0 0.0
    %438 = vmatmul.mubr.f32.gmra.mrb[0].mxu0 %v317
    %v439 = vpop.f32.mrb[0].mxu0
    %v440 = vadd.f32 %v239, %v439
    %v441 = vpop.f32.mrb[0].mxu0
    %442 = vmatprep.mubr.f32.mxu0 0.0
    %443 = vmatmul.mubr.f32.gmra.mrb[0].mxu0 %v320
    %v444 = vpop.f32.mrb[0].mxu0
    %v445 = vadd.f32 %v244, %v444
    %v446 = vpop.f32.mrb[0].mxu0
    %447 = vmatprep.mubr.f32.mxu0 0.0
    %448 = vmatmul.mubr.f32.gmra.mrb[0].mxu0 %v323
    %v449 = vpop.f32.mrb[0].mxu0
    %v450 = vadd.f32 %v249, %v449
    %v451 = vpop.f32.mrb[0].mxu0
    %452 = vmatprep.mubr.f32.mxu0 0.0
    %453 = vmatmul.mubr.f32.gmra.mrb[0].mxu0 %v326
    %v454 = vpop.f32.mrb[0].mxu0
    %v455 = vadd.f32 %v254, %v454
    %v456 = vpop.f32.mrb[0].mxu0
    %457 = vmatprep.mubr.f32.mxu0 0.0
    %458 = vmatmul.mubr.f32.gmra.mrb[0].mxu0 %v329
    %v459 = vpop.f32.mrb[0].mxu0
    %v460 = vadd.f32 %v259, %v459
    %v461 = vpop.f32.mrb[0].mxu0
    %462 = vmatprep.mubr.f32.mxu0 0.0
    %463 = vmatmul.mubr.f32.gmra.mrb[0].mxu0 %v332
    %v464 = vpop.f32.mrb[0].mxu0
    %v465 = vadd.f32 %v264, %v464
    %v466 = vpop.f32.mrb[0].mxu0
    %467 = vmatprep.mubr.f32.mxu0 0.0
    %468 = vmatmul.mubr.f32.gmra.mrb[0].mxu0 %v335
    %v469 = vpop.f32.mrb[0].mxu0
    %v470 = vadd.f32 %v269, %v469
    %v471 = vpop.f32.mrb[0].mxu0
    %472 = vmatprep.mubr.f32.mxu0 0.0
    %473 = vmatmul.mubr.f32.gmra.mrb[0].mxu0 %v338
    %v474 = vpop.f32.mrb[0].mxu0
    %v475 = vadd.f32 %v274, %v474
    %v476 = vpop.f32.mrb[0].mxu0
    %477 = vmatprep.mubr.f32.mxu0 0.0
    %478 = vmatmul.mubr.f32.gmra.mrb[0].mxu0 %v341
    %v479 = vpop.f32.mrb[0].mxu0
    %v480 = vadd.f32 %v279, %v479
    %v481 = vpop.f32.mrb[0].mxu0
    %482 = vmatprep.mubr.f32.mxu0 0.0
    %483 = vmatmul.mubr.f32.gmra.mrb[0].mxu0 %v344
    %v484 = vpop.f32.mrb[0].mxu0
    %v485 = vadd.f32 %v284, %v484
    %v486 = vpop.f32.mrb[0].mxu0
    %487 = vmatprep.mubr.f32.mxu0 0.0
    %488 = vmatmul.mubr.f32.gmra.mrb[0].mxu0 %v347
    %v489 = vpop.f32.mrb[0].mxu0
    %v490 = vadd.f32 %v289, %v489
    %v491 = vpop.f32.mrb[0].mxu0
    %492 = vmatprep.mubr.f32.mxu0 0.0
    %493 = vmatmul.mubr.f32.gmra.mrb[0].mxu0 %v350
    %v494 = vpop.f32.mrb[0].mxu0
    %v495 = vadd.f32 %v294, %v494
    %v496 = vpop.f32.mrb[0].mxu0
    %497 = vmatprep.mubr.f32.mxu0 0.0
    %498 = vmatmul.mubr.f32.gmra.mrb[0].mxu0 %v353
    %v499 = vpop.f32.mrb[0].mxu0
    %v500 = vadd.f32 %v299, %v499
    %v501 = vpop.f32.mrb[0].mxu0
    %502 = vmatprep.mubr.f32.mxu0 0.0
    %503 = vmatmul.mubr.f32.gmra.mrb[0].mxu0 %v356
    %v504 = vpop.f32.mrb[0].mxu0
    %v505 = vadd.f32 %v304, %v504
    %v506 = vpop.f32.mrb[0].mxu0
    %507 = vdwg.mxu0
    %v508 = vld [vmem:[%s0 + $0x2] sm:$0xff]
    %v509 = vld [vmem:[%s0 + $0xa] sm:$0xff]
    %v510 = vld [vmem:[%s0 + $0x12] sm:$0xff]
    %v511 = vld [vmem:[%s0 + $0x1a] sm:$0xff]
    %v512 = vld [vmem:[%s0 + $0x22] sm:$0xff]
    %v513 = vld [vmem:[%s0 + $0x2a] sm:$0xff]
    %v514 = vld [vmem:[%s0 + $0x32] sm:$0xff]
    %v515 = vld [vmem:[%s0 + $0x3a] sm:$0xff]
    %v516 = vld [vmem:[%s0 + $0x42] sm:$0xff]
    %v517 = vld [vmem:[%s0 + $0x4a] sm:$0xff]
    %v518 = vld [vmem:[%s0 + $0x52] sm:$0xff]
    %v519 = vld [vmem:[%s0 + $0x5a] sm:$0xff]
    %v520 = vld [vmem:[%s0 + $0x62] sm:$0xff]
    %v521 = vld [vmem:[%s0 + $0x6a] sm:$0xff]
    %v522 = vld [vmem:[%s0 + $0x72] sm:$0xff]
    %v523 = vld [vmem:[%s0 + $0x7a] sm:$0xff]
    %v524 = vld [vmem:[%s0 + $0x82] sm:$0x3]
    %s525 = scalar_lea.vmem %s1, 16
    %v526 = vld [vmem:[%s525] sm:$0xff]
    %v528 = vsel %vm105, %v508, 0
    %v531 = vsel %vm105, %v509, 0
    %v534 = vsel %vm105, %v510, 0
    %v537 = vsel %vm105, %v511, 0
    %v540 = vsel %vm105, %v512, 0
    %v543 = vsel %vm105, %v513, 0
    %v546 = vsel %vm105, %v514, 0
    %v549 = vsel %vm105, %v515, 0
    %v552 = vsel %vm105, %v516, 0
    %v555 = vsel %vm105, %v517, 0
    %v558 = vsel %vm105, %v518, 0
    %v561 = vsel %vm105, %v519, 0
    %v564 = vsel %vm105, %v520, 0
    %v567 = vsel %vm105, %v521, 0
    %v570 = vsel %vm105, %v522, 0
    %v573 = vsel %vm105, %v523, 0
    %v576 = vsel %vm105, %v524, 0
    %578 = vmatprep.subr.mxu0 0.0
    %579 = vmatpush1.msra.mxu0 %v526
    %580 = vmatprep.subr.mxu0 0.0
    %581 = vmatpush1.msra.mxu0 0.0
    %582 = vmatprep.subr.mxu0 0.0
    %583 = vmatpush1.msra.mxu0 0.0
    %584 = vmatprep.subr.mxu0 0.0
    %585 = vmatpush1.msra.mxu0 0.0
    %586 = vmatprep.subr.mxu0 0.0
    %587 = vmatpush1.msra.mxu0 0.0
    %588 = vmatprep.subr.mxu0 0.0
    %589 = vmatpush1.msra.mxu0 0.0
    %590 = vmatprep.subr.mxu0 0.0
    %591 = vmatpush1.msra.mxu0 0.0
    %592 = vmatprep.subr.mxu0 0.0
    %593 = vmatpush1.msra.mxu0 0.0
    %594 = vmatprep.subr.mxu0 0.0
    %595 = vmatpush1.msra.mxu0 0.0
    %596 = vmatprep.subr.mxu0 0.0
    %597 = vmatpush1.msra.mxu0 0.0
    %598 = vmatprep.subr.mxu0 0.0
    %599 = vmatpush1.msra.mxu0 0.0
    %600 = vmatprep.subr.mxu0 0.0
    %601 = vmatpush1.msra.mxu0 0.0
    %602 = vmatprep.subr.mxu0 0.0
    %603 = vmatpush1.msra.mxu0 0.0
    %604 = vmatprep.subr.mxu0 0.0
    %605 = vmatpush1.msra.mxu0 0.0
    %606 = vmatprep.subr.mxu0 0.0
    %607 = vmatpush1.msra.mxu0 0.0
    %608 = vmatprep.subr.mxu0 0.0
    %609 = vmatpush1.msra.mxu0 0.0
    %610 = vmatprep.subr.mxu0 0.0
    %611 = vmatpush1.msra.mxu0 0.0
    %612 = vmatprep.subr.mxu0 0.0
    %613 = vmatpush1.msra.mxu0 0.0
    %614 = vmatprep.subr.mxu0 0.0
    %615 = vmatpush1.msra.mxu0 0.0
    %616 = vmatprep.subr.mxu0 0.0
    %617 = vmatpush1.msra.mxu0 0.0
    %618 = vmatprep.subr.mxu0 0.0
    %619 = vmatpush1.msra.mxu0 0.0
    %620 = vmatprep.subr.mxu0 0.0
    %621 = vmatpush1.msra.mxu0 0.0
    %622 = vmatprep.subr.mxu0 0.0
    %623 = vmatpush1.msra.mxu0 0.0
    %624 = vmatprep.subr.mxu0 0.0
    %625 = vmatpush1.msra.mxu0 0.0
    %626 = vmatprep.subr.mxu0 0.0
    %627 = vmatpush1.msra.mxu0 0.0
    %628 = vmatprep.subr.mxu0 0.0
    %629 = vmatpush1.msra.mxu0 0.0
    %630 = vmatprep.subr.mxu0 0.0
    %631 = vmatpush1.msra.mxu0 0.0
    %632 = vmatprep.subr.mxu0 0.0
    %633 = vmatpush1.msra.mxu0 0.0
    %634 = vmatprep.subr.mxu0 0.0
    %635 = vmatpush1.msra.mxu0 0.0
    %636 = vmatprep.subr.mxu0 0.0
    %637 = vmatpush1.msra.mxu0 0.0
    %638 = vmatprep.subr.mxu0 0.0
    %639 = vmatpush1.msra.mxu0 0.0
    %640 = vmatprep.subr.mxu0 0.0
    %641 = vmatpush1.msra.mxu0 0.0
    %642 = vmatprep.mubr.f32.mxu0 0.0
    %643 = vmatmul.mubr.f32.gmra.mrb[0].mxu0 %v528
    %v644 = vpop.f32.mrb[0].mxu0
    %v645 = vadd.f32 0.0, %v644
    %v646 = vpop.f32.mrb[0].mxu0
    %647 = vmatprep.mubr.f32.mxu0 0.0
    %648 = vmatmul.mubr.f32.gmra.mrb[0].mxu0 %v531
    %v649 = vpop.f32.mrb[0].mxu0
    %v650 = vadd.f32 0.0, %v649
    %v651 = vpop.f32.mrb[0].mxu0
    %652 = vmatprep.mubr.f32.mxu0 0.0
    %653 = vmatmul.mubr.f32.gmra.mrb[0].mxu0 %v534
    %v654 = vpop.f32.mrb[0].mxu0
    %v655 = vadd.f32 0.0, %v654
    %v656 = vpop.f32.mrb[0].mxu0
    %657 = vmatprep.mubr.f32.mxu0 0.0
    %658 = vmatmul.mubr.f32.gmra.mrb[0].mxu0 %v537
    %v659 = vpop.f32.mrb[0].mxu0
    %v660 = vadd.f32 0.0, %v659
    %v661 = vpop.f32.mrb[0].mxu0
    %662 = vmatprep.mubr.f32.mxu0 0.0
    %663 = vmatmul.mubr.f32.gmra.mrb[0].mxu0 %v540
    %v664 = vpop.f32.mrb[0].mxu0
    %v665 = vadd.f32 0.0, %v664
    %v666 = vpop.f32.mrb[0].mxu0
    %667 = vmatprep.mubr.f32.mxu0 0.0
    %668 = vmatmul.mubr.f32.gmra.mrb[0].mxu0 %v543
    %v669 = vpop.f32.mrb[0].mxu0
    %v670 = vadd.f32 0.0, %v669
    %v671 = vpop.f32.mrb[0].mxu0
    %672 = vmatprep.mubr.f32.mxu0 0.0
    %673 = vmatmul.mubr.f32.gmra.mrb[0].mxu0 %v546
    %v674 = vpop.f32.mrb[0].mxu0
    %v675 = vadd.f32 0.0, %v674
    %v676 = vpop.f32.mrb[0].mxu0
    %677 = vmatprep.mubr.f32.mxu0 0.0
    %678 = vmatmul.mubr.f32.gmra.mrb[0].mxu0 %v549
    %v679 = vpop.f32.mrb[0].mxu0
    %v680 = vadd.f32 0.0, %v679
    %v681 = vpop.f32.mrb[0].mxu0
    %682 = vmatprep.mubr.f32.mxu0 0.0
    %683 = vmatmul.mubr.f32.gmra.mrb[0].mxu0 %v552
    %v684 = vpop.f32.mrb[0].mxu0
    %v685 = vadd.f32 0.0, %v684
    %v686 = vpop.f32.mrb[0].mxu0
    %687 = vmatprep.mubr.f32.mxu0 0.0
    %688 = vmatmul.mubr.f32.gmra.mrb[0].mxu0 %v555
    %v689 = vpop.f32.mrb[0].mxu0
    %v690 = vadd.f32 0.0, %v689
    %v691 = vpop.f32.mrb[0].mxu0
    %692 = vmatprep.mubr.f32.mxu0 0.0
    %693 = vmatmul.mubr.f32.gmra.mrb[0].mxu0 %v558
    %v694 = vpop.f32.mrb[0].mxu0
    %v695 = vadd.f32 0.0, %v694
    %v696 = vpop.f32.mrb[0].mxu0
    %697 = vmatprep.mubr.f32.mxu0 0.0
    %698 = vmatmul.mubr.f32.gmra.mrb[0].mxu0 %v561
    %v699 = vpop.f32.mrb[0].mxu0
    %v700 = vadd.f32 0.0, %v699
    %v701 = vpop.f32.mrb[0].mxu0
    %702 = vmatprep.mubr.f32.mxu0 0.0
    %703 = vmatmul.mubr.f32.gmra.mrb[0].mxu0 %v564
    %v704 = vpop.f32.mrb[0].mxu0
    %v705 = vadd.f32 0.0, %v704
    %v706 = vpop.f32.mrb[0].mxu0
    %707 = vmatprep.mubr.f32.mxu0 0.0
    %708 = vmatmul.mubr.f32.gmra.mrb[0].mxu0 %v567
    %v709 = vpop.f32.mrb[0].mxu0
    %v710 = vadd.f32 0.0, %v709
    %v711 = vpop.f32.mrb[0].mxu0
    %712 = vmatprep.mubr.f32.mxu0 0.0
    %713 = vmatmul.mubr.f32.gmra.mrb[0].mxu0 %v570
    %v714 = vpop.f32.mrb[0].mxu0
    %v715 = vadd.f32 0.0, %v714
    %v716 = vpop.f32.mrb[0].mxu0
    %717 = vmatprep.mubr.f32.mxu0 0.0
    %718 = vmatmul.mubr.f32.gmra.mrb[0].mxu0 %v573
    %v719 = vpop.f32.mrb[0].mxu0
    %v720 = vadd.f32 0.0, %v719
    %v721 = vpop.f32.mrb[0].mxu0
    %722 = vmatprep.mubr.f32.mxu0 0.0
    %723 = vmatmul.mubr.f32.gmra.mrb[0].mxu0 %v576
    %v724 = vpop.f32.mrb[0].mxu0
    %v725 = vadd.f32 0.0, %v724
    %v726 = vpop.f32.mrb[0].mxu0
    %727 = vdwg.mxu0
    %v728 = vadd.f32 %v425, %v645
    %v729 = vadd.f32 %v430, %v650
    %v730 = vadd.f32 %v435, %v655
    %v731 = vadd.f32 %v440, %v660
    %v732 = vadd.f32 %v445, %v665
    %v733 = vadd.f32 %v450, %v670
    %v734 = vadd.f32 %v455, %v675
    %v735 = vadd.f32 %v460, %v680
    %v736 = vadd.f32 %v465, %v685
    %v737 = vadd.f32 %v470, %v690
    %v738 = vadd.f32 %v475, %v695
    %v739 = vadd.f32 %v480, %v700
    %v740 = vadd.f32 %v485, %v705
    %v741 = vadd.f32 %v490, %v710
    %v742 = vadd.f32 %v495, %v715
    %v743 = vadd.f32 %v500, %v720
    %v744 = vadd.f32 %v505, %v725
    %v745 = vld [vmem:[%s0 + $0x7] sm:$0xff]
    %v746 = vld [vmem:[%s0 + $0xf] sm:$0xff]
    %v747 = vld [vmem:[%s0 + $0x17] sm:$0xff]
    %v748 = vld [vmem:[%s0 + $0x1f] sm:$0xff]
    %v749 = vld [vmem:[%s0 + $0x27] sm:$0xff]
    %v750 = vld [vmem:[%s0 + $0x2f] sm:$0xff]
    %v751 = vld [vmem:[%s0 + $0x37] sm:$0xff]
    %v752 = vld [vmem:[%s0 + $0x3f] sm:$0xff]
    %v753 = vld [vmem:[%s0 + $0x47] sm:$0xff]
    %v754 = vld [vmem:[%s0 + $0x4f] sm:$0xff]
    %v755 = vld [vmem:[%s0 + $0x57] sm:$0xff]
    %v756 = vld [vmem:[%s0 + $0x5f] sm:$0xff]
    %v757 = vld [vmem:[%s0 + $0x67] sm:$0xff]
    %v758 = vld [vmem:[%s0 + $0x6f] sm:$0xff]
    %v759 = vld [vmem:[%s0 + $0x77] sm:$0xff]
    %v760 = vld [vmem:[%s0 + $0x7f] sm:$0xff]
    %v761 = vld [vmem:[%s0 + $0x87] sm:$0x3]
    %s762 = scalar_lea.vmem %s1, 24
    %v763 = vld [vmem:[%s762] sm:$0xff]
    %v765 = vsel %vm105, %v745, 0
    %v768 = vsel %vm105, %v746, 0
    %v771 = vsel %vm105, %v747, 0
    %v774 = vsel %vm105, %v748, 0
    %v777 = vsel %vm105, %v749, 0
    %v780 = vsel %vm105, %v750, 0
    %v783 = vsel %vm105, %v751, 0
    %v786 = vsel %vm105, %v752, 0
    %v789 = vsel %vm105, %v753, 0
    %v792 = vsel %vm105, %v754, 0
    %v795 = vsel %vm105, %v755, 0
    %v798 = vsel %vm105, %v756, 0
    %v801 = vsel %vm105, %v757, 0
    %v804 = vsel %vm105, %v758, 0
    %v807 = vsel %vm105, %v759, 0
    %v810 = vsel %vm105, %v760, 0
    %v813 = vsel %vm105, %v761, 0
    %815 = vmatprep.subr.mxu0 0.0
    %816 = vmatpush1.msra.mxu0 %v763
    %817 = vmatprep.subr.mxu0 0.0
    %818 = vmatpush1.msra.mxu0 0.0
    %819 = vmatprep.subr.mxu0 0.0
    %820 = vmatpush1.msra.mxu0 0.0
    %821 = vmatprep.subr.mxu0 0.0
    %822 = vmatpush1.msra.mxu0 0.0
    %823 = vmatprep.subr.mxu0 0.0
    %824 = vmatpush1.msra.mxu0 0.0
    %825 = vmatprep.subr.mxu0 0.0
    %826 = vmatpush1.msra.mxu0 0.0
    %827 = vmatprep.subr.mxu0 0.0
    %828 = vmatpush1.msra.mxu0 0.0
    %829 = vmatprep.subr.mxu0 0.0
    %830 = vmatpush1.msra.mxu0 0.0
    %831 = vmatprep.subr.mxu0 0.0
    %832 = vmatpush1.msra.mxu0 0.0
    %833 = vmatprep.subr.mxu0 0.0
    %834 = vmatpush1.msra.mxu0 0.0
    %835 = vmatprep.subr.mxu0 0.0
    %836 = vmatpush1.msra.mxu0 0.0
    %837 = vmatprep.subr.mxu0 0.0
    %838 = vmatpush1.msra.mxu0 0.0
    %839 = vmatprep.subr.mxu0 0.0
    %840 = vmatpush1.msra.mxu0 0.0
    %841 = vmatprep.subr.mxu0 0.0
    %842 = vmatpush1.msra.mxu0 0.0
    %843 = vmatprep.subr.mxu0 0.0
    %844 = vmatpush1.msra.mxu0 0.0
    %845 = vmatprep.subr.mxu0 0.0
    %846 = vmatpush1.msra.mxu0 0.0
    %847 = vmatprep.subr.mxu0 0.0
    %848 = vmatpush1.msra.mxu0 0.0
    %849 = vmatprep.subr.mxu0 0.0
    %850 = vmatpush1.msra.mxu0 0.0
    %851 = vmatprep.subr.mxu0 0.0
    %852 = vmatpush1.msra.mxu0 0.0
    %853 = vmatprep.subr.mxu0 0.0
    %854 = vmatpush1.msra.mxu0 0.0
    %855 = vmatprep.subr.mxu0 0.0
    %856 = vmatpush1.msra.mxu0 0.0
    %857 = vmatprep.subr.mxu0 0.0
    %858 = vmatpush1.msra.mxu0 0.0
    %859 = vmatprep.subr.mxu0 0.0
    %860 = vmatpush1.msra.mxu0 0.0
    %861 = vmatprep.subr.mxu0 0.0
    %862 = vmatpush1.msra.mxu0 0.0
    %863 = vmatprep.subr.mxu0 0.0
    %864 = vmatpush1.msra.mxu0 0.0
    %865 = vmatprep.subr.mxu0 0.0
    %866 = vmatpush1.msra.mxu0 0.0
    %867 = vmatprep.subr.mxu0 0.0
    %868 = vmatpush1.msra.mxu0 0.0
    %869 = vmatprep.subr.mxu0 0.0
    %870 = vmatpush1.msra.mxu0 0.0
    %871 = vmatprep.subr.mxu0 0.0
    %872 = vmatpush1.msra.mxu0 0.0
    %873 = vmatprep.subr.mxu0 0.0
    %874 = vmatpush1.msra.mxu0 0.0
    %875 = vmatprep.subr.mxu0 0.0
    %876 = vmatpush1.msra.mxu0 0.0
    %877 = vmatprep.subr.mxu0 0.0
    %878 = vmatpush1.msra.mxu0 0.0
    %879 = vmatprep.mubr.f32.mxu0 0.0
    %880 = vmatmul.mubr.f32.gmra.mrb[0].mxu0 %v765
    %v881 = vpop.f32.mrb[0].mxu0
    %v882 = vadd.f32 0.0, %v881
    %v883 = vpop.f32.mrb[0].mxu0
    %884 = vmatprep.mubr.f32.mxu0 0.0
    %885 = vmatmul.mubr.f32.gmra.mrb[0].mxu0 %v768
    %v886 = vpop.f32.mrb[0].mxu0
    %v887 = vadd.f32 0.0, %v886
    %v888 = vpop.f32.mrb[0].mxu0
    %889 = vmatprep.mubr.f32.mxu0 0.0
    %890 = vmatmul.mubr.f32.gmra.mrb[0].mxu0 %v771
    %v891 = vpop.f32.mrb[0].mxu0
    %v892 = vadd.f32 0.0, %v891
    %v893 = vpop.f32.mrb[0].mxu0
    %894 = vmatprep.mubr.f32.mxu0 0.0
    %895 = vmatmul.mubr.f32.gmra.mrb[0].mxu0 %v774
    %v896 = vpop.f32.mrb[0].mxu0
    %v897 = vadd.f32 0.0, %v896
    %v898 = vpop.f32.mrb[0].mxu0
    %899 = vmatprep.mubr.f32.mxu0 0.0
    %900 = vmatmul.mubr.f32.gmra.mrb[0].mxu0 %v777
    %v901 = vpop.f32.mrb[0].mxu0
    %v902 = vadd.f32 0.0, %v901
    %v903 = vpop.f32.mrb[0].mxu0
    %904 = vmatprep.mubr.f32.mxu0 0.0
    %905 = vmatmul.mubr.f32.gmra.mrb[0].mxu0 %v780
    %v906 = vpop.f32.mrb[0].mxu0
    %v907 = vadd.f32 0.0, %v906
    %v908 = vpop.f32.mrb[0].mxu0
    %909 = vmatprep.mubr.f32.mxu0 0.0
    %910 = vmatmul.mubr.f32.gmra.mrb[0].mxu0 %v783
    %v911 = vpop.f32.mrb[0].mxu0
    %v912 = vadd.f32 0.0, %v911
    %v913 = vpop.f32.mrb[0].mxu0
    %914 = vmatprep.mubr.f32.mxu0 0.0
    %915 = vmatmul.mubr.f32.gmra.mrb[0].mxu0 %v786
    %v916 = vpop.f32.mrb[0].mxu0
    %v917 = vadd.f32 0.0, %v916
    %v918 = vpop.f32.mrb[0].mxu0
    %919 = vmatprep.mubr.f32.mxu0 0.0
    %920 = vmatmul.mubr.f32.gmra.mrb[0].mxu0 %v789
    %v921 = vpop.f32.mrb[0].mxu0
    %v922 = vadd.f32 0.0, %v921
    %v923 = vpop.f32.mrb[0].mxu0
    %924 = vmatprep.mubr.f32.mxu0 0.0
    %925 = vmatmul.mubr.f32.gmra.mrb[0].mxu0 %v792
    %v926 = vpop.f32.mrb[0].mxu0
    %v927 = vadd.f32 0.0, %v926
    %v928 = vpop.f32.mrb[0].mxu0
    %929 = vmatprep.mubr.f32.mxu0 0.0
    %930 = vmatmul.mubr.f32.gmra.mrb[0].mxu0 %v795
    %v931 = vpop.f32.mrb[0].mxu0
    %v932 = vadd.f32 0.0, %v931
    %v933 = vpop.f32.mrb[0].mxu0
    %934 = vmatprep.mubr.f32.mxu0 0.0
    %935 = vmatmul.mubr.f32.gmra.mrb[0].mxu0 %v798
    %v936 = vpop.f32.mrb[0].mxu0
    %v937 = vadd.f32 0.0, %v936
    %v938 = vpop.f32.mrb[0].mxu0
    %939 = vmatprep.mubr.f32.mxu0 0.0
    %940 = vmatmul.mubr.f32.gmra.mrb[0].mxu0 %v801
    %v941 = vpop.f32.mrb[0].mxu0
    %v942 = vadd.f32 0.0, %v941
    %v943 = vpop.f32.mrb[0].mxu0
    %944 = vmatprep.mubr.f32.mxu0 0.0
    %945 = vmatmul.mubr.f32.gmra.mrb[0].mxu0 %v804
    %v946 = vpop.f32.mrb[0].mxu0
    %v947 = vadd.f32 0.0, %v946
    %v948 = vpop.f32.mrb[0].mxu0
    %949 = vmatprep.mubr.f32.mxu0 0.0
    %950 = vmatmul.mubr.f32.gmra.mrb[0].mxu0 %v807
    %v951 = vpop.f32.mrb[0].mxu0
    %v952 = vadd.f32 0.0, %v951
    %v953 = vpop.f32.mrb[0].mxu0
    %954 = vmatprep.mubr.f32.mxu0 0.0
    %955 = vmatmul.mubr.f32.gmra.mrb[0].mxu0 %v810
    %v956 = vpop.f32.mrb[0].mxu0
    %v957 = vadd.f32 0.0, %v956
    %v958 = vpop.f32.mrb[0].mxu0
    %959 = vmatprep.mubr.f32.mxu0 0.0
    %960 = vmatmul.mubr.f32.gmra.mrb[0].mxu0 %v813
    %v961 = vpop.f32.mrb[0].mxu0
    %v962 = vadd.f32 0.0, %v961
    %v963 = vpop.f32.mrb[0].mxu0
    %964 = vdwg.mxu0
    %v965 = vadd.f32 %v728, %v882
    %v966 = vadd.f32 %v729, %v887
    %v967 = vadd.f32 %v730, %v892
    %v968 = vadd.f32 %v731, %v897
    %v969 = vadd.f32 %v732, %v902
    %v970 = vadd.f32 %v733, %v907
    %v971 = vadd.f32 %v734, %v912
    %v972 = vadd.f32 %v735, %v917
    %v973 = vadd.f32 %v736, %v922
    %v974 = vadd.f32 %v737, %v927
    %v975 = vadd.f32 %v738, %v932
    %v976 = vadd.f32 %v739, %v937
    %v977 = vadd.f32 %v740, %v942
    %v978 = vadd.f32 %v741, %v947
    %v979 = vadd.f32 %v742, %v952
    %v980 = vadd.f32 %v743, %v957
    %v981 = vadd.f32 %v744, %v962
    %v982 = vld [vmem:[%s0 + $0x8] sm:$0xff]
    %v983 = vld [vmem:[%s0 + $0x10] sm:$0xff]
    %v984 = vld [vmem:[%s0 + $0x18] sm:$0xff]
    %v985 = vld [vmem:[%s0 + $0x20] sm:$0xff]
    %v986 = vld [vmem:[%s0 + $0x28] sm:$0xff]
    %v987 = vld [vmem:[%s0 + $0x30] sm:$0xff]
    %v988 = vld [vmem:[%s0 + $0x38] sm:$0xff]
    %v989 = vld [vmem:[%s0 + $0x40] sm:$0xff]
    %v990 = vld [vmem:[%s0 + $0x48] sm:$0xff]
    %v991 = vld [vmem:[%s0 + $0x50] sm:$0xff]
    %v992 = vld [vmem:[%s0 + $0x58] sm:$0xff]
    %v993 = vld [vmem:[%s0 + $0x60] sm:$0xff]
    %v994 = vld [vmem:[%s0 + $0x68] sm:$0xff]
    %v995 = vld [vmem:[%s0 + $0x70] sm:$0xff]
    %v996 = vld [vmem:[%s0 + $0x78] sm:$0xff]
    %v997 = vld [vmem:[%s0 + $0x80] sm:$0xff]
    %v998 = vld [vmem:[%s0 + $0x88] sm:$0x3]
    %s999 = scalar_lea.vmem %s1, 32
    %v1000 = vld [vmem:[%s999] sm:$0xff]
    %v1002 = vsel %vm105, %v982, 0
    %v1005 = vsel %vm105, %v983, 0
    %v1008 = vsel %vm105, %v984, 0
    %v1011 = vsel %vm105, %v985, 0
    %v1014 = vsel %vm105, %v986, 0
    %v1017 = vsel %vm105, %v987, 0
    %v1020 = vsel %vm105, %v988, 0
    %v1023 = vsel %vm105, %v989, 0
    %v1026 = vsel %vm105, %v990, 0
    %v1029 = vsel %vm105, %v991, 0
    %v1032 = vsel %vm105, %v992, 0
    %v1035 = vsel %vm105, %v993, 0
    %v1038 = vsel %vm105, %v994, 0
    %v1041 = vsel %vm105, %v995, 0
    %v1044 = vsel %vm105, %v996, 0
    %v1047 = vsel %vm105, %v997, 0
    %v1050 = vsel %vm105, %v998, 0
    %1052 = vmatprep.subr.mxu0 0.0
    %1053 = vmatpush1.msra.mxu0 %v1000
    %1054 = vmatprep.subr.mxu0 0.0
    %1055 = vmatpush1.msra.mxu0 0.0
    %1056 = vmatprep.subr.mxu0 0.0
    %1057 = vmatpush1.msra.mxu0 0.0
    %1058 = vmatprep.subr.mxu0 0.0
    %1059 = vmatpush1.msra.mxu0 0.0
    %1060 = vmatprep.subr.mxu0 0.0
    %1061 = vmatpush1.msra.mxu0 0.0
    %1062 = vmatprep.subr.mxu0 0.0
    %1063 = vmatpush1.msra.mxu0 0.0
    %1064 = vmatprep.subr.mxu0 0.0
    %1065 = vmatpush1.msra.mxu0 0.0
    %1066 = vmatprep.subr.mxu0 0.0
    %1067 = vmatpush1.msra.mxu0 0.0
    %1068 = vmatprep.subr.mxu0 0.0
    %1069 = vmatpush1.msra.mxu0 0.0
    %1070 = vmatprep.subr.mxu0 0.0
    %1071 = vmatpush1.msra.mxu0 0.0
    %1072 = vmatprep.subr.mxu0 0.0
    %1073 = vmatpush1.msra.mxu0 0.0
    %1074 = vmatprep.subr.mxu0 0.0
    %1075 = vmatpush1.msra.mxu0 0.0
    %1076 = vmatprep.subr.mxu0 0.0
    %1077 = vmatpush1.msra.mxu0 0.0
    %1078 = vmatprep.subr.mxu0 0.0
    %1079 = vmatpush1.msra.mxu0 0.0
    %1080 = vmatprep.subr.mxu0 0.0
    %1081 = vmatpush1.msra.mxu0 0.0
    %1082 = vmatprep.subr.mxu0 0.0
    %1083 = vmatpush1.msra.mxu0 0.0
    %1084 = vmatprep.subr.mxu0 0.0
    %1085 = vmatpush1.msra.mxu0 0.0
    %1086 = vmatprep.subr.mxu0 0.0
    %1087 = vmatpush1.msra.mxu0 0.0
    %1088 = vmatprep.subr.mxu0 0.0
    %1089 = vmatpush1.msra.mxu0 0.0
    %1090 = vmatprep.subr.mxu0 0.0
    %1091 = vmatpush1.msra.mxu0 0.0
    %1092 = vmatprep.subr.mxu0 0.0
    %1093 = vmatpush1.msra.mxu0 0.0
    %1094 = vmatprep.subr.mxu0 0.0
    %1095 = vmatpush1.msra.mxu0 0.0
    %1096 = vmatprep.subr.mxu0 0.0
    %1097 = vmatpush1.msra.mxu0 0.0
    %1098 = vmatprep.subr.mxu0 0.0
    %1099 = vmatpush1.msra.mxu0 0.0
    %1100 = vmatprep.subr.mxu0 0.0
    %1101 = vmatpush1.msra.mxu0 0.0
    %1102 = vmatprep.subr.mxu0 0.0
    %1103 = vmatpush1.msra.mxu0 0.0
    %1104 = vmatprep.subr.mxu0 0.0
    %1105 = vmatpush1.msra.mxu0 0.0
    %1106 = vmatprep.subr.mxu0 0.0
    %1107 = vmatpush1.msra.mxu0 0.0
    %1108 = vmatprep.subr.mxu0 0.0
    %1109 = vmatpush1.msra.mxu0 0.0
    %1110 = vmatprep.subr.mxu0 0.0
    %1111 = vmatpush1.msra.mxu0 0.0
    %1112 = vmatprep.subr.mxu0 0.0
    %1113 = vmatpush1.msra.mxu0 0.0
    %1114 = vmatprep.subr.mxu0 0.0
    %1115 = vmatpush1.msra.mxu0 0.0
    %1116 = vmatprep.mubr.f32.mxu0 0.0
    %1117 = vmatmul.mubr.f32.gmra.mrb[0].mxu0 %v1002
    %v1118 = vpop.f32.mrb[0].mxu0
    %v1119 = vadd.f32 0.0, %v1118
    %v1120 = vpop.f32.mrb[0].mxu0
    %1121 = vmatprep.mubr.f32.mxu0 0.0
    %1122 = vmatmul.mubr.f32.gmra.mrb[0].mxu0 %v1005
    %v1123 = vpop.f32.mrb[0].mxu0
    %v1124 = vadd.f32 0.0, %v1123
    %v1125 = vpop.f32.mrb[0].mxu0
    %1126 = vmatprep.mubr.f32.mxu0 0.0
    %1127 = vmatmul.mubr.f32.gmra.mrb[0].mxu0 %v1008
    %v1128 = vpop.f32.mrb[0].mxu0
    %v1129 = vadd.f32 0.0, %v1128
    %v1130 = vpop.f32.mrb[0].mxu0
    %1131 = vmatprep.mubr.f32.mxu0 0.0
    %1132 = vmatmul.mubr.f32.gmra.mrb[0].mxu0 %v1011
    %v1133 = vpop.f32.mrb[0].mxu0
    %v1134 = vadd.f32 0.0, %v1133
    %v1135 = vpop.f32.mrb[0].mxu0
    %1136 = vmatprep.mubr.f32.mxu0 0.0
    %1137 = vmatmul.mubr.f32.gmra.mrb[0].mxu0 %v1014
    %v1138 = vpop.f32.mrb[0].mxu0
    %v1139 = vadd.f32 0.0, %v1138
    %v1140 = vpop.f32.mrb[0].mxu0
    %1141 = vmatprep.mubr.f32.mxu0 0.0
    %1142 = vmatmul.mubr.f32.gmra.mrb[0].mxu0 %v1017
    %v1143 = vpop.f32.mrb[0].mxu0
    %v1144 = vadd.f32 0.0, %v1143
    %v1145 = vpop.f32.mrb[0].mxu0
    %1146 = vmatprep.mubr.f32.mxu0 0.0
    %1147 = vmatmul.mubr.f32.gmra.mrb[0].mxu0 %v1020
    %v1148 = vpop.f32.mrb[0].mxu0
    %v1149 = vadd.f32 0.0, %v1148
    %v1150 = vpop.f32.mrb[0].mxu0
    %1151 = vmatprep.mubr.f32.mxu0 0.0
    %1152 = vmatmul.mubr.f32.gmra.mrb[0].mxu0 %v1023
    %v1153 = vpop.f32.mrb[0].mxu0
    %v1154 = vadd.f32 0.0, %v1153
    %v1155 = vpop.f32.mrb[0].mxu0
    %1156 = vmatprep.mubr.f32.mxu0 0.0
    %1157 = vmatmul.mubr.f32.gmra.mrb[0].mxu0 %v1026
    %v1158 = vpop.f32.mrb[0].mxu0
    %v1159 = vadd.f32 0.0, %v1158
    %v1160 = vpop.f32.mrb[0].mxu0
    %1161 = vmatprep.mubr.f32.mxu0 0.0
    %1162 = vmatmul.mubr.f32.gmra.mrb[0].mxu0 %v1029
    %v1163 = vpop.f32.mrb[0].mxu0
    %v1164 = vadd.f32 0.0, %v1163
    %v1165 = vpop.f32.mrb[0].mxu0
    %1166 = vmatprep.mubr.f32.mxu0 0.0
    %1167 = vmatmul.mubr.f32.gmra.mrb[0].mxu0 %v1032
    %v1168 = vpop.f32.mrb[0].mxu0
    %v1169 = vadd.f32 0.0, %v1168
    %v1170 = vpop.f32.mrb[0].mxu0
    %1171 = vmatprep.mubr.f32.mxu0 0.0
    %1172 = vmatmul.mubr.f32.gmra.mrb[0].mxu0 %v1035
    %v1173 = vpop.f32.mrb[0].mxu0
    %v1174 = vadd.f32 0.0, %v1173
    %v1175 = vpop.f32.mrb[0].mxu0
    %1176 = vmatprep.mubr.f32.mxu0 0.0
    %1177 = vmatmul.mubr.f32.gmra.mrb[0].mxu0 %v1038
    %v1178 = vpop.f32.mrb[0].mxu0
    %v1179 = vadd.f32 0.0, %v1178
    %v1180 = vpop.f32.mrb[0].mxu0
    %1181 = vmatprep.mubr.f32.mxu0 0.0
    %1182 = vmatmul.mubr.f32.gmra.mrb[0].mxu0 %v1041
    %v1183 = vpop.f32.mrb[0].mxu0
    %v1184 = vadd.f32 0.0, %v1183
    %v1185 = vpop.f32.mrb[0].mxu0
    %1186 = vmatprep.mubr.f32.mxu0 0.0
    %1187 = vmatmul.mubr.f32.gmra.mrb[0].mxu0 %v1044
    %v1188 = vpop.f32.mrb[0].mxu0
    %v1189 = vadd.f32 0.0, %v1188
    %v1190 = vpop.f32.mrb[0].mxu0
    %1191 = vmatprep.mubr.f32.mxu0 0.0
    %1192 = vmatmul.mubr.f32.gmra.mrb[0].mxu0 %v1047
    %v1193 = vpop.f32.mrb[0].mxu0
    %v1194 = vadd.f32 0.0, %v1193
    %v1195 = vpop.f32.mrb[0].mxu0
    %1196 = vmatprep.mubr.f32.mxu0 0.0
    %1197 = vmatmul.mubr.f32.gmra.mrb[0].mxu0 %v1050
    %v1198 = vpop.f32.mrb[0].mxu0
    %v1199 = vadd.f32 0.0, %v1198
    %v1200 = vpop.f32.mrb[0].mxu0
    %1201 = vdwg.mxu0
    %v1202 = vadd.f32 %v965, %v1119
    %v1203 = vadd.f32 %v966, %v1124
    %v1204 = vadd.f32 %v967, %v1129
    %v1205 = vadd.f32 %v968, %v1134
    %v1206 = vadd.f32 %v969, %v1139
    %v1207 = vadd.f32 %v970, %v1144
    %v1208 = vadd.f32 %v971, %v1149
    %v1209 = vadd.f32 %v972, %v1154
    %v1210 = vadd.f32 %v973, %v1159
    %v1211 = vadd.f32 %v974, %v1164
    %v1212 = vadd.f32 %v975, %v1169
    %v1213 = vadd.f32 %v976, %v1174
    %v1214 = vadd.f32 %v977, %v1179
    %v1215 = vadd.f32 %v978, %v1184
    %v1216 = vadd.f32 %v979, %v1189
    %v1217 = vadd.f32 %v980, %v1194
    %v1218 = vadd.f32 %v981, %v1199
    %v1219 = vld [vmem:[%s0 + $0x9] sm:$0xff]
    %v1220 = vld [vmem:[%s0 + $0x11] sm:$0xff]
    %v1221 = vld [vmem:[%s0 + $0x19] sm:$0xff]
    %v1222 = vld [vmem:[%s0 + $0x21] sm:$0xff]
    %v1223 = vld [vmem:[%s0 + $0x29] sm:$0xff]
    %v1224 = vld [vmem:[%s0 + $0x31] sm:$0xff]
    %v1225 = vld [vmem:[%s0 + $0x39] sm:$0xff]
    %v1226 = vld [vmem:[%s0 + $0x41] sm:$0xff]
    %v1227 = vld [vmem:[%s0 + $0x49] sm:$0xff]
    %v1228 = vld [vmem:[%s0 + $0x51] sm:$0xff]
    %v1229 = vld [vmem:[%s0 + $0x59] sm:$0xff]
    %v1230 = vld [vmem:[%s0 + $0x61] sm:$0xff]
    %v1231 = vld [vmem:[%s0 + $0x69] sm:$0xff]
    %v1232 = vld [vmem:[%s0 + $0x71] sm:$0xff]
    %v1233 = vld [vmem:[%s0 + $0x79] sm:$0xff]
    %v1234 = vld [vmem:[%s0 + $0x81] sm:$0xff]
    %v1235 = vld [vmem:[%s0 + $0x89] sm:$0x3]
    %s1236 = scalar_lea.vmem %s1, 40
    %v1237 = vld [vmem:[%s1236] sm:$0xff]
    %v1239 = vsel %vm105, %v1219, 0
    %v1242 = vsel %vm105, %v1220, 0
    %v1245 = vsel %vm105, %v1221, 0
    %v1248 = vsel %vm105, %v1222, 0
    %v1251 = vsel %vm105, %v1223, 0
    %v1254 = vsel %vm105, %v1224, 0
    %v1257 = vsel %vm105, %v1225, 0
    %v1260 = vsel %vm105, %v1226, 0
    %v1263 = vsel %vm105, %v1227, 0
    %v1266 = vsel %vm105, %v1228, 0
    %v1269 = vsel %vm105, %v1229, 0
    %v1272 = vsel %vm105, %v1230, 0
    %v1275 = vsel %vm105, %v1231, 0
    %v1278 = vsel %vm105, %v1232, 0
    %v1281 = vsel %vm105, %v1233, 0
    %v1284 = vsel %vm105, %v1234, 0
    %v1287 = vsel %vm105, %v1235, 0
    %1289 = vmatprep.subr.mxu0 0.0
    %1290 = vmatpush1.msra.mxu0 %v1237
    %1291 = vmatprep.subr.mxu0 0.0
    %1292 = vmatpush1.msra.mxu0 0.0
    %1293 = vmatprep.subr.mxu0 0.0
    %1294 = vmatpush1.msra.mxu0 0.0
    %1295 = vmatprep.subr.mxu0 0.0
    %1296 = vmatpush1.msra.mxu0 0.0
    %1297 = vmatprep.subr.mxu0 0.0
    %1298 = vmatpush1.msra.mxu0 0.0
    %1299 = vmatprep.subr.mxu0 0.0
    %1300 = vmatpush1.msra.mxu0 0.0
    %1301 = vmatprep.subr.mxu0 0.0
    %1302 = vmatpush1.msra.mxu0 0.0
    %1303 = vmatprep.subr.mxu0 0.0
    %1304 = vmatpush1.msra.mxu0 0.0
    %1305 = vmatprep.subr.mxu0 0.0
    %1306 = vmatpush1.msra.mxu0 0.0
    %1307 = vmatprep.subr.mxu0 0.0
    %1308 = vmatpush1.msra.mxu0 0.0
    %1309 = vmatprep.subr.mxu0 0.0
    %1310 = vmatpush1.msra.mxu0 0.0
    %1311 = vmatprep.subr.mxu0 0.0
    %1312 = vmatpush1.msra.mxu0 0.0
    %1313 = vmatprep.subr.mxu0 0.0
    %1314 = vmatpush1.msra.mxu0 0.0
    %1315 = vmatprep.subr.mxu0 0.0
    %1316 = vmatpush1.msra.mxu0 0.0
    %1317 = vmatprep.subr.mxu0 0.0
    %1318 = vmatpush1.msra.mxu0 0.0
    %1319 = vmatprep.subr.mxu0 0.0
    %1320 = vmatpush1.msra.mxu0 0.0
    %1321 = vmatprep.subr.mxu0 0.0
    %1322 = vmatpush1.msra.mxu0 0.0
    %1323 = vmatprep.subr.mxu0 0.0
    %1324 = vmatpush1.msra.mxu0 0.0
    %1325 = vmatprep.subr.mxu0 0.0
    %1326 = vmatpush1.msra.mxu0 0.0
    %1327 = vmatprep.subr.mxu0 0.0
    %1328 = vmatpush1.msra.mxu0 0.0
    %1329 = vmatprep.subr.mxu0 0.0
    %1330 = vmatpush1.msra.mxu0 0.0
    %1331 = vmatprep.subr.mxu0 0.0
    %1332 = vmatpush1.msra.mxu0 0.0
    %1333 = vmatprep.subr.mxu0 0.0
    %1334 = vmatpush1.msra.mxu0 0.0
    %1335 = vmatprep.subr.mxu0 0.0
    %1336 = vmatpush1.msra.mxu0 0.0
    %1337 = vmatprep.subr.mxu0 0.0
    %1338 = vmatpush1.msra.mxu0 0.0
    %1339 = vmatprep.subr.mxu0 0.0
    %1340 = vmatpush1.msra.mxu0 0.0
    %1341 = vmatprep.subr.mxu0 0.0
    %1342 = vmatpush1.msra.mxu0 0.0
    %1343 = vmatprep.subr.mxu0 0.0
    %1344 = vmatpush1.msra.mxu0 0.0
    %1345 = vmatprep.subr.mxu0 0.0
    %1346 = vmatpush1.msra.mxu0 0.0
    %1347 = vmatprep.subr.mxu0 0.0
    %1348 = vmatpush1.msra.mxu0 0.0
    %1349 = vmatprep.subr.mxu0 0.0
    %1350 = vmatpush1.msra.mxu0 0.0
    %1351 = vmatprep.subr.mxu0 0.0
    %1352 = vmatpush1.msra.mxu0 0.0
    %1353 = vmatprep.mubr.f32.mxu0 0.0
    %1354 = vmatmul.mubr.f32.gmra.mrb[0].mxu0 %v1239
    %v1355 = vpop.f32.mrb[0].mxu0
    %v1356 = vadd.f32 0.0, %v1355
    %v1357 = vpop.f32.mrb[0].mxu0
    %1358 = vmatprep.mubr.f32.mxu0 0.0
    %1359 = vmatmul.mubr.f32.gmra.mrb[0].mxu0 %v1242
    %v1360 = vpop.f32.mrb[0].mxu0
    %v1361 = vadd.f32 0.0, %v1360
    %v1362 = vpop.f32.mrb[0].mxu0
    %1363 = vmatprep.mubr.f32.mxu0 0.0
    %1364 = vmatmul.mubr.f32.gmra.mrb[0].mxu0 %v1245
    %v1365 = vpop.f32.mrb[0].mxu0
    %v1366 = vadd.f32 0.0, %v1365
    %v1367 = vpop.f32.mrb[0].mxu0
    %1368 = vmatprep.mubr.f32.mxu0 0.0
    %1369 = vmatmul.mubr.f32.gmra.mrb[0].mxu0 %v1248
    %v1370 = vpop.f32.mrb[0].mxu0
    %v1371 = vadd.f32 0.0, %v1370
    %v1372 = vpop.f32.mrb[0].mxu0
    %1373 = vmatprep.mubr.f32.mxu0 0.0
    %1374 = vmatmul.mubr.f32.gmra.mrb[0].mxu0 %v1251
    %v1375 = vpop.f32.mrb[0].mxu0
    %v1376 = vadd.f32 0.0, %v1375
    %v1377 = vpop.f32.mrb[0].mxu0
    %1378 = vmatprep.mubr.f32.mxu0 0.0
    %1379 = vmatmul.mubr.f32.gmra.mrb[0].mxu0 %v1254
    %v1380 = vpop.f32.mrb[0].mxu0
    %v1381 = vadd.f32 0.0, %v1380
    %v1382 = vpop.f32.mrb[0].mxu0
    %1383 = vmatprep.mubr.f32.mxu0 0.0
    %1384 = vmatmul.mubr.f32.gmra.mrb[0].mxu0 %v1257
    %v1385 = vpop.f32.mrb[0].mxu0
    %v1386 = vadd.f32 0.0, %v1385
    %v1387 = vpop.f32.mrb[0].mxu0
    %1388 = vmatprep.mubr.f32.mxu0 0.0
    %1389 = vmatmul.mubr.f32.gmra.mrb[0].mxu0 %v1260
    %v1390 = vpop.f32.mrb[0].mxu0
    %v1391 = vadd.f32 0.0, %v1390
    %v1392 = vpop.f32.mrb[0].mxu0
    %1393 = vmatprep.mubr.f32.mxu0 0.0
    %1394 = vmatmul.mubr.f32.gmra.mrb[0].mxu0 %v1263
    %v1395 = vpop.f32.mrb[0].mxu0
    %v1396 = vadd.f32 0.0, %v1395
    %v1397 = vpop.f32.mrb[0].mxu0
    %1398 = vmatprep.mubr.f32.mxu0 0.0
    %1399 = vmatmul.mubr.f32.gmra.mrb[0].mxu0 %v1266
    %v1400 = vpop.f32.mrb[0].mxu0
    %v1401 = vadd.f32 0.0, %v1400
    %v1402 = vpop.f32.mrb[0].mxu0
    %1403 = vmatprep.mubr.f32.mxu0 0.0
    %1404 = vmatmul.mubr.f32.gmra.mrb[0].mxu0 %v1269
    %v1405 = vpop.f32.mrb[0].mxu0
    %v1406 = vadd.f32 0.0, %v1405
    %v1407 = vpop.f32.mrb[0].mxu0
    %1408 = vmatprep.mubr.f32.mxu0 0.0
    %1409 = vmatmul.mubr.f32.gmra.mrb[0].mxu0 %v1272
    %v1410 = vpop.f32.mrb[0].mxu0
    %v1411 = vadd.f32 0.0, %v1410
    %v1412 = vpop.f32.mrb[0].mxu0
    %1413 = vmatprep.mubr.f32.mxu0 0.0
    %1414 = vmatmul.mubr.f32.gmra.mrb[0].mxu0 %v1275
    %v1415 = vpop.f32.mrb[0].mxu0
    %v1416 = vadd.f32 0.0, %v1415
    %v1417 = vpop.f32.mrb[0].mxu0
    %1418 = vmatprep.mubr.f32.mxu0 0.0
    %1419 = vmatmul.mubr.f32.gmra.mrb[0].mxu0 %v1278
    %v1420 = vpop.f32.mrb[0].mxu0
    %v1421 = vadd.f32 0.0, %v1420
    %v1422 = vpop.f32.mrb[0].mxu0
    %1423 = vmatprep.mubr.f32.mxu0 0.0
    %1424 = vmatmul.mubr.f32.gmra.mrb[0].mxu0 %v1281
    %v1425 = vpop.f32.mrb[0].mxu0
    %v1426 = vadd.f32 0.0, %v1425
    %v1427 = vpop.f32.mrb[0].mxu0
    %1428 = vmatprep.mubr.f32.mxu0 0.0
    %1429 = vmatmul.mubr.f32.gmra.mrb[0].mxu0 %v1284
    %v1430 = vpop.f32.mrb[0].mxu0
    %v1431 = vadd.f32 0.0, %v1430
    %v1432 = vpop.f32.mrb[0].mxu0
    %1433 = vmatprep.mubr.f32.mxu0 0.0
    %1434 = vmatmul.mubr.f32.gmra.mrb[0].mxu0 %v1287
    %v1435 = vpop.f32.mrb[0].mxu0
    %v1436 = vadd.f32 0.0, %v1435
    %v1437 = vpop.f32.mrb[0].mxu0
    %1438 = vdwg.mxu0
    %v1439 = vadd.f32 %v1202, %v1356
    %v1440 = vadd.f32 %v1203, %v1361
    %v1441 = vadd.f32 %v1204, %v1366
    %v1442 = vadd.f32 %v1205, %v1371
    %v1443 = vadd.f32 %v1206, %v1376
    %v1444 = vadd.f32 %v1207, %v1381
    %v1445 = vadd.f32 %v1208, %v1386
    %v1446 = vadd.f32 %v1209, %v1391
    %v1447 = vadd.f32 %v1210, %v1396
    %v1448 = vadd.f32 %v1211, %v1401
    %v1449 = vadd.f32 %v1212, %v1406
    %v1450 = vadd.f32 %v1213, %v1411
    %v1451 = vadd.f32 %v1214, %v1416
    %v1452 = vadd.f32 %v1215, %v1421
    %v1453 = vadd.f32 %v1216, %v1426
    %v1454 = vadd.f32 %v1217, %v1431
    %v1455 = vadd.f32 %v1218, %v1436
    %v1456 = vld [vmem:[%s0 + $0xe] sm:$0xff]
    %v1457 = vld [vmem:[%s0 + $0x16] sm:$0xff]
    %v1458 = vld [vmem:[%s0 + $0x1e] sm:$0xff]
    %v1459 = vld [vmem:[%s0 + $0x26] sm:$0xff]
    %v1460 = vld [vmem:[%s0 + $0x2e] sm:$0xff]
    %v1461 = vld [vmem:[%s0 + $0x36] sm:$0xff]
    %v1462 = vld [vmem:[%s0 + $0x3e] sm:$0xff]
    %v1463 = vld [vmem:[%s0 + $0x46] sm:$0xff]
    %v1464 = vld [vmem:[%s0 + $0x4e] sm:$0xff]
    %v1465 = vld [vmem:[%s0 + $0x56] sm:$0xff]
    %v1466 = vld [vmem:[%s0 + $0x5e] sm:$0xff]
    %v1467 = vld [vmem:[%s0 + $0x66] sm:$0xff]
    %v1468 = vld [vmem:[%s0 + $0x6e] sm:$0xff]
    %v1469 = vld [vmem:[%s0 + $0x76] sm:$0xff]
    %v1470 = vld [vmem:[%s0 + $0x7e] sm:$0xff]
    %v1471 = vld [vmem:[%s0 + $0x86] sm:$0xff]
    %v1472 = vld [vmem:[%s0 + $0x8e] sm:$0x3]
    %s1473 = scalar_lea.vmem %s1, 48
    %v1474 = vld [vmem:[%s1473] sm:$0xff]
    %v1476 = vsel %vm105, %v1456, 0
    %v1479 = vsel %vm105, %v1457, 0
    %v1482 = vsel %vm105, %v1458, 0
    %v1485 = vsel %vm105, %v1459, 0
    %v1488 = vsel %vm105, %v1460, 0
    %v1491 = vsel %vm105, %v1461, 0
    %v1494 = vsel %vm105, %v1462, 0
    %v1497 = vsel %vm105, %v1463, 0
    %v1500 = vsel %vm105, %v1464, 0
    %v1503 = vsel %vm105, %v1465, 0
    %v1506 = vsel %vm105, %v1466, 0
    %v1509 = vsel %vm105, %v1467, 0
    %v1512 = vsel %vm105, %v1468, 0
    %v1515 = vsel %vm105, %v1469, 0
    %v1518 = vsel %vm105, %v1470, 0
    %v1521 = vsel %vm105, %v1471, 0
    %v1524 = vsel %vm105, %v1472, 0
    %1526 = vmatprep.subr.mxu0 0.0
    %1527 = vmatpush1.msra.mxu0 %v1474
    %1528 = vmatprep.subr.mxu0 0.0
    %1529 = vmatpush1.msra.mxu0 0.0
    %1530 = vmatprep.subr.mxu0 0.0
    %1531 = vmatpush1.msra.mxu0 0.0
    %1532 = vmatprep.subr.mxu0 0.0
    %1533 = vmatpush1.msra.mxu0 0.0
    %1534 = vmatprep.subr.mxu0 0.0
    %1535 = vmatpush1.msra.mxu0 0.0
    %1536 = vmatprep.subr.mxu0 0.0
    %1537 = vmatpush1.msra.mxu0 0.0
    %1538 = vmatprep.subr.mxu0 0.0
    %1539 = vmatpush1.msra.mxu0 0.0
    %1540 = vmatprep.subr.mxu0 0.0
    %1541 = vmatpush1.msra.mxu0 0.0
    %1542 = vmatprep.subr.mxu0 0.0
    %1543 = vmatpush1.msra.mxu0 0.0
    %1544 = vmatprep.subr.mxu0 0.0
    %1545 = vmatpush1.msra.mxu0 0.0
    %1546 = vmatprep.subr.mxu0 0.0
    %1547 = vmatpush1.msra.mxu0 0.0
    %1548 = vmatprep.subr.mxu0 0.0
    %1549 = vmatpush1.msra.mxu0 0.0
    %1550 = vmatprep.subr.mxu0 0.0
    %1551 = vmatpush1.msra.mxu0 0.0
    %1552 = vmatprep.subr.mxu0 0.0
    %1553 = vmatpush1.msra.mxu0 0.0
    %1554 = vmatprep.subr.mxu0 0.0
    %1555 = vmatpush1.msra.mxu0 0.0
    %1556 = vmatprep.subr.mxu0 0.0
    %1557 = vmatpush1.msra.mxu0 0.0
    %1558 = vmatprep.subr.mxu0 0.0
    %1559 = vmatpush1.msra.mxu0 0.0
    %1560 = vmatprep.subr.mxu0 0.0
    %1561 = vmatpush1.msra.mxu0 0.0
    %1562 = vmatprep.subr.mxu0 0.0
    %1563 = vmatpush1.msra.mxu0 0.0
    %1564 = vmatprep.subr.mxu0 0.0
    %1565 = vmatpush1.msra.mxu0 0.0
    %1566 = vmatprep.subr.mxu0 0.0
    %1567 = vmatpush1.msra.mxu0 0.0
    %1568 = vmatprep.subr.mxu0 0.0
    %1569 = vmatpush1.msra.mxu0 0.0
    %1570 = vmatprep.subr.mxu0 0.0
    %1571 = vmatpush1.msra.mxu0 0.0
    %1572 = vmatprep.subr.mxu0 0.0
    %1573 = vmatpush1.msra.mxu0 0.0
    %1574 = vmatprep.subr.mxu0 0.0
    %1575 = vmatpush1.msra.mxu0 0.0
    %1576 = vmatprep.subr.mxu0 0.0
    %1577 = vmatpush1.msra.mxu0 0.0
    %1578 = vmatprep.subr.mxu0 0.0
    %1579 = vmatpush1.msra.mxu0 0.0
    %1580 = vmatprep.subr.mxu0 0.0
    %1581 = vmatpush1.msra.mxu0 0.0
    %1582 = vmatprep.subr.mxu0 0.0
    %1583 = vmatpush1.msra.mxu0 0.0
    %1584 = vmatprep.subr.mxu0 0.0
    %1585 = vmatpush1.msra.mxu0 0.0
    %1586 = vmatprep.subr.mxu0 0.0
    %1587 = vmatpush1.msra.mxu0 0.0
    %1588 = vmatprep.subr.mxu0 0.0
    %1589 = vmatpush1.msra.mxu0 0.0
    %1590 = vmatprep.mubr.f32.mxu0 0.0
    %1591 = vmatmul.mubr.f32.gmra.mrb[0].mxu0 %v1476
    %v1592 = vpop.f32.mrb[0].mxu0
    %v1593 = vadd.f32 0.0, %v1592
    %v1594 = vpop.f32.mrb[0].mxu0
    %1595 = vmatprep.mubr.f32.mxu0 0.0
    %1596 = vmatmul.mubr.f32.gmra.mrb[0].mxu0 %v1479
    %v1597 = vpop.f32.mrb[0].mxu0
    %v1598 = vadd.f32 0.0, %v1597
    %v1599 = vpop.f32.mrb[0].mxu0
    %1600 = vmatprep.mubr.f32.mxu0 0.0
    %1601 = vmatmul.mubr.f32.gmra.mrb[0].mxu0 %v1482
    %v1602 = vpop.f32.mrb[0].mxu0
    %v1603 = vadd.f32 0.0, %v1602
    %v1604 = vpop.f32.mrb[0].mxu0
    %1605 = vmatprep.mubr.f32.mxu0 0.0
    %1606 = vmatmul.mubr.f32.gmra.mrb[0].mxu0 %v1485
    %v1607 = vpop.f32.mrb[0].mxu0
    %v1608 = vadd.f32 0.0, %v1607
    %v1609 = vpop.f32.mrb[0].mxu0
    %1610 = vmatprep.mubr.f32.mxu0 0.0
    %1611 = vmatmul.mubr.f32.gmra.mrb[0].mxu0 %v1488
    %v1612 = vpop.f32.mrb[0].mxu0
    %v1613 = vadd.f32 0.0, %v1612
    %v1614 = vpop.f32.mrb[0].mxu0
    %1615 = vmatprep.mubr.f32.mxu0 0.0
    %1616 = vmatmul.mubr.f32.gmra.mrb[0].mxu0 %v1491
    %v1617 = vpop.f32.mrb[0].mxu0
    %v1618 = vadd.f32 0.0, %v1617
    %v1619 = vpop.f32.mrb[0].mxu0
    %1620 = vmatprep.mubr.f32.mxu0 0.0
    %1621 = vmatmul.mubr.f32.gmra.mrb[0].mxu0 %v1494
    %v1622 = vpop.f32.mrb[0].mxu0
    %v1623 = vadd.f32 0.0, %v1622
    %v1624 = vpop.f32.mrb[0].mxu0
    %1625 = vmatprep.mubr.f32.mxu0 0.0
    %1626 = vmatmul.mubr.f32.gmra.mrb[0].mxu0 %v1497
    %v1627 = vpop.f32.mrb[0].mxu0
    %v1628 = vadd.f32 0.0, %v1627
    %v1629 = vpop.f32.mrb[0].mxu0
    %1630 = vmatprep.mubr.f32.mxu0 0.0
    %1631 = vmatmul.mubr.f32.gmra.mrb[0].mxu0 %v1500
    %v1632 = vpop.f32.mrb[0].mxu0
    %v1633 = vadd.f32 0.0, %v1632
    %v1634 = vpop.f32.mrb[0].mxu0
    %1635 = vmatprep.mubr.f32.mxu0 0.0
    %1636 = vmatmul.mubr.f32.gmra.mrb[0].mxu0 %v1503
    %v1637 = vpop.f32.mrb[0].mxu0
    %v1638 = vadd.f32 0.0, %v1637
    %v1639 = vpop.f32.mrb[0].mxu0
    %1640 = vmatprep.mubr.f32.mxu0 0.0
    %1641 = vmatmul.mubr.f32.gmra.mrb[0].mxu0 %v1506
    %v1642 = vpop.f32.mrb[0].mxu0
    %v1643 = vadd.f32 0.0, %v1642
    %v1644 = vpop.f32.mrb[0].mxu0
    %1645 = vmatprep.mubr.f32.mxu0 0.0
    %1646 = vmatmul.mubr.f32.gmra.mrb[0].mxu0 %v1509
    %v1647 = vpop.f32.mrb[0].mxu0
    %v1648 = vadd.f32 0.0, %v1647
    %v1649 = vpop.f32.mrb[0].mxu0
    %1650 = vmatprep.mubr.f32.mxu0 0.0
    %1651 = vmatmul.mubr.f32.gmra.mrb[0].mxu0 %v1512
    %v1652 = vpop.f32.mrb[0].mxu0
    %v1653 = vadd.f32 0.0, %v1652
    %v1654 = vpop.f32.mrb[0].mxu0
    %1655 = vmatprep.mubr.f32.mxu0 0.0
    %1656 = vmatmul.mubr.f32.gmra.mrb[0].mxu0 %v1515
    %v1657 = vpop.f32.mrb[0].mxu0
    %v1658 = vadd.f32 0.0, %v1657
    %v1659 = vpop.f32.mrb[0].mxu0
    %1660 = vmatprep.mubr.f32.mxu0 0.0
    %1661 = vmatmul.mubr.f32.gmra.mrb[0].mxu0 %v1518
    %v1662 = vpop.f32.mrb[0].mxu0
    %v1663 = vadd.f32 0.0, %v1662
    %v1664 = vpop.f32.mrb[0].mxu0
    %1665 = vmatprep.mubr.f32.mxu0 0.0
    %1666 = vmatmul.mubr.f32.gmra.mrb[0].mxu0 %v1521
    %v1667 = vpop.f32.mrb[0].mxu0
    %v1668 = vadd.f32 0.0, %v1667
    %v1669 = vpop.f32.mrb[0].mxu0
    %1670 = vmatprep.mubr.f32.mxu0 0.0
    %1671 = vmatmul.mubr.f32.gmra.mrb[0].mxu0 %v1524
    %v1672 = vpop.f32.mrb[0].mxu0
    %v1673 = vadd.f32 0.0, %v1672
    %v1674 = vpop.f32.mrb[0].mxu0
    %1675 = vdwg.mxu0
    %v1676 = vadd.f32 %v1439, %v1593
    %v1677 = vadd.f32 %v1440, %v1598
    %v1678 = vadd.f32 %v1441, %v1603
    %v1679 = vadd.f32 %v1442, %v1608
    %v1680 = vadd.f32 %v1443, %v1613
    %v1681 = vadd.f32 %v1444, %v1618
    %v1682 = vadd.f32 %v1445, %v1623
    %v1683 = vadd.f32 %v1446, %v1628
    %v1684 = vadd.f32 %v1447, %v1633
    %v1685 = vadd.f32 %v1448, %v1638
    %v1686 = vadd.f32 %v1449, %v1643
    %v1687 = vadd.f32 %v1450, %v1648
    %v1688 = vadd.f32 %v1451, %v1653
    %v1689 = vadd.f32 %v1452, %v1658
    %v1690 = vadd.f32 %v1453, %v1663
    %v1691 = vadd.f32 %v1454, %v1668
    %v1692 = vadd.f32 %v1455, %v1673
    %v1693 = vld [vmem:[%s0 + $0xf] sm:$0xff]
    %v1694 = vld [vmem:[%s0 + $0x17] sm:$0xff]
    %v1695 = vld [vmem:[%s0 + $0x1f] sm:$0xff]
    %v1696 = vld [vmem:[%s0 + $0x27] sm:$0xff]
    %v1697 = vld [vmem:[%s0 + $0x2f] sm:$0xff]
    %v1698 = vld [vmem:[%s0 + $0x37] sm:$0xff]
    %v1699 = vld [vmem:[%s0 + $0x3f] sm:$0xff]
    %v1700 = vld [vmem:[%s0 + $0x47] sm:$0xff]
    %v1701 = vld [vmem:[%s0 + $0x4f] sm:$0xff]
    %v1702 = vld [vmem:[%s0 + $0x57] sm:$0xff]
    %v1703 = vld [vmem:[%s0 + $0x5f] sm:$0xff]
    %v1704 = vld [vmem:[%s0 + $0x67] sm:$0xff]
    %v1705 = vld [vmem:[%s0 + $0x6f] sm:$0xff]
    %v1706 = vld [vmem:[%s0 + $0x77] sm:$0xff]
    %v1707 = vld [vmem:[%s0 + $0x7f] sm:$0xff]
    %v1708 = vld [vmem:[%s0 + $0x87] sm:$0xff]
    %v1709 = vld [vmem:[%s0 + $0x8f] sm:$0x3]
    %s1710 = scalar_lea.vmem %s1, 56
    %v1711 = vld [vmem:[%s1710] sm:$0xff]
    %v1713 = vsel %vm105, %v1693, 0
    %v1716 = vsel %vm105, %v1694, 0
    %v1719 = vsel %vm105, %v1695, 0
    %v1722 = vsel %vm105, %v1696, 0
    %v1725 = vsel %vm105, %v1697, 0
    %v1728 = vsel %vm105, %v1698, 0
    %v1731 = vsel %vm105, %v1699, 0
    %v1734 = vsel %vm105, %v1700, 0
    %v1737 = vsel %vm105, %v1701, 0
    %v1740 = vsel %vm105, %v1702, 0
    %v1743 = vsel %vm105, %v1703, 0
    %v1746 = vsel %vm105, %v1704, 0
    %v1749 = vsel %vm105, %v1705, 0
    %v1752 = vsel %vm105, %v1706, 0
    %v1755 = vsel %vm105, %v1707, 0
    %v1758 = vsel %vm105, %v1708, 0
    %v1761 = vsel %vm105, %v1709, 0
    %1763 = vmatprep.subr.mxu0 0.0
    %1764 = vmatpush1.msra.mxu0 %v1711
    %1765 = vmatprep.subr.mxu0 0.0
    %1766 = vmatpush1.msra.mxu0 0.0
    %1767 = vmatprep.subr.mxu0 0.0
    %1768 = vmatpush1.msra.mxu0 0.0
    %1769 = vmatprep.subr.mxu0 0.0
    %1770 = vmatpush1.msra.mxu0 0.0
    %1771 = vmatprep.subr.mxu0 0.0
    %1772 = vmatpush1.msra.mxu0 0.0
    %1773 = vmatprep.subr.mxu0 0.0
    %1774 = vmatpush1.msra.mxu0 0.0
    %1775 = vmatprep.subr.mxu0 0.0
    %1776 = vmatpush1.msra.mxu0 0.0
    %1777 = vmatprep.subr.mxu0 0.0
    %1778 = vmatpush1.msra.mxu0 0.0
    %1779 = vmatprep.subr.mxu0 0.0
    %1780 = vmatpush1.msra.mxu0 0.0
    %1781 = vmatprep.subr.mxu0 0.0
    %1782 = vmatpush1.msra.mxu0 0.0
    %1783 = vmatprep.subr.mxu0 0.0
    %1784 = vmatpush1.msra.mxu0 0.0
    %1785 = vmatprep.subr.mxu0 0.0
    %1786 = vmatpush1.msra.mxu0 0.0
    %1787 = vmatprep.subr.mxu0 0.0
    %1788 = vmatpush1.msra.mxu0 0.0
    %1789 = vmatprep.subr.mxu0 0.0
    %1790 = vmatpush1.msra.mxu0 0.0
    %1791 = vmatprep.subr.mxu0 0.0
    %1792 = vmatpush1.msra.mxu0 0.0
    %1793 = vmatprep.subr.mxu0 0.0
    %1794 = vmatpush1.msra.mxu0 0.0
    %1795 = vmatprep.subr.mxu0 0.0
    %1796 = vmatpush1.msra.mxu0 0.0
    %1797 = vmatprep.subr.mxu0 0.0
    %1798 = vmatpush1.msra.mxu0 0.0
    %1799 = vmatprep.subr.mxu0 0.0
    %1800 = vmatpush1.msra.mxu0 0.0
    %1801 = vmatprep.subr.mxu0 0.0
    %1802 = vmatpush1.msra.mxu0 0.0
    %1803 = vmatprep.subr.mxu0 0.0
    %1804 = vmatpush1.msra.mxu0 0.0
    %1805 = vmatprep.subr.mxu0 0.0
    %1806 = vmatpush1.msra.mxu0 0.0
    %1807 = vmatprep.subr.mxu0 0.0
    %1808 = vmatpush1.msra.mxu0 0.0
    %1809 = vmatprep.subr.mxu0 0.0
    %1810 = vmatpush1.msra.mxu0 0.0
    %1811 = vmatprep.subr.mxu0 0.0
    %1812 = vmatpush1.msra.mxu0 0.0
    %1813 = vmatprep.subr.mxu0 0.0
    %1814 = vmatpush1.msra.mxu0 0.0
    %1815 = vmatprep.subr.mxu0 0.0
    %1816 = vmatpush1.msra.mxu0 0.0
    %1817 = vmatprep.subr.mxu0 0.0
    %1818 = vmatpush1.msra.mxu0 0.0
    %1819 = vmatprep.subr.mxu0 0.0
    %1820 = vmatpush1.msra.mxu0 0.0
    %1821 = vmatprep.subr.mxu0 0.0
    %1822 = vmatpush1.msra.mxu0 0.0
    %1823 = vmatprep.subr.mxu0 0.0
    %1824 = vmatpush1.msra.mxu0 0.0
    %1825 = vmatprep.subr.mxu0 0.0
    %1826 = vmatpush1.msra.mxu0 0.0
    %1827 = vmatprep.mubr.f32.mxu0 0.0
    %1828 = vmatmul.mubr.f32.gmra.mrb[0].mxu0 %v1713
    %v1829 = vpop.f32.mrb[0].mxu0
    %v1830 = vadd.f32 0.0, %v1829
    %v1831 = vpop.f32.mrb[0].mxu0
    %1832 = vmatprep.mubr.f32.mxu0 0.0
    %1833 = vmatmul.mubr.f32.gmra.mrb[0].mxu0 %v1716
    %v1834 = vpop.f32.mrb[0].mxu0
    %v1835 = vadd.f32 0.0, %v1834
    %v1836 = vpop.f32.mrb[0].mxu0
    %1837 = vmatprep.mubr.f32.mxu0 0.0
    %1838 = vmatmul.mubr.f32.gmra.mrb[0].mxu0 %v1719
    %v1839 = vpop.f32.mrb[0].mxu0
    %v1840 = vadd.f32 0.0, %v1839
    %v1841 = vpop.f32.mrb[0].mxu0
    %1842 = vmatprep.mubr.f32.mxu0 0.0
    %1843 = vmatmul.mubr.f32.gmra.mrb[0].mxu0 %v1722
    %v1844 = vpop.f32.mrb[0].mxu0
    %v1845 = vadd.f32 0.0, %v1844
    %v1846 = vpop.f32.mrb[0].mxu0
    %1847 = vmatprep.mubr.f32.mxu0 0.0
    %1848 = vmatmul.mubr.f32.gmra.mrb[0].mxu0 %v1725
    %v1849 = vpop.f32.mrb[0].mxu0
    %v1850 = vadd.f32 0.0, %v1849
    %v1851 = vpop.f32.mrb[0].mxu0
    %1852 = vmatprep.mubr.f32.mxu0 0.0
    %1853 = vmatmul.mubr.f32.gmra.mrb[0].mxu0 %v1728
    %v1854 = vpop.f32.mrb[0].mxu0
    %v1855 = vadd.f32 0.0, %v1854
    %v1856 = vpop.f32.mrb[0].mxu0
    %1857 = vmatprep.mubr.f32.mxu0 0.0
    %1858 = vmatmul.mubr.f32.gmra.mrb[0].mxu0 %v1731
    %v1859 = vpop.f32.mrb[0].mxu0
    %v1860 = vadd.f32 0.0, %v1859
    %v1861 = vpop.f32.mrb[0].mxu0
    %1862 = vmatprep.mubr.f32.mxu0 0.0
    %1863 = vmatmul.mubr.f32.gmra.mrb[0].mxu0 %v1734
    %v1864 = vpop.f32.mrb[0].mxu0
    %v1865 = vadd.f32 0.0, %v1864
    %v1866 = vpop.f32.mrb[0].mxu0
    %1867 = vmatprep.mubr.f32.mxu0 0.0
    %1868 = vmatmul.mubr.f32.gmra.mrb[0].mxu0 %v1737
    %v1869 = vpop.f32.mrb[0].mxu0
    %v1870 = vadd.f32 0.0, %v1869
    %v1871 = vpop.f32.mrb[0].mxu0
    %1872 = vmatprep.mubr.f32.mxu0 0.0
    %1873 = vmatmul.mubr.f32.gmra.mrb[0].mxu0 %v1740
    %v1874 = vpop.f32.mrb[0].mxu0
    %v1875 = vadd.f32 0.0, %v1874
    %v1876 = vpop.f32.mrb[0].mxu0
    %1877 = vmatprep.mubr.f32.mxu0 0.0
    %1878 = vmatmul.mubr.f32.gmra.mrb[0].mxu0 %v1743
    %v1879 = vpop.f32.mrb[0].mxu0
    %v1880 = vadd.f32 0.0, %v1879
    %v1881 = vpop.f32.mrb[0].mxu0
    %1882 = vmatprep.mubr.f32.mxu0 0.0
    %1883 = vmatmul.mubr.f32.gmra.mrb[0].mxu0 %v1746
    %v1884 = vpop.f32.mrb[0].mxu0
    %v1885 = vadd.f32 0.0, %v1884
    %v1886 = vpop.f32.mrb[0].mxu0
    %1887 = vmatprep.mubr.f32.mxu0 0.0
    %1888 = vmatmul.mubr.f32.gmra.mrb[0].mxu0 %v1749
    %v1889 = vpop.f32.mrb[0].mxu0
    %v1890 = vadd.f32 0.0, %v1889
    %v1891 = vpop.f32.mrb[0].mxu0
    %1892 = vmatprep.mubr.f32.mxu0 0.0
    %1893 = vmatmul.mubr.f32.gmra.mrb[0].mxu0 %v1752
    %v1894 = vpop.f32.mrb[0].mxu0
    %v1895 = vadd.f32 0.0, %v1894
    %v1896 = vpop.f32.mrb[0].mxu0
    %1897 = vmatprep.mubr.f32.mxu0 0.0
    %1898 = vmatmul.mubr.f32.gmra.mrb[0].mxu0 %v1755
    %v1899 = vpop.f32.mrb[0].mxu0
    %v1900 = vadd.f32 0.0, %v1899
    %v1901 = vpop.f32.mrb[0].mxu0
    %1902 = vmatprep.mubr.f32.mxu0 0.0
    %1903 = vmatmul.mubr.f32.gmra.mrb[0].mxu0 %v1758
    %v1904 = vpop.f32.mrb[0].mxu0
    %v1905 = vadd.f32 0.0, %v1904
    %v1906 = vpop.f32.mrb[0].mxu0
    %1907 = vmatprep.mubr.f32.mxu0 0.0
    %1908 = vmatmul.mubr.f32.gmra.mrb[0].mxu0 %v1761
    %v1909 = vpop.f32.mrb[0].mxu0
    %v1910 = vadd.f32 0.0, %v1909
    %v1911 = vpop.f32.mrb[0].mxu0
    %1912 = vdwg.mxu0
    %v1913 = vadd.f32 %v1676, %v1830
    %v1914 = vadd.f32 %v1677, %v1835
    %v1915 = vadd.f32 %v1678, %v1840
    %v1916 = vadd.f32 %v1679, %v1845
    %v1917 = vadd.f32 %v1680, %v1850
    %v1918 = vadd.f32 %v1681, %v1855
    %v1919 = vadd.f32 %v1682, %v1860
    %v1920 = vadd.f32 %v1683, %v1865
    %v1921 = vadd.f32 %v1684, %v1870
    %v1922 = vadd.f32 %v1685, %v1875
    %v1923 = vadd.f32 %v1686, %v1880
    %v1924 = vadd.f32 %v1687, %v1885
    %v1925 = vadd.f32 %v1688, %v1890
    %v1926 = vadd.f32 %v1689, %v1895
    %v1927 = vadd.f32 %v1690, %v1900
    %v1928 = vadd.f32 %v1691, %v1905
    %v1929 = vadd.f32 %v1692, %v1910
    %v1930 = vld [vmem:[%s0 + $0x10] sm:$0xff]
    %v1931 = vld [vmem:[%s0 + $0x18] sm:$0xff]
    %v1932 = vld [vmem:[%s0 + $0x20] sm:$0xff]
    %v1933 = vld [vmem:[%s0 + $0x28] sm:$0xff]
    %v1934 = vld [vmem:[%s0 + $0x30] sm:$0xff]
    %v1935 = vld [vmem:[%s0 + $0x38] sm:$0xff]
    %v1936 = vld [vmem:[%s0 + $0x40] sm:$0xff]
    %v1937 = vld [vmem:[%s0 + $0x48] sm:$0xff]
    %v1938 = vld [vmem:[%s0 + $0x50] sm:$0xff]
    %v1939 = vld [vmem:[%s0 + $0x58] sm:$0xff]
    %v1940 = vld [vmem:[%s0 + $0x60] sm:$0xff]
    %v1941 = vld [vmem:[%s0 + $0x68] sm:$0xff]
    %v1942 = vld [vmem:[%s0 + $0x70] sm:$0xff]
    %v1943 = vld [vmem:[%s0 + $0x78] sm:$0xff]
    %v1944 = vld [vmem:[%s0 + $0x80] sm:$0xff]
    %v1945 = vld [vmem:[%s0 + $0x88] sm:$0xff]
    %v1946 = vld [vmem:[%s0 + $0x90] sm:$0x3]
    %s1947 = scalar_lea.vmem %s1, 64
    %v1948 = vld [vmem:[%s1947] sm:$0xff]
    %v1950 = vsel %vm105, %v1930, 0
    %v1953 = vsel %vm105, %v1931, 0
    %v1956 = vsel %vm105, %v1932, 0
    %v1959 = vsel %vm105, %v1933, 0
    %v1962 = vsel %vm105, %v1934, 0
    %v1965 = vsel %vm105, %v1935, 0
    %v1968 = vsel %vm105, %v1936, 0
    %v1971 = vsel %vm105, %v1937, 0
    %v1974 = vsel %vm105, %v1938, 0
    %v1977 = vsel %vm105, %v1939, 0
    %v1980 = vsel %vm105, %v1940, 0
    %v1983 = vsel %vm105, %v1941, 0
    %v1986 = vsel %vm105, %v1942, 0
    %v1989 = vsel %vm105, %v1943, 0
    %v1992 = vsel %vm105, %v1944, 0
    %v1995 = vsel %vm105, %v1945, 0
    %v1998 = vsel %vm105, %v1946, 0
    %2000 = vmatprep.subr.mxu0 0.0
    %2001 = vmatpush1.msra.mxu0 %v1948
    %2002 = vmatprep.subr.mxu0 0.0
    %2003 = vmatpush1.msra.mxu0 0.0
    %2004 = vmatprep.subr.mxu0 0.0
    %2005 = vmatpush1.msra.mxu0 0.0
    %2006 = vmatprep.subr.mxu0 0.0
    %2007 = vmatpush1.msra.mxu0 0.0
    %2008 = vmatprep.subr.mxu0 0.0
    %2009 = vmatpush1.msra.mxu0 0.0
    %2010 = vmatprep.subr.mxu0 0.0
    %2011 = vmatpush1.msra.mxu0 0.0
    %2012 = vmatprep.subr.mxu0 0.0
    %2013 = vmatpush1.msra.mxu0 0.0
    %2014 = vmatprep.subr.mxu0 0.0
    %2015 = vmatpush1.msra.mxu0 0.0
    %2016 = vmatprep.subr.mxu0 0.0
    %2017 = vmatpush1.msra.mxu0 0.0
    %2018 = vmatprep.subr.mxu0 0.0
    %2019 = vmatpush1.msra.mxu0 0.0
    %2020 = vmatprep.subr.mxu0 0.0
    %2021 = vmatpush1.msra.mxu0 0.0
    %2022 = vmatprep.subr.mxu0 0.0
    %2023 = vmatpush1.msra.mxu0 0.0
    %2024 = vmatprep.subr.mxu0 0.0
    %2025 = vmatpush1.msra.mxu0 0.0
    %2026 = vmatprep.subr.mxu0 0.0
    %2027 = vmatpush1.msra.mxu0 0.0
    %2028 = vmatprep.subr.mxu0 0.0
    %2029 = vmatpush1.msra.mxu0 0.0
    %2030 = vmatprep.subr.mxu0 0.0
    %2031 = vmatpush1.msra.mxu0 0.0
    %2032 = vmatprep.subr.mxu0 0.0
    %2033 = vmatpush1.msra.mxu0 0.0
    %2034 = vmatprep.subr.mxu0 0.0
    %2035 = vmatpush1.msra.mxu0 0.0
    %2036 = vmatprep.subr.mxu0 0.0
    %2037 = vmatpush1.msra.mxu0 0.0
    %2038 = vmatprep.subr.mxu0 0.0
    %2039 = vmatpush1.msra.mxu0 0.0
    %2040 = vmatprep.subr.mxu0 0.0
    %2041 = vmatpush1.msra.mxu0 0.0
    %2042 = vmatprep.subr.mxu0 0.0
    %2043 = vmatpush1.msra.mxu0 0.0
    %2044 = vmatprep.subr.mxu0 0.0
    %2045 = vmatpush1.msra.mxu0 0.0
    %2046 = vmatprep.subr.mxu0 0.0
    %2047 = vmatpush1.msra.mxu0 0.0
    %2048 = vmatprep.subr.mxu0 0.0
    %2049 = vmatpush1.msra.mxu0 0.0
    %2050 = vmatprep.subr.mxu0 0.0
    %2051 = vmatpush1.msra.mxu0 0.0
    %2052 = vmatprep.subr.mxu0 0.0
    %2053 = vmatpush1.msra.mxu0 0.0
    %2054 = vmatprep.subr.mxu0 0.0
    %2055 = vmatpush1.msra.mxu0 0.0
    %2056 = vmatprep.subr.mxu0 0.0
    %2057 = vmatpush1.msra.mxu0 0.0
    %2058 = vmatprep.subr.mxu0 0.0
    %2059 = vmatpush1.msra.mxu0 0.0
    %2060 = vmatprep.subr.mxu0 0.0
    %2061 = vmatpush1.msra.mxu0 0.0
    %2062 = vmatprep.subr.mxu0 0.0
    %2063 = vmatpush1.msra.mxu0 0.0
    %2064 = vmatprep.mubr.f32.mxu0 0.0
    %2065 = vmatmul.mubr.f32.gmra.mrb[0].mxu0 %v1950
    %v2066 = vpop.f32.mrb[0].mxu0
    %v2067 = vadd.f32 0.0, %v2066
    %v2068 = vpop.f32.mrb[0].mxu0
    %2069 = vmatprep.mubr.f32.mxu0 0.0
    %2070 = vmatmul.mubr.f32.gmra.mrb[0].mxu0 %v1953
    %v2071 = vpop.f32.mrb[0].mxu0
    %v2072 = vadd.f32 0.0, %v2071
    %v2073 = vpop.f32.mrb[0].mxu0
    %2074 = vmatprep.mubr.f32.mxu0 0.0
    %2075 = vmatmul.mubr.f32.gmra.mrb[0].mxu0 %v1956
    %v2076 = vpop.f32.mrb[0].mxu0
    %v2077 = vadd.f32 0.0, %v2076
    %v2078 = vpop.f32.mrb[0].mxu0
    %2079 = vmatprep.mubr.f32.mxu0 0.0
    %2080 = vmatmul.mubr.f32.gmra.mrb[0].mxu0 %v1959
    %v2081 = vpop.f32.mrb[0].mxu0
    %v2082 = vadd.f32 0.0, %v2081
    %v2083 = vpop.f32.mrb[0].mxu0
    %2084 = vmatprep.mubr.f32.mxu0 0.0
    %2085 = vmatmul.mubr.f32.gmra.mrb[0].mxu0 %v1962
    %v2086 = vpop.f32.mrb[0].mxu0
    %v2087 = vadd.f32 0.0, %v2086
    %v2088 = vpop.f32.mrb[0].mxu0
    %2089 = vmatprep.mubr.f32.mxu0 0.0
    %2090 = vmatmul.mubr.f32.gmra.mrb[0].mxu0 %v1965
    %v2091 = vpop.f32.mrb[0].mxu0
    %v2092 = vadd.f32 0.0, %v2091
    %v2093 = vpop.f32.mrb[0].mxu0
    %2094 = vmatprep.mubr.f32.mxu0 0.0
    %2095 = vmatmul.mubr.f32.gmra.mrb[0].mxu0 %v1968
    %v2096 = vpop.f32.mrb[0].mxu0
    %v2097 = vadd.f32 0.0, %v2096
    %v2098 = vpop.f32.mrb[0].mxu0
    %2099 = vmatprep.mubr.f32.mxu0 0.0
    %2100 = vmatmul.mubr.f32.gmra.mrb[0].mxu0 %v1971
    %v2101 = vpop.f32.mrb[0].mxu0
    %v2102 = vadd.f32 0.0, %v2101
    %v2103 = vpop.f32.mrb[0].mxu0
    %2104 = vmatprep.mubr.f32.mxu0 0.0
    %2105 = vmatmul.mubr.f32.gmra.mrb[0].mxu0 %v1974
    %v2106 = vpop.f32.mrb[0].mxu0
    %v2107 = vadd.f32 0.0, %v2106
    %v2108 = vpop.f32.mrb[0].mxu0
    %2109 = vmatprep.mubr.f32.mxu0 0.0
    %2110 = vmatmul.mubr.f32.gmra.mrb[0].mxu0 %v1977
    %v2111 = vpop.f32.mrb[0].mxu0
    %v2112 = vadd.f32 0.0, %v2111
    %v2113 = vpop.f32.mrb[0].mxu0
    %2114 = vmatprep.mubr.f32.mxu0 0.0
    %2115 = vmatmul.mubr.f32.gmra.mrb[0].mxu0 %v1980
    %v2116 = vpop.f32.mrb[0].mxu0
    %v2117 = vadd.f32 0.0, %v2116
    %v2118 = vpop.f32.mrb[0].mxu0
    %2119 = vmatprep.mubr.f32.mxu0 0.0
    %2120 = vmatmul.mubr.f32.gmra.mrb[0].mxu0 %v1983
    %v2121 = vpop.f32.mrb[0].mxu0
    %v2122 = vadd.f32 0.0, %v2121
    %v2123 = vpop.f32.mrb[0].mxu0
    %2124 = vmatprep.mubr.f32.mxu0 0.0
    %2125 = vmatmul.mubr.f32.gmra.mrb[0].mxu0 %v1986
    %v2126 = vpop.f32.mrb[0].mxu0
    %v2127 = vadd.f32 0.0, %v2126
    %v2128 = vpop.f32.mrb[0].mxu0
    %2129 = vmatprep.mubr.f32.mxu0 0.0
    %2130 = vmatmul.mubr.f32.gmra.mrb[0].mxu0 %v1989
    %v2131 = vpop.f32.mrb[0].mxu0
    %v2132 = vadd.f32 0.0, %v2131
    %v2133 = vpop.f32.mrb[0].mxu0
    %2134 = vmatprep.mubr.f32.mxu0 0.0
    %2135 = vmatmul.mubr.f32.gmra.mrb[0].mxu0 %v1992
    %v2136 = vpop.f32.mrb[0].mxu0
    %v2137 = vadd.f32 0.0, %v2136
    %v2138 = vpop.f32.mrb[0].mxu0
    %2139 = vmatprep.mubr.f32.mxu0 0.0
    %2140 = vmatmul.mubr.f32.gmra.mrb[0].mxu0 %v1995
    %v2141 = vpop.f32.mrb[0].mxu0
    %v2142 = vadd.f32 0.0, %v2141
    %v2143 = vpop.f32.mrb[0].mxu0
    %2144 = vmatprep.mubr.f32.mxu0 0.0
    %2145 = vmatmul.mubr.f32.gmra.mrb[0].mxu0 %v1998
    %v2146 = vpop.f32.mrb[0].mxu0
    %v2147 = vadd.f32 0.0, %v2146
    %v2148 = vpop.f32.mrb[0].mxu0
    %2149 = vdwg.mxu0
    %v2150 = vadd.f32 %v1913, %v2067
    %v2151 = vadd.f32 %v1914, %v2072
    %v2152 = vadd.f32 %v1915, %v2077
    %v2153 = vadd.f32 %v1916, %v2082
    %v2154 = vadd.f32 %v1917, %v2087
    %v2155 = vadd.f32 %v1918, %v2092
    %v2156 = vadd.f32 %v1919, %v2097
    %v2157 = vadd.f32 %v1920, %v2102
    %v2158 = vadd.f32 %v1921, %v2107
    %v2159 = vadd.f32 %v1922, %v2112
    %v2160 = vadd.f32 %v1923, %v2117
    %v2161 = vadd.f32 %v1924, %v2122
    %v2162 = vadd.f32 %v1925, %v2127
    %v2163 = vadd.f32 %v1926, %v2132
    %v2164 = vadd.f32 %v1927, %v2137
    %v2165 = vadd.f32 %v1928, %v2142
    %v2166 = vadd.f32 %v1929, %v2147
    %v2167 = vld [vmem:[#allocation9] ss:$0 sm:$0xff]
    %v2168 = vadd.f32 %v2150, %v2167
    %v2169 = vadd.f32 %v2151, %v2167
    %v2170 = vadd.f32 %v2152, %v2167
    %v2171 = vadd.f32 %v2153, %v2167
    %v2172 = vadd.f32 %v2154, %v2167
    %v2173 = vadd.f32 %v2155, %v2167
    %v2174 = vadd.f32 %v2156, %v2167
    %v2175 = vadd.f32 %v2157, %v2167
    %v2176 = vadd.f32 %v2158, %v2167
    %v2177 = vadd.f32 %v2159, %v2167
    %v2178 = vadd.f32 %v2160, %v2167
    %v2179 = vadd.f32 %v2161, %v2167
    %v2180 = vadd.f32 %v2162, %v2167
    %v2181 = vadd.f32 %v2163, %v2167
    %v2182 = vadd.f32 %v2164, %v2167
    %v2183 = vadd.f32 %v2165, %v2167
    %v2184 = vadd.f32 %v2166, %v2167
    %v2185 = vmax.f32 %v2168, 0.0
    %v2186 = vmax.f32 %v2169, 0.0
    %v2187 = vmax.f32 %v2170, 0.0
    %v2188 = vmax.f32 %v2171, 0.0
    %v2189 = vmax.f32 %v2172, 0.0
    %v2190 = vmax.f32 %v2173, 0.0
    %v2191 = vmax.f32 %v2174, 0.0
    %v2192 = vmax.f32 %v2175, 0.0
    %v2193 = vmax.f32 %v2176, 0.0
    %v2194 = vmax.f32 %v2177, 0.0
    %v2195 = vmax.f32 %v2178, 0.0
    %v2196 = vmax.f32 %v2179, 0.0
    %v2197 = vmax.f32 %v2180, 0.0
    %v2198 = vmax.f32 %v2181, 0.0
    %v2199 = vmax.f32 %v2182, 0.0
    %v2200 = vmax.f32 %v2183, 0.0
    %v2201 = vmax.f32 %v2184, 0.0
    %vm2202 = vcmask 130048
    %2203 = vst.msk [vmem:[#allocation2] sm:$0xff] %vm2202, %v2185
    %2204 = vst.msk [vmem:[#allocation2 + $0x8] sm:$0xff] %vm2202, %v2186
    %2205 = vst.msk [vmem:[#allocation2 + $0x10] sm:$0xff] %vm2202, %v2187
    %2206 = vst.msk [vmem:[#allocation2 + $0x18] sm:$0xff] %vm2202, %v2188
    %2207 = vst.msk [vmem:[#allocation2 + $0x20] sm:$0xff] %vm2202, %v2189
    %2208 = vst.msk [vmem:[#allocation2 + $0x28] sm:$0xff] %vm2202, %v2190
    %2209 = vst.msk [vmem:[#allocation2 + $0x30] sm:$0xff] %vm2202, %v2191
    %2210 = vst.msk [vmem:[#allocation2 + $0x38] sm:$0xff] %vm2202, %v2192
    %2211 = vst.msk [vmem:[#allocation2 + $0x40] sm:$0xff] %vm2202, %v2193
    %2212 = vst.msk [vmem:[#allocation2 + $0x48] sm:$0xff] %vm2202, %v2194
    %2213 = vst.msk [vmem:[#allocation2 + $0x50] sm:$0xff] %vm2202, %v2195
    %2214 = vst.msk [vmem:[#allocation2 + $0x58] sm:$0xff] %vm2202, %v2196
    %2215 = vst.msk [vmem:[#allocation2 + $0x60] sm:$0xff] %vm2202, %v2197
    %2216 = vst.msk [vmem:[#allocation2 + $0x68] sm:$0xff] %vm2202, %v2198
    %2217 = vst.msk [vmem:[#allocation2 + $0x70] sm:$0xff] %vm2202, %v2199
    %2218 = vst.msk [vmem:[#allocation2 + $0x78] sm:$0xff] %vm2202, %v2200
    %vm2219 = vcmask 123904
    %2220 = vst.msk [vmem:[#allocation2 + $0x80] sm:$0x3] %vm2219, %v2201
    %v2221 = vld [vmem:[#allocation2] sm:$0xff]
    %v2222 = vld [vmem:[#allocation2 + $0x8] sm:$0xff]
    %v2223 = vld [vmem:[#allocation2 + $0x10] sm:$0xff]
    %v2224 = vld [vmem:[#allocation2 + $0x18] sm:$0xff]
    %v2225 = vld [vmem:[#allocation2 + $0x20] sm:$0xff]
    %v2226 = vld [vmem:[#allocation2 + $0x28] sm:$0xff]
    %v2227 = vld [vmem:[#allocation2 + $0x30] sm:$0xff]
    %v2228 = vld [vmem:[#allocation2 + $0x38] sm:$0xff]
    %v2229 = vld [vmem:[#allocation2 + $0x40] sm:$0xff]
    %v2230 = vld [vmem:[#allocation2 + $0x48] sm:$0xff]
    %v2231 = vld [vmem:[#allocation2 + $0x50] sm:$0xff]
    %v2232 = vld [vmem:[#allocation2 + $0x58] sm:$0xff]
    %v2233 = vld [vmem:[#allocation2 + $0x60] sm:$0xff]
    %v2234 = vld [vmem:[#allocation2 + $0x68] sm:$0xff]
    %v2235 = vld [vmem:[#allocation2 + $0x70] sm:$0xff]
    %v2236 = vld [vmem:[#allocation2 + $0x78] sm:$0x3]
    %v2237 = vld [vmem:[%s2] sm:$0xff]
    %v2238 = vld [vmem:[%s2 + $0x8] sm:$0xff]
    %v2239 = vld [vmem:[#allocation2 + $0x1] sm:$0xff]
    %v2240 = vld [vmem:[#allocation2 + $0x9] sm:$0xff]
    %v2241 = vld [vmem:[#allocation2 + $0x11] sm:$0xff]
    %v2242 = vld [vmem:[#allocation2 + $0x19] sm:$0xff]
    %v2243 = vld [vmem:[#allocation2 + $0x21] sm:$0xff]
    %v2244 = vld [vmem:[#allocation2 + $0x29] sm:$0xff]
    %v2245 = vld [vmem:[#allocation2 + $0x31] sm:$0xff]
    %v2246 = vld [vmem:[#allocation2 + $0x39] sm:$0xff]
    %v2247 = vld [vmem:[#allocation2 + $0x41] sm:$0xff]
    %v2248 = vld [vmem:[#allocation2 + $0x49] sm:$0xff]
    %v2249 = vld [vmem:[#allocation2 + $0x51] sm:$0xff]
    %v2250 = vld [vmem:[#allocation2 + $0x59] sm:$0xff]
    %v2251 = vld [vmem:[#allocation2 + $0x61] sm:$0xff]
    %v2252 = vld [vmem:[#allocation2 + $0x69] sm:$0xff]
    %v2253 = vld [vmem:[#allocation2 + $0x71] sm:$0xff]
    %v2254 = vld [vmem:[#allocation2 + $0x79] sm:$0x3]
    %s2255 = scalar_lea.vmem %s2, 16
    %v2256 = vld [vmem:[%s2255] sm:$0xff]
    %v2257 = vld [vmem:[%s2255 + $0x8] sm:$0xff]
    %v2259 = vsel %vm2202, %v2239, 0
    %v2262 = vsel %vm2202, %v2240, 0
    %v2265 = vsel %vm2202, %v2241, 0
    %v2268 = vsel %vm2202, %v2242, 0
    %v2271 = vsel %vm2202, %v2243, 0
    %v2274 = vsel %vm2202, %v2244, 0
    %v2277 = vsel %vm2202, %v2245, 0
    %v2280 = vsel %vm2202, %v2246, 0
    %v2283 = vsel %vm2202, %v2247, 0
    %v2286 = vsel %vm2202, %v2248, 0
    %v2289 = vsel %vm2202, %v2249, 0
    %v2292 = vsel %vm2202, %v2250, 0
    %v2295 = vsel %vm2202, %v2251, 0
    %v2298 = vsel %vm2202, %v2252, 0
    %v2301 = vsel %vm2202, %v2253, 0
    %v2304 = vsel %vm2202, %v2254, 0
    %2306 = vmatprep.subr.mxu0 0.0
    %2307 = vmatpush1.msra.mxu0 %v2256
    %2308 = vmatprep.subr.mxu0 0.0
    %2309 = vmatpush1.msra.mxu0 %v2257
    %2310 = vmatprep.subr.mxu0 0.0
    %2311 = vmatpush1.msra.mxu0 0.0
    %2312 = vmatprep.subr.mxu0 0.0
    %2313 = vmatpush1.msra.mxu0 0.0
    %2314 = vmatprep.subr.mxu0 0.0
    %2315 = vmatpush1.msra.mxu0 0.0
    %2316 = vmatprep.subr.mxu0 0.0
    %2317 = vmatpush1.msra.mxu0 0.0
    %2318 = vmatprep.subr.mxu0 0.0
    %2319 = vmatpush1.msra.mxu0 0.0
    %2320 = vmatprep.subr.mxu0 0.0
    %2321 = vmatpush1.msra.mxu0 0.0
    %2322 = vmatprep.subr.mxu0 0.0
    %2323 = vmatpush1.msra.mxu0 0.0
    %2324 = vmatprep.subr.mxu0 0.0
    %2325 = vmatpush1.msra.mxu0 0.0
    %2326 = vmatprep.subr.mxu0 0.0
    %2327 = vmatpush1.msra.mxu0 0.0
    %2328 = vmatprep.subr.mxu0 0.0
    %2329 = vmatpush1.msra.mxu0 0.0
    %2330 = vmatprep.subr.mxu0 0.0
    %2331 = vmatpush1.msra.mxu0 0.0
    %2332 = vmatprep.subr.mxu0 0.0
    %2333 = vmatpush1.msra.mxu0 0.0
    %2334 = vmatprep.subr.mxu0 0.0
    %2335 = vmatpush1.msra.mxu0 0.0
    %2336 = vmatprep.subr.mxu0 0.0
    %2337 = vmatpush1.msra.mxu0 0.0
    %2338 = vmatprep.subr.mxu0 0.0
    %2339 = vmatpush1.msra.mxu0 0.0
    %2340 = vmatprep.subr.mxu0 0.0
    %2341 = vmatpush1.msra.mxu0 0.0
    %2342 = vmatprep.subr.mxu0 0.0
    %2343 = vmatpush1.msra.mxu0 0.0
    %2344 = vmatprep.subr.mxu0 0.0
    %2345 = vmatpush1.msra.mxu0 0.0
    %2346 = vmatprep.subr.mxu0 0.0
    %2347 = vmatpush1.msra.mxu0 0.0
    %2348 = vmatprep.subr.mxu0 0.0
    %2349 = vmatpush1.msra.mxu0 0.0
    %2350 = vmatprep.subr.mxu0 0.0
    %2351 = vmatpush1.msra.mxu0 0.0
    %2352 = vmatprep.subr.mxu0 0.0
    %2353 = vmatpush1.msra.mxu0 0.0
    %2354 = vmatprep.subr.mxu0 0.0
    %2355 = vmatpush1.msra.mxu0 0.0
    %2356 = vmatprep.subr.mxu0 0.0
    %2357 = vmatpush1.msra.mxu0 0.0
    %2358 = vmatprep.subr.mxu0 0.0
    %2359 = vmatpush1.msra.mxu0 0.0
    %2360 = vmatprep.subr.mxu0 0.0
    %2361 = vmatpush1.msra.mxu0 0.0
    %2362 = vmatprep.subr.mxu0 0.0
    %2363 = vmatpush1.msra.mxu0 0.0
    %2364 = vmatprep.subr.mxu0 0.0
    %2365 = vmatpush1.msra.mxu0 0.0
    %2366 = vmatprep.subr.mxu0 0.0
    %2367 = vmatpush1.msra.mxu0 0.0
    %2368 = vmatprep.subr.mxu0 0.0
    %2369 = vmatpush1.msra.mxu0 0.0
    %2370 = vmatprep.mubr.f32.mxu0 0.0
    %2371 = vmatmul.mubr.f32.gmra.mrb[0].mxu0 %v2259
    %v2372 = vpop.f32.mrb[0].mxu0
    %v2373 = vadd.f32 0.0, %v2372
    %v2374 = vpop.f32.mrb[0].mxu0
    %2375 = vmatprep.mubr.f32.mxu0 0.0
    %2376 = vmatmul.mubr.f32.gmra.mrb[0].mxu0 %v2262
    %v2377 = vpop.f32.mrb[0].mxu0
    %v2378 = vadd.f32 0.0, %v2377
    %v2379 = vpop.f32.mrb[0].mxu0
    %2380 = vmatprep.mubr.f32.mxu0 0.0
    %2381 = vmatmul.mubr.f32.gmra.mrb[0].mxu0 %v2265
    %v2382 = vpop.f32.mrb[0].mxu0
    %v2383 = vadd.f32 0.0, %v2382
    %v2384 = vpop.f32.mrb[0].mxu0
    %2385 = vmatprep.mubr.f32.mxu0 0.0
    %2386 = vmatmul.mubr.f32.gmra.mrb[0].mxu0 %v2268
    %v2387 = vpop.f32.mrb[0].mxu0
    %v2388 = vadd.f32 0.0, %v2387
    %v2389 = vpop.f32.mrb[0].mxu0
    %2390 = vmatprep.mubr.f32.mxu0 0.0
    %2391 = vmatmul.mubr.f32.gmra.mrb[0].mxu0 %v2271
    %v2392 = vpop.f32.mrb[0].mxu0
    %v2393 = vadd.f32 0.0, %v2392
    %v2394 = vpop.f32.mrb[0].mxu0
    %2395 = vmatprep.mubr.f32.mxu0 0.0
    %2396 = vmatmul.mubr.f32.gmra.mrb[0].mxu0 %v2274
    %v2397 = vpop.f32.mrb[0].mxu0
    %v2398 = vadd.f32 0.0, %v2397
    %v2399 = vpop.f32.mrb[0].mxu0
    %2400 = vmatprep.mubr.f32.mxu0 0.0
    %2401 = vmatmul.mubr.f32.gmra.mrb[0].mxu0 %v2277
    %v2402 = vpop.f32.mrb[0].mxu0
    %v2403 = vadd.f32 0.0, %v2402
    %v2404 = vpop.f32.mrb[0].mxu0
    %2405 = vmatprep.mubr.f32.mxu0 0.0
    %2406 = vmatmul.mubr.f32.gmra.mrb[0].mxu0 %v2280
    %v2407 = vpop.f32.mrb[0].mxu0
    %v2408 = vadd.f32 0.0, %v2407
    %v2409 = vpop.f32.mrb[0].mxu0
    %2410 = vmatprep.mubr.f32.mxu0 0.0
    %2411 = vmatmul.mubr.f32.gmra.mrb[0].mxu0 %v2283
    %v2412 = vpop.f32.mrb[0].mxu0
    %v2413 = vadd.f32 0.0, %v2412
    %v2414 = vpop.f32.mrb[0].mxu0
    %2415 = vmatprep.mubr.f32.mxu0 0.0
    %2416 = vmatmul.mubr.f32.gmra.mrb[0].mxu0 %v2286
    %v2417 = vpop.f32.mrb[0].mxu0
    %v2418 = vadd.f32 0.0, %v2417
    %v2419 = vpop.f32.mrb[0].mxu0
    %2420 = vmatprep.mubr.f32.mxu0 0.0
    %2421 = vmatmul.mubr.f32.gmra.mrb[0].mxu0 %v2289
    %v2422 = vpop.f32.mrb[0].mxu0
    %v2423 = vadd.f32 0.0, %v2422
    %v2424 = vpop.f32.mrb[0].mxu0
    %2425 = vmatprep.mubr.f32.mxu0 0.0
    %2426 = vmatmul.mubr.f32.gmra.mrb[0].mxu0 %v2292
    %v2427 = vpop.f32.mrb[0].mxu0
    %v2428 = vadd.f32 0.0, %v2427
    %v2429 = vpop.f32.mrb[0].mxu0
    %2430 = vmatprep.mubr.f32.mxu0 0.0
    %2431 = vmatmul.mubr.f32.gmra.mrb[0].mxu0 %v2295
    %v2432 = vpop.f32.mrb[0].mxu0
    %v2433 = vadd.f32 0.0, %v2432
    %v2434 = vpop.f32.mrb[0].mxu0
    %2435 = vmatprep.mubr.f32.mxu0 0.0
    %2436 = vmatmul.mubr.f32.gmra.mrb[0].mxu0 %v2298
    %v2437 = vpop.f32.mrb[0].mxu0
    %v2438 = vadd.f32 0.0, %v2437
    %v2439 = vpop.f32.mrb[0].mxu0
    %2440 = vmatprep.mubr.f32.mxu0 0.0
    %2441 = vmatmul.mubr.f32.gmra.mrb[0].mxu0 %v2301
    %v2442 = vpop.f32.mrb[0].mxu0
    %v2443 = vadd.f32 0.0, %v2442
    %v2444 = vpop.f32.mrb[0].mxu0
    %2445 = vmatprep.mubr.f32.mxu0 0.0
    %2446 = vmatmul.mubr.f32.gmra.mrb[0].mxu0 %v2304
    %v2447 = vpop.f32.mrb[0].mxu0
    %v2448 = vadd.f32 0.0, %v2447
    %v2449 = vpop.f32.mrb[0].mxu0
    %2450 = vdwg.mxu0
    %v2452 = vsel %vm2202, %v2221, 0
    %v2455 = vsel %vm2202, %v2222, 0
    %v2458 = vsel %vm2202, %v2223, 0
    %v2461 = vsel %vm2202, %v2224, 0
    %v2464 = vsel %vm2202, %v2225, 0
    %v2467 = vsel %vm2202, %v2226, 0
    %v2470 = vsel %vm2202, %v2227, 0
    %v2473 = vsel %vm2202, %v2228, 0
    %v2476 = vsel %vm2202, %v2229, 0
    %v2479 = vsel %vm2202, %v2230, 0
    %v2482 = vsel %vm2202, %v2231, 0
    %v2485 = vsel %vm2202, %v2232, 0
    %v2488 = vsel %vm2202, %v2233, 0
    %v2491 = vsel %vm2202, %v2234, 0
    %v2494 = vsel %vm2202, %v2235, 0
    %v2497 = vsel %vm2202, %v2236, 0
    %2499 = vmatprep.subr.mxu0 0.0
    %2500 = vmatpush1.msra.mxu0 %v2237
    %2501 = vmatprep.subr.mxu0 0.0
    %2502 = vmatpush1.msra.mxu0 %v2238
    %2503 = vmatprep.subr.mxu0 0.0
    %2504 = vmatpush1.msra.mxu0 0.0
    %2505 = vmatprep.subr.mxu0 0.0
    %2506 = vmatpush1.msra.mxu0 0.0
    %2507 = vmatprep.subr.mxu0 0.0
    %2508 = vmatpush1.msra.mxu0 0.0
    %2509 = vmatprep.subr.mxu0 0.0
    %2510 = vmatpush1.msra.mxu0 0.0
    %2511 = vmatprep.subr.mxu0 0.0
    %2512 = vmatpush1.msra.mxu0 0.0
    %2513 = vmatprep.subr.mxu0 0.0
    %2514 = vmatpush1.msra.mxu0 0.0
    %2515 = vmatprep.subr.mxu0 0.0
    %2516 = vmatpush1.msra.mxu0 0.0
    %2517 = vmatprep.subr.mxu0 0.0
    %2518 = vmatpush1.msra.mxu0 0.0
    %2519 = vmatprep.subr.mxu0 0.0
    %2520 = vmatpush1.msra.mxu0 0.0
    %2521 = vmatprep.subr.mxu0 0.0
    %2522 = vmatpush1.msra.mxu0 0.0
    %2523 = vmatprep.subr.mxu0 0.0
    %2524 = vmatpush1.msra.mxu0 0.0
    %2525 = vmatprep.subr.mxu0 0.0
    %2526 = vmatpush1.msra.mxu0 0.0
    %2527 = vmatprep.subr.mxu0 0.0
    %2528 = vmatpush1.msra.mxu0 0.0
    %2529 = vmatprep.subr.mxu0 0.0
    %2530 = vmatpush1.msra.mxu0 0.0
    %2531 = vmatprep.subr.mxu0 0.0
    %2532 = vmatpush1.msra.mxu0 0.0
    %2533 = vmatprep.subr.mxu0 0.0
    %2534 = vmatpush1.msra.mxu0 0.0
    %2535 = vmatprep.subr.mxu0 0.0
    %2536 = vmatpush1.msra.mxu0 0.0
    %2537 = vmatprep.subr.mxu0 0.0
    %2538 = vmatpush1.msra.mxu0 0.0
    %2539 = vmatprep.subr.mxu0 0.0
    %2540 = vmatpush1.msra.mxu0 0.0
    %2541 = vmatprep.subr.mxu0 0.0
    %2542 = vmatpush1.msra.mxu0 0.0
    %2543 = vmatprep.subr.mxu0 0.0
    %2544 = vmatpush1.msra.mxu0 0.0
    %2545 = vmatprep.subr.mxu0 0.0
    %2546 = vmatpush1.msra.mxu0 0.0
    %2547 = vmatprep.subr.mxu0 0.0
    %2548 = vmatpush1.msra.mxu0 0.0
    %2549 = vmatprep.subr.mxu0 0.0
    %2550 = vmatpush1.msra.mxu0 0.0
    %2551 = vmatprep.subr.mxu0 0.0
    %2552 = vmatpush1.msra.mxu0 0.0
    %2553 = vmatprep.subr.mxu0 0.0
    %2554 = vmatpush1.msra.mxu0 0.0
    %2555 = vmatprep.subr.mxu0 0.0
    %2556 = vmatpush1.msra.mxu0 0.0
    %2557 = vmatprep.subr.mxu0 0.0
    %2558 = vmatpush1.msra.mxu0 0.0
    %2559 = vmatprep.subr.mxu0 0.0
    %2560 = vmatpush1.msra.mxu0 0.0
    %2561 = vmatprep.subr.mxu0 0.0
    %2562 = vmatpush1.msra.mxu0 0.0
    %2563 = vmatprep.mubr.f32.mxu0 0.0
    %2564 = vmatmul.mubr.f32.gmra.mrb[0].mxu0 %v2452
    %v2565 = vpop.f32.mrb[0].mxu0
    %v2566 = vadd.f32 %v2373, %v2565
    %v2567 = vpop.f32.mrb[0].mxu0
    %2568 = vmatprep.mubr.f32.mxu0 0.0
    %2569 = vmatmul.mubr.f32.gmra.mrb[0].mxu0 %v2455
    %v2570 = vpop.f32.mrb[0].mxu0
    %v2571 = vadd.f32 %v2378, %v2570
    %v2572 = vpop.f32.mrb[0].mxu0
    %2573 = vmatprep.mubr.f32.mxu0 0.0
    %2574 = vmatmul.mubr.f32.gmra.mrb[0].mxu0 %v2458
    %v2575 = vpop.f32.mrb[0].mxu0
    %v2576 = vadd.f32 %v2383, %v2575
    %v2577 = vpop.f32.mrb[0].mxu0
    %2578 = vmatprep.mubr.f32.mxu0 0.0
    %2579 = vmatmul.mubr.f32.gmra.mrb[0].mxu0 %v2461
    %v2580 = vpop.f32.mrb[0].mxu0
    %v2581 = vadd.f32 %v2388, %v2580
    %v2582 = vpop.f32.mrb[0].mxu0
    %2583 = vmatprep.mubr.f32.mxu0 0.0
    %2584 = vmatmul.mubr.f32.gmra.mrb[0].mxu0 %v2464
    %v2585 = vpop.f32.mrb[0].mxu0
    %v2586 = vadd.f32 %v2393, %v2585
    %v2587 = vpop.f32.mrb[0].mxu0
    %2588 = vmatprep.mubr.f32.mxu0 0.0
    %2589 = vmatmul.mubr.f32.gmra.mrb[0].mxu0 %v2467
    %v2590 = vpop.f32.mrb[0].mxu0
    %v2591 = vadd.f32 %v2398, %v2590
    %v2592 = vpop.f32.mrb[0].mxu0
    %2593 = vmatprep.mubr.f32.mxu0 0.0
    %2594 = vmatmul.mubr.f32.gmra.mrb[0].mxu0 %v2470
    %v2595 = vpop.f32.mrb[0].mxu0
    %v2596 = vadd.f32 %v2403, %v2595
    %v2597 = vpop.f32.mrb[0].mxu0
    %2598 = vmatprep.mubr.f32.mxu0 0.0
    %2599 = vmatmul.mubr.f32.gmra.mrb[0].mxu0 %v2473
    %v2600 = vpop.f32.mrb[0].mxu0
    %v2601 = vadd.f32 %v2408, %v2600
    %v2602 = vpop.f32.mrb[0].mxu0
    %2603 = vmatprep.mubr.f32.mxu0 0.0
    %2604 = vmatmul.mubr.f32.gmra.mrb[0].mxu0 %v2476
    %v2605 = vpop.f32.mrb[0].mxu0
    %v2606 = vadd.f32 %v2413, %v2605
    %v2607 = vpop.f32.mrb[0].mxu0
    %2608 = vmatprep.mubr.f32.mxu0 0.0
    %2609 = vmatmul.mubr.f32.gmra.mrb[0].mxu0 %v2479
    %v2610 = vpop.f32.mrb[0].mxu0
    %v2611 = vadd.f32 %v2418, %v2610
    %v2612 = vpop.f32.mrb[0].mxu0
    %2613 = vmatprep.mubr.f32.mxu0 0.0
    %2614 = vmatmul.mubr.f32.gmra.mrb[0].mxu0 %v2482
    %v2615 = vpop.f32.mrb[0].mxu0
    %v2616 = vadd.f32 %v2423, %v2615
    %v2617 = vpop.f32.mrb[0].mxu0
    %2618 = vmatprep.mubr.f32.mxu0 0.0
    %2619 = vmatmul.mubr.f32.gmra.mrb[0].mxu0 %v2485
    %v2620 = vpop.f32.mrb[0].mxu0
    %v2621 = vadd.f32 %v2428, %v2620
    %v2622 = vpop.f32.mrb[0].mxu0
    %2623 = vmatprep.mubr.f32.mxu0 0.0
    %2624 = vmatmul.mubr.f32.gmra.mrb[0].mxu0 %v2488
    %v2625 = vpop.f32.mrb[0].mxu0
    %v2626 = vadd.f32 %v2433, %v2625
    %v2627 = vpop.f32.mrb[0].mxu0
    %2628 = vmatprep.mubr.f32.mxu0 0.0
    %2629 = vmatmul.mubr.f32.gmra.mrb[0].mxu0 %v2491
    %v2630 = vpop.f32.mrb[0].mxu0
    %v2631 = vadd.f32 %v2438, %v2630
    %v2632 = vpop.f32.mrb[0].mxu0
    %2633 = vmatprep.mubr.f32.mxu0 0.0
    %2634 = vmatmul.mubr.f32.gmra.mrb[0].mxu0 %v2494
    %v2635 = vpop.f32.mrb[0].mxu0
    %v2636 = vadd.f32 %v2443, %v2635
    %v2637 = vpop.f32.mrb[0].mxu0
    %2638 = vmatprep.mubr.f32.mxu0 0.0
    %2639 = vmatmul.mubr.f32.gmra.mrb[0].mxu0 %v2497
    %v2640 = vpop.f32.mrb[0].mxu0
    %v2641 = vadd.f32 %v2448, %v2640
    %v2642 = vpop.f32.mrb[0].mxu0
    %2643 = vdwg.mxu0
    %v2644 = vld [vmem:[#allocation2 + $0x7] sm:$0xff]
    %v2645 = vld [vmem:[#allocation2 + $0xf] sm:$0xff]
    %v2646 = vld [vmem:[#allocation2 + $0x17] sm:$0xff]
    %v2647 = vld [vmem:[#allocation2 + $0x1f] sm:$0xff]
    %v2648 = vld [vmem:[#allocation2 + $0x27] sm:$0xff]
    %v2649 = vld [vmem:[#allocation2 + $0x2f] sm:$0xff]
    %v2650 = vld [vmem:[#allocation2 + $0x37] sm:$0xff]
    %v2651 = vld [vmem:[#allocation2 + $0x3f] sm:$0xff]
    %v2652 = vld [vmem:[#allocation2 + $0x47] sm:$0xff]
    %v2653 = vld [vmem:[#allocation2 + $0x4f] sm:$0xff]
    %v2654 = vld [vmem:[#allocation2 + $0x57] sm:$0xff]
    %v2655 = vld [vmem:[#allocation2 + $0x5f] sm:$0xff]
    %v2656 = vld [vmem:[#allocation2 + $0x67] sm:$0xff]
    %v2657 = vld [vmem:[#allocation2 + $0x6f] sm:$0xff]
    %v2658 = vld [vmem:[#allocation2 + $0x77] sm:$0xff]
    %v2659 = vld [vmem:[#allocation2 + $0x7f] sm:$0x3]
    %s2660 = scalar_lea.vmem %s2, 32
    %v2661 = vld [vmem:[%s2660] sm:$0xff]
    %v2662 = vld [vmem:[%s2660 + $0x8] sm:$0xff]
    %v2664 = vsel %vm2202, %v2644, 0
    %v2667 = vsel %vm2202, %v2645, 0
    %v2670 = vsel %vm2202, %v2646, 0
    %v2673 = vsel %vm2202, %v2647, 0
    %v2676 = vsel %vm2202, %v2648, 0
    %v2679 = vsel %vm2202, %v2649, 0
    %v2682 = vsel %vm2202, %v2650, 0
    %v2685 = vsel %vm2202, %v2651, 0
    %v2688 = vsel %vm2202, %v2652, 0
    %v2691 = vsel %vm2202, %v2653, 0
    %v2694 = vsel %vm2202, %v2654, 0
    %v2697 = vsel %vm2202, %v2655, 0
    %v2700 = vsel %vm2202, %v2656, 0
    %v2703 = vsel %vm2202, %v2657, 0
    %v2706 = vsel %vm2202, %v2658, 0
    %v2709 = vsel %vm2202, %v2659, 0
    %2711 = vmatprep.subr.mxu0 0.0
    %2712 = vmatpush1.msra.mxu0 %v2661
    %2713 = vmatprep.subr.mxu0 0.0
    %2714 = vmatpush1.msra.mxu0 %v2662
    %2715 = vmatprep.subr.mxu0 0.0
    %2716 = vmatpush1.msra.mxu0 0.0
    %2717 = vmatprep.subr.mxu0 0.0
    %2718 = vmatpush1.msra.mxu0 0.0
    %2719 = vmatprep.subr.mxu0 0.0
    %2720 = vmatpush1.msra.mxu0 0.0
    %2721 = vmatprep.subr.mxu0 0.0
    %2722 = vmatpush1.msra.mxu0 0.0
    %2723 = vmatprep.subr.mxu0 0.0
    %2724 = vmatpush1.msra.mxu0 0.0
    %2725 = vmatprep.subr.mxu0 0.0
    %2726 = vmatpush1.msra.mxu0 0.0
    %2727 = vmatprep.subr.mxu0 0.0
    %2728 = vmatpush1.msra.mxu0 0.0
    %2729 = vmatprep.subr.mxu0 0.0
    %2730 = vmatpush1.msra.mxu0 0.0
    %2731 = vmatprep.subr.mxu0 0.0
    %2732 = vmatpush1.msra.mxu0 0.0
    %2733 = vmatprep.subr.mxu0 0.0
    %2734 = vmatpush1.msra.mxu0 0.0
    %2735 = vmatprep.subr.mxu0 0.0
    %2736 = vmatpush1.msra.mxu0 0.0
    %2737 = vmatprep.subr.mxu0 0.0
    %2738 = vmatpush1.msra.mxu0 0.0
    %2739 = vmatprep.subr.mxu0 0.0
    %2740 = vmatpush1.msra.mxu0 0.0
    %2741 = vmatprep.subr.mxu0 0.0
    %2742 = vmatpush1.msra.mxu0 0.0
    %2743 = vmatprep.subr.mxu0 0.0
    %2744 = vmatpush1.msra.mxu0 0.0
    %2745 = vmatprep.subr.mxu0 0.0
    %2746 = vmatpush1.msra.mxu0 0.0
    %2747 = vmatprep.subr.mxu0 0.0
    %2748 = vmatpush1.msra.mxu0 0.0
    %2749 = vmatprep.subr.mxu0 0.0
    %2750 = vmatpush1.msra.mxu0 0.0
    %2751 = vmatprep.subr.mxu0 0.0
    %2752 = vmatpush1.msra.mxu0 0.0
    %2753 = vmatprep.subr.mxu0 0.0
    %2754 = vmatpush1.msra.mxu0 0.0
    %2755 = vmatprep.subr.mxu0 0.0
    %2756 = vmatpush1.msra.mxu0 0.0
    %2757 = vmatprep.subr.mxu0 0.0
    %2758 = vmatpush1.msra.mxu0 0.0
    %2759 = vmatprep.subr.mxu0 0.0
    %2760 = vmatpush1.msra.mxu0 0.0
    %2761 = vmatprep.subr.mxu0 0.0
    %2762 = vmatpush1.msra.mxu0 0.0
    %2763 = vmatprep.subr.mxu0 0.0
    %2764 = vmatpush1.msra.mxu0 0.0
    %2765 = vmatprep.subr.mxu0 0.0
    %2766 = vmatpush1.msra.mxu0 0.0
    %2767 = vmatprep.subr.mxu0 0.0
    %2768 = vmatpush1.msra.mxu0 0.0
    %2769 = vmatprep.subr.mxu0 0.0
    %2770 = vmatpush1.msra.mxu0 0.0
    %2771 = vmatprep.subr.mxu0 0.0
    %2772 = vmatpush1.msra.mxu0 0.0
    %2773 = vmatprep.subr.mxu0 0.0
    %2774 = vmatpush1.msra.mxu0 0.0
    %2775 = vmatprep.mubr.f32.mxu0 0.0
    %2776 = vmatmul.mubr.f32.gmra.mrb[0].mxu0 %v2664
    %v2777 = vpop.f32.mrb[0].mxu0
    %v2778 = vadd.f32 0.0, %v2777
    %v2779 = vpop.f32.mrb[0].mxu0
    %2780 = vmatprep.mubr.f32.mxu0 0.0
    %2781 = vmatmul.mubr.f32.gmra.mrb[0].mxu0 %v2667
    %v2782 = vpop.f32.mrb[0].mxu0
    %v2783 = vadd.f32 0.0, %v2782
    %v2784 = vpop.f32.mrb[0].mxu0
    %2785 = vmatprep.mubr.f32.mxu0 0.0
    %2786 = vmatmul.mubr.f32.gmra.mrb[0].mxu0 %v2670
    %v2787 = vpop.f32.mrb[0].mxu0
    %v2788 = vadd.f32 0.0, %v2787
    %v2789 = vpop.f32.mrb[0].mxu0
    %2790 = vmatprep.mubr.f32.mxu0 0.0
    %2791 = vmatmul.mubr.f32.gmra.mrb[0].mxu0 %v2673
    %v2792 = vpop.f32.mrb[0].mxu0
    %v2793 = vadd.f32 0.0, %v2792
    %v2794 = vpop.f32.mrb[0].mxu0
    %2795 = vmatprep.mubr.f32.mxu0 0.0
    %2796 = vmatmul.mubr.f32.gmra.mrb[0].mxu0 %v2676
    %v2797 = vpop.f32.mrb[0].mxu0
    %v2798 = vadd.f32 0.0, %v2797
    %v2799 = vpop.f32.mrb[0].mxu0
    %2800 = vmatprep.mubr.f32.mxu0 0.0
    %2801 = vmatmul.mubr.f32.gmra.mrb[0].mxu0 %v2679
    %v2802 = vpop.f32.mrb[0].mxu0
    %v2803 = vadd.f32 0.0, %v2802
    %v2804 = vpop.f32.mrb[0].mxu0
    %2805 = vmatprep.mubr.f32.mxu0 0.0
    %2806 = vmatmul.mubr.f32.gmra.mrb[0].mxu0 %v2682
    %v2807 = vpop.f32.mrb[0].mxu0
    %v2808 = vadd.f32 0.0, %v2807
    %v2809 = vpop.f32.mrb[0].mxu0
    %2810 = vmatprep.mubr.f32.mxu0 0.0
    %2811 = vmatmul.mubr.f32.gmra.mrb[0].mxu0 %v2685
    %v2812 = vpop.f32.mrb[0].mxu0
    %v2813 = vadd.f32 0.0, %v2812
    %v2814 = vpop.f32.mrb[0].mxu0
    %2815 = vmatprep.mubr.f32.mxu0 0.0
    %2816 = vmatmul.mubr.f32.gmra.mrb[0].mxu0 %v2688
    %v2817 = vpop.f32.mrb[0].mxu0
    %v2818 = vadd.f32 0.0, %v2817
    %v2819 = vpop.f32.mrb[0].mxu0
    %2820 = vmatprep.mubr.f32.mxu0 0.0
    %2821 = vmatmul.mubr.f32.gmra.mrb[0].mxu0 %v2691
    %v2822 = vpop.f32.mrb[0].mxu0
    %v2823 = vadd.f32 0.0, %v2822
    %v2824 = vpop.f32.mrb[0].mxu0
    %2825 = vmatprep.mubr.f32.mxu0 0.0
    %2826 = vmatmul.mubr.f32.gmra.mrb[0].mxu0 %v2694
    %v2827 = vpop.f32.mrb[0].mxu0
    %v2828 = vadd.f32 0.0, %v2827
    %v2829 = vpop.f32.mrb[0].mxu0
    %2830 = vmatprep.mubr.f32.mxu0 0.0
    %2831 = vmatmul.mubr.f32.gmra.mrb[0].mxu0 %v2697
    %v2832 = vpop.f32.mrb[0].mxu0
    %v2833 = vadd.f32 0.0, %v2832
    %v2834 = vpop.f32.mrb[0].mxu0
    %2835 = vmatprep.mubr.f32.mxu0 0.0
    %2836 = vmatmul.mubr.f32.gmra.mrb[0].mxu0 %v2700
    %v2837 = vpop.f32.mrb[0].mxu0
    %v2838 = vadd.f32 0.0, %v2837
    %v2839 = vpop.f32.mrb[0].mxu0
    %2840 = vmatprep.mubr.f32.mxu0 0.0
    %2841 = vmatmul.mubr.f32.gmra.mrb[0].mxu0 %v2703
    %v2842 = vpop.f32.mrb[0].mxu0
    %v2843 = vadd.f32 0.0, %v2842
    %v2844 = vpop.f32.mrb[0].mxu0
    %2845 = vmatprep.mubr.f32.mxu0 0.0
    %2846 = vmatmul.mubr.f32.gmra.mrb[0].mxu0 %v2706
    %v2847 = vpop.f32.mrb[0].mxu0
    %v2848 = vadd.f32 0.0, %v2847
    %v2849 = vpop.f32.mrb[0].mxu0
    %2850 = vmatprep.mubr.f32.mxu0 0.0
    %2851 = vmatmul.mubr.f32.gmra.mrb[0].mxu0 %v2709
    %v2852 = vpop.f32.mrb[0].mxu0
    %v2853 = vadd.f32 0.0, %v2852
    %v2854 = vpop.f32.mrb[0].mxu0
    %2855 = vdwg.mxu0
    %v2856 = vadd.f32 %v2566, %v2778
    %v2857 = vadd.f32 %v2571, %v2783
    %v2858 = vadd.f32 %v2576, %v2788
    %v2859 = vadd.f32 %v2581, %v2793
    %v2860 = vadd.f32 %v2586, %v2798
    %v2861 = vadd.f32 %v2591, %v2803
    %v2862 = vadd.f32 %v2596, %v2808
    %v2863 = vadd.f32 %v2601, %v2813
    %v2864 = vadd.f32 %v2606, %v2818
    %v2865 = vadd.f32 %v2611, %v2823
    %v2866 = vadd.f32 %v2616, %v2828
    %v2867 = vadd.f32 %v2621, %v2833
    %v2868 = vadd.f32 %v2626, %v2838
    %v2869 = vadd.f32 %v2631, %v2843
    %v2870 = vadd.f32 %v2636, %v2848
    %v2871 = vadd.f32 %v2641, %v2853
    %v2872 = vld [vmem:[#allocation2 + $0x8] sm:$0xff]
    %v2873 = vld [vmem:[#allocation2 + $0x10] sm:$0xff]
    %v2874 = vld [vmem:[#allocation2 + $0x18] sm:$0xff]
    %v2875 = vld [vmem:[#allocation2 + $0x20] sm:$0xff]
    %v2876 = vld [vmem:[#allocation2 + $0x28] sm:$0xff]
    %v2877 = vld [vmem:[#allocation2 + $0x30] sm:$0xff]
    %v2878 = vld [vmem:[#allocation2 + $0x38] sm:$0xff]
    %v2879 = vld [vmem:[#allocation2 + $0x40] sm:$0xff]
    %v2880 = vld [vmem:[#allocation2 + $0x48] sm:$0xff]
    %v2881 = vld [vmem:[#allocation2 + $0x50] sm:$0xff]
    %v2882 = vld [vmem:[#allocation2 + $0x58] sm:$0xff]
    %v2883 = vld [vmem:[#allocation2 + $0x60] sm:$0xff]
    %v2884 = vld [vmem:[#allocation2 + $0x68] sm:$0xff]
    %v2885 = vld [vmem:[#allocation2 + $0x70] sm:$0xff]
    %v2886 = vld [vmem:[#allocation2 + $0x78] sm:$0xff]
    %v2887 = vld [vmem:[#allocation2 + $0x80] sm:$0x3]
    %s2888 = scalar_lea.vmem %s2, 48
    %v2889 = vld [vmem:[%s2888] sm:$0xff]
    %v2890 = vld [vmem:[%s2888 + $0x8] sm:$0xff]
    %v2892 = vsel %vm2202, %v2872, 0
    %v2895 = vsel %vm2202, %v2873, 0
    %v2898 = vsel %vm2202, %v2874, 0
    %v2901 = vsel %vm2202, %v2875, 0
    %v2904 = vsel %vm2202, %v2876, 0
    %v2907 = vsel %vm2202, %v2877, 0
    %v2910 = vsel %vm2202, %v2878, 0
    %v2913 = vsel %vm2202, %v2879, 0
    %v2916 = vsel %vm2202, %v2880, 0
    %v2919 = vsel %vm2202, %v2881, 0
    %v2922 = vsel %vm2202, %v2882, 0
    %v2925 = vsel %vm2202, %v2883, 0
    %v2928 = vsel %vm2202, %v2884, 0
    %v2931 = vsel %vm2202, %v2885, 0
    %v2934 = vsel %vm2202, %v2886, 0
    %v2937 = vsel %vm2202, %v2887, 0
    %2939 = vmatprep.subr.mxu0 0.0
    %2940 = vmatpush1.msra.mxu0 %v2889
    %2941 = vmatprep.subr.mxu0 0.0
    %2942 = vmatpush1.msra.mxu0 %v2890
    %2943 = vmatprep.subr.mxu0 0.0
    %2944 = vmatpush1.msra.mxu0 0.0
    %2945 = vmatprep.subr.mxu0 0.0
    %2946 = vmatpush1.msra.mxu0 0.0
    %2947 = vmatprep.subr.mxu0 0.0
    %2948 = vmatpush1.msra.mxu0 0.0
    %2949 = vmatprep.subr.mxu0 0.0
    %2950 = vmatpush1.msra.mxu0 0.0
    %2951 = vmatprep.subr.mxu0 0.0
    %2952 = vmatpush1.msra.mxu0 0.0
    %2953 = vmatprep.subr.mxu0 0.0
    %2954 = vmatpush1.msra.mxu0 0.0
    %2955 = vmatprep.subr.mxu0 0.0
    %2956 = vmatpush1.msra.mxu0 0.0
    %2957 = vmatprep.subr.mxu0 0.0
    %2958 = vmatpush1.msra.mxu0 0.0
    %2959 = vmatprep.subr.mxu0 0.0
    %2960 = vmatpush1.msra.mxu0 0.0
    %2961 = vmatprep.subr.mxu0 0.0
    %2962 = vmatpush1.msra.mxu0 0.0
    %2963 = vmatprep.subr.mxu0 0.0
    %2964 = vmatpush1.msra.mxu0 0.0
    %2965 = vmatprep.subr.mxu0 0.0
    %2966 = vmatpush1.msra.mxu0 0.0
    %2967 = vmatprep.subr.mxu0 0.0
    %2968 = vmatpush1.msra.mxu0 0.0
    %2969 = vmatprep.subr.mxu0 0.0
    %2970 = vmatpush1.msra.mxu0 0.0
    %2971 = vmatprep.subr.mxu0 0.0
    %2972 = vmatpush1.msra.mxu0 0.0
    %2973 = vmatprep.subr.mxu0 0.0
    %2974 = vmatpush1.msra.mxu0 0.0
    %2975 = vmatprep.subr.mxu0 0.0
    %2976 = vmatpush1.msra.mxu0 0.0
    %2977 = vmatprep.subr.mxu0 0.0
    %2978 = vmatpush1.msra.mxu0 0.0
    %2979 = vmatprep.subr.mxu0 0.0
    %2980 = vmatpush1.msra.mxu0 0.0
    %2981 = vmatprep.subr.mxu0 0.0
    %2982 = vmatpush1.msra.mxu0 0.0
    %2983 = vmatprep.subr.mxu0 0.0
    %2984 = vmatpush1.msra.mxu0 0.0
    %2985 = vmatprep.subr.mxu0 0.0
    %2986 = vmatpush1.msra.mxu0 0.0
    %2987 = vmatprep.subr.mxu0 0.0
    %2988 = vmatpush1.msra.mxu0 0.0
    %2989 = vmatprep.subr.mxu0 0.0
    %2990 = vmatpush1.msra.mxu0 0.0
    %2991 = vmatprep.subr.mxu0 0.0
    %2992 = vmatpush1.msra.mxu0 0.0
    %2993 = vmatprep.subr.mxu0 0.0
    %2994 = vmatpush1.msra.mxu0 0.0
    %2995 = vmatprep.subr.mxu0 0.0
    %2996 = vmatpush1.msra.mxu0 0.0
    %2997 = vmatprep.subr.mxu0 0.0
    %2998 = vmatpush1.msra.mxu0 0.0
    %2999 = vmatprep.subr.mxu0 0.0
    %3000 = vmatpush1.msra.mxu0 0.0
    %3001 = vmatprep.subr.mxu0 0.0
    %3002 = vmatpush1.msra.mxu0 0.0
    %3003 = vmatprep.mubr.f32.mxu0 0.0
    %3004 = vmatmul.mubr.f32.gmra.mrb[0].mxu0 %v2892
    %v3005 = vpop.f32.mrb[0].mxu0
    %v3006 = vadd.f32 0.0, %v3005
    %v3007 = vpop.f32.mrb[0].mxu0
    %3008 = vmatprep.mubr.f32.mxu0 0.0
    %3009 = vmatmul.mubr.f32.gmra.mrb[0].mxu0 %v2895
    %v3010 = vpop.f32.mrb[0].mxu0
    %v3011 = vadd.f32 0.0, %v3010
    %v3012 = vpop.f32.mrb[0].mxu0
    %3013 = vmatprep.mubr.f32.mxu0 0.0
    %3014 = vmatmul.mubr.f32.gmra.mrb[0].mxu0 %v2898
    %v3015 = vpop.f32.mrb[0].mxu0
    %v3016 = vadd.f32 0.0, %v3015
    %v3017 = vpop.f32.mrb[0].mxu0
    %3018 = vmatprep.mubr.f32.mxu0 0.0
    %3019 = vmatmul.mubr.f32.gmra.mrb[0].mxu0 %v2901
    %v3020 = vpop.f32.mrb[0].mxu0
    %v3021 = vadd.f32 0.0, %v3020
    %v3022 = vpop.f32.mrb[0].mxu0
    %3023 = vmatprep.mubr.f32.mxu0 0.0
    %3024 = vmatmul.mubr.f32.gmra.mrb[0].mxu0 %v2904
    %v3025 = vpop.f32.mrb[0].mxu0
    %v3026 = vadd.f32 0.0, %v3025
    %v3027 = vpop.f32.mrb[0].mxu0
    %3028 = vmatprep.mubr.f32.mxu0 0.0
    %3029 = vmatmul.mubr.f32.gmra.mrb[0].mxu0 %v2907
    %v3030 = vpop.f32.mrb[0].mxu0
    %v3031 = vadd.f32 0.0, %v3030
    %v3032 = vpop.f32.mrb[0].mxu0
    %3033 = vmatprep.mubr.f32.mxu0 0.0
    %3034 = vmatmul.mubr.f32.gmra.mrb[0].mxu0 %v2910
    %v3035 = vpop.f32.mrb[0].mxu0
    %v3036 = vadd.f32 0.0, %v3035
    %v3037 = vpop.f32.mrb[0].mxu0
    %3038 = vmatprep.mubr.f32.mxu0 0.0
    %3039 = vmatmul.mubr.f32.gmra.mrb[0].mxu0 %v2913
    %v3040 = vpop.f32.mrb[0].mxu0
    %v3041 = vadd.f32 0.0, %v3040
    %v3042 = vpop.f32.mrb[0].mxu0
    %3043 = vmatprep.mubr.f32.mxu0 0.0
    %3044 = vmatmul.mubr.f32.gmra.mrb[0].mxu0 %v2916
    %v3045 = vpop.f32.mrb[0].mxu0
    %v3046 = vadd.f32 0.0, %v3045
    %v3047 = vpop.f32.mrb[0].mxu0
    %3048 = vmatprep.mubr.f32.mxu0 0.0
    %3049 = vmatmul.mubr.f32.gmra.mrb[0].mxu0 %v2919
    %v3050 = vpop.f32.mrb[0].mxu0
    %v3051 = vadd.f32 0.0, %v3050
    %v3052 = vpop.f32.mrb[0].mxu0
    %3053 = vmatprep.mubr.f32.mxu0 0.0
    %3054 = vmatmul.mubr.f32.gmra.mrb[0].mxu0 %v2922
    %v3055 = vpop.f32.mrb[0].mxu0
    %v3056 = vadd.f32 0.0, %v3055
    %v3057 = vpop.f32.mrb[0].mxu0
    %3058 = vmatprep.mubr.f32.mxu0 0.0
    %3059 = vmatmul.mubr.f32.gmra.mrb[0].mxu0 %v2925
    %v3060 = vpop.f32.mrb[0].mxu0
    %v3061 = vadd.f32 0.0, %v3060
    %v3062 = vpop.f32.mrb[0].mxu0
    %3063 = vmatprep.mubr.f32.mxu0 0.0
    %3064 = vmatmul.mubr.f32.gmra.mrb[0].mxu0 %v2928
    %v3065 = vpop.f32.mrb[0].mxu0
    %v3066 = vadd.f32 0.0, %v3065
    %v3067 = vpop.f32.mrb[0].mxu0
    %3068 = vmatprep.mubr.f32.mxu0 0.0
    %3069 = vmatmul.mubr.f32.gmra.mrb[0].mxu0 %v2931
    %v3070 = vpop.f32.mrb[0].mxu0
    %v3071 = vadd.f32 0.0, %v3070
    %v3072 = vpop.f32.mrb[0].mxu0
    %3073 = vmatprep.mubr.f32.mxu0 0.0
    %3074 = vmatmul.mubr.f32.gmra.mrb[0].mxu0 %v2934
    %v3075 = vpop.f32.mrb[0].mxu0
    %v3076 = vadd.f32 0.0, %v3075
    %v3077 = vpop.f32.mrb[0].mxu0
    %3078 = vmatprep.mubr.f32.mxu0 0.0
    %3079 = vmatmul.mubr.f32.gmra.mrb[0].mxu0 %v2937
    %v3080 = vpop.f32.mrb[0].mxu0
    %v3081 = vadd.f32 0.0, %v3080
    %v3082 = vpop.f32.mrb[0].mxu0
    %3083 = vdwg.mxu0
    %v3084 = vadd.f32 %v2856, %v3006
    %v3085 = vadd.f32 %v2857, %v3011
    %v3086 = vadd.f32 %v2858, %v3016
    %v3087 = vadd.f32 %v2859, %v3021
    %v3088 = vadd.f32 %v2860, %v3026
    %v3089 = vadd.f32 %v2861, %v3031
    %v3090 = vadd.f32 %v2862, %v3036
    %v3091 = vadd.f32 %v2863, %v3041
    %v3092 = vadd.f32 %v2864, %v3046
    %v3093 = vadd.f32 %v2865, %v3051
    %v3094 = vadd.f32 %v2866, %v3056
    %v3095 = vadd.f32 %v2867, %v3061
    %v3096 = vadd.f32 %v2868, %v3066
    %v3097 = vadd.f32 %v2869, %v3071
    %v3098 = vadd.f32 %v2870, %v3076
    %v3099 = vadd.f32 %v2871, %v3081
    %v3100 = vld [vmem:[#allocation9 + $0x1] ss:$0 sm:$0xff]
    %v3101 = vadd.f32 %v3084, %v3100
    %v3102 = vadd.f32 %v3085, %v3100
    %v3103 = vadd.f32 %v3086, %v3100
    %v3104 = vadd.f32 %v3087, %v3100
    %v3105 = vadd.f32 %v3088, %v3100
    %v3106 = vadd.f32 %v3089, %v3100
    %v3107 = vadd.f32 %v3090, %v3100
    %v3108 = vadd.f32 %v3091, %v3100
    %v3109 = vadd.f32 %v3092, %v3100
    %v3110 = vadd.f32 %v3093, %v3100
    %v3111 = vadd.f32 %v3094, %v3100
    %v3112 = vadd.f32 %v3095, %v3100
    %v3113 = vadd.f32 %v3096, %v3100
    %v3114 = vadd.f32 %v3097, %v3100
    %v3115 = vadd.f32 %v3098, %v3100
    %v3116 = vadd.f32 %v3099, %v3100
    %v3117 = vmax.f32 %v3101, 0.0
    %v3118 = vmax.f32 %v3102, 0.0
    %v3119 = vmax.f32 %v3103, 0.0
    %v3120 = vmax.f32 %v3104, 0.0
    %v3121 = vmax.f32 %v3105, 0.0
    %v3122 = vmax.f32 %v3106, 0.0
    %v3123 = vmax.f32 %v3107, 0.0
    %v3124 = vmax.f32 %v3108, 0.0
    %v3125 = vmax.f32 %v3109, 0.0
    %v3126 = vmax.f32 %v3110, 0.0
    %v3127 = vmax.f32 %v3111, 0.0
    %v3128 = vmax.f32 %v3112, 0.0
    %v3129 = vmax.f32 %v3113, 0.0
    %v3130 = vmax.f32 %v3114, 0.0
    %v3131 = vmax.f32 %v3115, 0.0
    %v3132 = vmax.f32 %v3116, 0.0
    %vm3133 = vcmask 261120
    %3134 = vst.msk [vmem:[#allocation3] sm:$0xff] %vm3133, %v3117
    %3135 = vst.msk [vmem:[#allocation3 + $0x8] sm:$0xff] %vm3133, %v3118
    %3136 = vst.msk [vmem:[#allocation3 + $0x10] sm:$0xff] %vm3133, %v3119
    %3137 = vst.msk [vmem:[#allocation3 + $0x18] sm:$0xff] %vm3133, %v3120
    %3138 = vst.msk [vmem:[#allocation3 + $0x20] sm:$0xff] %vm3133, %v3121
    %3139 = vst.msk [vmem:[#allocation3 + $0x28] sm:$0xff] %vm3133, %v3122
    %3140 = vst.msk [vmem:[#allocation3 + $0x30] sm:$0xff] %vm3133, %v3123
    %3141 = vst.msk [vmem:[#allocation3 + $0x38] sm:$0xff] %vm3133, %v3124
    %3142 = vst.msk [vmem:[#allocation3 + $0x40] sm:$0xff] %vm3133, %v3125
    %3143 = vst.msk [vmem:[#allocation3 + $0x48] sm:$0xff] %vm3133, %v3126
    %3144 = vst.msk [vmem:[#allocation3 + $0x50] sm:$0xff] %vm3133, %v3127
    %3145 = vst.msk [vmem:[#allocation3 + $0x58] sm:$0xff] %vm3133, %v3128
    %3146 = vst.msk [vmem:[#allocation3 + $0x60] sm:$0xff] %vm3133, %v3129
    %3147 = vst.msk [vmem:[#allocation3 + $0x68] sm:$0xff] %vm3133, %v3130
    %3148 = vst.msk [vmem:[#allocation3 + $0x70] sm:$0xff] %vm3133, %v3131
    %vm3149 = vcmask 254976
    %3150 = vst.msk [vmem:[#allocation3 + $0x78] sm:$0x3] %vm3149, %v3132
    %v3151 = vld [vmem:[#allocation3] sm:$0xff]
    %v3152 = vld [vmem:[#allocation3 + $0x8] sm:$0xff]
    %v3153 = vld [vmem:[#allocation3 + $0x10] sm:$0xff]
    %v3154 = vld [vmem:[#allocation3 + $0x18] sm:$0xff]
    %v3155 = vld [vmem:[#allocation3 + $0x20] sm:$0xff]
    %v3156 = vld [vmem:[#allocation3 + $0x28] sm:$0xff]
    %v3157 = vld [vmem:[#allocation3 + $0x30] sm:$0xff]
    %v3158 = vld [vmem:[#allocation3 + $0x38] sm:$0xff]
    %v3159 = vld [vmem:[#allocation3 + $0x40] sm:$0xff]
    %v3160 = vld [vmem:[#allocation3 + $0x48] sm:$0xff]
    %v3161 = vld [vmem:[#allocation3 + $0x50] sm:$0xff]
    %v3162 = vld [vmem:[#allocation3 + $0x58] sm:$0xff]
    %v3163 = vld [vmem:[#allocation3 + $0x60] sm:$0xff]
    %v3164 = vld [vmem:[#allocation3 + $0x68] sm:$0xff]
    %v3165 = vld [vmem:[#allocation3 + $0x70] sm:$0x3]
    %v3166 = vld [vmem:[%s3] sm:$0xff]
    %v3167 = vld [vmem:[%s3 + $0x8] sm:$0xff]
    %v3168 = vld [vmem:[%s3 + $0x10] sm:$0xff]
    %v3169 = vld [vmem:[%s3 + $0x18] sm:$0xff]
    %v3170 = vld [vmem:[#allocation3 + $0x1] sm:$0xff]
    %v3171 = vld [vmem:[#allocation3 + $0x9] sm:$0xff]
    %v3172 = vld [vmem:[#allocation3 + $0x11] sm:$0xff]
    %v3173 = vld [vmem:[#allocation3 + $0x19] sm:$0xff]
    %v3174 = vld [vmem:[#allocation3 + $0x21] sm:$0xff]
    %v3175 = vld [vmem:[#allocation3 + $0x29] sm:$0xff]
    %v3176 = vld [vmem:[#allocation3 + $0x31] sm:$0xff]
    %v3177 = vld [vmem:[#allocation3 + $0x39] sm:$0xff]
    %v3178 = vld [vmem:[#allocation3 + $0x41] sm:$0xff]
    %v3179 = vld [vmem:[#allocation3 + $0x49] sm:$0xff]
    %v3180 = vld [vmem:[#allocation3 + $0x51] sm:$0xff]
    %v3181 = vld [vmem:[#allocation3 + $0x59] sm:$0xff]
    %v3182 = vld [vmem:[#allocation3 + $0x61] sm:$0xff]
    %v3183 = vld [vmem:[#allocation3 + $0x69] sm:$0xff]
    %v3184 = vld [vmem:[#allocation3 + $0x71] sm:$0x3]
    %s3185 = scalar_lea.vmem %s3, 32
    %v3186 = vld [vmem:[%s3185] sm:$0xff]
    %v3187 = vld [vmem:[%s3185 + $0x8] sm:$0xff]
    %v3188 = vld [vmem:[%s3185 + $0x10] sm:$0xff]
    %v3189 = vld [vmem:[%s3185 + $0x18] sm:$0xff]
    %v3191 = vsel %vm3133, %v3170, 0
    %v3194 = vsel %vm3133, %v3171, 0
    %v3197 = vsel %vm3133, %v3172, 0
    %v3200 = vsel %vm3133, %v3173, 0
    %v3203 = vsel %vm3133, %v3174, 0
    %v3206 = vsel %vm3133, %v3175, 0
    %v3209 = vsel %vm3133, %v3176, 0
    %v3212 = vsel %vm3133, %v3177, 0
    %v3215 = vsel %vm3133, %v3178, 0
    %v3218 = vsel %vm3133, %v3179, 0
    %v3221 = vsel %vm3133, %v3180, 0
    %v3224 = vsel %vm3133, %v3181, 0
    %v3227 = vsel %vm3133, %v3182, 0
    %v3230 = vsel %vm3133, %v3183, 0
    %v3233 = vsel %vm3133, %v3184, 0
    %3235 = vmatprep.subr.mxu0 0.0
    %3236 = vmatpush1.msra.mxu0 %v3186
    %3237 = vmatprep.subr.mxu0 0.0
    %3238 = vmatpush1.msra.mxu0 %v3187
    %3239 = vmatprep.subr.mxu0 0.0
    %3240 = vmatpush1.msra.mxu0 %v3188
    %3241 = vmatprep.subr.mxu0 0.0
    %3242 = vmatpush1.msra.mxu0 %v3189
    %3243 = vmatprep.subr.mxu0 0.0
    %3244 = vmatpush1.msra.mxu0 0.0
    %3245 = vmatprep.subr.mxu0 0.0
    %3246 = vmatpush1.msra.mxu0 0.0
    %3247 = vmatprep.subr.mxu0 0.0
    %3248 = vmatpush1.msra.mxu0 0.0
    %3249 = vmatprep.subr.mxu0 0.0
    %3250 = vmatpush1.msra.mxu0 0.0
    %3251 = vmatprep.subr.mxu0 0.0
    %3252 = vmatpush1.msra.mxu0 0.0
    %3253 = vmatprep.subr.mxu0 0.0
    %3254 = vmatpush1.msra.mxu0 0.0
    %3255 = vmatprep.subr.mxu0 0.0
    %3256 = vmatpush1.msra.mxu0 0.0
    %3257 = vmatprep.subr.mxu0 0.0
    %3258 = vmatpush1.msra.mxu0 0.0
    %3259 = vmatprep.subr.mxu0 0.0
    %3260 = vmatpush1.msra.mxu0 0.0
    %3261 = vmatprep.subr.mxu0 0.0
    %3262 = vmatpush1.msra.mxu0 0.0
    %3263 = vmatprep.subr.mxu0 0.0
    %3264 = vmatpush1.msra.mxu0 0.0
    %3265 = vmatprep.subr.mxu0 0.0
    %3266 = vmatpush1.msra.mxu0 0.0
    %3267 = vmatprep.subr.mxu0 0.0
    %3268 = vmatpush1.msra.mxu0 0.0
    %3269 = vmatprep.subr.mxu0 0.0
    %3270 = vmatpush1.msra.mxu0 0.0
    %3271 = vmatprep.subr.mxu0 0.0
    %3272 = vmatpush1.msra.mxu0 0.0
    %3273 = vmatprep.subr.mxu0 0.0
    %3274 = vmatpush1.msra.mxu0 0.0
    %3275 = vmatprep.subr.mxu0 0.0
    %3276 = vmatpush1.msra.mxu0 0.0
    %3277 = vmatprep.subr.mxu0 0.0
    %3278 = vmatpush1.msra.mxu0 0.0
    %3279 = vmatprep.subr.mxu0 0.0
    %3280 = vmatpush1.msra.mxu0 0.0
    %3281 = vmatprep.subr.mxu0 0.0
    %3282 = vmatpush1.msra.mxu0 0.0
    %3283 = vmatprep.subr.mxu0 0.0
    %3284 = vmatpush1.msra.mxu0 0.0
    %3285 = vmatprep.subr.mxu0 0.0
    %3286 = vmatpush1.msra.mxu0 0.0
    %3287 = vmatprep.subr.mxu0 0.0
    %3288 = vmatpush1.msra.mxu0 0.0
    %3289 = vmatprep.subr.mxu0 0.0
    %3290 = vmatpush1.msra.mxu0 0.0
    %3291 = vmatprep.subr.mxu0 0.0
    %3292 = vmatpush1.msra.mxu0 0.0
    %3293 = vmatprep.subr.mxu0 0.0
    %3294 = vmatpush1.msra.mxu0 0.0
    %3295 = vmatprep.subr.mxu0 0.0
    %3296 = vmatpush1.msra.mxu0 0.0
    %3297 = vmatprep.subr.mxu0 0.0
    %3298 = vmatpush1.msra.mxu0 0.0
    %3299 = vmatprep.mubr.f32.mxu0 0.0
    %3300 = vmatmul.mubr.f32.gmra.mrb[0].mxu0 %v3191
    %v3301 = vpop.f32.mrb[0].mxu0
    %v3302 = vadd.f32 0.0, %v3301
    %v3303 = vpop.f32.mrb[0].mxu0
    %3304 = vmatprep.mubr.f32.mxu0 0.0
    %3305 = vmatmul.mubr.f32.gmra.mrb[0].mxu0 %v3194
    %v3306 = vpop.f32.mrb[0].mxu0
    %v3307 = vadd.f32 0.0, %v3306
    %v3308 = vpop.f32.mrb[0].mxu0
    %3309 = vmatprep.mubr.f32.mxu0 0.0
    %3310 = vmatmul.mubr.f32.gmra.mrb[0].mxu0 %v3197
    %v3311 = vpop.f32.mrb[0].mxu0
    %v3312 = vadd.f32 0.0, %v3311
    %v3313 = vpop.f32.mrb[0].mxu0
    %3314 = vmatprep.mubr.f32.mxu0 0.0
    %3315 = vmatmul.mubr.f32.gmra.mrb[0].mxu0 %v3200
    %v3316 = vpop.f32.mrb[0].mxu0
    %v3317 = vadd.f32 0.0, %v3316
    %v3318 = vpop.f32.mrb[0].mxu0
    %3319 = vmatprep.mubr.f32.mxu0 0.0
    %3320 = vmatmul.mubr.f32.gmra.mrb[0].mxu0 %v3203
    %v3321 = vpop.f32.mrb[0].mxu0
    %v3322 = vadd.f32 0.0, %v3321
    %v3323 = vpop.f32.mrb[0].mxu0
    %3324 = vmatprep.mubr.f32.mxu0 0.0
    %3325 = vmatmul.mubr.f32.gmra.mrb[0].mxu0 %v3206
    %v3326 = vpop.f32.mrb[0].mxu0
    %v3327 = vadd.f32 0.0, %v3326
    %v3328 = vpop.f32.mrb[0].mxu0
    %3329 = vmatprep.mubr.f32.mxu0 0.0
    %3330 = vmatmul.mubr.f32.gmra.mrb[0].mxu0 %v3209
    %v3331 = vpop.f32.mrb[0].mxu0
    %v3332 = vadd.f32 0.0, %v3331
    %v3333 = vpop.f32.mrb[0].mxu0
    %3334 = vmatprep.mubr.f32.mxu0 0.0
    %3335 = vmatmul.mubr.f32.gmra.mrb[0].mxu0 %v3212
    %v3336 = vpop.f32.mrb[0].mxu0
    %v3337 = vadd.f32 0.0, %v3336
    %v3338 = vpop.f32.mrb[0].mxu0
    %3339 = vmatprep.mubr.f32.mxu0 0.0
    %3340 = vmatmul.mubr.f32.gmra.mrb[0].mxu0 %v3215
    %v3341 = vpop.f32.mrb[0].mxu0
    %v3342 = vadd.f32 0.0, %v3341
    %v3343 = vpop.f32.mrb[0].mxu0
    %3344 = vmatprep.mubr.f32.mxu0 0.0
    %3345 = vmatmul.mubr.f32.gmra.mrb[0].mxu0 %v3218
    %v3346 = vpop.f32.mrb[0].mxu0
    %v3347 = vadd.f32 0.0, %v3346
    %v3348 = vpop.f32.mrb[0].mxu0
    %3349 = vmatprep.mubr.f32.mxu0 0.0
    %3350 = vmatmul.mubr.f32.gmra.mrb[0].mxu0 %v3221
    %v3351 = vpop.f32.mrb[0].mxu0
    %v3352 = vadd.f32 0.0, %v3351
    %v3353 = vpop.f32.mrb[0].mxu0
    %3354 = vmatprep.mubr.f32.mxu0 0.0
    %3355 = vmatmul.mubr.f32.gmra.mrb[0].mxu0 %v3224
    %v3356 = vpop.f32.mrb[0].mxu0
    %v3357 = vadd.f32 0.0, %v3356
    %v3358 = vpop.f32.mrb[0].mxu0
    %3359 = vmatprep.mubr.f32.mxu0 0.0
    %3360 = vmatmul.mubr.f32.gmra.mrb[0].mxu0 %v3227
    %v3361 = vpop.f32.mrb[0].mxu0
    %v3362 = vadd.f32 0.0, %v3361
    %v3363 = vpop.f32.mrb[0].mxu0
    %3364 = vmatprep.mubr.f32.mxu0 0.0
    %3365 = vmatmul.mubr.f32.gmra.mrb[0].mxu0 %v3230
    %v3366 = vpop.f32.mrb[0].mxu0
    %v3367 = vadd.f32 0.0, %v3366
    %v3368 = vpop.f32.mrb[0].mxu0
    %3369 = vmatprep.mubr.f32.mxu0 0.0
    %3370 = vmatmul.mubr.f32.gmra.mrb[0].mxu0 %v3233
    %v3371 = vpop.f32.mrb[0].mxu0
    %v3372 = vadd.f32 0.0, %v3371
    %v3373 = vpop.f32.mrb[0].mxu0
    %3374 = vdwg.mxu0
    %v3376 = vsel %vm3133, %v3151, 0
    %v3379 = vsel %vm3133, %v3152, 0
    %v3382 = vsel %vm3133, %v3153, 0
    %v3385 = vsel %vm3133, %v3154, 0
    %v3388 = vsel %vm3133, %v3155, 0
    %v3391 = vsel %vm3133, %v3156, 0
    %v3394 = vsel %vm3133, %v3157, 0
    %v3397 = vsel %vm3133, %v3158, 0
    %v3400 = vsel %vm3133, %v3159, 0
    %v3403 = vsel %vm3133, %v3160, 0
    %v3406 = vsel %vm3133, %v3161, 0
    %v3409 = vsel %vm3133, %v3162, 0
    %v3412 = vsel %vm3133, %v3163, 0
    %v3415 = vsel %vm3133, %v3164, 0
    %v3418 = vsel %vm3133, %v3165, 0
    %3420 = vmatprep.subr.mxu0 0.0
    %3421 = vmatpush1.msra.mxu0 %v3166
    %3422 = vmatprep.subr.mxu0 0.0
    %3423 = vmatpush1.msra.mxu0 %v3167
    %3424 = vmatprep.subr.mxu0 0.0
    %3425 = vmatpush1.msra.mxu0 %v3168
    %3426 = vmatprep.subr.mxu0 0.0
    %3427 = vmatpush1.msra.mxu0 %v3169
    %3428 = vmatprep.subr.mxu0 0.0
    %3429 = vmatpush1.msra.mxu0 0.0
    %3430 = vmatprep.subr.mxu0 0.0
    %3431 = vmatpush1.msra.mxu0 0.0
    %3432 = vmatprep.subr.mxu0 0.0
    %3433 = vmatpush1.msra.mxu0 0.0
    %3434 = vmatprep.subr.mxu0 0.0
    %3435 = vmatpush1.msra.mxu0 0.0
    %3436 = vmatprep.subr.mxu0 0.0
    %3437 = vmatpush1.msra.mxu0 0.0
    %3438 = vmatprep.subr.mxu0 0.0
    %3439 = vmatpush1.msra.mxu0 0.0
    %3440 = vmatprep.subr.mxu0 0.0
    %3441 = vmatpush1.msra.mxu0 0.0
    %3442 = vmatprep.subr.mxu0 0.0
    %3443 = vmatpush1.msra.mxu0 0.0
    %3444 = vmatprep.subr.mxu0 0.0
    %3445 = vmatpush1.msra.mxu0 0.0
    %3446 = vmatprep.subr.mxu0 0.0
    %3447 = vmatpush1.msra.mxu0 0.0
    %3448 = vmatprep.subr.mxu0 0.0
    %3449 = vmatpush1.msra.mxu0 0.0
    %3450 = vmatprep.subr.mxu0 0.0
    %3451 = vmatpush1.msra.mxu0 0.0
    %3452 = vmatprep.subr.mxu0 0.0
    %3453 = vmatpush1.msra.mxu0 0.0
    %3454 = vmatprep.subr.mxu0 0.0
    %3455 = vmatpush1.msra.mxu0 0.0
    %3456 = vmatprep.subr.mxu0 0.0
    %3457 = vmatpush1.msra.mxu0 0.0
    %3458 = vmatprep.subr.mxu0 0.0
    %3459 = vmatpush1.msra.mxu0 0.0
    %3460 = vmatprep.subr.mxu0 0.0
    %3461 = vmatpush1.msra.mxu0 0.0
    %3462 = vmatprep.subr.mxu0 0.0
    %3463 = vmatpush1.msra.mxu0 0.0
    %3464 = vmatprep.subr.mxu0 0.0
    %3465 = vmatpush1.msra.mxu0 0.0
    %3466 = vmatprep.subr.mxu0 0.0
    %3467 = vmatpush1.msra.mxu0 0.0
    %3468 = vmatprep.subr.mxu0 0.0
    %3469 = vmatpush1.msra.mxu0 0.0
    %3470 = vmatprep.subr.mxu0 0.0
    %3471 = vmatpush1.msra.mxu0 0.0
    %3472 = vmatprep.subr.mxu0 0.0
    %3473 = vmatpush1.msra.mxu0 0.0
    %3474 = vmatprep.subr.mxu0 0.0
    %3475 = vmatpush1.msra.mxu0 0.0
    %3476 = vmatprep.subr.mxu0 0.0
    %3477 = vmatpush1.msra.mxu0 0.0
    %3478 = vmatprep.subr.mxu0 0.0
    %3479 = vmatpush1.msra.mxu0 0.0
    %3480 = vmatprep.subr.mxu0 0.0
    %3481 = vmatpush1.msra.mxu0 0.0
    %3482 = vmatprep.subr.mxu0 0.0
    %3483 = vmatpush1.msra.mxu0 0.0
    %3484 = vmatprep.mubr.f32.mxu0 0.0
    %3485 = vmatmul.mubr.f32.gmra.mrb[0].mxu0 %v3376
    %v3486 = vpop.f32.mrb[0].mxu0
    %v3487 = vadd.f32 %v3302, %v3486
    %v3488 = vpop.f32.mrb[0].mxu0
    %3489 = vmatprep.mubr.f32.mxu0 0.0
    %3490 = vmatmul.mubr.f32.gmra.mrb[0].mxu0 %v3379
    %v3491 = vpop.f32.mrb[0].mxu0
    %v3492 = vadd.f32 %v3307, %v3491
    %v3493 = vpop.f32.mrb[0].mxu0
    %3494 = vmatprep.mubr.f32.mxu0 0.0
    %3495 = vmatmul.mubr.f32.gmra.mrb[0].mxu0 %v3382
    %v3496 = vpop.f32.mrb[0].mxu0
    %v3497 = vadd.f32 %v3312, %v3496
    %v3498 = vpop.f32.mrb[0].mxu0
    %3499 = vmatprep.mubr.f32.mxu0 0.0
    %3500 = vmatmul.mubr.f32.gmra.mrb[0].mxu0 %v3385
    %v3501 = vpop.f32.mrb[0].mxu0
    %v3502 = vadd.f32 %v3317, %v3501
    %v3503 = vpop.f32.mrb[0].mxu0
    %3504 = vmatprep.mubr.f32.mxu0 0.0
    %3505 = vmatmul.mubr.f32.gmra.mrb[0].mxu0 %v3388
    %v3506 = vpop.f32.mrb[0].mxu0
    %v3507 = vadd.f32 %v3322, %v3506
    %v3508 = vpop.f32.mrb[0].mxu0
    %3509 = vmatprep.mubr.f32.mxu0 0.0
    %3510 = vmatmul.mubr.f32.gmra.mrb[0].mxu0 %v3391
    %v3511 = vpop.f32.mrb[0].mxu0
    %v3512 = vadd.f32 %v3327, %v3511
    %v3513 = vpop.f32.mrb[0].mxu0
    %3514 = vmatprep.mubr.f32.mxu0 0.0
    %3515 = vmatmul.mubr.f32.gmra.mrb[0].mxu0 %v3394
    %v3516 = vpop.f32.mrb[0].mxu0
    %v3517 = vadd.f32 %v3332, %v3516
    %v3518 = vpop.f32.mrb[0].mxu0
    %3519 = vmatprep.mubr.f32.mxu0 0.0
    %3520 = vmatmul.mubr.f32.gmra.mrb[0].mxu0 %v3397
    %v3521 = vpop.f32.mrb[0].mxu0
    %v3522 = vadd.f32 %v3337, %v3521
    %v3523 = vpop.f32.mrb[0].mxu0
    %3524 = vmatprep.mubr.f32.mxu0 0.0
    %3525 = vmatmul.mubr.f32.gmra.mrb[0].mxu0 %v3400
    %v3526 = vpop.f32.mrb[0].mxu0
    %v3527 = vadd.f32 %v3342, %v3526
    %v3528 = vpop.f32.mrb[0].mxu0
    %3529 = vmatprep.mubr.f32.mxu0 0.0
    %3530 = vmatmul.mubr.f32.gmra.mrb[0].mxu0 %v3403
    %v3531 = vpop.f32.mrb[0].mxu0
    %v3532 = vadd.f32 %v3347, %v3531
    %v3533 = vpop.f32.mrb[0].mxu0
    %3534 = vmatprep.mubr.f32.mxu0 0.0
    %3535 = vmatmul.mubr.f32.gmra.mrb[0].mxu0 %v3406
    %v3536 = vpop.f32.mrb[0].mxu0
    %v3537 = vadd.f32 %v3352, %v3536
    %v3538 = vpop.f32.mrb[0].mxu0
    %3539 = vmatprep.mubr.f32.mxu0 0.0
    %3540 = vmatmul.mubr.f32.gmra.mrb[0].mxu0 %v3409
    %v3541 = vpop.f32.mrb[0].mxu0
    %v3542 = vadd.f32 %v3357, %v3541
    %v3543 = vpop.f32.mrb[0].mxu0
    %3544 = vmatprep.mubr.f32.mxu0 0.0
    %3545 = vmatmul.mubr.f32.gmra.mrb[0].mxu0 %v3412
    %v3546 = vpop.f32.mrb[0].mxu0
    %v3547 = vadd.f32 %v3362, %v3546
    %v3548 = vpop.f32.mrb[0].mxu0
    %3549 = vmatprep.mubr.f32.mxu0 0.0
    %3550 = vmatmul.mubr.f32.gmra.mrb[0].mxu0 %v3415
    %v3551 = vpop.f32.mrb[0].mxu0
    %v3552 = vadd.f32 %v3367, %v3551
    %v3553 = vpop.f32.mrb[0].mxu0
    %3554 = vmatprep.mubr.f32.mxu0 0.0
    %3555 = vmatmul.mubr.f32.gmra.mrb[0].mxu0 %v3418
    %v3556 = vpop.f32.mrb[0].mxu0
    %v3557 = vadd.f32 %v3372, %v3556
    %v3558 = vpop.f32.mrb[0].mxu0
    %3559 = vdwg.mxu0
    %v3560 = vld [vmem:[#allocation3 + $0x7] sm:$0xff]
    %v3561 = vld [vmem:[#allocation3 + $0xf] sm:$0xff]
    %v3562 = vld [vmem:[#allocation3 + $0x17] sm:$0xff]
    %v3563 = vld [vmem:[#allocation3 + $0x1f] sm:$0xff]
    %v3564 = vld [vmem:[#allocation3 + $0x27] sm:$0xff]
    %v3565 = vld [vmem:[#allocation3 + $0x2f] sm:$0xff]
    %v3566 = vld [vmem:[#allocation3 + $0x37] sm:$0xff]
    %v3567 = vld [vmem:[#allocation3 + $0x3f] sm:$0xff]
    %v3568 = vld [vmem:[#allocation3 + $0x47] sm:$0xff]
    %v3569 = vld [vmem:[#allocation3 + $0x4f] sm:$0xff]
    %v3570 = vld [vmem:[#allocation3 + $0x57] sm:$0xff]
    %v3571 = vld [vmem:[#allocation3 + $0x5f] sm:$0xff]
    %v3572 = vld [vmem:[#allocation3 + $0x67] sm:$0xff]
    %v3573 = vld [vmem:[#allocation3 + $0x6f] sm:$0xff]
    %v3574 = vld [vmem:[#allocation3 + $0x77] sm:$0x3]
    %s3575 = scalar_lea.vmem %s3, 64
    %v3576 = vld [vmem:[%s3575] sm:$0xff]
    %v3577 = vld [vmem:[%s3575 + $0x8] sm:$0xff]
    %v3578 = vld [vmem:[%s3575 + $0x10] sm:$0xff]
    %v3579 = vld [vmem:[%s3575 + $0x18] sm:$0xff]
    %v3581 = vsel %vm3133, %v3560, 0
    %v3584 = vsel %vm3133, %v3561, 0
    %v3587 = vsel %vm3133, %v3562, 0
    %v3590 = vsel %vm3133, %v3563, 0
    %v3593 = vsel %vm3133, %v3564, 0
    %v3596 = vsel %vm3133, %v3565, 0
    %v3599 = vsel %vm3133, %v3566, 0
    %v3602 = vsel %vm3133, %v3567, 0
    %v3605 = vsel %vm3133, %v3568, 0
    %v3608 = vsel %vm3133, %v3569, 0
    %v3611 = vsel %vm3133, %v3570, 0
    %v3614 = vsel %vm3133, %v3571, 0
    %v3617 = vsel %vm3133, %v3572, 0
    %v3620 = vsel %vm3133, %v3573, 0
    %v3623 = vsel %vm3133, %v3574, 0
    %3625 = vmatprep.subr.mxu0 0.0
    %3626 = vmatpush1.msra.mxu0 %v3576
    %3627 = vmatprep.subr.mxu0 0.0
    %3628 = vmatpush1.msra.mxu0 %v3577
    %3629 = vmatprep.subr.mxu0 0.0
    %3630 = vmatpush1.msra.mxu0 %v3578
    %3631 = vmatprep.subr.mxu0 0.0
    %3632 = vmatpush1.msra.mxu0 %v3579
    %3633 = vmatprep.subr.mxu0 0.0
    %3634 = vmatpush1.msra.mxu0 0.0
    %3635 = vmatprep.subr.mxu0 0.0
    %3636 = vmatpush1.msra.mxu0 0.0
    %3637 = vmatprep.subr.mxu0 0.0
    %3638 = vmatpush1.msra.mxu0 0.0
    %3639 = vmatprep.subr.mxu0 0.0
    %3640 = vmatpush1.msra.mxu0 0.0
    %3641 = vmatprep.subr.mxu0 0.0
    %3642 = vmatpush1.msra.mxu0 0.0
    %3643 = vmatprep.subr.mxu0 0.0
    %3644 = vmatpush1.msra.mxu0 0.0
    %3645 = vmatprep.subr.mxu0 0.0
    %3646 = vmatpush1.msra.mxu0 0.0
    %3647 = vmatprep.subr.mxu0 0.0
    %3648 = vmatpush1.msra.mxu0 0.0
    %3649 = vmatprep.subr.mxu0 0.0
    %3650 = vmatpush1.msra.mxu0 0.0
    %3651 = vmatprep.subr.mxu0 0.0
    %3652 = vmatpush1.msra.mxu0 0.0
    %3653 = vmatprep.subr.mxu0 0.0
    %3654 = vmatpush1.msra.mxu0 0.0
    %3655 = vmatprep.subr.mxu0 0.0
    %3656 = vmatpush1.msra.mxu0 0.0
    %3657 = vmatprep.subr.mxu0 0.0
    %3658 = vmatpush1.msra.mxu0 0.0
    %3659 = vmatprep.subr.mxu0 0.0
    %3660 = vmatpush1.msra.mxu0 0.0
    %3661 = vmatprep.subr.mxu0 0.0
    %3662 = vmatpush1.msra.mxu0 0.0
    %3663 = vmatprep.subr.mxu0 0.0
    %3664 = vmatpush1.msra.mxu0 0.0
    %3665 = vmatprep.subr.mxu0 0.0
    %3666 = vmatpush1.msra.mxu0 0.0
    %3667 = vmatprep.subr.mxu0 0.0
    %3668 = vmatpush1.msra.mxu0 0.0
    %3669 = vmatprep.subr.mxu0 0.0
    %3670 = vmatpush1.msra.mxu0 0.0
    %3671 = vmatprep.subr.mxu0 0.0
    %3672 = vmatpush1.msra.mxu0 0.0
    %3673 = vmatprep.subr.mxu0 0.0
    %3674 = vmatpush1.msra.mxu0 0.0
    %3675 = vmatprep.subr.mxu0 0.0
    %3676 = vmatpush1.msra.mxu0 0.0
    %3677 = vmatprep.subr.mxu0 0.0
    %3678 = vmatpush1.msra.mxu0 0.0
    %3679 = vmatprep.subr.mxu0 0.0
    %3680 = vmatpush1.msra.mxu0 0.0
    %3681 = vmatprep.subr.mxu0 0.0
    %3682 = vmatpush1.msra.mxu0 0.0
    %3683 = vmatprep.subr.mxu0 0.0
    %3684 = vmatpush1.msra.mxu0 0.0
    %3685 = vmatprep.subr.mxu0 0.0
    %3686 = vmatpush1.msra.mxu0 0.0
    %3687 = vmatprep.subr.mxu0 0.0
    %3688 = vmatpush1.msra.mxu0 0.0
    %3689 = vmatprep.mubr.f32.mxu0 0.0
    %3690 = vmatmul.mubr.f32.gmra.mrb[0].mxu0 %v3581
    %v3691 = vpop.f32.mrb[0].mxu0
    %v3692 = vadd.f32 0.0, %v3691
    %v3693 = vpop.f32.mrb[0].mxu0
    %3694 = vmatprep.mubr.f32.mxu0 0.0
    %3695 = vmatmul.mubr.f32.gmra.mrb[0].mxu0 %v3584
    %v3696 = vpop.f32.mrb[0].mxu0
    %v3697 = vadd.f32 0.0, %v3696
    %v3698 = vpop.f32.mrb[0].mxu0
    %3699 = vmatprep.mubr.f32.mxu0 0.0
    %3700 = vmatmul.mubr.f32.gmra.mrb[0].mxu0 %v3587
    %v3701 = vpop.f32.mrb[0].mxu0
    %v3702 = vadd.f32 0.0, %v3701
    %v3703 = vpop.f32.mrb[0].mxu0
    %3704 = vmatprep.mubr.f32.mxu0 0.0
    %3705 = vmatmul.mubr.f32.gmra.mrb[0].mxu0 %v3590
    %v3706 = vpop.f32.mrb[0].mxu0
    %v3707 = vadd.f32 0.0, %v3706
    %v3708 = vpop.f32.mrb[0].mxu0
    %3709 = vmatprep.mubr.f32.mxu0 0.0
    %3710 = vmatmul.mubr.f32.gmra.mrb[0].mxu0 %v3593
    %v3711 = vpop.f32.mrb[0].mxu0
    %v3712 = vadd.f32 0.0, %v3711
    %v3713 = vpop.f32.mrb[0].mxu0
    %3714 = vmatprep.mubr.f32.mxu0 0.0
    %3715 = vmatmul.mubr.f32.gmra.mrb[0].mxu0 %v3596
    %v3716 = vpop.f32.mrb[0].mxu0
    %v3717 = vadd.f32 0.0, %v3716
    %v3718 = vpop.f32.mrb[0].mxu0
    %3719 = vmatprep.mubr.f32.mxu0 0.0
    %3720 = vmatmul.mubr.f32.gmra.mrb[0].mxu0 %v3599
    %v3721 = vpop.f32.mrb[0].mxu0
    %v3722 = vadd.f32 0.0, %v3721
    %v3723 = vpop.f32.mrb[0].mxu0
    %3724 = vmatprep.mubr.f32.mxu0 0.0
    %3725 = vmatmul.mubr.f32.gmra.mrb[0].mxu0 %v3602
    %v3726 = vpop.f32.mrb[0].mxu0
    %v3727 = vadd.f32 0.0, %v3726
    %v3728 = vpop.f32.mrb[0].mxu0
    %3729 = vmatprep.mubr.f32.mxu0 0.0
    %3730 = vmatmul.mubr.f32.gmra.mrb[0].mxu0 %v3605
    %v3731 = vpop.f32.mrb[0].mxu0
    %v3732 = vadd.f32 0.0, %v3731
    %v3733 = vpop.f32.mrb[0].mxu0
    %3734 = vmatprep.mubr.f32.mxu0 0.0
    %3735 = vmatmul.mubr.f32.gmra.mrb[0].mxu0 %v3608
    %v3736 = vpop.f32.mrb[0].mxu0
    %v3737 = vadd.f32 0.0, %v3736
    %v3738 = vpop.f32.mrb[0].mxu0
    %3739 = vmatprep.mubr.f32.mxu0 0.0
    %3740 = vmatmul.mubr.f32.gmra.mrb[0].mxu0 %v3611
    %v3741 = vpop.f32.mrb[0].mxu0
    %v3742 = vadd.f32 0.0, %v3741
    %v3743 = vpop.f32.mrb[0].mxu0
    %3744 = vmatprep.mubr.f32.mxu0 0.0
    %3745 = vmatmul.mubr.f32.gmra.mrb[0].mxu0 %v3614
    %v3746 = vpop.f32.mrb[0].mxu0
    %v3747 = vadd.f32 0.0, %v3746
    %v3748 = vpop.f32.mrb[0].mxu0
    %3749 = vmatprep.mubr.f32.mxu0 0.0
    %3750 = vmatmul.mubr.f32.gmra.mrb[0].mxu0 %v3617
    %v3751 = vpop.f32.mrb[0].mxu0
    %v3752 = vadd.f32 0.0, %v3751
    %v3753 = vpop.f32.mrb[0].mxu0
    %3754 = vmatprep.mubr.f32.mxu0 0.0
    %3755 = vmatmul.mubr.f32.gmra.mrb[0].mxu0 %v3620
    %v3756 = vpop.f32.mrb[0].mxu0
    %v3757 = vadd.f32 0.0, %v3756
    %v3758 = vpop.f32.mrb[0].mxu0
    %3759 = vmatprep.mubr.f32.mxu0 0.0
    %3760 = vmatmul.mubr.f32.gmra.mrb[0].mxu0 %v3623
    %v3761 = vpop.f32.mrb[0].mxu0
    %v3762 = vadd.f32 0.0, %v3761
    %v3763 = vpop.f32.mrb[0].mxu0
    %3764 = vdwg.mxu0
    %v3765 = vadd.f32 %v3487, %v3692
    %v3766 = vadd.f32 %v3492, %v3697
    %v3767 = vadd.f32 %v3497, %v3702
    %v3768 = vadd.f32 %v3502, %v3707
    %v3769 = vadd.f32 %v3507, %v3712
    %v3770 = vadd.f32 %v3512, %v3717
    %v3771 = vadd.f32 %v3517, %v3722
    %v3772 = vadd.f32 %v3522, %v3727
    %v3773 = vadd.f32 %v3527, %v3732
    %v3774 = vadd.f32 %v3532, %v3737
    %v3775 = vadd.f32 %v3537, %v3742
    %v3776 = vadd.f32 %v3542, %v3747
    %v3777 = vadd.f32 %v3547, %v3752
    %v3778 = vadd.f32 %v3552, %v3757
    %v3779 = vadd.f32 %v3557, %v3762
    %v3780 = vld [vmem:[#allocation3 + $0x8] sm:$0xff]
    %v3781 = vld [vmem:[#allocation3 + $0x10] sm:$0xff]
    %v3782 = vld [vmem:[#allocation3 + $0x18] sm:$0xff]
    %v3783 = vld [vmem:[#allocation3 + $0x20] sm:$0xff]
    %v3784 = vld [vmem:[#allocation3 + $0x28] sm:$0xff]
    %v3785 = vld [vmem:[#allocation3 + $0x30] sm:$0xff]
    %v3786 = vld [vmem:[#allocation3 + $0x38] sm:$0xff]
    %v3787 = vld [vmem:[#allocation3 + $0x40] sm:$0xff]
    %v3788 = vld [vmem:[#allocation3 + $0x48] sm:$0xff]
    %v3789 = vld [vmem:[#allocation3 + $0x50] sm:$0xff]
    %v3790 = vld [vmem:[#allocation3 + $0x58] sm:$0xff]
    %v3791 = vld [vmem:[#allocation3 + $0x60] sm:$0xff]
    %v3792 = vld [vmem:[#allocation3 + $0x68] sm:$0xff]
    %v3793 = vld [vmem:[#allocation3 + $0x70] sm:$0xff]
    %v3794 = vld [vmem:[#allocation3 + $0x78] sm:$0x3]
    %s3795 = scalar_lea.vmem %s3, 96
    %v3796 = vld [vmem:[%s3795] sm:$0xff]
    %v3797 = vld [vmem:[%s3795 + $0x8] sm:$0xff]
    %v3798 = vld [vmem:[%s3795 + $0x10] sm:$0xff]
    %v3799 = vld [vmem:[%s3795 + $0x18] sm:$0xff]
    %v3801 = vsel %vm3133, %v3780, 0
    %v3804 = vsel %vm3133, %v3781, 0
    %v3807 = vsel %vm3133, %v3782, 0
    %v3810 = vsel %vm3133, %v3783, 0
    %v3813 = vsel %vm3133, %v3784, 0
    %v3816 = vsel %vm3133, %v3785, 0
    %v3819 = vsel %vm3133, %v3786, 0
    %v3822 = vsel %vm3133, %v3787, 0
    %v3825 = vsel %vm3133, %v3788, 0
    %v3828 = vsel %vm3133, %v3789, 0
    %v3831 = vsel %vm3133, %v3790, 0
    %v3834 = vsel %vm3133, %v3791, 0
    %v3837 = vsel %vm3133, %v3792, 0
    %v3840 = vsel %vm3133, %v3793, 0
    %v3843 = vsel %vm3133, %v3794, 0
    %3845 = vmatprep.subr.mxu0 0.0
    %3846 = vmatpush1.msra.mxu0 %v3796
    %3847 = vmatprep.subr.mxu0 0.0
    %3848 = vmatpush1.msra.mxu0 %v3797
    %3849 = vmatprep.subr.mxu0 0.0
    %3850 = vmatpush1.msra.mxu0 %v3798
    %3851 = vmatprep.subr.mxu0 0.0
    %3852 = vmatpush1.msra.mxu0 %v3799
    %3853 = vmatprep.subr.mxu0 0.0
    %3854 = vmatpush1.msra.mxu0 0.0
    %3855 = vmatprep.subr.mxu0 0.0
    %3856 = vmatpush1.msra.mxu0 0.0
    %3857 = vmatprep.subr.mxu0 0.0
    %3858 = vmatpush1.msra.mxu0 0.0
    %3859 = vmatprep.subr.mxu0 0.0
    %3860 = vmatpush1.msra.mxu0 0.0
    %3861 = vmatprep.subr.mxu0 0.0
    %3862 = vmatpush1.msra.mxu0 0.0
    %3863 = vmatprep.subr.mxu0 0.0
    %3864 = vmatpush1.msra.mxu0 0.0
    %3865 = vmatprep.subr.mxu0 0.0
    %3866 = vmatpush1.msra.mxu0 0.0
    %3867 = vmatprep.subr.mxu0 0.0
    %3868 = vmatpush1.msra.mxu0 0.0
    %3869 = vmatprep.subr.mxu0 0.0
    %3870 = vmatpush1.msra.mxu0 0.0
    %3871 = vmatprep.subr.mxu0 0.0
    %3872 = vmatpush1.msra.mxu0 0.0
    %3873 = vmatprep.subr.mxu0 0.0
    %3874 = vmatpush1.msra.mxu0 0.0
    %3875 = vmatprep.subr.mxu0 0.0
    %3876 = vmatpush1.msra.mxu0 0.0
    %3877 = vmatprep.subr.mxu0 0.0
    %3878 = vmatpush1.msra.mxu0 0.0
    %3879 = vmatprep.subr.mxu0 0.0
    %3880 = vmatpush1.msra.mxu0 0.0
    %3881 = vmatprep.subr.mxu0 0.0
    %3882 = vmatpush1.msra.mxu0 0.0
    %3883 = vmatprep.subr.mxu0 0.0
    %3884 = vmatpush1.msra.mxu0 0.0
    %3885 = vmatprep.subr.mxu0 0.0
    %3886 = vmatpush1.msra.mxu0 0.0
    %3887 = vmatprep.subr.mxu0 0.0
    %3888 = vmatpush1.msra.mxu0 0.0
    %3889 = vmatprep.subr.mxu0 0.0
    %3890 = vmatpush1.msra.mxu0 0.0
    %3891 = vmatprep.subr.mxu0 0.0
    %3892 = vmatpush1.msra.mxu0 0.0
    %3893 = vmatprep.subr.mxu0 0.0
    %3894 = vmatpush1.msra.mxu0 0.0
    %3895 = vmatprep.subr.mxu0 0.0
    %3896 = vmatpush1.msra.mxu0 0.0
    %3897 = vmatprep.subr.mxu0 0.0
    %3898 = vmatpush1.msra.mxu0 0.0
    %3899 = vmatprep.subr.mxu0 0.0
    %3900 = vmatpush1.msra.mxu0 0.0
    %3901 = vmatprep.subr.mxu0 0.0
    %3902 = vmatpush1.msra.mxu0 0.0
    %3903 = vmatprep.subr.mxu0 0.0
    %3904 = vmatpush1.msra.mxu0 0.0
    %3905 = vmatprep.subr.mxu0 0.0
    %3906 = vmatpush1.msra.mxu0 0.0
    %3907 = vmatprep.subr.mxu0 0.0
    %3908 = vmatpush1.msra.mxu0 0.0
    %3909 = vmatprep.mubr.f32.mxu0 0.0
    %3910 = vmatmul.mubr.f32.gmra.mrb[0].mxu0 %v3801
    %v3911 = vpop.f32.mrb[0].mxu0
    %v3912 = vadd.f32 0.0, %v3911
    %v3913 = vpop.f32.mrb[0].mxu0
    %3914 = vmatprep.mubr.f32.mxu0 0.0
    %3915 = vmatmul.mubr.f32.gmra.mrb[0].mxu0 %v3804
    %v3916 = vpop.f32.mrb[0].mxu0
    %v3917 = vadd.f32 0.0, %v3916
    %v3918 = vpop.f32.mrb[0].mxu0
    %3919 = vmatprep.mubr.f32.mxu0 0.0
    %3920 = vmatmul.mubr.f32.gmra.mrb[0].mxu0 %v3807
    %v3921 = vpop.f32.mrb[0].mxu0
    %v3922 = vadd.f32 0.0, %v3921
    %v3923 = vpop.f32.mrb[0].mxu0
    %3924 = vmatprep.mubr.f32.mxu0 0.0
    %3925 = vmatmul.mubr.f32.gmra.mrb[0].mxu0 %v3810
    %v3926 = vpop.f32.mrb[0].mxu0
    %v3927 = vadd.f32 0.0, %v3926
    %v3928 = vpop.f32.mrb[0].mxu0
    %3929 = vmatprep.mubr.f32.mxu0 0.0
    %3930 = vmatmul.mubr.f32.gmra.mrb[0].mxu0 %v3813
    %v3931 = vpop.f32.mrb[0].mxu0
    %v3932 = vadd.f32 0.0, %v3931
    %v3933 = vpop.f32.mrb[0].mxu0
    %3934 = vmatprep.mubr.f32.mxu0 0.0
    %3935 = vmatmul.mubr.f32.gmra.mrb[0].mxu0 %v3816
    %v3936 = vpop.f32.mrb[0].mxu0
    %v3937 = vadd.f32 0.0, %v3936
    %v3938 = vpop.f32.mrb[0].mxu0
    %3939 = vmatprep.mubr.f32.mxu0 0.0
    %3940 = vmatmul.mubr.f32.gmra.mrb[0].mxu0 %v3819
    %v3941 = vpop.f32.mrb[0].mxu0
    %v3942 = vadd.f32 0.0, %v3941
    %v3943 = vpop.f32.mrb[0].mxu0
    %3944 = vmatprep.mubr.f32.mxu0 0.0
    %3945 = vmatmul.mubr.f32.gmra.mrb[0].mxu0 %v3822
    %v3946 = vpop.f32.mrb[0].mxu0
    %v3947 = vadd.f32 0.0, %v3946
    %v3948 = vpop.f32.mrb[0].mxu0
    %3949 = vmatprep.mubr.f32.mxu0 0.0
    %3950 = vmatmul.mubr.f32.gmra.mrb[0].mxu0 %v3825
    %v3951 = vpop.f32.mrb[0].mxu0
    %v3952 = vadd.f32 0.0, %v3951
    %v3953 = vpop.f32.mrb[0].mxu0
    %3954 = vmatprep.mubr.f32.mxu0 0.0
    %3955 = vmatmul.mubr.f32.gmra.mrb[0].mxu0 %v3828
    %v3956 = vpop.f32.mrb[0].mxu0
    %v3957 = vadd.f32 0.0, %v3956
    %v3958 = vpop.f32.mrb[0].mxu0
    %3959 = vmatprep.mubr.f32.mxu0 0.0
    %3960 = vmatmul.mubr.f32.gmra.mrb[0].mxu0 %v3831
    %v3961 = vpop.f32.mrb[0].mxu0
    %v3962 = vadd.f32 0.0, %v3961
    %v3963 = vpop.f32.mrb[0].mxu0
    %3964 = vmatprep.mubr.f32.mxu0 0.0
    %3965 = vmatmul.mubr.f32.gmra.mrb[0].mxu0 %v3834
    %v3966 = vpop.f32.mrb[0].mxu0
    %v3967 = vadd.f32 0.0, %v3966
    %v3968 = vpop.f32.mrb[0].mxu0
    %3969 = vmatprep.mubr.f32.mxu0 0.0
    %3970 = vmatmul.mubr.f32.gmra.mrb[0].mxu0 %v3837
    %v3971 = vpop.f32.mrb[0].mxu0
    %v3972 = vadd.f32 0.0, %v3971
    %v3973 = vpop.f32.mrb[0].mxu0
    %3974 = vmatprep.mubr.f32.mxu0 0.0
    %3975 = vmatmul.mubr.f32.gmra.mrb[0].mxu0 %v3840
    %v3976 = vpop.f32.mrb[0].mxu0
    %v3977 = vadd.f32 0.0, %v3976
    %v3978 = vpop.f32.mrb[0].mxu0
    %3979 = vmatprep.mubr.f32.mxu0 0.0
    %3980 = vmatmul.mubr.f32.gmra.mrb[0].mxu0 %v3843
    %v3981 = vpop.f32.mrb[0].mxu0
    %v3982 = vadd.f32 0.0, %v3981
    %v3983 = vpop.f32.mrb[0].mxu0
    %3984 = vdwg.mxu0
    %v3985 = vadd.f32 %v3765, %v3912
    %v3986 = vadd.f32 %v3766, %v3917
    %v3987 = vadd.f32 %v3767, %v3922
    %v3988 = vadd.f32 %v3768, %v3927
    %v3989 = vadd.f32 %v3769, %v3932
    %v3990 = vadd.f32 %v3770, %v3937
    %v3991 = vadd.f32 %v3771, %v3942
    %v3992 = vadd.f32 %v3772, %v3947
    %v3993 = vadd.f32 %v3773, %v3952
    %v3994 = vadd.f32 %v3774, %v3957
    %v3995 = vadd.f32 %v3775, %v3962
    %v3996 = vadd.f32 %v3776, %v3967
    %v3997 = vadd.f32 %v3777, %v3972
    %v3998 = vadd.f32 %v3778, %v3977
    %v3999 = vadd.f32 %v3779, %v3982
    %v4000 = vld [vmem:[#allocation9 + $0x2] ss:$0 sm:$0xff]
    %v4001 = vadd.f32 %v3985, %v4000
    %v4002 = vadd.f32 %v3986, %v4000
    %v4003 = vadd.f32 %v3987, %v4000
    %v4004 = vadd.f32 %v3988, %v4000
    %v4005 = vadd.f32 %v3989, %v4000
    %v4006 = vadd.f32 %v3990, %v4000
    %v4007 = vadd.f32 %v3991, %v4000
    %v4008 = vadd.f32 %v3992, %v4000
    %v4009 = vadd.f32 %v3993, %v4000
    %v4010 = vadd.f32 %v3994, %v4000
    %v4011 = vadd.f32 %v3995, %v4000
    %v4012 = vadd.f32 %v3996, %v4000
    %v4013 = vadd.f32 %v3997, %v4000
    %v4014 = vadd.f32 %v3998, %v4000
    %v4015 = vadd.f32 %v3999, %v4000
    %v4016 = vmax.f32 %v4001, 0.0
    %v4017 = vmax.f32 %v4002, 0.0
    %v4018 = vmax.f32 %v4003, 0.0
    %v4019 = vmax.f32 %v4004, 0.0
    %v4020 = vmax.f32 %v4005, 0.0
    %v4021 = vmax.f32 %v4006, 0.0
    %v4022 = vmax.f32 %v4007, 0.0
    %v4023 = vmax.f32 %v4008, 0.0
    %v4024 = vmax.f32 %v4009, 0.0
    %v4025 = vmax.f32 %v4010, 0.0
    %v4026 = vmax.f32 %v4011, 0.0
    %v4027 = vmax.f32 %v4012, 0.0
    %v4028 = vmax.f32 %v4013, 0.0
    %v4029 = vmax.f32 %v4014, 0.0
    %v4030 = vmax.f32 %v4015, 0.0
    %vm4031 = vcmask 523264
    %4032 = vst.msk [vmem:[#allocation4] sm:$0xff] %vm4031, %v4016
    %4033 = vst.msk [vmem:[#allocation4 + $0x8] sm:$0xff] %vm4031, %v4017
    %4034 = vst.msk [vmem:[#allocation4 + $0x10] sm:$0xff] %vm4031, %v4018
    %4035 = vst.msk [vmem:[#allocation4 + $0x18] sm:$0xff] %vm4031, %v4019
    %4036 = vst.msk [vmem:[#allocation4 + $0x20] sm:$0xff] %vm4031, %v4020
    %4037 = vst.msk [vmem:[#allocation4 + $0x28] sm:$0xff] %vm4031, %v4021
    %4038 = vst.msk [vmem:[#allocation4 + $0x30] sm:$0xff] %vm4031, %v4022
    %4039 = vst.msk [vmem:[#allocation4 + $0x38] sm:$0xff] %vm4031, %v4023
    %4040 = vst.msk [vmem:[#allocation4 + $0x40] sm:$0xff] %vm4031, %v4024
    %4041 = vst.msk [vmem:[#allocation4 + $0x48] sm:$0xff] %vm4031, %v4025
    %4042 = vst.msk [vmem:[#allocation4 + $0x50] sm:$0xff] %vm4031, %v4026
    %4043 = vst.msk [vmem:[#allocation4 + $0x58] sm:$0xff] %vm4031, %v4027
    %4044 = vst.msk [vmem:[#allocation4 + $0x60] sm:$0xff] %vm4031, %v4028
    %4045 = vst.msk [vmem:[#allocation4 + $0x68] sm:$0xff] %vm4031, %v4029
    %vm4046 = vcmask 517120
    %4047 = vst.msk [vmem:[#allocation4 + $0x70] sm:$0x3] %vm4046, %v4030
    %v4048 = vld [vmem:[#allocation4] sm:$0xff]
    %v4049 = vld [vmem:[#allocation4 + $0x8] sm:$0xff]
    %v4050 = vld [vmem:[#allocation4 + $0x10] sm:$0xff]
    %v4051 = vld [vmem:[#allocation4 + $0x18] sm:$0xff]
    %v4052 = vld [vmem:[#allocation4 + $0x20] sm:$0xff]
    %v4053 = vld [vmem:[#allocation4 + $0x28] sm:$0xff]
    %v4054 = vld [vmem:[#allocation4 + $0x30] sm:$0xff]
    %v4055 = vld [vmem:[#allocation4 + $0x38] sm:$0xff]
    %v4056 = vld [vmem:[#allocation4 + $0x40] sm:$0xff]
    %v4057 = vld [vmem:[#allocation4 + $0x48] sm:$0xff]
    %v4058 = vld [vmem:[#allocation4 + $0x50] sm:$0xff]
    %v4059 = vld [vmem:[#allocation4 + $0x58] sm:$0xff]
    %v4060 = vld [vmem:[#allocation4 + $0x60] sm:$0x3]
    %v4061 = vld [vmem:[#allocation5] sm:$0xff]
    %v4062 = vld [vmem:[#allocation5 + $0x8] sm:$0xff]
    %v4063 = vld [vmem:[#allocation5 + $0x10] sm:$0xff]
    %v4064 = vld [vmem:[#allocation5 + $0x18] sm:$0xff]
    %v4065 = vld [vmem:[#allocation5 + $0x20] sm:$0xff]
    %v4066 = vld [vmem:[#allocation5 + $0x28] sm:$0xff]
    %v4067 = vld [vmem:[#allocation5 + $0x30] sm:$0xff]
    %v4068 = vld [vmem:[#allocation5 + $0x38] sm:$0xff]
    %v4069 = vld [vmem:[#allocation4 + $0x1] sm:$0xff]
    %v4070 = vld [vmem:[#allocation4 + $0x9] sm:$0xff]
    %v4071 = vld [vmem:[#allocation4 + $0x11] sm:$0xff]
    %v4072 = vld [vmem:[#allocation4 + $0x19] sm:$0xff]
    %v4073 = vld [vmem:[#allocation4 + $0x21] sm:$0xff]
    %v4074 = vld [vmem:[#allocation4 + $0x29] sm:$0xff]
    %v4075 = vld [vmem:[#allocation4 + $0x31] sm:$0xff]
    %v4076 = vld [vmem:[#allocation4 + $0x39] sm:$0xff]
    %v4077 = vld [vmem:[#allocation4 + $0x41] sm:$0xff]
    %v4078 = vld [vmem:[#allocation4 + $0x49] sm:$0xff]
    %v4079 = vld [vmem:[#allocation4 + $0x51] sm:$0xff]
    %v4080 = vld [vmem:[#allocation4 + $0x59] sm:$0xff]
    %v4081 = vld [vmem:[#allocation4 + $0x61] sm:$0x3]
    %s4082 = scalar_lea.vmem [#allocation5], 64
    %v4083 = vld [vmem:[%s4082] sm:$0xff]
    %v4084 = vld [vmem:[%s4082 + $0x8] sm:$0xff]
    %v4085 = vld [vmem:[%s4082 + $0x10] sm:$0xff]
    %v4086 = vld [vmem:[%s4082 + $0x18] sm:$0xff]
    %v4087 = vld [vmem:[%s4082 + $0x20] sm:$0xff]
    %v4088 = vld [vmem:[%s4082 + $0x28] sm:$0xff]
    %v4089 = vld [vmem:[%s4082 + $0x30] sm:$0xff]
    %v4090 = vld [vmem:[%s4082 + $0x38] sm:$0xff]
    %v4092 = vsel %vm4031, %v4069, 0
    %v4095 = vsel %vm4031, %v4070, 0
    %v4098 = vsel %vm4031, %v4071, 0
    %v4101 = vsel %vm4031, %v4072, 0
    %v4104 = vsel %vm4031, %v4073, 0
    %v4107 = vsel %vm4031, %v4074, 0
    %v4110 = vsel %vm4031, %v4075, 0
    %v4113 = vsel %vm4031, %v4076, 0
    %v4116 = vsel %vm4031, %v4077, 0
    %v4119 = vsel %vm4031, %v4078, 0
    %v4122 = vsel %vm4031, %v4079, 0
    %v4125 = vsel %vm4031, %v4080, 0
    %v4128 = vsel %vm4031, %v4081, 0
    %4130 = vmatprep.subr.mxu0 0.0
    %4131 = vmatpush1.msra.mxu0 %v4083
    %4132 = vmatprep.subr.mxu0 0.0
    %4133 = vmatpush1.msra.mxu0 %v4084
    %4134 = vmatprep.subr.mxu0 0.0
    %4135 = vmatpush1.msra.mxu0 %v4085
    %4136 = vmatprep.subr.mxu0 0.0
    %4137 = vmatpush1.msra.mxu0 %v4086
    %4138 = vmatprep.subr.mxu0 0.0
    %4139 = vmatpush1.msra.mxu0 %v4087
    %4140 = vmatprep.subr.mxu0 0.0
    %4141 = vmatpush1.msra.mxu0 %v4088
    %4142 = vmatprep.subr.mxu0 0.0
    %4143 = vmatpush1.msra.mxu0 %v4089
    %4144 = vmatprep.subr.mxu0 0.0
    %4145 = vmatpush1.msra.mxu0 %v4090
    %4146 = vmatprep.subr.mxu0 0.0
    %4147 = vmatpush1.msra.mxu0 0.0
    %4148 = vmatprep.subr.mxu0 0.0
    %4149 = vmatpush1.msra.mxu0 0.0
    %4150 = vmatprep.subr.mxu0 0.0
    %4151 = vmatpush1.msra.mxu0 0.0
    %4152 = vmatprep.subr.mxu0 0.0
    %4153 = vmatpush1.msra.mxu0 0.0
    %4154 = vmatprep.subr.mxu0 0.0
    %4155 = vmatpush1.msra.mxu0 0.0
    %4156 = vmatprep.subr.mxu0 0.0
    %4157 = vmatpush1.msra.mxu0 0.0
    %4158 = vmatprep.subr.mxu0 0.0
    %4159 = vmatpush1.msra.mxu0 0.0
    %4160 = vmatprep.subr.mxu0 0.0
    %4161 = vmatpush1.msra.mxu0 0.0
    %4162 = vmatprep.subr.mxu0 0.0
    %4163 = vmatpush1.msra.mxu0 0.0
    %4164 = vmatprep.subr.mxu0 0.0
    %4165 = vmatpush1.msra.mxu0 0.0
    %4166 = vmatprep.subr.mxu0 0.0
    %4167 = vmatpush1.msra.mxu0 0.0
    %4168 = vmatprep.subr.mxu0 0.0
    %4169 = vmatpush1.msra.mxu0 0.0
    %4170 = vmatprep.subr.mxu0 0.0
    %4171 = vmatpush1.msra.mxu0 0.0
    %4172 = vmatprep.subr.mxu0 0.0
    %4173 = vmatpush1.msra.mxu0 0.0
    %4174 = vmatprep.subr.mxu0 0.0
    %4175 = vmatpush1.msra.mxu0 0.0
    %4176 = vmatprep.subr.mxu0 0.0
    %4177 = vmatpush1.msra.mxu0 0.0
    %4178 = vmatprep.subr.mxu0 0.0
    %4179 = vmatpush1.msra.mxu0 0.0
    %4180 = vmatprep.subr.mxu0 0.0
    %4181 = vmatpush1.msra.mxu0 0.0
    %4182 = vmatprep.subr.mxu0 0.0
    %4183 = vmatpush1.msra.mxu0 0.0
    %4184 = vmatprep.subr.mxu0 0.0
    %4185 = vmatpush1.msra.mxu0 0.0
    %4186 = vmatprep.subr.mxu0 0.0
    %4187 = vmatpush1.msra.mxu0 0.0
    %4188 = vmatprep.subr.mxu0 0.0
    %4189 = vmatpush1.msra.mxu0 0.0
    %4190 = vmatprep.subr.mxu0 0.0
    %4191 = vmatpush1.msra.mxu0 0.0
    %4192 = vmatprep.subr.mxu0 0.0
    %4193 = vmatpush1.msra.mxu0 0.0
    %4194 = vmatprep.mubr.f32.mxu0 0.0
    %4195 = vmatmul.mubr.f32.gmra.mrb[0].mxu0 %v4092
    %v4196 = vpop.f32.mrb[0].mxu0
    %v4197 = vadd.f32 0.0, %v4196
    %v4198 = vpop.f32.mrb[0].mxu0
    %4199 = vmatprep.mubr.f32.mxu0 0.0
    %4200 = vmatmul.mubr.f32.gmra.mrb[0].mxu0 %v4095
    %v4201 = vpop.f32.mrb[0].mxu0
    %v4202 = vadd.f32 0.0, %v4201
    %v4203 = vpop.f32.mrb[0].mxu0
    %4204 = vmatprep.mubr.f32.mxu0 0.0
    %4205 = vmatmul.mubr.f32.gmra.mrb[0].mxu0 %v4098
    %v4206 = vpop.f32.mrb[0].mxu0
    %v4207 = vadd.f32 0.0, %v4206
    %v4208 = vpop.f32.mrb[0].mxu0
    %4209 = vmatprep.mubr.f32.mxu0 0.0
    %4210 = vmatmul.mubr.f32.gmra.mrb[0].mxu0 %v4101
    %v4211 = vpop.f32.mrb[0].mxu0
    %v4212 = vadd.f32 0.0, %v4211
    %v4213 = vpop.f32.mrb[0].mxu0
    %4214 = vmatprep.mubr.f32.mxu0 0.0
    %4215 = vmatmul.mubr.f32.gmra.mrb[0].mxu0 %v4104
    %v4216 = vpop.f32.mrb[0].mxu0
    %v4217 = vadd.f32 0.0, %v4216
    %v4218 = vpop.f32.mrb[0].mxu0
    %4219 = vmatprep.mubr.f32.mxu0 0.0
    %4220 = vmatmul.mubr.f32.gmra.mrb[0].mxu0 %v4107
    %v4221 = vpop.f32.mrb[0].mxu0
    %v4222 = vadd.f32 0.0, %v4221
    %v4223 = vpop.f32.mrb[0].mxu0
    %4224 = vmatprep.mubr.f32.mxu0 0.0
    %4225 = vmatmul.mubr.f32.gmra.mrb[0].mxu0 %v4110
    %v4226 = vpop.f32.mrb[0].mxu0
    %v4227 = vadd.f32 0.0, %v4226
    %v4228 = vpop.f32.mrb[0].mxu0
    %4229 = vmatprep.mubr.f32.mxu0 0.0
    %4230 = vmatmul.mubr.f32.gmra.mrb[0].mxu0 %v4113
    %v4231 = vpop.f32.mrb[0].mxu0
    %v4232 = vadd.f32 0.0, %v4231
    %v4233 = vpop.f32.mrb[0].mxu0
    %4234 = vmatprep.mubr.f32.mxu0 0.0
    %4235 = vmatmul.mubr.f32.gmra.mrb[0].mxu0 %v4116
    %v4236 = vpop.f32.mrb[0].mxu0
    %v4237 = vadd.f32 0.0, %v4236
    %v4238 = vpop.f32.mrb[0].mxu0
    %4239 = vmatprep.mubr.f32.mxu0 0.0
    %4240 = vmatmul.mubr.f32.gmra.mrb[0].mxu0 %v4119
    %v4241 = vpop.f32.mrb[0].mxu0
    %v4242 = vadd.f32 0.0, %v4241
    %v4243 = vpop.f32.mrb[0].mxu0
    %4244 = vmatprep.mubr.f32.mxu0 0.0
    %4245 = vmatmul.mubr.f32.gmra.mrb[0].mxu0 %v4122
    %v4246 = vpop.f32.mrb[0].mxu0
    %v4247 = vadd.f32 0.0, %v4246
    %v4248 = vpop.f32.mrb[0].mxu0
    %4249 = vmatprep.mubr.f32.mxu0 0.0
    %4250 = vmatmul.mubr.f32.gmra.mrb[0].mxu0 %v4125
    %v4251 = vpop.f32.mrb[0].mxu0
    %v4252 = vadd.f32 0.0, %v4251
    %v4253 = vpop.f32.mrb[0].mxu0
    %4254 = vmatprep.mubr.f32.mxu0 0.0
    %4255 = vmatmul.mubr.f32.gmra.mrb[0].mxu0 %v4128
    %v4256 = vpop.f32.mrb[0].mxu0
    %v4257 = vadd.f32 0.0, %v4256
    %v4258 = vpop.f32.mrb[0].mxu0
    %4259 = vdwg.mxu0
    %v4261 = vsel %vm4031, %v4048, 0
    %v4264 = vsel %vm4031, %v4049, 0
    %v4267 = vsel %vm4031, %v4050, 0
    %v4270 = vsel %vm4031, %v4051, 0
    %v4273 = vsel %vm4031, %v4052, 0
    %v4276 = vsel %vm4031, %v4053, 0
    %v4279 = vsel %vm4031, %v4054, 0
    %v4282 = vsel %vm4031, %v4055, 0
    %v4285 = vsel %vm4031, %v4056, 0
    %v4288 = vsel %vm4031, %v4057, 0
    %v4291 = vsel %vm4031, %v4058, 0
    %v4294 = vsel %vm4031, %v4059, 0
    %v4297 = vsel %vm4031, %v4060, 0
    %4299 = vmatprep.subr.mxu0 0.0
    %4300 = vmatpush1.msra.mxu0 %v4061
    %4301 = vmatprep.subr.mxu0 0.0
    %4302 = vmatpush1.msra.mxu0 %v4062
    %4303 = vmatprep.subr.mxu0 0.0
    %4304 = vmatpush1.msra.mxu0 %v4063
    %4305 = vmatprep.subr.mxu0 0.0
    %4306 = vmatpush1.msra.mxu0 %v4064
    %4307 = vmatprep.subr.mxu0 0.0
    %4308 = vmatpush1.msra.mxu0 %v4065
    %4309 = vmatprep.subr.mxu0 0.0
    %4310 = vmatpush1.msra.mxu0 %v4066
    %4311 = vmatprep.subr.mxu0 0.0
    %4312 = vmatpush1.msra.mxu0 %v4067
    %4313 = vmatprep.subr.mxu0 0.0
    %4314 = vmatpush1.msra.mxu0 %v4068
    %4315 = vmatprep.subr.mxu0 0.0
    %4316 = vmatpush1.msra.mxu0 0.0
    %4317 = vmatprep.subr.mxu0 0.0
    %4318 = vmatpush1.msra.mxu0 0.0
    %4319 = vmatprep.subr.mxu0 0.0
    %4320 = vmatpush1.msra.mxu0 0.0
    %4321 = vmatprep.subr.mxu0 0.0
    %4322 = vmatpush1.msra.mxu0 0.0
    %4323 = vmatprep.subr.mxu0 0.0
    %4324 = vmatpush1.msra.mxu0 0.0
    %4325 = vmatprep.subr.mxu0 0.0
    %4326 = vmatpush1.msra.mxu0 0.0
    %4327 = vmatprep.subr.mxu0 0.0
    %4328 = vmatpush1.msra.mxu0 0.0
    %4329 = vmatprep.subr.mxu0 0.0
    %4330 = vmatpush1.msra.mxu0 0.0
    %4331 = vmatprep.subr.mxu0 0.0
    %4332 = vmatpush1.msra.mxu0 0.0
    %4333 = vmatprep.subr.mxu0 0.0
    %4334 = vmatpush1.msra.mxu0 0.0
    %4335 = vmatprep.subr.mxu0 0.0
    %4336 = vmatpush1.msra.mxu0 0.0
    %4337 = vmatprep.subr.mxu0 0.0
    %4338 = vmatpush1.msra.mxu0 0.0
    %4339 = vmatprep.subr.mxu0 0.0
    %4340 = vmatpush1.msra.mxu0 0.0
    %4341 = vmatprep.subr.mxu0 0.0
    %4342 = vmatpush1.msra.mxu0 0.0
    %4343 = vmatprep.subr.mxu0 0.0
    %4344 = vmatpush1.msra.mxu0 0.0
    %4345 = vmatprep.subr.mxu0 0.0
    %4346 = vmatpush1.msra.mxu0 0.0
    %4347 = vmatprep.subr.mxu0 0.0
    %4348 = vmatpush1.msra.mxu0 0.0
    %4349 = vmatprep.subr.mxu0 0.0
    %4350 = vmatpush1.msra.mxu0 0.0
    %4351 = vmatprep.subr.mxu0 0.0
    %4352 = vmatpush1.msra.mxu0 0.0
    %4353 = vmatprep.subr.mxu0 0.0
    %4354 = vmatpush1.msra.mxu0 0.0
    %4355 = vmatprep.subr.mxu0 0.0
    %4356 = vmatpush1.msra.mxu0 0.0
    %4357 = vmatprep.subr.mxu0 0.0
    %4358 = vmatpush1.msra.mxu0 0.0
    %4359 = vmatprep.subr.mxu0 0.0
    %4360 = vmatpush1.msra.mxu0 0.0
    %4361 = vmatprep.subr.mxu0 0.0
    %4362 = vmatpush1.msra.mxu0 0.0
    %4363 = vmatprep.mubr.f32.mxu0 0.0
    %4364 = vmatmul.mubr.f32.gmra.mrb[0].mxu0 %v4261
    %v4365 = vpop.f32.mrb[0].mxu0
    %v4366 = vadd.f32 %v4197, %v4365
    %v4367 = vpop.f32.mrb[0].mxu0
    %4368 = vmatprep.mubr.f32.mxu0 0.0
    %4369 = vmatmul.mubr.f32.gmra.mrb[0].mxu0 %v4264
    %v4370 = vpop.f32.mrb[0].mxu0
    %v4371 = vadd.f32 %v4202, %v4370
    %v4372 = vpop.f32.mrb[0].mxu0
    %4373 = vmatprep.mubr.f32.mxu0 0.0
    %4374 = vmatmul.mubr.f32.gmra.mrb[0].mxu0 %v4267
    %v4375 = vpop.f32.mrb[0].mxu0
    %v4376 = vadd.f32 %v4207, %v4375
    %v4377 = vpop.f32.mrb[0].mxu0
    %4378 = vmatprep.mubr.f32.mxu0 0.0
    %4379 = vmatmul.mubr.f32.gmra.mrb[0].mxu0 %v4270
    %v4380 = vpop.f32.mrb[0].mxu0
    %v4381 = vadd.f32 %v4212, %v4380
    %v4382 = vpop.f32.mrb[0].mxu0
    %4383 = vmatprep.mubr.f32.mxu0 0.0
    %4384 = vmatmul.mubr.f32.gmra.mrb[0].mxu0 %v4273
    %v4385 = vpop.f32.mrb[0].mxu0
    %v4386 = vadd.f32 %v4217, %v4385
    %v4387 = vpop.f32.mrb[0].mxu0
    %4388 = vmatprep.mubr.f32.mxu0 0.0
    %4389 = vmatmul.mubr.f32.gmra.mrb[0].mxu0 %v4276
    %v4390 = vpop.f32.mrb[0].mxu0
    %v4391 = vadd.f32 %v4222, %v4390
    %v4392 = vpop.f32.mrb[0].mxu0
    %4393 = vmatprep.mubr.f32.mxu0 0.0
    %4394 = vmatmul.mubr.f32.gmra.mrb[0].mxu0 %v4279
    %v4395 = vpop.f32.mrb[0].mxu0
    %v4396 = vadd.f32 %v4227, %v4395
    %v4397 = vpop.f32.mrb[0].mxu0
    %4398 = vmatprep.mubr.f32.mxu0 0.0
    %4399 = vmatmul.mubr.f32.gmra.mrb[0].mxu0 %v4282
    %v4400 = vpop.f32.mrb[0].mxu0
    %v4401 = vadd.f32 %v4232, %v4400
    %v4402 = vpop.f32.mrb[0].mxu0
    %4403 = vmatprep.mubr.f32.mxu0 0.0
    %4404 = vmatmul.mubr.f32.gmra.mrb[0].mxu0 %v4285
    %v4405 = vpop.f32.mrb[0].mxu0
    %v4406 = vadd.f32 %v4237, %v4405
    %v4407 = vpop.f32.mrb[0].mxu0
    %4408 = vmatprep.mubr.f32.mxu0 0.0
    %4409 = vmatmul.mubr.f32.gmra.mrb[0].mxu0 %v4288
    %v4410 = vpop.f32.mrb[0].mxu0
    %v4411 = vadd.f32 %v4242, %v4410
    %v4412 = vpop.f32.mrb[0].mxu0
    %4413 = vmatprep.mubr.f32.mxu0 0.0
    %4414 = vmatmul.mubr.f32.gmra.mrb[0].mxu0 %v4291
    %v4415 = vpop.f32.mrb[0].mxu0
    %v4416 = vadd.f32 %v4247, %v4415
    %v4417 = vpop.f32.mrb[0].mxu0
    %4418 = vmatprep.mubr.f32.mxu0 0.0
    %4419 = vmatmul.mubr.f32.gmra.mrb[0].mxu0 %v4294
    %v4420 = vpop.f32.mrb[0].mxu0
    %v4421 = vadd.f32 %v4252, %v4420
    %v4422 = vpop.f32.mrb[0].mxu0
    %4423 = vmatprep.mubr.f32.mxu0 0.0
    %4424 = vmatmul.mubr.f32.gmra.mrb[0].mxu0 %v4297
    %v4425 = vpop.f32.mrb[0].mxu0
    %v4426 = vadd.f32 %v4257, %v4425
    %v4427 = vpop.f32.mrb[0].mxu0
    %4428 = vdwg.mxu0
    %v4429 = vld [vmem:[#allocation4 + $0x2] sm:$0xff]
    %v4430 = vld [vmem:[#allocation4 + $0xa] sm:$0xff]
    %v4431 = vld [vmem:[#allocation4 + $0x12] sm:$0xff]
    %v4432 = vld [vmem:[#allocation4 + $0x1a] sm:$0xff]
    %v4433 = vld [vmem:[#allocation4 + $0x22] sm:$0xff]
    %v4434 = vld [vmem:[#allocation4 + $0x2a] sm:$0xff]
    %v4435 = vld [vmem:[#allocation4 + $0x32] sm:$0xff]
    %v4436 = vld [vmem:[#allocation4 + $0x3a] sm:$0xff]
    %v4437 = vld [vmem:[#allocation4 + $0x42] sm:$0xff]
    %v4438 = vld [vmem:[#allocation4 + $0x4a] sm:$0xff]
    %v4439 = vld [vmem:[#allocation4 + $0x52] sm:$0xff]
    %v4440 = vld [vmem:[#allocation4 + $0x5a] sm:$0xff]
    %v4441 = vld [vmem:[#allocation4 + $0x62] sm:$0x3]
    %s4442 = scalar_lea.vmem [#allocation5], 128
    %v4443 = vld [vmem:[%s4442] sm:$0xff]
    %v4444 = vld [vmem:[%s4442 + $0x8] sm:$0xff]
    %v4445 = vld [vmem:[%s4442 + $0x10] sm:$0xff]
    %v4446 = vld [vmem:[%s4442 + $0x18] sm:$0xff]
    %v4447 = vld [vmem:[%s4442 + $0x20] sm:$0xff]
    %v4448 = vld [vmem:[%s4442 + $0x28] sm:$0xff]
    %v4449 = vld [vmem:[%s4442 + $0x30] sm:$0xff]
    %v4450 = vld [vmem:[%s4442 + $0x38] sm:$0xff]
    %v4452 = vsel %vm4031, %v4429, 0
    %v4455 = vsel %vm4031, %v4430, 0
    %v4458 = vsel %vm4031, %v4431, 0
    %v4461 = vsel %vm4031, %v4432, 0
    %v4464 = vsel %vm4031, %v4433, 0
    %v4467 = vsel %vm4031, %v4434, 0
    %v4470 = vsel %vm4031, %v4435, 0
    %v4473 = vsel %vm4031, %v4436, 0
    %v4476 = vsel %vm4031, %v4437, 0
    %v4479 = vsel %vm4031, %v4438, 0
    %v4482 = vsel %vm4031, %v4439, 0
    %v4485 = vsel %vm4031, %v4440, 0
    %v4488 = vsel %vm4031, %v4441, 0
    %4490 = vmatprep.subr.mxu0 0.0
    %4491 = vmatpush1.msra.mxu0 %v4443
    %4492 = vmatprep.subr.mxu0 0.0
    %4493 = vmatpush1.msra.mxu0 %v4444
    %4494 = vmatprep.subr.mxu0 0.0
    %4495 = vmatpush1.msra.mxu0 %v4445
    %4496 = vmatprep.subr.mxu0 0.0
    %4497 = vmatpush1.msra.mxu0 %v4446
    %4498 = vmatprep.subr.mxu0 0.0
    %4499 = vmatpush1.msra.mxu0 %v4447
    %4500 = vmatprep.subr.mxu0 0.0
    %4501 = vmatpush1.msra.mxu0 %v4448
    %4502 = vmatprep.subr.mxu0 0.0
    %4503 = vmatpush1.msra.mxu0 %v4449
    %4504 = vmatprep.subr.mxu0 0.0
    %4505 = vmatpush1.msra.mxu0 %v4450
    %4506 = vmatprep.subr.mxu0 0.0
    %4507 = vmatpush1.msra.mxu0 0.0
    %4508 = vmatprep.subr.mxu0 0.0
    %4509 = vmatpush1.msra.mxu0 0.0
    %4510 = vmatprep.subr.mxu0 0.0
    %4511 = vmatpush1.msra.mxu0 0.0
    %4512 = vmatprep.subr.mxu0 0.0
    %4513 = vmatpush1.msra.mxu0 0.0
    %4514 = vmatprep.subr.mxu0 0.0
    %4515 = vmatpush1.msra.mxu0 0.0
    %4516 = vmatprep.subr.mxu0 0.0
    %4517 = vmatpush1.msra.mxu0 0.0
    %4518 = vmatprep.subr.mxu0 0.0
    %4519 = vmatpush1.msra.mxu0 0.0
    %4520 = vmatprep.subr.mxu0 0.0
    %4521 = vmatpush1.msra.mxu0 0.0
    %4522 = vmatprep.subr.mxu0 0.0
    %4523 = vmatpush1.msra.mxu0 0.0
    %4524 = vmatprep.subr.mxu0 0.0
    %4525 = vmatpush1.msra.mxu0 0.0
    %4526 = vmatprep.subr.mxu0 0.0
    %4527 = vmatpush1.msra.mxu0 0.0
    %4528 = vmatprep.subr.mxu0 0.0
    %4529 = vmatpush1.msra.mxu0 0.0
    %4530 = vmatprep.subr.mxu0 0.0
    %4531 = vmatpush1.msra.mxu0 0.0
    %4532 = vmatprep.subr.mxu0 0.0
    %4533 = vmatpush1.msra.mxu0 0.0
    %4534 = vmatprep.subr.mxu0 0.0
    %4535 = vmatpush1.msra.mxu0 0.0
    %4536 = vmatprep.subr.mxu0 0.0
    %4537 = vmatpush1.msra.mxu0 0.0
    %4538 = vmatprep.subr.mxu0 0.0
    %4539 = vmatpush1.msra.mxu0 0.0
    %4540 = vmatprep.subr.mxu0 0.0
    %4541 = vmatpush1.msra.mxu0 0.0
    %4542 = vmatprep.subr.mxu0 0.0
    %4543 = vmatpush1.msra.mxu0 0.0
    %4544 = vmatprep.subr.mxu0 0.0
    %4545 = vmatpush1.msra.mxu0 0.0
    %4546 = vmatprep.subr.mxu0 0.0
    %4547 = vmatpush1.msra.mxu0 0.0
    %4548 = vmatprep.subr.mxu0 0.0
    %4549 = vmatpush1.msra.mxu0 0.0
    %4550 = vmatprep.subr.mxu0 0.0
    %4551 = vmatpush1.msra.mxu0 0.0
    %4552 = vmatprep.subr.mxu0 0.0
    %4553 = vmatpush1.msra.mxu0 0.0
    %4554 = vmatprep.mubr.f32.mxu0 0.0
    %4555 = vmatmul.mubr.f32.gmra.mrb[0].mxu0 %v4452
    %v4556 = vpop.f32.mrb[0].mxu0
    %v4557 = vadd.f32 0.0, %v4556
    %v4558 = vpop.f32.mrb[0].mxu0
    %4559 = vmatprep.mubr.f32.mxu0 0.0
    %4560 = vmatmul.mubr.f32.gmra.mrb[0].mxu0 %v4455
    %v4561 = vpop.f32.mrb[0].mxu0
    %v4562 = vadd.f32 0.0, %v4561
    %v4563 = vpop.f32.mrb[0].mxu0
    %4564 = vmatprep.mubr.f32.mxu0 0.0
    %4565 = vmatmul.mubr.f32.gmra.mrb[0].mxu0 %v4458
    %v4566 = vpop.f32.mrb[0].mxu0
    %v4567 = vadd.f32 0.0, %v4566
    %v4568 = vpop.f32.mrb[0].mxu0
    %4569 = vmatprep.mubr.f32.mxu0 0.0
    %4570 = vmatmul.mubr.f32.gmra.mrb[0].mxu0 %v4461
    %v4571 = vpop.f32.mrb[0].mxu0
    %v4572 = vadd.f32 0.0, %v4571
    %v4573 = vpop.f32.mrb[0].mxu0
    %4574 = vmatprep.mubr.f32.mxu0 0.0
    %4575 = vmatmul.mubr.f32.gmra.mrb[0].mxu0 %v4464
    %v4576 = vpop.f32.mrb[0].mxu0
    %v4577 = vadd.f32 0.0, %v4576
    %v4578 = vpop.f32.mrb[0].mxu0
    %4579 = vmatprep.mubr.f32.mxu0 0.0
    %4580 = vmatmul.mubr.f32.gmra.mrb[0].mxu0 %v4467
    %v4581 = vpop.f32.mrb[0].mxu0
    %v4582 = vadd.f32 0.0, %v4581
    %v4583 = vpop.f32.mrb[0].mxu0
    %4584 = vmatprep.mubr.f32.mxu0 0.0
    %4585 = vmatmul.mubr.f32.gmra.mrb[0].mxu0 %v4470
    %v4586 = vpop.f32.mrb[0].mxu0
    %v4587 = vadd.f32 0.0, %v4586
    %v4588 = vpop.f32.mrb[0].mxu0
    %4589 = vmatprep.mubr.f32.mxu0 0.0
    %4590 = vmatmul.mubr.f32.gmra.mrb[0].mxu0 %v4473
    %v4591 = vpop.f32.mrb[0].mxu0
    %v4592 = vadd.f32 0.0, %v4591
    %v4593 = vpop.f32.mrb[0].mxu0
    %4594 = vmatprep.mubr.f32.mxu0 0.0
    %4595 = vmatmul.mubr.f32.gmra.mrb[0].mxu0 %v4476
    %v4596 = vpop.f32.mrb[0].mxu0
    %v4597 = vadd.f32 0.0, %v4596
    %v4598 = vpop.f32.mrb[0].mxu0
    %4599 = vmatprep.mubr.f32.mxu0 0.0
    %4600 = vmatmul.mubr.f32.gmra.mrb[0].mxu0 %v4479
    %v4601 = vpop.f32.mrb[0].mxu0
    %v4602 = vadd.f32 0.0, %v4601
    %v4603 = vpop.f32.mrb[0].mxu0
    %4604 = vmatprep.mubr.f32.mxu0 0.0
    %4605 = vmatmul.mubr.f32.gmra.mrb[0].mxu0 %v4482
    %v4606 = vpop.f32.mrb[0].mxu0
    %v4607 = vadd.f32 0.0, %v4606
    %v4608 = vpop.f32.mrb[0].mxu0
    %4609 = vmatprep.mubr.f32.mxu0 0.0
    %4610 = vmatmul.mubr.f32.gmra.mrb[0].mxu0 %v4485
    %v4611 = vpop.f32.mrb[0].mxu0
    %v4612 = vadd.f32 0.0, %v4611
    %v4613 = vpop.f32.mrb[0].mxu0
    %4614 = vmatprep.mubr.f32.mxu0 0.0
    %4615 = vmatmul.mubr.f32.gmra.mrb[0].mxu0 %v4488
    %v4616 = vpop.f32.mrb[0].mxu0
    %v4617 = vadd.f32 0.0, %v4616
    %v4618 = vpop.f32.mrb[0].mxu0
    %4619 = vdwg.mxu0
    %v4620 = vadd.f32 %v4366, %v4557
    %v4621 = vadd.f32 %v4371, %v4562
    %v4622 = vadd.f32 %v4376, %v4567
    %v4623 = vadd.f32 %v4381, %v4572
    %v4624 = vadd.f32 %v4386, %v4577
    %v4625 = vadd.f32 %v4391, %v4582
    %v4626 = vadd.f32 %v4396, %v4587
    %v4627 = vadd.f32 %v4401, %v4592
    %v4628 = vadd.f32 %v4406, %v4597
    %v4629 = vadd.f32 %v4411, %v4602
    %v4630 = vadd.f32 %v4416, %v4607
    %v4631 = vadd.f32 %v4421, %v4612
    %v4632 = vadd.f32 %v4426, %v4617
    %v4633 = vld [vmem:[#allocation4 + $0x7] sm:$0xff]
    %v4634 = vld [vmem:[#allocation4 + $0xf] sm:$0xff]
    %v4635 = vld [vmem:[#allocation4 + $0x17] sm:$0xff]
    %v4636 = vld [vmem:[#allocation4 + $0x1f] sm:$0xff]
    %v4637 = vld [vmem:[#allocation4 + $0x27] sm:$0xff]
    %v4638 = vld [vmem:[#allocation4 + $0x2f] sm:$0xff]
    %v4639 = vld [vmem:[#allocation4 + $0x37] sm:$0xff]
    %v4640 = vld [vmem:[#allocation4 + $0x3f] sm:$0xff]
    %v4641 = vld [vmem:[#allocation4 + $0x47] sm:$0xff]
    %v4642 = vld [vmem:[#allocation4 + $0x4f] sm:$0xff]
    %v4643 = vld [vmem:[#allocation4 + $0x57] sm:$0xff]
    %v4644 = vld [vmem:[#allocation4 + $0x5f] sm:$0xff]
    %v4645 = vld [vmem:[#allocation4 + $0x67] sm:$0x3]
    %s4646 = scalar_lea.vmem [#allocation5], 192
    %v4647 = vld [vmem:[%s4646] sm:$0xff]
    %v4648 = vld [vmem:[%s4646 + $0x8] sm:$0xff]
    %v4649 = vld [vmem:[%s4646 + $0x10] sm:$0xff]
    %v4650 = vld [vmem:[%s4646 + $0x18] sm:$0xff]
    %v4651 = vld [vmem:[%s4646 + $0x20] sm:$0xff]
    %v4652 = vld [vmem:[%s4646 + $0x28] sm:$0xff]
    %v4653 = vld [vmem:[%s4646 + $0x30] sm:$0xff]
    %v4654 = vld [vmem:[%s4646 + $0x38] sm:$0xff]
    %v4656 = vsel %vm4031, %v4633, 0
    %v4659 = vsel %vm4031, %v4634, 0
    %v4662 = vsel %vm4031, %v4635, 0
    %v4665 = vsel %vm4031, %v4636, 0
    %v4668 = vsel %vm4031, %v4637, 0
    %v4671 = vsel %vm4031, %v4638, 0
    %v4674 = vsel %vm4031, %v4639, 0
    %v4677 = vsel %vm4031, %v4640, 0
    %v4680 = vsel %vm4031, %v4641, 0
    %v4683 = vsel %vm4031, %v4642, 0
    %v4686 = vsel %vm4031, %v4643, 0
    %v4689 = vsel %vm4031, %v4644, 0
    %v4692 = vsel %vm4031, %v4645, 0
    %4694 = vmatprep.subr.mxu0 0.0
    %4695 = vmatpush1.msra.mxu0 %v4647
    %4696 = vmatprep.subr.mxu0 0.0
    %4697 = vmatpush1.msra.mxu0 %v4648
    %4698 = vmatprep.subr.mxu0 0.0
    %4699 = vmatpush1.msra.mxu0 %v4649
    %4700 = vmatprep.subr.mxu0 0.0
    %4701 = vmatpush1.msra.mxu0 %v4650
    %4702 = vmatprep.subr.mxu0 0.0
    %4703 = vmatpush1.msra.mxu0 %v4651
    %4704 = vmatprep.subr.mxu0 0.0
    %4705 = vmatpush1.msra.mxu0 %v4652
    %4706 = vmatprep.subr.mxu0 0.0
    %4707 = vmatpush1.msra.mxu0 %v4653
    %4708 = vmatprep.subr.mxu0 0.0
    %4709 = vmatpush1.msra.mxu0 %v4654
    %4710 = vmatprep.subr.mxu0 0.0
    %4711 = vmatpush1.msra.mxu0 0.0
    %4712 = vmatprep.subr.mxu0 0.0
    %4713 = vmatpush1.msra.mxu0 0.0
    %4714 = vmatprep.subr.mxu0 0.0
    %4715 = vmatpush1.msra.mxu0 0.0
    %4716 = vmatprep.subr.mxu0 0.0
    %4717 = vmatpush1.msra.mxu0 0.0
    %4718 = vmatprep.subr.mxu0 0.0
    %4719 = vmatpush1.msra.mxu0 0.0
    %4720 = vmatprep.subr.mxu0 0.0
    %4721 = vmatpush1.msra.mxu0 0.0
    %4722 = vmatprep.subr.mxu0 0.0
    %4723 = vmatpush1.msra.mxu0 0.0
    %4724 = vmatprep.subr.mxu0 0.0
    %4725 = vmatpush1.msra.mxu0 0.0
    %4726 = vmatprep.subr.mxu0 0.0
    %4727 = vmatpush1.msra.mxu0 0.0
    %4728 = vmatprep.subr.mxu0 0.0
    %4729 = vmatpush1.msra.mxu0 0.0
    %4730 = vmatprep.subr.mxu0 0.0
    %4731 = vmatpush1.msra.mxu0 0.0
    %4732 = vmatprep.subr.mxu0 0.0
    %4733 = vmatpush1.msra.mxu0 0.0
    %4734 = vmatprep.subr.mxu0 0.0
    %4735 = vmatpush1.msra.mxu0 0.0
    %4736 = vmatprep.subr.mxu0 0.0
    %4737 = vmatpush1.msra.mxu0 0.0
    %4738 = vmatprep.subr.mxu0 0.0
    %4739 = vmatpush1.msra.mxu0 0.0
    %4740 = vmatprep.subr.mxu0 0.0
    %4741 = vmatpush1.msra.mxu0 0.0
    %4742 = vmatprep.subr.mxu0 0.0
    %4743 = vmatpush1.msra.mxu0 0.0
    %4744 = vmatprep.subr.mxu0 0.0
    %4745 = vmatpush1.msra.mxu0 0.0
    %4746 = vmatprep.subr.mxu0 0.0
    %4747 = vmatpush1.msra.mxu0 0.0
    %4748 = vmatprep.subr.mxu0 0.0
    %4749 = vmatpush1.msra.mxu0 0.0
    %4750 = vmatprep.subr.mxu0 0.0
    %4751 = vmatpush1.msra.mxu0 0.0
    %4752 = vmatprep.subr.mxu0 0.0
    %4753 = vmatpush1.msra.mxu0 0.0
    %4754 = vmatprep.subr.mxu0 0.0
    %4755 = vmatpush1.msra.mxu0 0.0
    %4756 = vmatprep.subr.mxu0 0.0
    %4757 = vmatpush1.msra.mxu0 0.0
    %4758 = vmatprep.mubr.f32.mxu0 0.0
    %4759 = vmatmul.mubr.f32.gmra.mrb[0].mxu0 %v4656
    %v4760 = vpop.f32.mrb[0].mxu0
    %v4761 = vadd.f32 0.0, %v4760
    %v4762 = vpop.f32.mrb[0].mxu0
    %4763 = vmatprep.mubr.f32.mxu0 0.0
    %4764 = vmatmul.mubr.f32.gmra.mrb[0].mxu0 %v4659
    %v4765 = vpop.f32.mrb[0].mxu0
    %v4766 = vadd.f32 0.0, %v4765
    %v4767 = vpop.f32.mrb[0].mxu0
    %4768 = vmatprep.mubr.f32.mxu0 0.0
    %4769 = vmatmul.mubr.f32.gmra.mrb[0].mxu0 %v4662
    %v4770 = vpop.f32.mrb[0].mxu0
    %v4771 = vadd.f32 0.0, %v4770
    %v4772 = vpop.f32.mrb[0].mxu0
    %4773 = vmatprep.mubr.f32.mxu0 0.0
    %4774 = vmatmul.mubr.f32.gmra.mrb[0].mxu0 %v4665
    %v4775 = vpop.f32.mrb[0].mxu0
    %v4776 = vadd.f32 0.0, %v4775
    %v4777 = vpop.f32.mrb[0].mxu0
    %4778 = vmatprep.mubr.f32.mxu0 0.0
    %4779 = vmatmul.mubr.f32.gmra.mrb[0].mxu0 %v4668
    %v4780 = vpop.f32.mrb[0].mxu0
    %v4781 = vadd.f32 0.0, %v4780
    %v4782 = vpop.f32.mrb[0].mxu0
    %4783 = vmatprep.mubr.f32.mxu0 0.0
    %4784 = vmatmul.mubr.f32.gmra.mrb[0].mxu0 %v4671
    %v4785 = vpop.f32.mrb[0].mxu0
    %v4786 = vadd.f32 0.0, %v4785
    %v4787 = vpop.f32.mrb[0].mxu0
    %4788 = vmatprep.mubr.f32.mxu0 0.0
    %4789 = vmatmul.mubr.f32.gmra.mrb[0].mxu0 %v4674
    %v4790 = vpop.f32.mrb[0].mxu0
    %v4791 = vadd.f32 0.0, %v4790
    %v4792 = vpop.f32.mrb[0].mxu0
    %4793 = vmatprep.mubr.f32.mxu0 0.0
    %4794 = vmatmul.mubr.f32.gmra.mrb[0].mxu0 %v4677
    %v4795 = vpop.f32.mrb[0].mxu0
    %v4796 = vadd.f32 0.0, %v4795
    %v4797 = vpop.f32.mrb[0].mxu0
    %4798 = vmatprep.mubr.f32.mxu0 0.0
    %4799 = vmatmul.mubr.f32.gmra.mrb[0].mxu0 %v4680
    %v4800 = vpop.f32.mrb[0].mxu0
    %v4801 = vadd.f32 0.0, %v4800
    %v4802 = vpop.f32.mrb[0].mxu0
    %4803 = vmatprep.mubr.f32.mxu0 0.0
    %4804 = vmatmul.mubr.f32.gmra.mrb[0].mxu0 %v4683
    %v4805 = vpop.f32.mrb[0].mxu0
    %v4806 = vadd.f32 0.0, %v4805
    %v4807 = vpop.f32.mrb[0].mxu0
    %4808 = vmatprep.mubr.f32.mxu0 0.0
    %4809 = vmatmul.mubr.f32.gmra.mrb[0].mxu0 %v4686
    %v4810 = vpop.f32.mrb[0].mxu0
    %v4811 = vadd.f32 0.0, %v4810
    %v4812 = vpop.f32.mrb[0].mxu0
    %4813 = vmatprep.mubr.f32.mxu0 0.0
    %4814 = vmatmul.mubr.f32.gmra.mrb[0].mxu0 %v4689
    %v4815 = vpop.f32.mrb[0].mxu0
    %v4816 = vadd.f32 0.0, %v4815
    %v4817 = vpop.f32.mrb[0].mxu0
    %4818 = vmatprep.mubr.f32.mxu0 0.0
    %4819 = vmatmul.mubr.f32.gmra.mrb[0].mxu0 %v4692
    %v4820 = vpop.f32.mrb[0].mxu0
    %v4821 = vadd.f32 0.0, %v4820
    %v4822 = vpop.f32.mrb[0].mxu0
    %4823 = vdwg.mxu0
    %v4824 = vadd.f32 %v4620, %v4761
    %v4825 = vadd.f32 %v4621, %v4766
    %v4826 = vadd.f32 %v4622, %v4771
    %v4827 = vadd.f32 %v4623, %v4776
    %v4828 = vadd.f32 %v4624, %v4781
    %v4829 = vadd.f32 %v4625, %v4786
    %v4830 = vadd.f32 %v4626, %v4791
    %v4831 = vadd.f32 %v4627, %v4796
    %v4832 = vadd.f32 %v4628, %v4801
    %v4833 = vadd.f32 %v4629, %v4806
    %v4834 = vadd.f32 %v4630, %v4811
    %v4835 = vadd.f32 %v4631, %v4816
    %v4836 = vadd.f32 %v4632, %v4821
    %v4837 = vld [vmem:[#allocation4 + $0x8] sm:$0xff]
    %v4838 = vld [vmem:[#allocation4 + $0x10] sm:$0xff]
    %v4839 = vld [vmem:[#allocation4 + $0x18] sm:$0xff]
    %v4840 = vld [vmem:[#allocation4 + $0x20] sm:$0xff]
    %v4841 = vld [vmem:[#allocation4 + $0x28] sm:$0xff]
    %v4842 = vld [vmem:[#allocation4 + $0x30] sm:$0xff]
    %v4843 = vld [vmem:[#allocation4 + $0x38] sm:$0xff]
    %v4844 = vld [vmem:[#allocation4 + $0x40] sm:$0xff]
    %v4845 = vld [vmem:[#allocation4 + $0x48] sm:$0xff]
    %v4846 = vld [vmem:[#allocation4 + $0x50] sm:$0xff]
    %v4847 = vld [vmem:[#allocation4 + $0x58] sm:$0xff]
    %v4848 = vld [vmem:[#allocation4 + $0x60] sm:$0xff]
    %v4849 = vld [vmem:[#allocation4 + $0x68] sm:$0x3]
    %s4850 = scalar_lea.vmem [#allocation5], 256
    %v4851 = vld [vmem:[%s4850] sm:$0xff]
    %v4852 = vld [vmem:[%s4850 + $0x8] sm:$0xff]
    %v4853 = vld [vmem:[%s4850 + $0x10] sm:$0xff]
    %v4854 = vld [vmem:[%s4850 + $0x18] sm:$0xff]
    %v4855 = vld [vmem:[%s4850 + $0x20] sm:$0xff]
    %v4856 = vld [vmem:[%s4850 + $0x28] sm:$0xff]
    %v4857 = vld [vmem:[%s4850 + $0x30] sm:$0xff]
    %v4858 = vld [vmem:[%s4850 + $0x38] sm:$0xff]
    %v4860 = vsel %vm4031, %v4837, 0
    %v4863 = vsel %vm4031, %v4838, 0
    %v4866 = vsel %vm4031, %v4839, 0
    %v4869 = vsel %vm4031, %v4840, 0
    %v4872 = vsel %vm4031, %v4841, 0
    %v4875 = vsel %vm4031, %v4842, 0
    %v4878 = vsel %vm4031, %v4843, 0
    %v4881 = vsel %vm4031, %v4844, 0
    %v4884 = vsel %vm4031, %v4845, 0
    %v4887 = vsel %vm4031, %v4846, 0
    %v4890 = vsel %vm4031, %v4847, 0
    %v4893 = vsel %vm4031, %v4848, 0
    %v4896 = vsel %vm4031, %v4849, 0
    %4898 = vmatprep.subr.mxu0 0.0
    %4899 = vmatpush1.msra.mxu0 %v4851
    %4900 = vmatprep.subr.mxu0 0.0
    %4901 = vmatpush1.msra.mxu0 %v4852
    %4902 = vmatprep.subr.mxu0 0.0
    %4903 = vmatpush1.msra.mxu0 %v4853
    %4904 = vmatprep.subr.mxu0 0.0
    %4905 = vmatpush1.msra.mxu0 %v4854
    %4906 = vmatprep.subr.mxu0 0.0
    %4907 = vmatpush1.msra.mxu0 %v4855
    %4908 = vmatprep.subr.mxu0 0.0
    %4909 = vmatpush1.msra.mxu0 %v4856
    %4910 = vmatprep.subr.mxu0 0.0
    %4911 = vmatpush1.msra.mxu0 %v4857
    %4912 = vmatprep.subr.mxu0 0.0
    %4913 = vmatpush1.msra.mxu0 %v4858
    %4914 = vmatprep.subr.mxu0 0.0
    %4915 = vmatpush1.msra.mxu0 0.0
    %4916 = vmatprep.subr.mxu0 0.0
    %4917 = vmatpush1.msra.mxu0 0.0
    %4918 = vmatprep.subr.mxu0 0.0
    %4919 = vmatpush1.msra.mxu0 0.0
    %4920 = vmatprep.subr.mxu0 0.0
    %4921 = vmatpush1.msra.mxu0 0.0
    %4922 = vmatprep.subr.mxu0 0.0
    %4923 = vmatpush1.msra.mxu0 0.0
    %4924 = vmatprep.subr.mxu0 0.0
    %4925 = vmatpush1.msra.mxu0 0.0
    %4926 = vmatprep.subr.mxu0 0.0
    %4927 = vmatpush1.msra.mxu0 0.0
    %4928 = vmatprep.subr.mxu0 0.0
    %4929 = vmatpush1.msra.mxu0 0.0
    %4930 = vmatprep.subr.mxu0 0.0
    %4931 = vmatpush1.msra.mxu0 0.0
    %4932 = vmatprep.subr.mxu0 0.0
    %4933 = vmatpush1.msra.mxu0 0.0
    %4934 = vmatprep.subr.mxu0 0.0
    %4935 = vmatpush1.msra.mxu0 0.0
    %4936 = vmatprep.subr.mxu0 0.0
    %4937 = vmatpush1.msra.mxu0 0.0
    %4938 = vmatprep.subr.mxu0 0.0
    %4939 = vmatpush1.msra.mxu0 0.0
    %4940 = vmatprep.subr.mxu0 0.0
    %4941 = vmatpush1.msra.mxu0 0.0
    %4942 = vmatprep.subr.mxu0 0.0
    %4943 = vmatpush1.msra.mxu0 0.0
    %4944 = vmatprep.subr.mxu0 0.0
    %4945 = vmatpush1.msra.mxu0 0.0
    %4946 = vmatprep.subr.mxu0 0.0
    %4947 = vmatpush1.msra.mxu0 0.0
    %4948 = vmatprep.subr.mxu0 0.0
    %4949 = vmatpush1.msra.mxu0 0.0
    %4950 = vmatprep.subr.mxu0 0.0
    %4951 = vmatpush1.msra.mxu0 0.0
    %4952 = vmatprep.subr.mxu0 0.0
    %4953 = vmatpush1.msra.mxu0 0.0
    %4954 = vmatprep.subr.mxu0 0.0
    %4955 = vmatpush1.msra.mxu0 0.0
    %4956 = vmatprep.subr.mxu0 0.0
    %4957 = vmatpush1.msra.mxu0 0.0
    %4958 = vmatprep.subr.mxu0 0.0
    %4959 = vmatpush1.msra.mxu0 0.0
    %4960 = vmatprep.subr.mxu0 0.0
    %4961 = vmatpush1.msra.mxu0 0.0
    %4962 = vmatprep.mubr.f32.mxu0 0.0
    %4963 = vmatmul.mubr.f32.gmra.mrb[0].mxu0 %v4860
    %v4964 = vpop.f32.mrb[0].mxu0
    %v4965 = vadd.f32 0.0, %v4964
    %v4966 = vpop.f32.mrb[0].mxu0
    %4967 = vmatprep.mubr.f32.mxu0 0.0
    %4968 = vmatmul.mubr.f32.gmra.mrb[0].mxu0 %v4863
    %v4969 = vpop.f32.mrb[0].mxu0
    %v4970 = vadd.f32 0.0, %v4969
    %v4971 = vpop.f32.mrb[0].mxu0
    %4972 = vmatprep.mubr.f32.mxu0 0.0
    %4973 = vmatmul.mubr.f32.gmra.mrb[0].mxu0 %v4866
    %v4974 = vpop.f32.mrb[0].mxu0
    %v4975 = vadd.f32 0.0, %v4974
    %v4976 = vpop.f32.mrb[0].mxu0
    %4977 = vmatprep.mubr.f32.mxu0 0.0
    %4978 = vmatmul.mubr.f32.gmra.mrb[0].mxu0 %v4869
    %v4979 = vpop.f32.mrb[0].mxu0
    %v4980 = vadd.f32 0.0, %v4979
    %v4981 = vpop.f32.mrb[0].mxu0
    %4982 = vmatprep.mubr.f32.mxu0 0.0
    %4983 = vmatmul.mubr.f32.gmra.mrb[0].mxu0 %v4872
    %v4984 = vpop.f32.mrb[0].mxu0
    %v4985 = vadd.f32 0.0, %v4984
    %v4986 = vpop.f32.mrb[0].mxu0
    %4987 = vmatprep.mubr.f32.mxu0 0.0
    %4988 = vmatmul.mubr.f32.gmra.mrb[0].mxu0 %v4875
    %v4989 = vpop.f32.mrb[0].mxu0
    %v4990 = vadd.f32 0.0, %v4989
    %v4991 = vpop.f32.mrb[0].mxu0
    %4992 = vmatprep.mubr.f32.mxu0 0.0
    %4993 = vmatmul.mubr.f32.gmra.mrb[0].mxu0 %v4878
    %v4994 = vpop.f32.mrb[0].mxu0
    %v4995 = vadd.f32 0.0, %v4994
    %v4996 = vpop.f32.mrb[0].mxu0
    %4997 = vmatprep.mubr.f32.mxu0 0.0
    %4998 = vmatmul.mubr.f32.gmra.mrb[0].mxu0 %v4881
    %v4999 = vpop.f32.mrb[0].mxu0
    %v5000 = vadd.f32 0.0, %v4999
    %v5001 = vpop.f32.mrb[0].mxu0
    %5002 = vmatprep.mubr.f32.mxu0 0.0
    %5003 = vmatmul.mubr.f32.gmra.mrb[0].mxu0 %v4884
    %v5004 = vpop.f32.mrb[0].mxu0
    %v5005 = vadd.f32 0.0, %v5004
    %v5006 = vpop.f32.mrb[0].mxu0
    %5007 = vmatprep.mubr.f32.mxu0 0.0
    %5008 = vmatmul.mubr.f32.gmra.mrb[0].mxu0 %v4887
    %v5009 = vpop.f32.mrb[0].mxu0
    %v5010 = vadd.f32 0.0, %v5009
    %v5011 = vpop.f32.mrb[0].mxu0
    %5012 = vmatprep.mubr.f32.mxu0 0.0
    %5013 = vmatmul.mubr.f32.gmra.mrb[0].mxu0 %v4890
    %v5014 = vpop.f32.mrb[0].mxu0
    %v5015 = vadd.f32 0.0, %v5014
    %v5016 = vpop.f32.mrb[0].mxu0
    %5017 = vmatprep.mubr.f32.mxu0 0.0
    %5018 = vmatmul.mubr.f32.gmra.mrb[0].mxu0 %v4893
    %v5019 = vpop.f32.mrb[0].mxu0
    %v5020 = vadd.f32 0.0, %v5019
    %v5021 = vpop.f32.mrb[0].mxu0
    %5022 = vmatprep.mubr.f32.mxu0 0.0
    %5023 = vmatmul.mubr.f32.gmra.mrb[0].mxu0 %v4896
    %v5024 = vpop.f32.mrb[0].mxu0
    %v5025 = vadd.f32 0.0, %v5024
    %v5026 = vpop.f32.mrb[0].mxu0
    %5027 = vdwg.mxu0
    %v5028 = vadd.f32 %v4824, %v4965
    %v5029 = vadd.f32 %v4825, %v4970
    %v5030 = vadd.f32 %v4826, %v4975
    %v5031 = vadd.f32 %v4827, %v4980
    %v5032 = vadd.f32 %v4828, %v4985
    %v5033 = vadd.f32 %v4829, %v4990
    %v5034 = vadd.f32 %v4830, %v4995
    %v5035 = vadd.f32 %v4831, %v5000
    %v5036 = vadd.f32 %v4832, %v5005
    %v5037 = vadd.f32 %v4833, %v5010
    %v5038 = vadd.f32 %v4834, %v5015
    %v5039 = vadd.f32 %v4835, %v5020
    %v5040 = vadd.f32 %v4836, %v5025
    %v5041 = vld [vmem:[#allocation4 + $0x9] sm:$0xff]
    %v5042 = vld [vmem:[#allocation4 + $0x11] sm:$0xff]
    %v5043 = vld [vmem:[#allocation4 + $0x19] sm:$0xff]
    %v5044 = vld [vmem:[#allocation4 + $0x21] sm:$0xff]
    %v5045 = vld [vmem:[#allocation4 + $0x29] sm:$0xff]
    %v5046 = vld [vmem:[#allocation4 + $0x31] sm:$0xff]
    %v5047 = vld [vmem:[#allocation4 + $0x39] sm:$0xff]
    %v5048 = vld [vmem:[#allocation4 + $0x41] sm:$0xff]
    %v5049 = vld [vmem:[#allocation4 + $0x49] sm:$0xff]
    %v5050 = vld [vmem:[#allocation4 + $0x51] sm:$0xff]
    %v5051 = vld [vmem:[#allocation4 + $0x59] sm:$0xff]
    %v5052 = vld [vmem:[#allocation4 + $0x61] sm:$0xff]
    %v5053 = vld [vmem:[#allocation4 + $0x69] sm:$0x3]
    %s5054 = scalar_lea.vmem [#allocation5], 320
    %v5055 = vld [vmem:[%s5054] sm:$0xff]
    %v5056 = vld [vmem:[%s5054 + $0x8] sm:$0xff]
    %v5057 = vld [vmem:[%s5054 + $0x10] sm:$0xff]
    %v5058 = vld [vmem:[%s5054 + $0x18] sm:$0xff]
    %v5059 = vld [vmem:[%s5054 + $0x20] sm:$0xff]
    %v5060 = vld [vmem:[%s5054 + $0x28] sm:$0xff]
    %v5061 = vld [vmem:[%s5054 + $0x30] sm:$0xff]
    %v5062 = vld [vmem:[%s5054 + $0x38] sm:$0xff]
    %v5064 = vsel %vm4031, %v5041, 0
    %v5067 = vsel %vm4031, %v5042, 0
    %v5070 = vsel %vm4031, %v5043, 0
    %v5073 = vsel %vm4031, %v5044, 0
    %v5076 = vsel %vm4031, %v5045, 0
    %v5079 = vsel %vm4031, %v5046, 0
    %v5082 = vsel %vm4031, %v5047, 0
    %v5085 = vsel %vm4031, %v5048, 0
    %v5088 = vsel %vm4031, %v5049, 0
    %v5091 = vsel %vm4031, %v5050, 0
    %v5094 = vsel %vm4031, %v5051, 0
    %v5097 = vsel %vm4031, %v5052, 0
    %v5100 = vsel %vm4031, %v5053, 0
    %5102 = vmatprep.subr.mxu0 0.0
    %5103 = vmatpush1.msra.mxu0 %v5055
    %5104 = vmatprep.subr.mxu0 0.0
    %5105 = vmatpush1.msra.mxu0 %v5056
    %5106 = vmatprep.subr.mxu0 0.0
    %5107 = vmatpush1.msra.mxu0 %v5057
    %5108 = vmatprep.subr.mxu0 0.0
    %5109 = vmatpush1.msra.mxu0 %v5058
    %5110 = vmatprep.subr.mxu0 0.0
    %5111 = vmatpush1.msra.mxu0 %v5059
    %5112 = vmatprep.subr.mxu0 0.0
    %5113 = vmatpush1.msra.mxu0 %v5060
    %5114 = vmatprep.subr.mxu0 0.0
    %5115 = vmatpush1.msra.mxu0 %v5061
    %5116 = vmatprep.subr.mxu0 0.0
    %5117 = vmatpush1.msra.mxu0 %v5062
    %5118 = vmatprep.subr.mxu0 0.0
    %5119 = vmatpush1.msra.mxu0 0.0
    %5120 = vmatprep.subr.mxu0 0.0
    %5121 = vmatpush1.msra.mxu0 0.0
    %5122 = vmatprep.subr.mxu0 0.0
    %5123 = vmatpush1.msra.mxu0 0.0
    %5124 = vmatprep.subr.mxu0 0.0
    %5125 = vmatpush1.msra.mxu0 0.0
    %5126 = vmatprep.subr.mxu0 0.0
    %5127 = vmatpush1.msra.mxu0 0.0
    %5128 = vmatprep.subr.mxu0 0.0
    %5129 = vmatpush1.msra.mxu0 0.0
    %5130 = vmatprep.subr.mxu0 0.0
    %5131 = vmatpush1.msra.mxu0 0.0
    %5132 = vmatprep.subr.mxu0 0.0
    %5133 = vmatpush1.msra.mxu0 0.0
    %5134 = vmatprep.subr.mxu0 0.0
    %5135 = vmatpush1.msra.mxu0 0.0
    %5136 = vmatprep.subr.mxu0 0.0
    %5137 = vmatpush1.msra.mxu0 0.0
    %5138 = vmatprep.subr.mxu0 0.0
    %5139 = vmatpush1.msra.mxu0 0.0
    %5140 = vmatprep.subr.mxu0 0.0
    %5141 = vmatpush1.msra.mxu0 0.0
    %5142 = vmatprep.subr.mxu0 0.0
    %5143 = vmatpush1.msra.mxu0 0.0
    %5144 = vmatprep.subr.mxu0 0.0
    %5145 = vmatpush1.msra.mxu0 0.0
    %5146 = vmatprep.subr.mxu0 0.0
    %5147 = vmatpush1.msra.mxu0 0.0
    %5148 = vmatprep.subr.mxu0 0.0
    %5149 = vmatpush1.msra.mxu0 0.0
    %5150 = vmatprep.subr.mxu0 0.0
    %5151 = vmatpush1.msra.mxu0 0.0
    %5152 = vmatprep.subr.mxu0 0.0
    %5153 = vmatpush1.msra.mxu0 0.0
    %5154 = vmatprep.subr.mxu0 0.0
    %5155 = vmatpush1.msra.mxu0 0.0
    %5156 = vmatprep.subr.mxu0 0.0
    %5157 = vmatpush1.msra.mxu0 0.0
    %5158 = vmatprep.subr.mxu0 0.0
    %5159 = vmatpush1.msra.mxu0 0.0
    %5160 = vmatprep.subr.mxu0 0.0
    %5161 = vmatpush1.msra.mxu0 0.0
    %5162 = vmatprep.subr.mxu0 0.0
    %5163 = vmatpush1.msra.mxu0 0.0
    %5164 = vmatprep.subr.mxu0 0.0
    %5165 = vmatpush1.msra.mxu0 0.0
    %5166 = vmatprep.mubr.f32.mxu0 0.0
    %5167 = vmatmul.mubr.f32.gmra.mrb[0].mxu0 %v5064
    %v5168 = vpop.f32.mrb[0].mxu0
    %v5169 = vadd.f32 0.0, %v5168
    %v5170 = vpop.f32.mrb[0].mxu0
    %5171 = vmatprep.mubr.f32.mxu0 0.0
    %5172 = vmatmul.mubr.f32.gmra.mrb[0].mxu0 %v5067
    %v5173 = vpop.f32.mrb[0].mxu0
    %v5174 = vadd.f32 0.0, %v5173
    %v5175 = vpop.f32.mrb[0].mxu0
    %5176 = vmatprep.mubr.f32.mxu0 0.0
    %5177 = vmatmul.mubr.f32.gmra.mrb[0].mxu0 %v5070
    %v5178 = vpop.f32.mrb[0].mxu0
    %v5179 = vadd.f32 0.0, %v5178
    %v5180 = vpop.f32.mrb[0].mxu0
    %5181 = vmatprep.mubr.f32.mxu0 0.0
    %5182 = vmatmul.mubr.f32.gmra.mrb[0].mxu0 %v5073
    %v5183 = vpop.f32.mrb[0].mxu0
    %v5184 = vadd.f32 0.0, %v5183
    %v5185 = vpop.f32.mrb[0].mxu0
    %5186 = vmatprep.mubr.f32.mxu0 0.0
    %5187 = vmatmul.mubr.f32.gmra.mrb[0].mxu0 %v5076
    %v5188 = vpop.f32.mrb[0].mxu0
    %v5189 = vadd.f32 0.0, %v5188
    %v5190 = vpop.f32.mrb[0].mxu0
    %5191 = vmatprep.mubr.f32.mxu0 0.0
    %5192 = vmatmul.mubr.f32.gmra.mrb[0].mxu0 %v5079
    %v5193 = vpop.f32.mrb[0].mxu0
    %v5194 = vadd.f32 0.0, %v5193
    %v5195 = vpop.f32.mrb[0].mxu0
    %5196 = vmatprep.mubr.f32.mxu0 0.0
    %5197 = vmatmul.mubr.f32.gmra.mrb[0].mxu0 %v5082
    %v5198 = vpop.f32.mrb[0].mxu0
    %v5199 = vadd.f32 0.0, %v5198
    %v5200 = vpop.f32.mrb[0].mxu0
    %5201 = vmatprep.mubr.f32.mxu0 0.0
    %5202 = vmatmul.mubr.f32.gmra.mrb[0].mxu0 %v5085
    %v5203 = vpop.f32.mrb[0].mxu0
    %v5204 = vadd.f32 0.0, %v5203
    %v5205 = vpop.f32.mrb[0].mxu0
    %5206 = vmatprep.mubr.f32.mxu0 0.0
    %5207 = vmatmul.mubr.f32.gmra.mrb[0].mxu0 %v5088
    %v5208 = vpop.f32.mrb[0].mxu0
    %v5209 = vadd.f32 0.0, %v5208
    %v5210 = vpop.f32.mrb[0].mxu0
    %5211 = vmatprep.mubr.f32.mxu0 0.0
    %5212 = vmatmul.mubr.f32.gmra.mrb[0].mxu0 %v5091
    %v5213 = vpop.f32.mrb[0].mxu0
    %v5214 = vadd.f32 0.0, %v5213
    %v5215 = vpop.f32.mrb[0].mxu0
    %5216 = vmatprep.mubr.f32.mxu0 0.0
    %5217 = vmatmul.mubr.f32.gmra.mrb[0].mxu0 %v5094
    %v5218 = vpop.f32.mrb[0].mxu0
    %v5219 = vadd.f32 0.0, %v5218
    %v5220 = vpop.f32.mrb[0].mxu0
    %5221 = vmatprep.mubr.f32.mxu0 0.0
    %5222 = vmatmul.mubr.f32.gmra.mrb[0].mxu0 %v5097
    %v5223 = vpop.f32.mrb[0].mxu0
    %v5224 = vadd.f32 0.0, %v5223
    %v5225 = vpop.f32.mrb[0].mxu0
    %5226 = vmatprep.mubr.f32.mxu0 0.0
    %5227 = vmatmul.mubr.f32.gmra.mrb[0].mxu0 %v5100
    %v5228 = vpop.f32.mrb[0].mxu0
    %v5229 = vadd.f32 0.0, %v5228
    %v5230 = vpop.f32.mrb[0].mxu0
    %5231 = vdwg.mxu0
    %v5232 = vadd.f32 %v5028, %v5169
    %v5233 = vadd.f32 %v5029, %v5174
    %v5234 = vadd.f32 %v5030, %v5179
    %v5235 = vadd.f32 %v5031, %v5184
    %v5236 = vadd.f32 %v5032, %v5189
    %v5237 = vadd.f32 %v5033, %v5194
    %v5238 = vadd.f32 %v5034, %v5199
    %v5239 = vadd.f32 %v5035, %v5204
    %v5240 = vadd.f32 %v5036, %v5209
    %v5241 = vadd.f32 %v5037, %v5214
    %v5242 = vadd.f32 %v5038, %v5219
    %v5243 = vadd.f32 %v5039, %v5224
    %v5244 = vadd.f32 %v5040, %v5229
    %v5245 = vld [vmem:[#allocation4 + $0xe] sm:$0xff]
    %v5246 = vld [vmem:[#allocation4 + $0x16] sm:$0xff]
    %v5247 = vld [vmem:[#allocation4 + $0x1e] sm:$0xff]
    %v5248 = vld [vmem:[#allocation4 + $0x26] sm:$0xff]
    %v5249 = vld [vmem:[#allocation4 + $0x2e] sm:$0xff]
    %v5250 = vld [vmem:[#allocation4 + $0x36] sm:$0xff]
    %v5251 = vld [vmem:[#allocation4 + $0x3e] sm:$0xff]
    %v5252 = vld [vmem:[#allocation4 + $0x46] sm:$0xff]
    %v5253 = vld [vmem:[#allocation4 + $0x4e] sm:$0xff]
    %v5254 = vld [vmem:[#allocation4 + $0x56] sm:$0xff]
    %v5255 = vld [vmem:[#allocation4 + $0x5e] sm:$0xff]
    %v5256 = vld [vmem:[#allocation4 + $0x66] sm:$0xff]
    %v5257 = vld [vmem:[#allocation4 + $0x6e] sm:$0x3]
    %s5258 = scalar_lea.vmem [#allocation5], 384
    %v5259 = vld [vmem:[%s5258] sm:$0xff]
    %v5260 = vld [vmem:[%s5258 + $0x8] sm:$0xff]
    %v5261 = vld [vmem:[%s5258 + $0x10] sm:$0xff]
    %v5262 = vld [vmem:[%s5258 + $0x18] sm:$0xff]
    %v5263 = vld [vmem:[%s5258 + $0x20] sm:$0xff]
    %v5264 = vld [vmem:[%s5258 + $0x28] sm:$0xff]
    %v5265 = vld [vmem:[%s5258 + $0x30] sm:$0xff]
    %v5266 = vld [vmem:[%s5258 + $0x38] sm:$0xff]
    %v5268 = vsel %vm4031, %v5245, 0
    %v5271 = vsel %vm4031, %v5246, 0
    %v5274 = vsel %vm4031, %v5247, 0
    %v5277 = vsel %vm4031, %v5248, 0
    %v5280 = vsel %vm4031, %v5249, 0
    %v5283 = vsel %vm4031, %v5250, 0
    %v5286 = vsel %vm4031, %v5251, 0
    %v5289 = vsel %vm4031, %v5252, 0
    %v5292 = vsel %vm4031, %v5253, 0
    %v5295 = vsel %vm4031, %v5254, 0
    %v5298 = vsel %vm4031, %v5255, 0
    %v5301 = vsel %vm4031, %v5256, 0
    %v5304 = vsel %vm4031, %v5257, 0
    %5306 = vmatprep.subr.mxu0 0.0
    %5307 = vmatpush1.msra.mxu0 %v5259
    %5308 = vmatprep.subr.mxu0 0.0
    %5309 = vmatpush1.msra.mxu0 %v5260
    %5310 = vmatprep.subr.mxu0 0.0
    %5311 = vmatpush1.msra.mxu0 %v5261
    %5312 = vmatprep.subr.mxu0 0.0
    %5313 = vmatpush1.msra.mxu0 %v5262
    %5314 = vmatprep.subr.mxu0 0.0
    %5315 = vmatpush1.msra.mxu0 %v5263
    %5316 = vmatprep.subr.mxu0 0.0
    %5317 = vmatpush1.msra.mxu0 %v5264
    %5318 = vmatprep.subr.mxu0 0.0
    %5319 = vmatpush1.msra.mxu0 %v5265
    %5320 = vmatprep.subr.mxu0 0.0
    %5321 = vmatpush1.msra.mxu0 %v5266
    %5322 = vmatprep.subr.mxu0 0.0
    %5323 = vmatpush1.msra.mxu0 0.0
    %5324 = vmatprep.subr.mxu0 0.0
    %5325 = vmatpush1.msra.mxu0 0.0
    %5326 = vmatprep.subr.mxu0 0.0
    %5327 = vmatpush1.msra.mxu0 0.0
    %5328 = vmatprep.subr.mxu0 0.0
    %5329 = vmatpush1.msra.mxu0 0.0
    %5330 = vmatprep.subr.mxu0 0.0
    %5331 = vmatpush1.msra.mxu0 0.0
    %5332 = vmatprep.subr.mxu0 0.0
    %5333 = vmatpush1.msra.mxu0 0.0
    %5334 = vmatprep.subr.mxu0 0.0
    %5335 = vmatpush1.msra.mxu0 0.0
    %5336 = vmatprep.subr.mxu0 0.0
    %5337 = vmatpush1.msra.mxu0 0.0
    %5338 = vmatprep.subr.mxu0 0.0
    %5339 = vmatpush1.msra.mxu0 0.0
    %5340 = vmatprep.subr.mxu0 0.0
    %5341 = vmatpush1.msra.mxu0 0.0
    %5342 = vmatprep.subr.mxu0 0.0
    %5343 = vmatpush1.msra.mxu0 0.0
    %5344 = vmatprep.subr.mxu0 0.0
    %5345 = vmatpush1.msra.mxu0 0.0
    %5346 = vmatprep.subr.mxu0 0.0
    %5347 = vmatpush1.msra.mxu0 0.0
    %5348 = vmatprep.subr.mxu0 0.0
    %5349 = vmatpush1.msra.mxu0 0.0
    %5350 = vmatprep.subr.mxu0 0.0
    %5351 = vmatpush1.msra.mxu0 0.0
    %5352 = vmatprep.subr.mxu0 0.0
    %5353 = vmatpush1.msra.mxu0 0.0
    %5354 = vmatprep.subr.mxu0 0.0
    %5355 = vmatpush1.msra.mxu0 0.0
    %5356 = vmatprep.subr.mxu0 0.0
    %5357 = vmatpush1.msra.mxu0 0.0
    %5358 = vmatprep.subr.mxu0 0.0
    %5359 = vmatpush1.msra.mxu0 0.0
    %5360 = vmatprep.subr.mxu0 0.0
    %5361 = vmatpush1.msra.mxu0 0.0
    %5362 = vmatprep.subr.mxu0 0.0
    %5363 = vmatpush1.msra.mxu0 0.0
    %5364 = vmatprep.subr.mxu0 0.0
    %5365 = vmatpush1.msra.mxu0 0.0
    %5366 = vmatprep.subr.mxu0 0.0
    %5367 = vmatpush1.msra.mxu0 0.0
    %5368 = vmatprep.subr.mxu0 0.0
    %5369 = vmatpush1.msra.mxu0 0.0
    %5370 = vmatprep.mubr.f32.mxu0 0.0
    %5371 = vmatmul.mubr.f32.gmra.mrb[0].mxu0 %v5268
    %v5372 = vpop.f32.mrb[0].mxu0
    %v5373 = vadd.f32 0.0, %v5372
    %v5374 = vpop.f32.mrb[0].mxu0
    %5375 = vmatprep.mubr.f32.mxu0 0.0
    %5376 = vmatmul.mubr.f32.gmra.mrb[0].mxu0 %v5271
    %v5377 = vpop.f32.mrb[0].mxu0
    %v5378 = vadd.f32 0.0, %v5377
    %v5379 = vpop.f32.mrb[0].mxu0
    %5380 = vmatprep.mubr.f32.mxu0 0.0
    %5381 = vmatmul.mubr.f32.gmra.mrb[0].mxu0 %v5274
    %v5382 = vpop.f32.mrb[0].mxu0
    %v5383 = vadd.f32 0.0, %v5382
    %v5384 = vpop.f32.mrb[0].mxu0
    %5385 = vmatprep.mubr.f32.mxu0 0.0
    %5386 = vmatmul.mubr.f32.gmra.mrb[0].mxu0 %v5277
    %v5387 = vpop.f32.mrb[0].mxu0
    %v5388 = vadd.f32 0.0, %v5387
    %v5389 = vpop.f32.mrb[0].mxu0
    %5390 = vmatprep.mubr.f32.mxu0 0.0
    %5391 = vmatmul.mubr.f32.gmra.mrb[0].mxu0 %v5280
    %v5392 = vpop.f32.mrb[0].mxu0
    %v5393 = vadd.f32 0.0, %v5392
    %v5394 = vpop.f32.mrb[0].mxu0
    %5395 = vmatprep.mubr.f32.mxu0 0.0
    %5396 = vmatmul.mubr.f32.gmra.mrb[0].mxu0 %v5283
    %v5397 = vpop.f32.mrb[0].mxu0
    %v5398 = vadd.f32 0.0, %v5397
    %v5399 = vpop.f32.mrb[0].mxu0
    %5400 = vmatprep.mubr.f32.mxu0 0.0
    %5401 = vmatmul.mubr.f32.gmra.mrb[0].mxu0 %v5286
    %v5402 = vpop.f32.mrb[0].mxu0
    %v5403 = vadd.f32 0.0, %v5402
    %v5404 = vpop.f32.mrb[0].mxu0
    %5405 = vmatprep.mubr.f32.mxu0 0.0
    %5406 = vmatmul.mubr.f32.gmra.mrb[0].mxu0 %v5289
    %v5407 = vpop.f32.mrb[0].mxu0
    %v5408 = vadd.f32 0.0, %v5407
    %v5409 = vpop.f32.mrb[0].mxu0
    %5410 = vmatprep.mubr.f32.mxu0 0.0
    %5411 = vmatmul.mubr.f32.gmra.mrb[0].mxu0 %v5292
    %v5412 = vpop.f32.mrb[0].mxu0
    %v5413 = vadd.f32 0.0, %v5412
    %v5414 = vpop.f32.mrb[0].mxu0
    %5415 = vmatprep.mubr.f32.mxu0 0.0
    %5416 = vmatmul.mubr.f32.gmra.mrb[0].mxu0 %v5295
    %v5417 = vpop.f32.mrb[0].mxu0
    %v5418 = vadd.f32 0.0, %v5417
    %v5419 = vpop.f32.mrb[0].mxu0
    %5420 = vmatprep.mubr.f32.mxu0 0.0
    %5421 = vmatmul.mubr.f32.gmra.mrb[0].mxu0 %v5298
    %v5422 = vpop.f32.mrb[0].mxu0
    %v5423 = vadd.f32 0.0, %v5422
    %v5424 = vpop.f32.mrb[0].mxu0
    %5425 = vmatprep.mubr.f32.mxu0 0.0
    %5426 = vmatmul.mubr.f32.gmra.mrb[0].mxu0 %v5301
    %v5427 = vpop.f32.mrb[0].mxu0
    %v5428 = vadd.f32 0.0, %v5427
    %v5429 = vpop.f32.mrb[0].mxu0
    %5430 = vmatprep.mubr.f32.mxu0 0.0
    %5431 = vmatmul.mubr.f32.gmra.mrb[0].mxu0 %v5304
    %v5432 = vpop.f32.mrb[0].mxu0
    %v5433 = vadd.f32 0.0, %v5432
    %v5434 = vpop.f32.mrb[0].mxu0
    %5435 = vdwg.mxu0
    %v5436 = vadd.f32 %v5232, %v5373
    %v5437 = vadd.f32 %v5233, %v5378
    %v5438 = vadd.f32 %v5234, %v5383
    %v5439 = vadd.f32 %v5235, %v5388
    %v5440 = vadd.f32 %v5236, %v5393
    %v5441 = vadd.f32 %v5237, %v5398
    %v5442 = vadd.f32 %v5238, %v5403
    %v5443 = vadd.f32 %v5239, %v5408
    %v5444 = vadd.f32 %v5240, %v5413
    %v5445 = vadd.f32 %v5241, %v5418
    %v5446 = vadd.f32 %v5242, %v5423
    %v5447 = vadd.f32 %v5243, %v5428
    %v5448 = vadd.f32 %v5244, %v5433
    %v5449 = vld [vmem:[#allocation4 + $0xf] sm:$0xff]
    %v5450 = vld [vmem:[#allocation4 + $0x17] sm:$0xff]
    %v5451 = vld [vmem:[#allocation4 + $0x1f] sm:$0xff]
    %v5452 = vld [vmem:[#allocation4 + $0x27] sm:$0xff]
    %v5453 = vld [vmem:[#allocation4 + $0x2f] sm:$0xff]
    %v5454 = vld [vmem:[#allocation4 + $0x37] sm:$0xff]
    %v5455 = vld [vmem:[#allocation4 + $0x3f] sm:$0xff]
    %v5456 = vld [vmem:[#allocation4 + $0x47] sm:$0xff]
    %v5457 = vld [vmem:[#allocation4 + $0x4f] sm:$0xff]
    %v5458 = vld [vmem:[#allocation4 + $0x57] sm:$0xff]
    %v5459 = vld [vmem:[#allocation4 + $0x5f] sm:$0xff]
    %v5460 = vld [vmem:[#allocation4 + $0x67] sm:$0xff]
    %v5461 = vld [vmem:[#allocation4 + $0x6f] sm:$0x3]
    %s5462 = scalar_lea.vmem [#allocation5], 448
    %v5463 = vld [vmem:[%s5462] sm:$0xff]
    %v5464 = vld [vmem:[%s5462 + $0x8] sm:$0xff]
    %v5465 = vld [vmem:[%s5462 + $0x10] sm:$0xff]
    %v5466 = vld [vmem:[%s5462 + $0x18] sm:$0xff]
    %v5467 = vld [vmem:[%s5462 + $0x20] sm:$0xff]
    %v5468 = vld [vmem:[%s5462 + $0x28] sm:$0xff]
    %v5469 = vld [vmem:[%s5462 + $0x30] sm:$0xff]
    %v5470 = vld [vmem:[%s5462 + $0x38] sm:$0xff]
    %v5472 = vsel %vm4031, %v5449, 0
    %v5475 = vsel %vm4031, %v5450, 0
    %v5478 = vsel %vm4031, %v5451, 0
    %v5481 = vsel %vm4031, %v5452, 0
    %v5484 = vsel %vm4031, %v5453, 0
    %v5487 = vsel %vm4031, %v5454, 0
    %v5490 = vsel %vm4031, %v5455, 0
    %v5493 = vsel %vm4031, %v5456, 0
    %v5496 = vsel %vm4031, %v5457, 0
    %v5499 = vsel %vm4031, %v5458, 0
    %v5502 = vsel %vm4031, %v5459, 0
    %v5505 = vsel %vm4031, %v5460, 0
    %v5508 = vsel %vm4031, %v5461, 0
    %5510 = vmatprep.subr.mxu0 0.0
    %5511 = vmatpush1.msra.mxu0 %v5463
    %5512 = vmatprep.subr.mxu0 0.0
    %5513 = vmatpush1.msra.mxu0 %v5464
    %5514 = vmatprep.subr.mxu0 0.0
    %5515 = vmatpush1.msra.mxu0 %v5465
    %5516 = vmatprep.subr.mxu0 0.0
    %5517 = vmatpush1.msra.mxu0 %v5466
    %5518 = vmatprep.subr.mxu0 0.0
    %5519 = vmatpush1.msra.mxu0 %v5467
    %5520 = vmatprep.subr.mxu0 0.0
    %5521 = vmatpush1.msra.mxu0 %v5468
    %5522 = vmatprep.subr.mxu0 0.0
    %5523 = vmatpush1.msra.mxu0 %v5469
    %5524 = vmatprep.subr.mxu0 0.0
    %5525 = vmatpush1.msra.mxu0 %v5470
    %5526 = vmatprep.subr.mxu0 0.0
    %5527 = vmatpush1.msra.mxu0 0.0
    %5528 = vmatprep.subr.mxu0 0.0
    %5529 = vmatpush1.msra.mxu0 0.0
    %5530 = vmatprep.subr.mxu0 0.0
    %5531 = vmatpush1.msra.mxu0 0.0
    %5532 = vmatprep.subr.mxu0 0.0
    %5533 = vmatpush1.msra.mxu0 0.0
    %5534 = vmatprep.subr.mxu0 0.0
    %5535 = vmatpush1.msra.mxu0 0.0
    %5536 = vmatprep.subr.mxu0 0.0
    %5537 = vmatpush1.msra.mxu0 0.0
    %5538 = vmatprep.subr.mxu0 0.0
    %5539 = vmatpush1.msra.mxu0 0.0
    %5540 = vmatprep.subr.mxu0 0.0
    %5541 = vmatpush1.msra.mxu0 0.0
    %5542 = vmatprep.subr.mxu0 0.0
    %5543 = vmatpush1.msra.mxu0 0.0
    %5544 = vmatprep.subr.mxu0 0.0
    %5545 = vmatpush1.msra.mxu0 0.0
    %5546 = vmatprep.subr.mxu0 0.0
    %5547 = vmatpush1.msra.mxu0 0.0
    %5548 = vmatprep.subr.mxu0 0.0
    %5549 = vmatpush1.msra.mxu0 0.0
    %5550 = vmatprep.subr.mxu0 0.0
    %5551 = vmatpush1.msra.mxu0 0.0
    %5552 = vmatprep.subr.mxu0 0.0
    %5553 = vmatpush1.msra.mxu0 0.0
    %5554 = vmatprep.subr.mxu0 0.0
    %5555 = vmatpush1.msra.mxu0 0.0
    %5556 = vmatprep.subr.mxu0 0.0
    %5557 = vmatpush1.msra.mxu0 0.0
    %5558 = vmatprep.subr.mxu0 0.0
    %5559 = vmatpush1.msra.mxu0 0.0
    %5560 = vmatprep.subr.mxu0 0.0
    %5561 = vmatpush1.msra.mxu0 0.0
    %5562 = vmatprep.subr.mxu0 0.0
    %5563 = vmatpush1.msra.mxu0 0.0
    %5564 = vmatprep.subr.mxu0 0.0
    %5565 = vmatpush1.msra.mxu0 0.0
    %5566 = vmatprep.subr.mxu0 0.0
    %5567 = vmatpush1.msra.mxu0 0.0
    %5568 = vmatprep.subr.mxu0 0.0
    %5569 = vmatpush1.msra.mxu0 0.0
    %5570 = vmatprep.subr.mxu0 0.0
    %5571 = vmatpush1.msra.mxu0 0.0
    %5572 = vmatprep.subr.mxu0 0.0
    %5573 = vmatpush1.msra.mxu0 0.0
    %5574 = vmatprep.mubr.f32.mxu0 0.0
    %5575 = vmatmul.mubr.f32.gmra.mrb[0].mxu0 %v5472
    %v5576 = vpop.f32.mrb[0].mxu0
    %v5577 = vadd.f32 0.0, %v5576
    %v5578 = vpop.f32.mrb[0].mxu0
    %5579 = vmatprep.mubr.f32.mxu0 0.0
    %5580 = vmatmul.mubr.f32.gmra.mrb[0].mxu0 %v5475
    %v5581 = vpop.f32.mrb[0].mxu0
    %v5582 = vadd.f32 0.0, %v5581
    %v5583 = vpop.f32.mrb[0].mxu0
    %5584 = vmatprep.mubr.f32.mxu0 0.0
    %5585 = vmatmul.mubr.f32.gmra.mrb[0].mxu0 %v5478
    %v5586 = vpop.f32.mrb[0].mxu0
    %v5587 = vadd.f32 0.0, %v5586
    %v5588 = vpop.f32.mrb[0].mxu0
    %5589 = vmatprep.mubr.f32.mxu0 0.0
    %5590 = vmatmul.mubr.f32.gmra.mrb[0].mxu0 %v5481
    %v5591 = vpop.f32.mrb[0].mxu0
    %v5592 = vadd.f32 0.0, %v5591
    %v5593 = vpop.f32.mrb[0].mxu0
    %5594 = vmatprep.mubr.f32.mxu0 0.0
    %5595 = vmatmul.mubr.f32.gmra.mrb[0].mxu0 %v5484
    %v5596 = vpop.f32.mrb[0].mxu0
    %v5597 = vadd.f32 0.0, %v5596
    %v5598 = vpop.f32.mrb[0].mxu0
    %5599 = vmatprep.mubr.f32.mxu0 0.0
    %5600 = vmatmul.mubr.f32.gmra.mrb[0].mxu0 %v5487
    %v5601 = vpop.f32.mrb[0].mxu0
    %v5602 = vadd.f32 0.0, %v5601
    %v5603 = vpop.f32.mrb[0].mxu0
    %5604 = vmatprep.mubr.f32.mxu0 0.0
    %5605 = vmatmul.mubr.f32.gmra.mrb[0].mxu0 %v5490
    %v5606 = vpop.f32.mrb[0].mxu0
    %v5607 = vadd.f32 0.0, %v5606
    %v5608 = vpop.f32.mrb[0].mxu0
    %5609 = vmatprep.mubr.f32.mxu0 0.0
    %5610 = vmatmul.mubr.f32.gmra.mrb[0].mxu0 %v5493
    %v5611 = vpop.f32.mrb[0].mxu0
    %v5612 = vadd.f32 0.0, %v5611
    %v5613 = vpop.f32.mrb[0].mxu0
    %5614 = vmatprep.mubr.f32.mxu0 0.0
    %5615 = vmatmul.mubr.f32.gmra.mrb[0].mxu0 %v5496
    %v5616 = vpop.f32.mrb[0].mxu0
    %v5617 = vadd.f32 0.0, %v5616
    %v5618 = vpop.f32.mrb[0].mxu0
    %5619 = vmatprep.mubr.f32.mxu0 0.0
    %5620 = vmatmul.mubr.f32.gmra.mrb[0].mxu0 %v5499
    %v5621 = vpop.f32.mrb[0].mxu0
    %v5622 = vadd.f32 0.0, %v5621
    %v5623 = vpop.f32.mrb[0].mxu0
    %5624 = vmatprep.mubr.f32.mxu0 0.0
    %5625 = vmatmul.mubr.f32.gmra.mrb[0].mxu0 %v5502
    %v5626 = vpop.f32.mrb[0].mxu0
    %v5627 = vadd.f32 0.0, %v5626
    %v5628 = vpop.f32.mrb[0].mxu0
    %5629 = vmatprep.mubr.f32.mxu0 0.0
    %5630 = vmatmul.mubr.f32.gmra.mrb[0].mxu0 %v5505
    %v5631 = vpop.f32.mrb[0].mxu0
    %v5632 = vadd.f32 0.0, %v5631
    %v5633 = vpop.f32.mrb[0].mxu0
    %5634 = vmatprep.mubr.f32.mxu0 0.0
    %5635 = vmatmul.mubr.f32.gmra.mrb[0].mxu0 %v5508
    %v5636 = vpop.f32.mrb[0].mxu0
    %v5637 = vadd.f32 0.0, %v5636
    %v5638 = vpop.f32.mrb[0].mxu0
    %5639 = vdwg.mxu0
    %v5640 = vadd.f32 %v5436, %v5577
    %v5641 = vadd.f32 %v5437, %v5582
    %v5642 = vadd.f32 %v5438, %v5587
    %v5643 = vadd.f32 %v5439, %v5592
    %v5644 = vadd.f32 %v5440, %v5597
    %v5645 = vadd.f32 %v5441, %v5602
    %v5646 = vadd.f32 %v5442, %v5607
    %v5647 = vadd.f32 %v5443, %v5612
    %v5648 = vadd.f32 %v5444, %v5617
    %v5649 = vadd.f32 %v5445, %v5622
    %v5650 = vadd.f32 %v5446, %v5627
    %v5651 = vadd.f32 %v5447, %v5632
    %v5652 = vadd.f32 %v5448, %v5637
    %v5653 = vld [vmem:[#allocation4 + $0x10] sm:$0xff]
    %v5654 = vld [vmem:[#allocation4 + $0x18] sm:$0xff]
    %v5655 = vld [vmem:[#allocation4 + $0x20] sm:$0xff]
    %v5656 = vld [vmem:[#allocation4 + $0x28] sm:$0xff]
    %v5657 = vld [vmem:[#allocation4 + $0x30] sm:$0xff]
    %v5658 = vld [vmem:[#allocation4 + $0x38] sm:$0xff]
    %v5659 = vld [vmem:[#allocation4 + $0x40] sm:$0xff]
    %v5660 = vld [vmem:[#allocation4 + $0x48] sm:$0xff]
    %v5661 = vld [vmem:[#allocation4 + $0x50] sm:$0xff]
    %v5662 = vld [vmem:[#allocation4 + $0x58] sm:$0xff]
    %v5663 = vld [vmem:[#allocation4 + $0x60] sm:$0xff]
    %v5664 = vld [vmem:[#allocation4 + $0x68] sm:$0xff]
    %v5665 = vld [vmem:[#allocation4 + $0x70] sm:$0x3]
    %s5666 = scalar_lea.vmem [#allocation5], 512
    %v5667 = vld [vmem:[%s5666] sm:$0xff]
    %v5668 = vld [vmem:[%s5666 + $0x8] sm:$0xff]
    %v5669 = vld [vmem:[%s5666 + $0x10] sm:$0xff]
    %v5670 = vld [vmem:[%s5666 + $0x18] sm:$0xff]
    %v5671 = vld [vmem:[%s5666 + $0x20] sm:$0xff]
    %v5672 = vld [vmem:[%s5666 + $0x28] sm:$0xff]
    %v5673 = vld [vmem:[%s5666 + $0x30] sm:$0xff]
    %v5674 = vld [vmem:[%s5666 + $0x38] sm:$0xff]
    %v5676 = vsel %vm4031, %v5653, 0
    %v5679 = vsel %vm4031, %v5654, 0
    %v5682 = vsel %vm4031, %v5655, 0
    %v5685 = vsel %vm4031, %v5656, 0
    %v5688 = vsel %vm4031, %v5657, 0
    %v5691 = vsel %vm4031, %v5658, 0
    %v5694 = vsel %vm4031, %v5659, 0
    %v5697 = vsel %vm4031, %v5660, 0
    %v5700 = vsel %vm4031, %v5661, 0
    %v5703 = vsel %vm4031, %v5662, 0
    %v5706 = vsel %vm4031, %v5663, 0
    %v5709 = vsel %vm4031, %v5664, 0
    %v5712 = vsel %vm4031, %v5665, 0
    %5714 = vmatprep.subr.mxu0 0.0
    %5715 = vmatpush1.msra.mxu0 %v5667
    %5716 = vmatprep.subr.mxu0 0.0
    %5717 = vmatpush1.msra.mxu0 %v5668
    %5718 = vmatprep.subr.mxu0 0.0
    %5719 = vmatpush1.msra.mxu0 %v5669
    %5720 = vmatprep.subr.mxu0 0.0
    %5721 = vmatpush1.msra.mxu0 %v5670
    %5722 = vmatprep.subr.mxu0 0.0
    %5723 = vmatpush1.msra.mxu0 %v5671
    %5724 = vmatprep.subr.mxu0 0.0
    %5725 = vmatpush1.msra.mxu0 %v5672
    %5726 = vmatprep.subr.mxu0 0.0
    %5727 = vmatpush1.msra.mxu0 %v5673
    %5728 = vmatprep.subr.mxu0 0.0
    %5729 = vmatpush1.msra.mxu0 %v5674
    %5730 = vmatprep.subr.mxu0 0.0
    %5731 = vmatpush1.msra.mxu0 0.0
    %5732 = vmatprep.subr.mxu0 0.0
    %5733 = vmatpush1.msra.mxu0 0.0
    %5734 = vmatprep.subr.mxu0 0.0
    %5735 = vmatpush1.msra.mxu0 0.0
    %5736 = vmatprep.subr.mxu0 0.0
    %5737 = vmatpush1.msra.mxu0 0.0
    %5738 = vmatprep.subr.mxu0 0.0
    %5739 = vmatpush1.msra.mxu0 0.0
    %5740 = vmatprep.subr.mxu0 0.0
    %5741 = vmatpush1.msra.mxu0 0.0
    %5742 = vmatprep.subr.mxu0 0.0
    %5743 = vmatpush1.msra.mxu0 0.0
    %5744 = vmatprep.subr.mxu0 0.0
    %5745 = vmatpush1.msra.mxu0 0.0
    %5746 = vmatprep.subr.mxu0 0.0
    %5747 = vmatpush1.msra.mxu0 0.0
    %5748 = vmatprep.subr.mxu0 0.0
    %5749 = vmatpush1.msra.mxu0 0.0
    %5750 = vmatprep.subr.mxu0 0.0
    %5751 = vmatpush1.msra.mxu0 0.0
    %5752 = vmatprep.subr.mxu0 0.0
    %5753 = vmatpush1.msra.mxu0 0.0
    %5754 = vmatprep.subr.mxu0 0.0
    %5755 = vmatpush1.msra.mxu0 0.0
    %5756 = vmatprep.subr.mxu0 0.0
    %5757 = vmatpush1.msra.mxu0 0.0
    %5758 = vmatprep.subr.mxu0 0.0
    %5759 = vmatpush1.msra.mxu0 0.0
    %5760 = vmatprep.subr.mxu0 0.0
    %5761 = vmatpush1.msra.mxu0 0.0
    %5762 = vmatprep.subr.mxu0 0.0
    %5763 = vmatpush1.msra.mxu0 0.0
    %5764 = vmatprep.subr.mxu0 0.0
    %5765 = vmatpush1.msra.mxu0 0.0
    %5766 = vmatprep.subr.mxu0 0.0
    %5767 = vmatpush1.msra.mxu0 0.0
    %5768 = vmatprep.subr.mxu0 0.0
    %5769 = vmatpush1.msra.mxu0 0.0
    %5770 = vmatprep.subr.mxu0 0.0
    %5771 = vmatpush1.msra.mxu0 0.0
    %5772 = vmatprep.subr.mxu0 0.0
    %5773 = vmatpush1.msra.mxu0 0.0
    %5774 = vmatprep.subr.mxu0 0.0
    %5775 = vmatpush1.msra.mxu0 0.0
    %5776 = vmatprep.subr.mxu0 0.0
    %5777 = vmatpush1.msra.mxu0 0.0
    %5778 = vmatprep.mubr.f32.mxu0 0.0
    %5779 = vmatmul.mubr.f32.gmra.mrb[0].mxu0 %v5676
    %v5780 = vpop.f32.mrb[0].mxu0
    %v5781 = vadd.f32 0.0, %v5780
    %v5782 = vpop.f32.mrb[0].mxu0
    %5783 = vmatprep.mubr.f32.mxu0 0.0
    %5784 = vmatmul.mubr.f32.gmra.mrb[0].mxu0 %v5679
    %v5785 = vpop.f32.mrb[0].mxu0
    %v5786 = vadd.f32 0.0, %v5785
    %v5787 = vpop.f32.mrb[0].mxu0
    %5788 = vmatprep.mubr.f32.mxu0 0.0
    %5789 = vmatmul.mubr.f32.gmra.mrb[0].mxu0 %v5682
    %v5790 = vpop.f32.mrb[0].mxu0
    %v5791 = vadd.f32 0.0, %v5790
    %v5792 = vpop.f32.mrb[0].mxu0
    %5793 = vmatprep.mubr.f32.mxu0 0.0
    %5794 = vmatmul.mubr.f32.gmra.mrb[0].mxu0 %v5685
    %v5795 = vpop.f32.mrb[0].mxu0
    %v5796 = vadd.f32 0.0, %v5795
    %v5797 = vpop.f32.mrb[0].mxu0
    %5798 = vmatprep.mubr.f32.mxu0 0.0
    %5799 = vmatmul.mubr.f32.gmra.mrb[0].mxu0 %v5688
    %v5800 = vpop.f32.mrb[0].mxu0
    %v5801 = vadd.f32 0.0, %v5800
    %v5802 = vpop.f32.mrb[0].mxu0
    %5803 = vmatprep.mubr.f32.mxu0 0.0
    %5804 = vmatmul.mubr.f32.gmra.mrb[0].mxu0 %v5691
    %v5805 = vpop.f32.mrb[0].mxu0
    %v5806 = vadd.f32 0.0, %v5805
    %v5807 = vpop.f32.mrb[0].mxu0
    %5808 = vmatprep.mubr.f32.mxu0 0.0
    %5809 = vmatmul.mubr.f32.gmra.mrb[0].mxu0 %v5694
    %v5810 = vpop.f32.mrb[0].mxu0
    %v5811 = vadd.f32 0.0, %v5810
    %v5812 = vpop.f32.mrb[0].mxu0
    %5813 = vmatprep.mubr.f32.mxu0 0.0
    %5814 = vmatmul.mubr.f32.gmra.mrb[0].mxu0 %v5697
    %v5815 = vpop.f32.mrb[0].mxu0
    %v5816 = vadd.f32 0.0, %v5815
    %v5817 = vpop.f32.mrb[0].mxu0
    %5818 = vmatprep.mubr.f32.mxu0 0.0
    %5819 = vmatmul.mubr.f32.gmra.mrb[0].mxu0 %v5700
    %v5820 = vpop.f32.mrb[0].mxu0
    %v5821 = vadd.f32 0.0, %v5820
    %v5822 = vpop.f32.mrb[0].mxu0
    %5823 = vmatprep.mubr.f32.mxu0 0.0
    %5824 = vmatmul.mubr.f32.gmra.mrb[0].mxu0 %v5703
    %v5825 = vpop.f32.mrb[0].mxu0
    %v5826 = vadd.f32 0.0, %v5825
    %v5827 = vpop.f32.mrb[0].mxu0
    %5828 = vmatprep.mubr.f32.mxu0 0.0
    %5829 = vmatmul.mubr.f32.gmra.mrb[0].mxu0 %v5706
    %v5830 = vpop.f32.mrb[0].mxu0
    %v5831 = vadd.f32 0.0, %v5830
    %v5832 = vpop.f32.mrb[0].mxu0
    %5833 = vmatprep.mubr.f32.mxu0 0.0
    %5834 = vmatmul.mubr.f32.gmra.mrb[0].mxu0 %v5709
    %v5835 = vpop.f32.mrb[0].mxu0
    %v5836 = vadd.f32 0.0, %v5835
    %v5837 = vpop.f32.mrb[0].mxu0
    %5838 = vmatprep.mubr.f32.mxu0 0.0
    %5839 = vmatmul.mubr.f32.gmra.mrb[0].mxu0 %v5712
    %v5840 = vpop.f32.mrb[0].mxu0
    %v5841 = vadd.f32 0.0, %v5840
    %v5842 = vpop.f32.mrb[0].mxu0
    %5843 = vdwg.mxu0
    %v5844 = vadd.f32 %v5640, %v5781
    %v5845 = vadd.f32 %v5641, %v5786
    %v5846 = vadd.f32 %v5642, %v5791
    %v5847 = vadd.f32 %v5643, %v5796
    %v5848 = vadd.f32 %v5644, %v5801
    %v5849 = vadd.f32 %v5645, %v5806
    %v5850 = vadd.f32 %v5646, %v5811
    %v5851 = vadd.f32 %v5647, %v5816
    %v5852 = vadd.f32 %v5648, %v5821
    %v5853 = vadd.f32 %v5649, %v5826
    %v5854 = vadd.f32 %v5650, %v5831
    %v5855 = vadd.f32 %v5651, %v5836
    %v5856 = vadd.f32 %v5652, %v5841
    %v5857 = vlaneseq
    %v5858 = vand.u32 %v5857, 127
    %v5859 = vlaneseq
    %v5860 = vshrl.u32 %v5859, 7
    %v5861 = vmul.u32 %v5860, 49
    %vm5862 = vcmp.eq.s32.totalorder %v5858, %v5861
    %v5863 = vsel %vm5862, 1, 0
    %v5864 = vcvt.s32.f32 %v5863
    %v5865 = vld [vmem:[#allocation9 + $0x3] ss:$0 sm:$0xff]
    %vm5866 = vcmask 801792
    %v5868 = vsel %vm5866, %v5864, 0
    %vm5870 = vcmask 1041408
    %v5872 = vsel %vm5870, %v5856, 0
    %5874 = vmatprep.subr.mxu0 0.0
    %5875 = vmatpush1.msra.mxu0 %v5844
    %5876 = vmatprep.subr.mxu0 0.0
    %5877 = vmatpush1.msra.mxu0 %v5845
    %5878 = vmatprep.subr.mxu0 0.0
    %5879 = vmatpush1.msra.mxu0 %v5846
    %5880 = vmatprep.subr.mxu0 0.0
    %5881 = vmatpush1.msra.mxu0 %v5847
    %5882 = vmatprep.subr.mxu0 0.0
    %5883 = vmatpush1.msra.mxu0 %v5848
    %5884 = vmatprep.subr.mxu0 0.0
    %5885 = vmatpush1.msra.mxu0 %v5849
    %5886 = vmatprep.subr.mxu0 0.0
    %5887 = vmatpush1.msra.mxu0 %v5850
    %5888 = vmatprep.subr.mxu0 0.0
    %5889 = vmatpush1.msra.mxu0 %v5851
    %5890 = vmatprep.subr.mxu0 0.0
    %5891 = vmatpush1.msra.mxu0 %v5852
    %5892 = vmatprep.subr.mxu0 0.0
    %5893 = vmatpush1.msra.mxu0 %v5853
    %5894 = vmatprep.subr.mxu0 0.0
    %5895 = vmatpush1.msra.mxu0 %v5854
    %5896 = vmatprep.subr.mxu0 0.0
    %5897 = vmatpush1.msra.mxu0 %v5855
    %5898 = vmatprep.subr.mxu0 0.0
    %5899 = vmatpush1.msra.mxu0 %v5872
    %5900 = vmatprep.subr.mxu0 0.0
    %5901 = vmatpush1.msra.mxu0 0.0
    %5902 = vmatprep.subr.mxu0 0.0
    %5903 = vmatpush1.msra.mxu0 0.0
    %5904 = vmatprep.subr.mxu0 0.0
    %5905 = vmatpush1.msra.mxu0 0.0
    %5906 = vmatprep.subr.mxu0 0.0
    %5907 = vmatpush1.msra.mxu0 0.0
    %5908 = vmatprep.subr.mxu0 0.0
    %5909 = vmatpush1.msra.mxu0 0.0
    %5910 = vmatprep.subr.mxu0 0.0
    %5911 = vmatpush1.msra.mxu0 0.0
    %5912 = vmatprep.subr.mxu0 0.0
    %5913 = vmatpush1.msra.mxu0 0.0
    %5914 = vmatprep.subr.mxu0 0.0
    %5915 = vmatpush1.msra.mxu0 0.0
    %5916 = vmatprep.subr.mxu0 0.0
    %5917 = vmatpush1.msra.mxu0 0.0
    %5918 = vmatprep.subr.mxu0 0.0
    %5919 = vmatpush1.msra.mxu0 0.0
    %5920 = vmatprep.subr.mxu0 0.0
    %5921 = vmatpush1.msra.mxu0 0.0
    %5922 = vmatprep.subr.mxu0 0.0
    %5923 = vmatpush1.msra.mxu0 0.0
    %5924 = vmatprep.subr.mxu0 0.0
    %5925 = vmatpush1.msra.mxu0 0.0
    %5926 = vmatprep.subr.mxu0 0.0
    %5927 = vmatpush1.msra.mxu0 0.0
    %5928 = vmatprep.subr.mxu0 0.0
    %5929 = vmatpush1.msra.mxu0 0.0
    %5930 = vmatprep.subr.mxu0 0.0
    %5931 = vmatpush1.msra.mxu0 0.0
    %5932 = vmatprep.subr.mxu0 0.0
    %5933 = vmatpush1.msra.mxu0 0.0
    %5934 = vmatprep.subr.mxu0 0.0
    %5935 = vmatpush1.msra.mxu0 0.0
    %5936 = vmatprep.subr.mxu0 0.0
    %5937 = vmatpush1.msra.mxu0 0.0
    %5938 = vmatprep.mubr.f32.mxu0 0.0
    %5939 = vmatmul.mubr.f32.gmra.mrb[0].mxu0 %v5868
    %v5940 = vpop.f32.mrb[0].mxu0
    %v5941 = vadd.f32 %v5865, %v5940
    %v5942 = vpop.f32.mrb[0].mxu0
    %5943 = vdwg.mxu0
    %v5944 = vld [vmem:[%s5] sm:$0xff]
    %v5945 = vld [vmem:[%s5 + $0x8] sm:$0xff]
    %v5946 = vld [vmem:[%s5 + $0x10] sm:$0xff]
    %v5947 = vld [vmem:[%s5 + $0x18] sm:$0xff]
    %v5948 = vld [vmem:[%s5 + $0x20] sm:$0xff]
    %v5949 = vld [vmem:[%s5 + $0x28] sm:$0xff]
    %v5950 = vld [vmem:[%s5 + $0x30] sm:$0xff]
    %v5951 = vld [vmem:[%s5 + $0x38] sm:$0xff]
    %v5952 = vld [vmem:[%s5 + $0x40] sm:$0xff]
    %v5953 = vld [vmem:[%s5 + $0x48] sm:$0xff]
    %v5954 = vld [vmem:[%s5 + $0x50] sm:$0xff]
    %v5955 = vld [vmem:[%s5 + $0x58] sm:$0xff]
    %v5956 = vld [vmem:[%s5 + $0x60] sm:$0xff]
    %v5957 = vld [vmem:[%s5 + $0x68] sm:$0xff]
    %v5958 = vld [vmem:[%s5 + $0x70] sm:$0xff]
    %v5959 = vld [vmem:[%s5 + $0x78] sm:$0xff]
    %v5960 = vld [vmem:[%s5 + $0x80] sm:$0xff]
    %v5961 = vld [vmem:[%s5 + $0x88] sm:$0xff]
    %v5962 = vld [vmem:[%s5 + $0x90] sm:$0xff]
    %v5963 = vld [vmem:[%s5 + $0x98] sm:$0xff]
    %v5964 = vld [vmem:[%s5 + $0xa0] sm:$0xff]
    %v5965 = vld [vmem:[%s5 + $0xa8] sm:$0xff]
    %v5966 = vld [vmem:[%s5 + $0xb0] sm:$0xff]
    %v5967 = vld [vmem:[%s5 + $0xb8] sm:$0xff]
    %v5968 = vld [vmem:[%s5 + $0xc0] sm:$0xff]
    %v5969 = vld [vmem:[%s5 + $0xc8] sm:$0xff]
    %v5970 = vld [vmem:[%s5 + $0xd0] sm:$0xff]
    %v5971 = vld [vmem:[%s5 + $0xd8] sm:$0xff]
    %v5972 = vld [vmem:[%s5 + $0xe0] sm:$0xff]
    %v5973 = vld [vmem:[%s5 + $0xe8] sm:$0xff]
    %v5974 = vld [vmem:[%s5 + $0xf0] sm:$0xff]
    %v5975 = vld [vmem:[%s5 + $0xf8] sm:$0xff]
    %s5976 = scalar_lea.vmem [#allocation9], 4
    %v5977 = vld [vmem:[%s5976] ss:$8 sm:$0x3]
    %v5979 = vlaneseq
    %v5980 = vshrl.u32 %v5979, 7
    %v5981 = vsub.s32 0, %v5980
    %v5982 = vrot.slane %v5977, %v5981
    %v5983 = vlaneseq
    %v5984 = vshrl.u32 %v5983, 7
    %v5985 = vsub.s32 1, %v5984
    %v5986 = vrot.slane %v5977, %v5985
    %5989 = vmatprep.subr.mxu0 %v5945
    %5990 = vmatpush1.msra.mxu0 %v5944
    %5991 = vmatprep.subr.mxu0 %v5947
    %5992 = vmatpush1.msra.mxu0 %v5946
    %5993 = vmatprep.subr.mxu0 %v5949
    %5994 = vmatpush1.msra.mxu0 %v5948
    %5995 = vmatprep.subr.mxu0 %v5951
    %5996 = vmatpush1.msra.mxu0 %v5950
    %5997 = vmatprep.subr.mxu0 %v5953
    %5998 = vmatpush1.msra.mxu0 %v5952
    %5999 = vmatprep.subr.mxu0 %v5955
    %6000 = vmatpush1.msra.mxu0 %v5954
    %6001 = vmatprep.subr.mxu0 %v5957
    %6002 = vmatpush1.msra.mxu0 %v5956
    %6003 = vmatprep.subr.mxu0 %v5959
    %6004 = vmatpush1.msra.mxu0 %v5958
    %6005 = vmatprep.subr.mxu0 %v5961
    %6006 = vmatpush1.msra.mxu0 %v5960
    %6007 = vmatprep.subr.mxu0 %v5963
    %6008 = vmatpush1.msra.mxu0 %v5962
    %6009 = vmatprep.subr.mxu0 %v5965
    %6010 = vmatpush1.msra.mxu0 %v5964
    %6011 = vmatprep.subr.mxu0 %v5967
    %6012 = vmatpush1.msra.mxu0 %v5966
    %6013 = vmatprep.subr.mxu0 %v5969
    %6014 = vmatpush1.msra.mxu0 %v5968
    %6015 = vmatprep.subr.mxu0 %v5971
    %6016 = vmatpush1.msra.mxu0 %v5970
    %6017 = vmatprep.subr.mxu0 %v5973
    %6018 = vmatpush1.msra.mxu0 %v5972
    %6019 = vmatprep.subr.mxu0 %v5975
    %6020 = vmatpush1.msra.mxu0 %v5974
    %6021 = vmatprep.subr.mxu0 0.0
    %6022 = vmatpush1.msra.mxu0 0.0
    %6023 = vmatprep.subr.mxu0 0.0
    %6024 = vmatpush1.msra.mxu0 0.0
    %6025 = vmatprep.subr.mxu0 0.0
    %6026 = vmatpush1.msra.mxu0 0.0
    %6027 = vmatprep.subr.mxu0 0.0
    %6028 = vmatpush1.msra.mxu0 0.0
    %6029 = vmatprep.subr.mxu0 0.0
    %6030 = vmatpush1.msra.mxu0 0.0
    %6031 = vmatprep.subr.mxu0 0.0
    %6032 = vmatpush1.msra.mxu0 0.0
    %6033 = vmatprep.subr.mxu0 0.0
    %6034 = vmatpush1.msra.mxu0 0.0
    %6035 = vmatprep.subr.mxu0 0.0
    %6036 = vmatpush1.msra.mxu0 0.0
    %6037 = vmatprep.subr.mxu0 0.0
    %6038 = vmatpush1.msra.mxu0 0.0
    %6039 = vmatprep.subr.mxu0 0.0
    %6040 = vmatpush1.msra.mxu0 0.0
    %6041 = vmatprep.subr.mxu0 0.0
    %6042 = vmatpush1.msra.mxu0 0.0
    %6043 = vmatprep.subr.mxu0 0.0
    %6044 = vmatpush1.msra.mxu0 0.0
    %6045 = vmatprep.subr.mxu0 0.0
    %6046 = vmatpush1.msra.mxu0 0.0
    %6047 = vmatprep.subr.mxu0 0.0
    %6048 = vmatpush1.msra.mxu0 0.0
    %6049 = vmatprep.subr.mxu0 0.0
    %6050 = vmatpush1.msra.mxu0 0.0
    %6051 = vmatprep.subr.mxu0 0.0
    %6052 = vmatpush1.msra.mxu0 0.0
    %6053 = vmatprep.mubr.f32.mxu0 0.0
    %6054 = vmatmul.mubr.f32.gmra.mrb[0].mxu0 %v5941
    %v6055 = vpop.f32.mrb[0].mxu0
    %v6056 = vadd.f32 %v5982, %v6055
    %v6057 = vpop.f32.mrb[0].mxu0
    %v6058 = vadd.f32 %v5986, %v6057
    %6059 = vdwg.mxu0
    %v6060 = vmax.f32 %v6056, 0.0
    %v6061 = vmax.f32 %v6058, 0.0
    %v6062 = vld [vmem:[#allocation7] sm:$0xff]
    %v6063 = vld [vmem:[#allocation7 + $0x8] sm:$0xff]
    %v6064 = vld [vmem:[#allocation7 + $0x10] sm:$0xff]
    %v6065 = vld [vmem:[#allocation7 + $0x18] sm:$0xff]
    %v6066 = vld [vmem:[#allocation7 + $0x20] sm:$0xff]
    %v6067 = vld [vmem:[#allocation7 + $0x28] sm:$0xff]
    %v6068 = vld [vmem:[#allocation7 + $0x30] sm:$0xff]
    %v6069 = vld [vmem:[#allocation7 + $0x38] sm:$0xff]
    %v6070 = vld [vmem:[#allocation7 + $0x40] sm:$0xff]
    %v6071 = vld [vmem:[#allocation7 + $0x48] sm:$0xff]
    %v6072 = vld [vmem:[#allocation7 + $0x50] sm:$0xff]
    %v6073 = vld [vmem:[#allocation7 + $0x58] sm:$0xff]
    %v6074 = vld [vmem:[#allocation7 + $0x60] sm:$0xff]
    %v6075 = vld [vmem:[#allocation7 + $0x68] sm:$0xff]
    %v6076 = vld [vmem:[#allocation7 + $0x70] sm:$0xff]
    %v6077 = vld [vmem:[#allocation7 + $0x78] sm:$0xff]
    %v6078 = vld [vmem:[#allocation7 + $0x80] sm:$0xff]
    %v6079 = vld [vmem:[#allocation7 + $0x88] sm:$0xff]
    %v6080 = vld [vmem:[#allocation7 + $0x90] sm:$0xff]
    %v6081 = vld [vmem:[#allocation7 + $0x98] sm:$0xff]
    %v6082 = vld [vmem:[#allocation7 + $0xa0] sm:$0xff]
    %v6083 = vld [vmem:[#allocation7 + $0xa8] sm:$0xff]
    %v6084 = vld [vmem:[#allocation7 + $0xb0] sm:$0xff]
    %v6085 = vld [vmem:[#allocation7 + $0xb8] sm:$0xff]
    %v6086 = vld [vmem:[#allocation7 + $0xc0] sm:$0xff]
    %v6087 = vld [vmem:[#allocation7 + $0xc8] sm:$0xff]
    %v6088 = vld [vmem:[#allocation7 + $0xd0] sm:$0xff]
    %v6089 = vld [vmem:[#allocation7 + $0xd8] sm:$0xff]
    %v6090 = vld [vmem:[#allocation7 + $0xe0] sm:$0xff]
    %v6091 = vld [vmem:[#allocation7 + $0xe8] sm:$0xff]
    %v6092 = vld [vmem:[#allocation7 + $0xf0] sm:$0xff]
    %v6093 = vld [vmem:[#allocation7 + $0xf8] sm:$0xff]
    %v6094 = vld [vmem:[#allocation9 + $0x5] ss:$0 sm:$0xff]
    %6095 = vmatprep.subr.mxu0 0.0
    %6096 = vmatpush1.msra.mxu0 %v6062
    %6097 = vmatprep.subr.mxu0 0.0
    %6098 = vmatpush1.msra.mxu0 %v6063
    %6099 = vmatprep.subr.mxu0 0.0
    %6100 = vmatpush1.msra.mxu0 %v6064
    %6101 = vmatprep.subr.mxu0 0.0
    %6102 = vmatpush1.msra.mxu0 %v6065
    %6103 = vmatprep.subr.mxu0 0.0
    %6104 = vmatpush1.msra.mxu0 %v6066
    %6105 = vmatprep.subr.mxu0 0.0
    %6106 = vmatpush1.msra.mxu0 %v6067
    %6107 = vmatprep.subr.mxu0 0.0
    %6108 = vmatpush1.msra.mxu0 %v6068
    %6109 = vmatprep.subr.mxu0 0.0
    %6110 = vmatpush1.msra.mxu0 %v6069
    %6111 = vmatprep.subr.mxu0 0.0
    %6112 = vmatpush1.msra.mxu0 %v6070
    %6113 = vmatprep.subr.mxu0 0.0
    %6114 = vmatpush1.msra.mxu0 %v6071
    %6115 = vmatprep.subr.mxu0 0.0
    %6116 = vmatpush1.msra.mxu0 %v6072
    %6117 = vmatprep.subr.mxu0 0.0
    %6118 = vmatpush1.msra.mxu0 %v6073
    %6119 = vmatprep.subr.mxu0 0.0
    %6120 = vmatpush1.msra.mxu0 %v6074
    %6121 = vmatprep.subr.mxu0 0.0
    %6122 = vmatpush1.msra.mxu0 %v6075
    %6123 = vmatprep.subr.mxu0 0.0
    %6124 = vmatpush1.msra.mxu0 %v6076
    %6125 = vmatprep.subr.mxu0 0.0
    %6126 = vmatpush1.msra.mxu0 %v6077
    %6127 = vmatprep.subr.mxu0 0.0
    %6128 = vmatpush1.msra.mxu0 %v6078
    %6129 = vmatprep.subr.mxu0 0.0
    %6130 = vmatpush1.msra.mxu0 %v6079
    %6131 = vmatprep.subr.mxu0 0.0
    %6132 = vmatpush1.msra.mxu0 %v6080
    %6133 = vmatprep.subr.mxu0 0.0
    %6134 = vmatpush1.msra.mxu0 %v6081
    %6135 = vmatprep.subr.mxu0 0.0
    %6136 = vmatpush1.msra.mxu0 %v6082
    %6137 = vmatprep.subr.mxu0 0.0
    %6138 = vmatpush1.msra.mxu0 %v6083
    %6139 = vmatprep.subr.mxu0 0.0
    %6140 = vmatpush1.msra.mxu0 %v6084
    %6141 = vmatprep.subr.mxu0 0.0
    %6142 = vmatpush1.msra.mxu0 %v6085
    %6143 = vmatprep.subr.mxu0 0.0
    %6144 = vmatpush1.msra.mxu0 %v6086
    %6145 = vmatprep.subr.mxu0 0.0
    %6146 = vmatpush1.msra.mxu0 %v6087
    %6147 = vmatprep.subr.mxu0 0.0
    %6148 = vmatpush1.msra.mxu0 %v6088
    %6149 = vmatprep.subr.mxu0 0.0
    %6150 = vmatpush1.msra.mxu0 %v6089
    %6151 = vmatprep.subr.mxu0 0.0
    %6152 = vmatpush1.msra.mxu0 %v6090
    %6153 = vmatprep.subr.mxu0 0.0
    %6154 = vmatpush1.msra.mxu0 %v6091
    %6155 = vmatprep.subr.mxu0 0.0
    %6156 = vmatpush1.msra.mxu0 %v6092
    %6157 = vmatprep.subr.mxu0 0.0
    %6158 = vmatpush1.msra.mxu0 %v6093
    %6159 = vmatprep.mubr.f32.mxu0 %v6061
    %6160 = vmatmul.mubr.f32.gmra.mrb[0].mxu0 %v6060
    %v6161 = vpop.f32.mrb[0].mxu0
    %v6162 = vadd.f32 %v6094, %v6161
    %v6163 = vpop.f32.mrb[0].mxu0
    %6164 = vdwg.mxu0
    %vm6165 = vcmask 50176
    %v6166 = vsel %vm6165, %v6162, -inf
    %6167 = vmax.xlane.f32.xlu0 %v6166
    %v6168 = vpop.xlane.xlu0 %6167
    %v6169 = vsub.f32 %v6162, %v6168
    %v6170 = vmul.f32 %v6169, 1.442695
    %v6171 = vpow.pop %v6170
    %v6172 = vsel %vm6165, %v6171, 0.0
    %6173 = vadd.xlane.f32.xlu0 %v6172
    %v6174 = vpop.xlane.xlu0 %6173
    %v6175 = vlog2.pop %v6174
    %v6176 = vmul.f32 %v6175, 0.6931472
    %v6177 = vadd.f32 %v6168, %v6176
    %vm6178 = vcmp.lt.s32.totalorder %v5858, 7
    %v6179 = vsub.f32 %v6162, %v6177
    %v6180 = vsel %vm6178, %v6179, %v6162
    %6181 = vst [vmem:[%s8] sm:$0x3] %v6180
    // Predicated region
    $region46: #{rnd_models_forward.1} parent=1 // pred_check
      _
    $region47: #{rnd_models_forward.1} parent=1 // pred_check_branch
      %6183 = sbr.rel (0) target = $region49
    $region48: #{rnd_models_forward.1} parent=1 // pred_region
      _
    $region49: #{rnd_models_forward.1} parent=1 // pred_fallthru
      _
    // Predicated region
    $region50: #{rnd_models_forward.1} parent=1 // pred_check
      _
    $region51: #{rnd_models_forward.1} parent=1 // pred_check_branch
      %6185 = sbr.rel (0) target = $region53
    $region52: #{rnd_models_forward.1} parent=1 // pred_region
      _
    $region53: #{rnd_models_forward.1} parent=1 // pred_fallthru
      _
    %6186 = vsyncpa [#allocation6], 1
    %6187 = vsyncpa [#allocation8], 1

</llo_original>
